<compile_context>
chip_gen: v7x
topology: tpu7x:2x2x1
jax: 0.10.0
libtpu: 0.0.40
codegen_flags: <defaults>
</compile_context>

<pallas_src>
import functools

import jax
import jax.numpy as jnp
from jax.experimental import pallas as pl
from jax.experimental.pallas import tpu as pltpu


# ----------------------------------------------------------------------------
# Fused Pallas kernel: conv (all 6 faces) + bias + SE, one grid step per batch
# ----------------------------------------------------------------------------
def _cubesphere_fused_pallas(x, w_all, b_all, w1k, w2k, *, kh, kw, padding):
    """Fused cube-sphere conv + SE.

    x     : (B, Cin, 6, H, W)     f32  (native PyTorch layout, untouched in HBM)
    w_all : (3, Cout, KH*KW*Cin)  f32  [equator, south pole, effective north pole]
    b_all : (3, Cout, 1)          f32
    w1k   : (Cout, hidden)        f32  (= fc1.weight.T)
    w2k   : (Cout, hidden)        f32  (= fc2.weight)
    returns (B, Cout, 6*Ho*Wo)    f32  (lane-dense; reshaped by the caller)
    """
    B, Cin, F, H, W = x.shape
    assert F == 6
    _, Cout, KKC = w_all.shape
    KH, KW, p = kh, kw, padding
    assert KKC == KH * KW * Cin
    Ho = H + 2 * p - KH + 1
    Wo = W + 2 * p - KW + 1
    n_pix = Ho * Wo
    hidden = w1k.shape[1]
    inv_pool = 1.0 / float(6 * n_pix)

    def kernel(x_ref, w_ref, b_ref, w1_ref, w2_ref, o_ref):
        # ---- im2col for one face: (KH*KW*Cin, Ho*Wo) patch matrix ----------
        def im2col(face):
            xcf = x_ref[0, :, face, :, :]                       # (Cin, H, W)
            if p > 0:
                zr = jnp.zeros((Cin, p, W), jnp.float32)
                xcf = jnp.concatenate([zr, xcf, zr], axis=1)    # (Cin, H+2p, W)
                zc = jnp.zeros((Cin, H + 2 * p, p), jnp.float32)
                xcf = jnp.concatenate([zc, xcf, zc], axis=2)    # (Cin, Hp, Wp)
            slabs = [xcf[:, i:i + Ho, j:j + Wo]                 # (Cin, Ho, Wo)
                     for i in range(KH) for j in range(KW)]
            return jnp.concatenate(slabs, axis=0).reshape(KKC, n_pix)

        pats = [im2col(f) for f in range(6)]
        pat_eq = jnp.concatenate(pats[0:4], axis=1)             # (KKC, 4*Ho*Wo)

        # ---- conv as three dots (equator faces share one big dot) ----------
        y_eq = jnp.dot(w_ref[0], pat_eq,
                       preferred_element_type=jnp.float32) + b_ref[0]
        y_s = jnp.dot(w_ref[1], pats[4],
                      preferred_element_type=jnp.float32) + b_ref[1]
        y_n = jnp.dot(w_ref[2], pats[5],
                      preferred_element_type=jnp.float32) + b_ref[2]
        y = jnp.concatenate([y_eq, y_s, y_n], axis=1)           # (Cout, 6*Ho*Wo)

        # ---- SE: global average pool + 2-layer MLP + rescale ---------------
        pooled = jnp.sum(y, axis=1, keepdims=True) * inv_pool   # (Cout, 1)
        # h_j = relu(sum_c fc1.weight[j, c] * pooled[c])  -> (1, hidden)
        h = jnp.maximum(
            jnp.sum(w1_ref[...] * pooled, axis=0, keepdims=True), 0.0)
        # s_c = sigmoid(sum_j fc2.weight[c, j] * h_j)     -> (Cout, 1)
        s = jax.nn.sigmoid(
            jnp.sum(w2_ref[...] * h, axis=1, keepdims=True))

        o_ref[0] = y * s                                        # lane-dense store

    return pl.pallas_call(
        kernel,
        out_shape=jax.ShapeDtypeStruct((B, Cout, 6 * n_pix), jnp.float32),
        grid=(B,),
        in_specs=[
            pl.BlockSpec((1, Cin, 6, H, W), lambda b: (b, 0, 0, 0, 0)),
            pl.BlockSpec((3, Cout, KKC), lambda b: (0, 0, 0)),
            pl.BlockSpec((3, Cout, 1), lambda b: (0, 0, 0)),
            pl.BlockSpec((Cout, hidden), lambda b: (0, 0)),
            pl.BlockSpec((Cout, hidden), lambda b: (0, 0)),
        ],
        out_specs=pl.BlockSpec((1, Cout, 6 * n_pix), lambda b: (b, 0, 0)),
        compiler_params=pltpu.CompilerParams(
            dimension_semantics=("parallel",)),
    )(x, w_all, b_all, w1k, w2k)


# ----------------------------------------------------------------------------
# CubeSphereConv2D forward (tiny weight prep in JAX, everything else in Pallas)
# ----------------------------------------------------------------------------
def cubesphere_conv2d_forward(x, params, *, padding, flip_north_pole=True,
                              independent_north_pole=False):
    """x: (B, Cin, 6, H, W)  ->  (B, Cout, 6, Ho, Wo)  (PyTorch layout)."""
    w_eq, b_eq, w_pole, b_pole, w_np, b_np, w1, w2 = params
    B, Cin, F, H, W = x.shape
    assert F == 6
    KH, KW, _, Cout = w_eq.shape

    if independent_north_pole:
        assert w_np is not None and b_np is not None, \
            "independent_north_pole=True requires north-pole conv parameters"
        w_n, b_n = w_np, b_np
    else:
        w_n, b_n = w_pole, b_pole
    if flip_north_pole:
        # flip_H(conv2d(flip_H(x), w)) == conv2d(x, flip_KH(w)) for symmetric
        # zero padding: fold both data flips into the (tiny) weight.
        w_n = jnp.flip(w_n, axis=0)

    def to_mat(w):  # (KH, KW, Cin, Cout) -> (Cout, KH*KW*Cin)
        return w.reshape(KH * KW * Cin, Cout).T

    w_all = jnp.stack([to_mat(w_eq), to_mat(w_pole), to_mat(w_n)], axis=0)
    b_all = jnp.stack([b_eq, b_pole, b_n], axis=0).reshape(3, Cout, 1)
    w1k = w1          # (Cout, hidden) == fc1.weight.T
    w2k = w2.T        # (Cout, hidden) == fc2.weight

    Ho = H + 2 * padding - KH + 1
    Wo = W + 2 * padding - KW + 1
    out = _cubesphere_fused_pallas(x, w_all, b_all, w1k, w2k,
                                   kh=KH, kw=KW, padding=padding)
    # Metadata-only reshape (no HBM transpose) back to the PyTorch layout.
    return out.reshape(B, Cout, 6, Ho, Wo)


# ----------------------------------------------------------------------------
# Pure-JAX reference (mirrors the PyTorch module) for correctness checking
# ----------------------------------------------------------------------------
def forward_ref(x, params, *, padding, flip_north_pole=True,
                independent_north_pole=False):
    w_eq, b_eq, w_pole, b_pole, w_np, b_np, w1, w2 = params

    def conv(img, w, b):
        out = jax.lax.conv_general_dilated(
            img, w, window_strides=(1, 1),
            padding=[(padding, padding)] * 2,
            dimension_numbers=("NCHW", "HWIO", "NCHW"),
            precision=jax.lax.Precision.HIGHEST)
        return out + b[None, :, None, None]

    outs_e = [conv(x[:, :, f], w_eq, b_eq) for f in range(4)]
    out_s = conv(x[:, :, 4], w_pole, b_pole)
    xn = x[:, :, 5]
    if flip_north_pole:
        xn = jnp.flip(xn, axis=-2)
    if independent_north_pole:
        out_n = conv(xn, w_np, b_np)
    else:
        out_n = conv(xn, w_pole, b_pole)
    if flip_north_pole:
        out_n = jnp.flip(out_n, axis=-2)
    y = jnp.stack(outs_e + [out_s, out_n], axis=2)          # (B, Cout, 6, Ho, Wo)
    pooled = jnp.mean(y, axis=(2, 3, 4))                    # (B, Cout)
    h = jnp.maximum(pooled @ w1, 0.0)
    s = jax.nn.sigmoid(h @ w2)
    return y * s[:, :, None, None, None]


# ----------------------------------------------------------------------------
if __name__ == "__main__":
    B, Cin, Cout, H, W, K, pad = 2, 4, 16, 16, 16, 3, 1

    key = jax.random.PRNGKey(0)
    k = jax.random.split(key, 6)

    # conv weights: xavier_uniform_, biases: 0 (matches module __init__)
    fan_in, fan_out = Cin * K * K, Cout * K * K
    bound = (6.0 / (fan_in + fan_out)) ** 0.5
    w_eq = jax.random.uniform(k[0], (K, K, Cin, Cout), jnp.float32, -bound, bound)
    w_pole = jax.random.uniform(k[1], (K, K, Cin, Cout), jnp.float32, -bound, bound)
    b_eq = jnp.zeros((Cout,), jnp.float32)
    b_pole = jnp.zeros((Cout,), jnp.float32)

    # SE: fc1 = Linear(Cout, Cout//16+1, bias=False), fc2 = Linear(hidden, Cout, bias=False)
    hidden = Cout // 16 + 1
    lb1 = 1.0 / (Cout ** 0.5)
    lb2 = 1.0 / (hidden ** 0.5)
    w1 = jax.random.uniform(k[2], (Cout, hidden), jnp.float32, -lb1, lb1)  # fc1.weight.T
    w2 = jax.random.uniform(k[3], (hidden, Cout), jnp.float32, -lb2, lb2)  # fc2.weight.T

    # independent_north_pole=False (module default) -> no separate north conv.
    params = (w_eq, b_eq, w_pole, b_pole, None, None, w1, w2)

    x = jax.random.normal(k[4], (B, Cin, 6, H, W), jnp.float32)

    fwd = jax.jit(functools.partial(cubesphere_conv2d_forward, padding=pad))
    out = jax.block_until_ready(fwd(x, params))

    ref = forward_ref(x, params, padding=pad)
    assert out.shape == (B, Cout, 6, H, W), out.shape
    max_err = float(jnp.max(jnp.abs(out - ref)))
    # MXU f32 matmul decomposition vs. Precision.HIGHEST reference -> small tol.
    assert max_err < 1e-2, f"max abs err {max_err}"

    print("KERNEL_OK")
</pallas_src>

<mosaic_0001>
module attributes {stable_mosaic.version = 11 : i64} {
  func.func @kernel(%arg0: i32, %arg1: memref<1x4x6x16x16xf32, #tpu.memory_space<vmem>>, %arg2: memref<3x16x36xf32, #tpu.memory_space<vmem>>, %arg3: memref<3x16x1xf32, #tpu.memory_space<vmem>>, %arg4: memref<16x2xf32, #tpu.memory_space<vmem>>, %arg5: memref<16x2xf32, #tpu.memory_space<vmem>>, %arg6: memref<1x16x1536xf32, #tpu.memory_space<vmem>>) attributes {dimension_semantics = [#tpu.dimension_semantics<parallel>], iteration_bounds = array<i64: 2>, scalar_prefetch = 0 : i64, scratch_operands = 0 : i64, tpu.core_type = #tpu.core_type<tc>, window_params = [{transform_indices = @transform_0, window_bounds = array<i64: 1, 4, 6, 16, 16>}, {pipeline_mode = #tpu.pipeline_mode<synchronous>, transform_indices = @transform_1, window_bounds = array<i64: 3, 16, 36>}, {pipeline_mode = #tpu.pipeline_mode<synchronous>, transform_indices = @transform_2, window_bounds = array<i64: 3, 16, 1>}, {pipeline_mode = #tpu.pipeline_mode<synchronous>, transform_indices = @transform_3, window_bounds = array<i64: 16, 2>}, {pipeline_mode = #tpu.pipeline_mode<synchronous>, transform_indices = @transform_4, window_bounds = array<i64: 16, 2>}, {transform_indices = @transform_5, window_bounds = array<i64: 1, 16, 1536>}]} {
    %c0 = arith.constant 0 : index
    %c0_0 = arith.constant 0 : index
    %c0_1 = arith.constant 0 : index
    %c0_2 = arith.constant 0 : index
    %c0_3 = arith.constant 0 : index
    %0 = vector.load %arg1[%c0, %c0_0, %c0_1, %c0_2, %c0_3] : memref<1x4x6x16x16xf32, #tpu.memory_space<vmem>>, vector<1x4x1x16x16xf32>
    %1 = vector.shape_cast %0 : vector<1x4x1x16x16xf32> to vector<4x16x16xf32>
    %cst = arith.constant 0.000000e+00 : f32
    %2 = vector.broadcast %cst : f32 to vector<4x1x16xf32>
    %3 = tpu.concatenate %2, %1, %2 in 1 : vector<4x1x16xf32>, vector<4x16x16xf32>, vector<4x1x16xf32> -> vector<4x18x16xf32>
    %cst_4 = arith.constant 0.000000e+00 : f32
    %4 = vector.broadcast %cst_4 : f32 to vector<4x18x1xf32>
    %5 = tpu.concatenate %4, %3, %4 in 2 : vector<4x18x1xf32>, vector<4x18x16xf32>, vector<4x18x1xf32> -> vector<4x18x18xf32>
    %6 = vector.extract_strided_slice %5 {offsets = [0, 0, 0], sizes = [4, 16, 16], strides = [1, 1, 1]} : vector<4x18x18xf32> to vector<4x16x16xf32>
    %7 = vector.extract_strided_slice %5 {offsets = [0, 0, 1], sizes = [4, 16, 16], strides = [1, 1, 1]} : vector<4x18x18xf32> to vector<4x16x16xf32>
    %8 = vector.extract_strided_slice %5 {offsets = [0, 0, 2], sizes = [4, 16, 16], strides = [1, 1, 1]} : vector<4x18x18xf32> to vector<4x16x16xf32>
    %9 = vector.extract_strided_slice %5 {offsets = [0, 1, 0], sizes = [4, 16, 16], strides = [1, 1, 1]} : vector<4x18x18xf32> to vector<4x16x16xf32>
    %10 = vector.extract_strided_slice %5 {offsets = [0, 1, 1], sizes = [4, 16, 16], strides = [1, 1, 1]} : vector<4x18x18xf32> to vector<4x16x16xf32>
    %11 = vector.extract_strided_slice %5 {offsets = [0, 1, 2], sizes = [4, 16, 16], strides = [1, 1, 1]} : vector<4x18x18xf32> to vector<4x16x16xf32>
    %12 = vector.extract_strided_slice %5 {offsets = [0, 2, 0], sizes = [4, 16, 16], strides = [1, 1, 1]} : vector<4x18x18xf32> to vector<4x16x16xf32>
    %13 = vector.extract_strided_slice %5 {offsets = [0, 2, 1], sizes = [4, 16, 16], strides = [1, 1, 1]} : vector<4x18x18xf32> to vector<4x16x16xf32>
    %14 = vector.extract_strided_slice %5 {offsets = [0, 2, 2], sizes = [4, 16, 16], strides = [1, 1, 1]} : vector<4x18x18xf32> to vector<4x16x16xf32>
    %15 = tpu.concatenate %6, %7, %8, %9, %10, %11, %12, %13, %14 in 0 : vector<4x16x16xf32>, vector<4x16x16xf32>, vector<4x16x16xf32>, vector<4x16x16xf32>, vector<4x16x16xf32>, vector<4x16x16xf32>, vector<4x16x16xf32>, vector<4x16x16xf32>, vector<4x16x16xf32> -> vector<36x16x16xf32>
    %16 = vector.shape_cast %15 : vector<36x16x16xf32> to vector<36x256xf32>
    %c0_5 = arith.constant 0 : index
    %c0_6 = arith.constant 0 : index
    %c1 = arith.constant 1 : index
    %c0_7 = arith.constant 0 : index
    %c0_8 = arith.constant 0 : index
    %17 = vector.load %arg1[%c0_5, %c0_6, %c1, %c0_7, %c0_8] : memref<1x4x6x16x16xf32, #tpu.memory_space<vmem>>, vector<1x4x1x16x16xf32>
    %18 = vector.shape_cast %17 : vector<1x4x1x16x16xf32> to vector<4x16x16xf32>
    %cst_9 = arith.constant 0.000000e+00 : f32
    %19 = vector.broadcast %cst_9 : f32 to vector<4x1x16xf32>
    %20 = tpu.concatenate %19, %18, %19 in 1 : vector<4x1x16xf32>, vector<4x16x16xf32>, vector<4x1x16xf32> -> vector<4x18x16xf32>
    %cst_10 = arith.constant 0.000000e+00 : f32
    %21 = vector.broadcast %cst_10 : f32 to vector<4x18x1xf32>
    %22 = tpu.concatenate %21, %20, %21 in 2 : vector<4x18x1xf32>, vector<4x18x16xf32>, vector<4x18x1xf32> -> vector<4x18x18xf32>
    %23 = vector.extract_strided_slice %22 {offsets = [0, 0, 0], sizes = [4, 16, 16], strides = [1, 1, 1]} : vector<4x18x18xf32> to vector<4x16x16xf32>
    %24 = vector.extract_strided_slice %22 {offsets = [0, 0, 1], sizes = [4, 16, 16], strides = [1, 1, 1]} : vector<4x18x18xf32> to vector<4x16x16xf32>
    %25 = vector.extract_strided_slice %22 {offsets = [0, 0, 2], sizes = [4, 16, 16], strides = [1, 1, 1]} : vector<4x18x18xf32> to vector<4x16x16xf32>
    %26 = vector.extract_strided_slice %22 {offsets = [0, 1, 0], sizes = [4, 16, 16], strides = [1, 1, 1]} : vector<4x18x18xf32> to vector<4x16x16xf32>
    %27 = vector.extract_strided_slice %22 {offsets = [0, 1, 1], sizes = [4, 16, 16], strides = [1, 1, 1]} : vector<4x18x18xf32> to vector<4x16x16xf32>
    %28 = vector.extract_strided_slice %22 {offsets = [0, 1, 2], sizes = [4, 16, 16], strides = [1, 1, 1]} : vector<4x18x18xf32> to vector<4x16x16xf32>
    %29 = vector.extract_strided_slice %22 {offsets = [0, 2, 0], sizes = [4, 16, 16], strides = [1, 1, 1]} : vector<4x18x18xf32> to vector<4x16x16xf32>
    %30 = vector.extract_strided_slice %22 {offsets = [0, 2, 1], sizes = [4, 16, 16], strides = [1, 1, 1]} : vector<4x18x18xf32> to vector<4x16x16xf32>
    %31 = vector.extract_strided_slice %22 {offsets = [0, 2, 2], sizes = [4, 16, 16], strides = [1, 1, 1]} : vector<4x18x18xf32> to vector<4x16x16xf32>
    %32 = tpu.concatenate %23, %24, %25, %26, %27, %28, %29, %30, %31 in 0 : vector<4x16x16xf32>, vector<4x16x16xf32>, vector<4x16x16xf32>, vector<4x16x16xf32>, vector<4x16x16xf32>, vector<4x16x16xf32>, vector<4x16x16xf32>, vector<4x16x16xf32>, vector<4x16x16xf32> -> vector<36x16x16xf32>
    %33 = vector.shape_cast %32 : vector<36x16x16xf32> to vector<36x256xf32>
    %c0_11 = arith.constant 0 : index
    %c0_12 = arith.constant 0 : index
    %c2 = arith.constant 2 : index
    %c0_13 = arith.constant 0 : index
    %c0_14 = arith.constant 0 : index
    %34 = vector.load %arg1[%c0_11, %c0_12, %c2, %c0_13, %c0_14] : memref<1x4x6x16x16xf32, #tpu.memory_space<vmem>>, vector<1x4x1x16x16xf32>
    %35 = vector.shape_cast %34 : vector<1x4x1x16x16xf32> to vector<4x16x16xf32>
    %cst_15 = arith.constant 0.000000e+00 : f32
    %36 = vector.broadcast %cst_15 : f32 to vector<4x1x16xf32>
    %37 = tpu.concatenate %36, %35, %36 in 1 : vector<4x1x16xf32>, vector<4x16x16xf32>, vector<4x1x16xf32> -> vector<4x18x16xf32>
    %cst_16 = arith.constant 0.000000e+00 : f32
    %38 = vector.broadcast %cst_16 : f32 to vector<4x18x1xf32>
    %39 = tpu.concatenate %38, %37, %38 in 2 : vector<4x18x1xf32>, vector<4x18x16xf32>, vector<4x18x1xf32> -> vector<4x18x18xf32>
    %40 = vector.extract_strided_slice %39 {offsets = [0, 0, 0], sizes = [4, 16, 16], strides = [1, 1, 1]} : vector<4x18x18xf32> to vector<4x16x16xf32>
    %41 = vector.extract_strided_slice %39 {offsets = [0, 0, 1], sizes = [4, 16, 16], strides = [1, 1, 1]} : vector<4x18x18xf32> to vector<4x16x16xf32>
    %42 = vector.extract_strided_slice %39 {offsets = [0, 0, 2], sizes = [4, 16, 16], strides = [1, 1, 1]} : vector<4x18x18xf32> to vector<4x16x16xf32>
    %43 = vector.extract_strided_slice %39 {offsets = [0, 1, 0], sizes = [4, 16, 16], strides = [1, 1, 1]} : vector<4x18x18xf32> to vector<4x16x16xf32>
    %44 = vector.extract_strided_slice %39 {offsets = [0, 1, 1], sizes = [4, 16, 16], strides = [1, 1, 1]} : vector<4x18x18xf32> to vector<4x16x16xf32>
    %45 = vector.extract_strided_slice %39 {offsets = [0, 1, 2], sizes = [4, 16, 16], strides = [1, 1, 1]} : vector<4x18x18xf32> to vector<4x16x16xf32>
    %46 = vector.extract_strided_slice %39 {offsets = [0, 2, 0], sizes = [4, 16, 16], strides = [1, 1, 1]} : vector<4x18x18xf32> to vector<4x16x16xf32>
    %47 = vector.extract_strided_slice %39 {offsets = [0, 2, 1], sizes = [4, 16, 16], strides = [1, 1, 1]} : vector<4x18x18xf32> to vector<4x16x16xf32>
    %48 = vector.extract_strided_slice %39 {offsets = [0, 2, 2], sizes = [4, 16, 16], strides = [1, 1, 1]} : vector<4x18x18xf32> to vector<4x16x16xf32>
    %49 = tpu.concatenate %40, %41, %42, %43, %44, %45, %46, %47, %48 in 0 : vector<4x16x16xf32>, vector<4x16x16xf32>, vector<4x16x16xf32>, vector<4x16x16xf32>, vector<4x16x16xf32>, vector<4x16x16xf32>, vector<4x16x16xf32>, vector<4x16x16xf32>, vector<4x16x16xf32> -> vector<36x16x16xf32>
    %50 = vector.shape_cast %49 : vector<36x16x16xf32> to vector<36x256xf32>
    %c0_17 = arith.constant 0 : index
    %c0_18 = arith.constant 0 : index
    %c3 = arith.constant 3 : index
    %c0_19 = arith.constant 0 : index
    %c0_20 = arith.constant 0 : index
    %51 = vector.load %arg1[%c0_17, %c0_18, %c3, %c0_19, %c0_20] : memref<1x4x6x16x16xf32, #tpu.memory_space<vmem>>, vector<1x4x1x16x16xf32>
    %52 = vector.shape_cast %51 : vector<1x4x1x16x16xf32> to vector<4x16x16xf32>
    %cst_21 = arith.constant 0.000000e+00 : f32
    %53 = vector.broadcast %cst_21 : f32 to vector<4x1x16xf32>
    %54 = tpu.concatenate %53, %52, %53 in 1 : vector<4x1x16xf32>, vector<4x16x16xf32>, vector<4x1x16xf32> -> vector<4x18x16xf32>
    %cst_22 = arith.constant 0.000000e+00 : f32
    %55 = vector.broadcast %cst_22 : f32 to vector<4x18x1xf32>
    %56 = tpu.concatenate %55, %54, %55 in 2 : vector<4x18x1xf32>, vector<4x18x16xf32>, vector<4x18x1xf32> -> vector<4x18x18xf32>
    %57 = vector.extract_strided_slice %56 {offsets = [0, 0, 0], sizes = [4, 16, 16], strides = [1, 1, 1]} : vector<4x18x18xf32> to vector<4x16x16xf32>
    %58 = vector.extract_strided_slice %56 {offsets = [0, 0, 1], sizes = [4, 16, 16], strides = [1, 1, 1]} : vector<4x18x18xf32> to vector<4x16x16xf32>
    %59 = vector.extract_strided_slice %56 {offsets = [0, 0, 2], sizes = [4, 16, 16], strides = [1, 1, 1]} : vector<4x18x18xf32> to vector<4x16x16xf32>
    %60 = vector.extract_strided_slice %56 {offsets = [0, 1, 0], sizes = [4, 16, 16], strides = [1, 1, 1]} : vector<4x18x18xf32> to vector<4x16x16xf32>
    %61 = vector.extract_strided_slice %56 {offsets = [0, 1, 1], sizes = [4, 16, 16], strides = [1, 1, 1]} : vector<4x18x18xf32> to vector<4x16x16xf32>
    %62 = vector.extract_strided_slice %56 {offsets = [0, 1, 2], sizes = [4, 16, 16], strides = [1, 1, 1]} : vector<4x18x18xf32> to vector<4x16x16xf32>
    %63 = vector.extract_strided_slice %56 {offsets = [0, 2, 0], sizes = [4, 16, 16], strides = [1, 1, 1]} : vector<4x18x18xf32> to vector<4x16x16xf32>
    %64 = vector.extract_strided_slice %56 {offsets = [0, 2, 1], sizes = [4, 16, 16], strides = [1, 1, 1]} : vector<4x18x18xf32> to vector<4x16x16xf32>
    %65 = vector.extract_strided_slice %56 {offsets = [0, 2, 2], sizes = [4, 16, 16], strides = [1, 1, 1]} : vector<4x18x18xf32> to vector<4x16x16xf32>
    %66 = tpu.concatenate %57, %58, %59, %60, %61, %62, %63, %64, %65 in 0 : vector<4x16x16xf32>, vector<4x16x16xf32>, vector<4x16x16xf32>, vector<4x16x16xf32>, vector<4x16x16xf32>, vector<4x16x16xf32>, vector<4x16x16xf32>, vector<4x16x16xf32>, vector<4x16x16xf32> -> vector<36x16x16xf32>
    %67 = vector.shape_cast %66 : vector<36x16x16xf32> to vector<36x256xf32>
    %c0_23 = arith.constant 0 : index
    %c0_24 = arith.constant 0 : index
    %c4 = arith.constant 4 : index
    %c0_25 = arith.constant 0 : index
    %c0_26 = arith.constant 0 : index
    %68 = vector.load %arg1[%c0_23, %c0_24, %c4, %c0_25, %c0_26] : memref<1x4x6x16x16xf32, #tpu.memory_space<vmem>>, vector<1x4x1x16x16xf32>
    %69 = vector.shape_cast %68 : vector<1x4x1x16x16xf32> to vector<4x16x16xf32>
    %cst_27 = arith.constant 0.000000e+00 : f32
    %70 = vector.broadcast %cst_27 : f32 to vector<4x1x16xf32>
    %71 = tpu.concatenate %70, %69, %70 in 1 : vector<4x1x16xf32>, vector<4x16x16xf32>, vector<4x1x16xf32> -> vector<4x18x16xf32>
    %cst_28 = arith.constant 0.000000e+00 : f32
    %72 = vector.broadcast %cst_28 : f32 to vector<4x18x1xf32>
    %73 = tpu.concatenate %72, %71, %72 in 2 : vector<4x18x1xf32>, vector<4x18x16xf32>, vector<4x18x1xf32> -> vector<4x18x18xf32>
    %74 = vector.extract_strided_slice %73 {offsets = [0, 0, 0], sizes = [4, 16, 16], strides = [1, 1, 1]} : vector<4x18x18xf32> to vector<4x16x16xf32>
    %75 = vector.extract_strided_slice %73 {offsets = [0, 0, 1], sizes = [4, 16, 16], strides = [1, 1, 1]} : vector<4x18x18xf32> to vector<4x16x16xf32>
    %76 = vector.extract_strided_slice %73 {offsets = [0, 0, 2], sizes = [4, 16, 16], strides = [1, 1, 1]} : vector<4x18x18xf32> to vector<4x16x16xf32>
    %77 = vector.extract_strided_slice %73 {offsets = [0, 1, 0], sizes = [4, 16, 16], strides = [1, 1, 1]} : vector<4x18x18xf32> to vector<4x16x16xf32>
    %78 = vector.extract_strided_slice %73 {offsets = [0, 1, 1], sizes = [4, 16, 16], strides = [1, 1, 1]} : vector<4x18x18xf32> to vector<4x16x16xf32>
    %79 = vector.extract_strided_slice %73 {offsets = [0, 1, 2], sizes = [4, 16, 16], strides = [1, 1, 1]} : vector<4x18x18xf32> to vector<4x16x16xf32>
    %80 = vector.extract_strided_slice %73 {offsets = [0, 2, 0], sizes = [4, 16, 16], strides = [1, 1, 1]} : vector<4x18x18xf32> to vector<4x16x16xf32>
    %81 = vector.extract_strided_slice %73 {offsets = [0, 2, 1], sizes = [4, 16, 16], strides = [1, 1, 1]} : vector<4x18x18xf32> to vector<4x16x16xf32>
    %82 = vector.extract_strided_slice %73 {offsets = [0, 2, 2], sizes = [4, 16, 16], strides = [1, 1, 1]} : vector<4x18x18xf32> to vector<4x16x16xf32>
    %83 = tpu.concatenate %74, %75, %76, %77, %78, %79, %80, %81, %82 in 0 : vector<4x16x16xf32>, vector<4x16x16xf32>, vector<4x16x16xf32>, vector<4x16x16xf32>, vector<4x16x16xf32>, vector<4x16x16xf32>, vector<4x16x16xf32>, vector<4x16x16xf32>, vector<4x16x16xf32> -> vector<36x16x16xf32>
    %84 = vector.shape_cast %83 : vector<36x16x16xf32> to vector<36x256xf32>
    %c0_29 = arith.constant 0 : index
    %c0_30 = arith.constant 0 : index
    %c5 = arith.constant 5 : index
    %c0_31 = arith.constant 0 : index
    %c0_32 = arith.constant 0 : index
    %85 = vector.load %arg1[%c0_29, %c0_30, %c5, %c0_31, %c0_32] : memref<1x4x6x16x16xf32, #tpu.memory_space<vmem>>, vector<1x4x1x16x16xf32>
    %86 = vector.shape_cast %85 : vector<1x4x1x16x16xf32> to vector<4x16x16xf32>
    %cst_33 = arith.constant 0.000000e+00 : f32
    %87 = vector.broadcast %cst_33 : f32 to vector<4x1x16xf32>
    %88 = tpu.concatenate %87, %86, %87 in 1 : vector<4x1x16xf32>, vector<4x16x16xf32>, vector<4x1x16xf32> -> vector<4x18x16xf32>
    %cst_34 = arith.constant 0.000000e+00 : f32
    %89 = vector.broadcast %cst_34 : f32 to vector<4x18x1xf32>
    %90 = tpu.concatenate %89, %88, %89 in 2 : vector<4x18x1xf32>, vector<4x18x16xf32>, vector<4x18x1xf32> -> vector<4x18x18xf32>
    %91 = vector.extract_strided_slice %90 {offsets = [0, 0, 0], sizes = [4, 16, 16], strides = [1, 1, 1]} : vector<4x18x18xf32> to vector<4x16x16xf32>
    %92 = vector.extract_strided_slice %90 {offsets = [0, 0, 1], sizes = [4, 16, 16], strides = [1, 1, 1]} : vector<4x18x18xf32> to vector<4x16x16xf32>
    %93 = vector.extract_strided_slice %90 {offsets = [0, 0, 2], sizes = [4, 16, 16], strides = [1, 1, 1]} : vector<4x18x18xf32> to vector<4x16x16xf32>
    %94 = vector.extract_strided_slice %90 {offsets = [0, 1, 0], sizes = [4, 16, 16], strides = [1, 1, 1]} : vector<4x18x18xf32> to vector<4x16x16xf32>
    %95 = vector.extract_strided_slice %90 {offsets = [0, 1, 1], sizes = [4, 16, 16], strides = [1, 1, 1]} : vector<4x18x18xf32> to vector<4x16x16xf32>
    %96 = vector.extract_strided_slice %90 {offsets = [0, 1, 2], sizes = [4, 16, 16], strides = [1, 1, 1]} : vector<4x18x18xf32> to vector<4x16x16xf32>
    %97 = vector.extract_strided_slice %90 {offsets = [0, 2, 0], sizes = [4, 16, 16], strides = [1, 1, 1]} : vector<4x18x18xf32> to vector<4x16x16xf32>
    %98 = vector.extract_strided_slice %90 {offsets = [0, 2, 1], sizes = [4, 16, 16], strides = [1, 1, 1]} : vector<4x18x18xf32> to vector<4x16x16xf32>
    %99 = vector.extract_strided_slice %90 {offsets = [0, 2, 2], sizes = [4, 16, 16], strides = [1, 1, 1]} : vector<4x18x18xf32> to vector<4x16x16xf32>
    %100 = tpu.concatenate %91, %92, %93, %94, %95, %96, %97, %98, %99 in 0 : vector<4x16x16xf32>, vector<4x16x16xf32>, vector<4x16x16xf32>, vector<4x16x16xf32>, vector<4x16x16xf32>, vector<4x16x16xf32>, vector<4x16x16xf32>, vector<4x16x16xf32>, vector<4x16x16xf32> -> vector<36x16x16xf32>
    %101 = vector.shape_cast %100 : vector<36x16x16xf32> to vector<36x256xf32>
    %102 = tpu.concatenate %16, %33, %50, %67 in 1 : vector<36x256xf32>, vector<36x256xf32>, vector<36x256xf32>, vector<36x256xf32> -> vector<36x1024xf32>
    %c0_35 = arith.constant 0 : index
    %c0_36 = arith.constant 0 : index
    %c0_37 = arith.constant 0 : index
    %103 = vector.load %arg2[%c0_35, %c0_36, %c0_37] : memref<3x16x36xf32, #tpu.memory_space<vmem>>, vector<1x16x36xf32>
    %104 = vector.shape_cast %103 : vector<1x16x36xf32> to vector<16x36xf32>
    %cst_38 = arith.constant dense<0.000000e+00> : vector<16x1024xf32>
    %105 = tpu.matmul %104, %102, %cst_38 {dimension_numbers = #tpu.dot_dimension_numbers<[1], [0], [0], [1], [0, 0, 1, 1], [], []>} : vector<16x36xf32>, vector<36x1024xf32>, vector<16x1024xf32> -> vector<16x1024xf32>
    %c0_39 = arith.constant 0 : index
    %c0_40 = arith.constant 0 : index
    %c0_41 = arith.constant 0 : index
    %106 = vector.load %arg3[%c0_39, %c0_40, %c0_41] : memref<3x16x1xf32, #tpu.memory_space<vmem>>, vector<1x16x1xf32>
    %107 = vector.shape_cast %106 : vector<1x16x1xf32> to vector<16x1xf32>
    %108 = vector.broadcast %107 : vector<16x1xf32> to vector<16x1024xf32>
    %109 = arith.addf %105, %108 : vector<16x1024xf32>
    %c1_42 = arith.constant 1 : index
    %c0_43 = arith.constant 0 : index
    %c0_44 = arith.constant 0 : index
    %110 = vector.load %arg2[%c1_42, %c0_43, %c0_44] : memref<3x16x36xf32, #tpu.memory_space<vmem>>, vector<1x16x36xf32>
    %111 = vector.shape_cast %110 : vector<1x16x36xf32> to vector<16x36xf32>
    %cst_45 = arith.constant dense<0.000000e+00> : vector<16x256xf32>
    %112 = tpu.matmul %111, %84, %cst_45 {dimension_numbers = #tpu.dot_dimension_numbers<[1], [0], [0], [1], [0, 0, 1, 1], [], []>} : vector<16x36xf32>, vector<36x256xf32>, vector<16x256xf32> -> vector<16x256xf32>
    %c1_46 = arith.constant 1 : index
    %c0_47 = arith.constant 0 : index
    %c0_48 = arith.constant 0 : index
    %113 = vector.load %arg3[%c1_46, %c0_47, %c0_48] : memref<3x16x1xf32, #tpu.memory_space<vmem>>, vector<1x16x1xf32>
    %114 = vector.shape_cast %113 : vector<1x16x1xf32> to vector<16x1xf32>
    %115 = vector.broadcast %114 : vector<16x1xf32> to vector<16x256xf32>
    %116 = arith.addf %112, %115 : vector<16x256xf32>
    %c2_49 = arith.constant 2 : index
    %c0_50 = arith.constant 0 : index
    %c0_51 = arith.constant 0 : index
    %117 = vector.load %arg2[%c2_49, %c0_50, %c0_51] : memref<3x16x36xf32, #tpu.memory_space<vmem>>, vector<1x16x36xf32>
    %118 = vector.shape_cast %117 : vector<1x16x36xf32> to vector<16x36xf32>
    %cst_52 = arith.constant dense<0.000000e+00> : vector<16x256xf32>
    %119 = tpu.matmul %118, %101, %cst_52 {dimension_numbers = #tpu.dot_dimension_numbers<[1], [0], [0], [1], [0, 0, 1, 1], [], []>} : vector<16x36xf32>, vector<36x256xf32>, vector<16x256xf32> -> vector<16x256xf32>
    %c2_53 = arith.constant 2 : index
    %c0_54 = arith.constant 0 : index
    %c0_55 = arith.constant 0 : index
    %120 = vector.load %arg3[%c2_53, %c0_54, %c0_55] : memref<3x16x1xf32, #tpu.memory_space<vmem>>, vector<1x16x1xf32>
    %121 = vector.shape_cast %120 : vector<1x16x1xf32> to vector<16x1xf32>
    %122 = vector.broadcast %121 : vector<16x1xf32> to vector<16x256xf32>
    %123 = arith.addf %119, %122 : vector<16x256xf32>
    %124 = tpu.concatenate %109, %116, %123 in 1 : vector<16x1024xf32>, vector<16x256xf32>, vector<16x256xf32> -> vector<16x1536xf32>
    %cst_56 = arith.constant dense<0.000000e+00> : vector<16xf32>
    %125 = vector.multi_reduction <add>, %124, %cst_56 [1] : vector<16x1536xf32> to vector<16xf32>
    %126 = vector.shape_cast %125 : vector<16xf32> to vector<16x1xf32>
    %cst_57 = arith.constant 6.51041686E-4 : f32
    %127 = vector.broadcast %cst_57 : f32 to vector<16x1xf32>
    %128 = arith.mulf %126, %127 : vector<16x1xf32>
    %c0_58 = arith.constant 0 : index
    %c0_59 = arith.constant 0 : index
    %129 = vector.load %arg4[%c0_58, %c0_59] : memref<16x2xf32, #tpu.memory_space<vmem>>, vector<16x2xf32>
    %130 = vector.broadcast %128 : vector<16x1xf32> to vector<16x2xf32>
    %131 = arith.mulf %129, %130 : vector<16x2xf32>
    %cst_60 = arith.constant dense<0.000000e+00> : vector<2xf32>
    %132 = vector.multi_reduction <add>, %131, %cst_60 [0] : vector<16x2xf32> to vector<2xf32>
    %133 = vector.shape_cast %132 : vector<2xf32> to vector<1x2xf32>
    %cst_61 = arith.constant 0.000000e+00 : f32
    %134 = vector.broadcast %cst_61 : f32 to vector<1x2xf32>
    %135 = arith.maximumf %133, %134 : vector<1x2xf32>
    %c0_62 = arith.constant 0 : index
    %c0_63 = arith.constant 0 : index
    %136 = vector.load %arg5[%c0_62, %c0_63] : memref<16x2xf32, #tpu.memory_space<vmem>>, vector<16x2xf32>
    %137 = vector.broadcast %135 : vector<1x2xf32> to vector<16x2xf32>
    %138 = arith.mulf %136, %137 : vector<16x2xf32>
    %cst_64 = arith.constant dense<0.000000e+00> : vector<16xf32>
    %139 = vector.multi_reduction <add>, %138, %cst_64 [1] : vector<16x2xf32> to vector<16xf32>
    %140 = vector.shape_cast %139 : vector<16xf32> to vector<16x1xf32>
    %141 = arith.negf %140 : vector<16x1xf32>
    %142 = math.exp %141 : vector<16x1xf32>
    %cst_65 = arith.constant 1.000000e+00 : f32
    %143 = vector.broadcast %cst_65 : f32 to vector<16x1xf32>
    %144 = arith.addf %143, %142 : vector<16x1xf32>
    %145 = arith.divf %143, %144 : vector<16x1xf32>
    %146 = vector.broadcast %145 : vector<16x1xf32> to vector<16x1536xf32>
    %147 = arith.mulf %124, %146 : vector<16x1536xf32>
    %c0_66 = arith.constant 0 : index
    %c0_67 = arith.constant 0 : index
    %c0_68 = arith.constant 0 : index
    %148 = vector.load %arg6[%c0_66, %c0_67, %c0_68] : memref<1x16x1536xf32, #tpu.memory_space<vmem>>, vector<1x16x1536xf32>
    %149 = vector.shape_cast %148 : vector<1x16x1536xf32> to vector<16x1536xf32>
    %150 = vector.shape_cast %147 : vector<16x1536xf32> to vector<1x16x1536xf32>
    tpu.vector_store %arg6[%c0_66, %c0_67, %c0_68], %150 {strides = array<i32>} : memref<1x16x1536xf32, #tpu.memory_space<vmem>>, vector<1x16x1536xf32>,
    return
  }
  func.func @transform_0(%arg0: i32) -> (i32, i32, i32, i32, i32) {
    %c0_i32 = arith.constant 0 : i32
    %c0_i32_0 = arith.constant 0 : i32
    %c0_i32_1 = arith.constant 0 : i32
    %c0_i32_2 = arith.constant 0 : i32
    %c0_i32_3 = arith.constant 0 : i32
    return %arg0, %c0_i32, %c0_i32_0, %c0_i32_1, %c0_i32_2 : i32, i32, i32, i32, i32
  }
  func.func @transform_1(%arg0: i32) -> (i32, i32, i32) {
    %c0_i32 = arith.constant 0 : i32
    %c0_i32_0 = arith.constant 0 : i32
    %c0_i32_1 = arith.constant 0 : i32
    %c0_i32_2 = arith.constant 0 : i32
    return %c0_i32, %c0_i32_0, %c0_i32_1 : i32, i32, i32
  }
  func.func @transform_2(%arg0: i32) -> (i32, i32, i32) {
    %c0_i32 = arith.constant 0 : i32
    %c0_i32_0 = arith.constant 0 : i32
    %c0_i32_1 = arith.constant 0 : i32
    %c0_i32_2 = arith.constant 0 : i32
    return %c0_i32, %c0_i32_0, %c0_i32_1 : i32, i32, i32
  }
  func.func @transform_3(%arg0: i32) -> (i32, i32) {
    %c0_i32 = arith.constant 0 : i32
    %c0_i32_0 = arith.constant 0 : i32
    %c0_i32_1 = arith.constant 0 : i32
    return %c0_i32, %c0_i32_0 : i32, i32
  }
  func.func @transform_4(%arg0: i32) -> (i32, i32) {
    %c0_i32 = arith.constant 0 : i32
    %c0_i32_0 = arith.constant 0 : i32
    %c0_i32_1 = arith.constant 0 : i32
    return %c0_i32, %c0_i32_0 : i32, i32
  }
  func.func @transform_5(%arg0: i32) -> (i32, i32, i32) {
    %c0_i32 = arith.constant 0 : i32
    %c0_i32_0 = arith.constant 0 : i32
    %c0_i32_1 = arith.constant 0 : i32
    return %arg0, %c0_i32, %c0_i32_0 : i32, i32, i32
  }
}

</mosaic_0001>

<llo_original>
// kernel: cubesphere_conv2d_forward.1
$region0: #{cubesphere_conv2d_forward.1}
  #allocation0 [shape = 'u32[]', space=smem, size = 0x4, offset = 0x4, fixed_abs, tag = 'smem constant byte address 0x4 - core index']
  #allocation1 [shape = 'u32[144,128]{1,0:T(1,128)}', space=vmem, size = 0x12000, scoped, tag = 'internal scratch']
  %s0 = inlined_call_operand.hbm [shape: f32[2,4,6,16,16], index: 0, kind: input, shape index: {}]
  %s1 = inlined_call_operand.vmem [shape: f32[3,16,36], index: 1, kind: input, shape index: {}]
  %s2 = inlined_call_operand.vmem [shape: f32[3,16,1], index: 2, kind: input, shape index: {}]
  %s3 = inlined_call_operand.vmem [shape: f32[16,2], index: 3, kind: input, shape index: {}]
  %s4 = inlined_call_operand.vmem [shape: f32[16,2], index: 4, kind: input, shape index: {}]
  %s5 = inlined_call_operand.vmem [shape: f32[2,16,1536], index: 5, kind: output, shape index: {}]
  %s6 = sld [smem:[#allocation0]]
  $region57: #{cubesphere_conv2d_forward.1} parent=0
    _
  %s8 = ssub.s32 1, %s6
  %s9 = scalar_select 0, %s8, %s6
  $region1: #{cubesphere_conv2d_forward.1} parent=0
    #allocation2 [shape = 'u8[393216]{0}', space=vmem, size = 0x60000, scoped, tag = 'input window, operand 0']
    #allocation3 [shape = 's32[2]{0}', space=sflag, size = 0x8, scoped, tag = 'scoped memory for cubesphere_conv2d_forward.1']
    %10 = vsyncpa [#allocation3], 0
    %s11 = scalar_lea.sflag [#allocation3], 1
    %12 = vsyncpa %s11, 0
    loop: start=0, step=1, limit=4
    $region2: #{cubesphere_conv2d_forward.1} parent=1 // loop_pre_header
      _
    $region3: #{cubesphere_conv2d_forward.1} parent=1 // loop_header
      %s14 = sphi 0, %s18
      %p15 = scmp.ge.s32.totalorder %s14, 4
      %s24 = sphi 0, %s26
      %s27 = sphi 0, %s24
      %s28 = sphi 0, %s27
      %s44 = sphi 0, %s28
      %s48 = sphi 0, %s48
      %s50 = sphi 0, %s48
      %s51 = sphi 0, %s50
      %s65 = sphi 0, %s51
      %s69 = sphi 0, %s69
      %s71 = sphi 0, %s69
      %s72 = sphi 0, %s71
      %s86 = sphi 0, %s72
      %s90 = sphi 0, %s90
      %s92 = sphi 0, %s90
      %s93 = sphi 0, %s92
      %s107 = sphi 0, %s93
      %s111 = sphi 0, %s111
      %s113 = sphi 0, %s111
      %s114 = sphi 0, %s113
      %s128 = sphi 0, %s114
      %s134 = sphi 0, %s136
      %s137 = sphi 0, %s134
      %s138 = sphi 0, %s137
      %s154 = sphi 0, %s138
    $region4: #{cubesphere_conv2d_forward.1} parent=1 // loop_header_branch
      %17 = sbr.rel (%p15) target = $region8
    $region5: #{cubesphere_conv2d_forward.1} parent=1 // loop_body
      %s19 = ssub.s32 %s14, 1
      %s20 = ssub.s32 %s14, 2
      %s21 = sadd.s32 %s14, 1
      %s22 = ssub.s32 %s14, %s21
      %p23 = scmp.eq.s32.totalorder %s22, 0
      %s25 = sadd.s32 %s24, 1
      %s26 = scalar_select %p23, %s24, %s25
      %p29 = pneg %p23
      %p30 = scmp.eq.s32.totalorder %s14, 1
      %p31 = por %p29, %p30
      %p32 = scmp.ne.s32.totalorder %s24, %s27
      %p33 = scmp.eq.s32.totalorder %s14, 0
      %p34 = por %p32, %p33
      %p35 = scmp.ne.s32.totalorder %s24, %s27
      %p36 = scmp.eq.s32.totalorder %s19, 1
      %p37 = por %p35, %p36
      %p38 = scmp.ne.s32.totalorder %s27, %s28
      %p39 = scmp.eq.s32.totalorder %s19, 0
      %p40 = por %p38, %p39
      %p41 = scmp.ne.s32.totalorder %s27, %s28
      %p42 = scmp.eq.s32.totalorder %s20, 1
      %p43 = por %p41, %p42
      %p45 = scmp.ne.s32.totalorder %s28, %s44
      %p46 = scmp.eq.s32.totalorder %s20, 0
      %p47 = por %p45, %p46
      %s49 = sadd.s32 %s48, 1
      %p52 = scmp.eq.s32.totalorder %s14, 1
      %p53 = scmp.ne.s32.totalorder %s48, %s50
      %p54 = scmp.eq.s32.totalorder %s14, 0
      %p55 = por %p53, %p54
      %p56 = scmp.ne.s32.totalorder %s48, %s50
      %p57 = scmp.eq.s32.totalorder %s19, 1
      %p58 = por %p56, %p57
      %p59 = scmp.ne.s32.totalorder %s50, %s51
      %p60 = scmp.eq.s32.totalorder %s19, 0
      %p61 = por %p59, %p60
      %p62 = scmp.ne.s32.totalorder %s50, %s51
      %p63 = scmp.eq.s32.totalorder %s20, 1
      %p64 = por %p62, %p63
      %p66 = scmp.ne.s32.totalorder %s51, %s65
      %p67 = scmp.eq.s32.totalorder %s20, 0
      %p68 = por %p66, %p67
      %s70 = sadd.s32 %s69, 1
      %p73 = scmp.eq.s32.totalorder %s14, 1
      %p74 = scmp.ne.s32.totalorder %s69, %s71
      %p75 = scmp.eq.s32.totalorder %s14, 0
      %p76 = por %p74, %p75
      %p77 = scmp.ne.s32.totalorder %s69, %s71
      %p78 = scmp.eq.s32.totalorder %s19, 1
      %p79 = por %p77, %p78
      %p80 = scmp.ne.s32.totalorder %s71, %s72
      %p81 = scmp.eq.s32.totalorder %s19, 0
      %p82 = por %p80, %p81
      %p83 = scmp.ne.s32.totalorder %s71, %s72
      %p84 = scmp.eq.s32.totalorder %s20, 1
      %p85 = por %p83, %p84
      %p87 = scmp.ne.s32.totalorder %s72, %s86
      %p88 = scmp.eq.s32.totalorder %s20, 0
      %p89 = por %p87, %p88
      %s91 = sadd.s32 %s90, 1
      %p94 = scmp.eq.s32.totalorder %s14, 1
      %p95 = scmp.ne.s32.totalorder %s90, %s92
      %p96 = scmp.eq.s32.totalorder %s14, 0
      %p97 = por %p95, %p96
      %p98 = scmp.ne.s32.totalorder %s90, %s92
      %p99 = scmp.eq.s32.totalorder %s19, 1
      %p100 = por %p98, %p99
      %p101 = scmp.ne.s32.totalorder %s92, %s93
      %p102 = scmp.eq.s32.totalorder %s19, 0
      %p103 = por %p101, %p102
      %p104 = scmp.ne.s32.totalorder %s92, %s93
      %p105 = scmp.eq.s32.totalorder %s20, 1
      %p106 = por %p104, %p105
      %p108 = scmp.ne.s32.totalorder %s93, %s107
      %p109 = scmp.eq.s32.totalorder %s20, 0
      %p110 = por %p108, %p109
      %s112 = sadd.s32 %s111, 1
      %p115 = scmp.eq.s32.totalorder %s14, 1
      %p116 = scmp.ne.s32.totalorder %s111, %s113
      %p117 = scmp.eq.s32.totalorder %s14, 0
      %p118 = por %p116, %p117
      %p119 = scmp.ne.s32.totalorder %s111, %s113
      %p120 = scmp.eq.s32.totalorder %s19, 1
      %p121 = por %p119, %p120
      %p122 = scmp.ne.s32.totalorder %s113, %s114
      %p123 = scmp.eq.s32.totalorder %s19, 0
      %p124 = por %p122, %p123
      %p125 = scmp.ne.s32.totalorder %s113, %s114
      %p126 = scmp.eq.s32.totalorder %s20, 1
      %p127 = por %p125, %p126
      %p129 = scmp.ne.s32.totalorder %s114, %s128
      %p130 = scmp.eq.s32.totalorder %s20, 0
      %p131 = por %p129, %p130
      %s132 = ssub.s32 %s14, %s21
      %p133 = scmp.eq.s32.totalorder %s132, 0
      %s135 = sadd.s32 %s134, 1
      %s136 = scalar_select %p133, %s134, %s135
      %p139 = pneg %p133
      %p140 = scmp.eq.s32.totalorder %s14, 1
      %p141 = por %p139, %p140
      %p142 = scmp.ne.s32.totalorder %s134, %s137
      %p143 = scmp.eq.s32.totalorder %s14, 0
      %p144 = por %p142, %p143
      %p145 = scmp.ne.s32.totalorder %s134, %s137
      %p146 = scmp.eq.s32.totalorder %s19, 1
      %p147 = por %p145, %p146
      %p148 = scmp.ne.s32.totalorder %s137, %s138
      %p149 = scmp.eq.s32.totalorder %s19, 0
      %p150 = por %p148, %p149
      %p151 = scmp.ne.s32.totalorder %s137, %s138
      %p152 = scmp.eq.s32.totalorder %s20, 1
      %p153 = por %p151, %p152
      %p155 = scmp.ne.s32.totalorder %s138, %s154
      %p156 = scmp.eq.s32.totalorder %s20, 0
      %p157 = por %p155, %p156
      %p158 = scmp.le.s32.totalorder 1, %s14
      %p159 = scmp.lt.s32.totalorder %s14, 3
      %p160 = pnand %p158, %p159
      %p161 = pneg %p160
      // Predicated region
      $region9: #{cubesphere_conv2d_forward.1} parent=5 // pred_check
        _
      $region10: #{cubesphere_conv2d_forward.1} parent=5 // pred_check_branch
        %163 = sbr.rel (%p160) target = $region12
      $region11: #{cubesphere_conv2d_forward.1} parent=5 // pred_region
        %s164 = ssub.s32 %s14, 1
        // Predicated region
        $region13: #{cubesphere_conv2d_forward.1} parent=11 // pred_check
          %p165 = pneg %p61
        $region14: #{cubesphere_conv2d_forward.1} parent=11 // pred_check_branch
          %167 = sbr.rel (%p165) target = $region16
        $region15: #{cubesphere_conv2d_forward.1} parent=11 // pred_region
          _
        $region16: #{cubesphere_conv2d_forward.1} parent=11 // pred_fallthru
          _
        // Predicated region
        $region17: #{cubesphere_conv2d_forward.1} parent=11 // pred_check
          %p168 = pneg %p82
        $region18: #{cubesphere_conv2d_forward.1} parent=11 // pred_check_branch
          %170 = sbr.rel (%p168) target = $region20
        $region19: #{cubesphere_conv2d_forward.1} parent=11 // pred_region
          _
        $region20: #{cubesphere_conv2d_forward.1} parent=11 // pred_fallthru
          _
        // Predicated region
        $region21: #{cubesphere_conv2d_forward.1} parent=11 // pred_check
          %p171 = pneg %p103
        $region22: #{cubesphere_conv2d_forward.1} parent=11 // pred_check_branch
          %173 = sbr.rel (%p171) target = $region24
        $region23: #{cubesphere_conv2d_forward.1} parent=11 // pred_region
          _
        $region24: #{cubesphere_conv2d_forward.1} parent=11 // pred_fallthru
          _
        // Predicated region
        $region25: #{cubesphere_conv2d_forward.1} parent=11 // pred_check
          %p174 = pneg %p124
        $region26: #{cubesphere_conv2d_forward.1} parent=11 // pred_check_branch
          %176 = sbr.rel (%p174) target = $region28
        $region27: #{cubesphere_conv2d_forward.1} parent=11 // pred_region
          _
        $region28: #{cubesphere_conv2d_forward.1} parent=11 // pred_fallthru
          _
      $region12: #{cubesphere_conv2d_forward.1} parent=5 // pred_fallthru
        _
      %p177 = scmp.lt.s32.totalorder %s14, 2
      // Predicated region
      $region29: #{cubesphere_conv2d_forward.1} parent=5 // pred_check
        %p178 = pneg %p177
      $region30: #{cubesphere_conv2d_forward.1} parent=5 // pred_check_branch
        %180 = sbr.rel (%p178) target = $region32
      $region31: #{cubesphere_conv2d_forward.1} parent=5 // pred_region
        // Predicated region
        $region33: #{cubesphere_conv2d_forward.1} parent=31 // pred_check
          %p181 = pneg %p34
        $region34: #{cubesphere_conv2d_forward.1} parent=31 // pred_check_branch
          %183 = sbr.rel (%p181) target = $region36
        $region35: #{cubesphere_conv2d_forward.1} parent=31 // pred_region
          %s184 = sand.u32 %s24, 1
          %s185 = scalar_lea.sflag [#allocation3], %s184
          %s186 = sand.u32 %s24, 1
          %s187 = smul.addr %s186, 384
          %s188 = scalar_lea.vmem [#allocation2], %s187
          %s190 = ssub.s32 6144, 6144
          %191 = vsyncadd %s185, %s190
          %s192 = smul.addr %s14, 48
          %s193 = smul.addr %s192, 128
          %s194 = scalar_lea.hbm %s0, %s193
          %s195 = sshll.u32 %s188, 4
          %s196 = int_to_ptr.vmem [resolvable:$true] %s195
          %201 = dma.hbm_to_vmem [thread:$0]  %s194, 6144, %s196, %s185, 128, 128, 8
        $region36: #{cubesphere_conv2d_forward.1} parent=31 // pred_fallthru
          _
      $region32: #{cubesphere_conv2d_forward.1} parent=5 // pred_fallthru
        _
      %p202 = scmp.le.s32.totalorder 1, %s14
      %p203 = scmp.lt.s32.totalorder %s14, 3
      %p204 = pnand %p202, %p203
      %p205 = pneg %p204
      // Predicated region
      $region37: #{cubesphere_conv2d_forward.1} parent=5 // pred_check
        _
      $region38: #{cubesphere_conv2d_forward.1} parent=5 // pred_check_branch
        %207 = sbr.rel (%p204) target = $region40
      $region39: #{cubesphere_conv2d_forward.1} parent=5 // pred_region
        %s208 = ssub.s32 %s14, 1
        %s209 = sand.u32 %s27, 1
        %s210 = scalar_lea.sflag [#allocation3], %s209
        %s211 = sand.u32 %s27, 1
        %s212 = smul.addr %s211, 384
        %s213 = scalar_lea.vmem [#allocation2], %s212
        // Predicated region
        $region41: #{cubesphere_conv2d_forward.1} parent=39 // pred_check
          %p214 = pneg %p40
        $region42: #{cubesphere_conv2d_forward.1} parent=39 // pred_check_branch
          %216 = sbr.rel (%p214) target = $region44
        $region43: #{cubesphere_conv2d_forward.1} parent=39 // pred_region
          %217 = dma.done %s210, 6144
        $region44: #{cubesphere_conv2d_forward.1} parent=39 // pred_fallthru
          _
        %s218 = sand.u32 %s27, 1
        %s219 = scalar_lea.sflag [#allocation3], %s218
        %s220 = sand.u32 %s27, 1
        %s221 = smul.addr %s220, 384
        %s222 = scalar_lea.vmem [#allocation2], %s221
        %p223 = pneg %p40
        %p224 = pneg %p37
        %p225 = pneg %p61
        %p226 = pneg %p58
        %p227 = pneg %p82
        %p228 = pneg %p79
        %p229 = pneg %p103
        %p230 = pneg %p100
        %p231 = pneg %p124
        %p232 = pneg %p121
        %p233 = pneg %p150
        %p234 = pneg %p147
        %p235 = scmp.lt.s32.totalorder %s19, 1
        %s236 = scalar_select %p235, %s19, 1
        %s237 = smul.addr %s236, 24
        %s238 = smul.addr %s237, 8
        %s239 = scalar_lea.vmem %s5, %s238
        %p240 = scmp.lt.s32.totalorder %s19, 1
        %s241 = scalar_select %p240, %s19, 1
        %s242 = smul.addr %s241, 24
        %s243 = smul.addr %s242, 8
        %s244 = scalar_lea.vmem %s5, %s243
        %v245 = vld [vmem:[%s213] sm:$0xff]
        %v246 = vld [vmem:[%s213 + $0x8] sm:$0xff]
        %v247 = vld [vmem:[%s213 + $0x60] sm:$0xff]
        %v248 = vld [vmem:[%s213 + $0x68] sm:$0xff]
        %v249 = vld [vmem:[%s213 + $0xc0] sm:$0xff]
        %v250 = vld [vmem:[%s213 + $0xc8] sm:$0xff]
        %v251 = vld [vmem:[%s213 + $0x120] sm:$0xff]
        %v252 = vld [vmem:[%s213 + $0x128] sm:$0xff]
        %vm261 = vcmask 1040384
        %v262 = vrot.slane %v245, 7
        %v263 = vrot.slane %v246, 7
        %v264 = vsel %vm261, %v262, %v263
        %v265 = vrot.slane %v247, 7
        %v266 = vrot.slane %v248, 7
        %v267 = vsel %vm261, %v265, %v266
        %v268 = vrot.slane %v249, 7
        %v269 = vrot.slane %v250, 7
        %v270 = vsel %vm261, %v268, %v269
        %v271 = vrot.slane %v251, 7
        %v272 = vrot.slane %v252, 7
        %v273 = vsel %vm261, %v271, %v272
        %v282 = vsel %vm261, 0.0, %v262
        %v283 = vsel %vm261, 0.0, %v265
        %v284 = vsel %vm261, 0.0, %v268
        %v285 = vsel %vm261, 0.0, %v271
        %v286 = vsel %vm261, %v263, 0.0
        %v287 = vsel %vm261, %v266, 0.0
        %v288 = vsel %vm261, %v269, 0.0
        %v289 = vsel %vm261, %v272, 0.0
        %298 = vrot.lane.b32.xlu0 %v282, 1
        %v299 = vpop.permute.xlu0 %298
        %300 = vrot.lane.b32.xlu0 %v264, 1
        %v301 = vpop.permute.xlu0 %300
        %302 = vrot.lane.b32.xlu0 %v286, 1
        %v303 = vpop.permute.xlu0 %302
        %304 = vrot.lane.b32.xlu0 %v283, 1
        %v305 = vpop.permute.xlu0 %304
        %306 = vrot.lane.b32.xlu0 %v267, 1
        %v307 = vpop.permute.xlu0 %306
        %308 = vrot.lane.b32.xlu0 %v287, 1
        %v309 = vpop.permute.xlu0 %308
        %310 = vrot.lane.b32.xlu0 %v284, 1
        %v311 = vpop.permute.xlu0 %310
        %312 = vrot.lane.b32.xlu0 %v270, 1
        %v313 = vpop.permute.xlu0 %312
        %314 = vrot.lane.b32.xlu0 %v288, 1
        %v315 = vpop.permute.xlu0 %314
        %316 = vrot.lane.b32.xlu0 %v285, 1
        %v317 = vpop.permute.xlu0 %316
        %318 = vrot.lane.b32.xlu0 %v273, 1
        %v319 = vpop.permute.xlu0 %318
        %320 = vrot.lane.b32.xlu0 %v289, 1
        %v321 = vpop.permute.xlu0 %320
        %vm334 = vcmask 7168
        %v335 = vsel %vm334, 0.0, %v299
        %v336 = vsel %vm334, 0.0, %v301
        %v337 = vsel %vm334, 0.0, %v303
        %v338 = vsel %vm334, 0.0, %v305
        %v339 = vsel %vm334, 0.0, %v307
        %v340 = vsel %vm334, 0.0, %v309
        %v341 = vsel %vm334, 0.0, %v311
        %v342 = vsel %vm334, 0.0, %v313
        %v343 = vsel %vm334, 0.0, %v315
        %v344 = vsel %vm334, 0.0, %v317
        %v345 = vsel %vm334, 0.0, %v319
        %v346 = vsel %vm334, 0.0, %v321
        %vm347 = vcmask 138240
        %v348 = vsel %vm347, %v335, 0.0
        %v349 = vsel %vm347, %v336, 0.0
        %v350 = vsel %vm347, %v337, 0.0
        %v351 = vsel %vm347, %v338, 0.0
        %v352 = vsel %vm347, %v339, 0.0
        %v353 = vsel %vm347, %v340, 0.0
        %v354 = vsel %vm347, %v341, 0.0
        %v355 = vsel %vm347, %v342, 0.0
        %v356 = vsel %vm347, %v343, 0.0
        %v357 = vsel %vm347, %v344, 0.0
        %v358 = vsel %vm347, %v345, 0.0
        %v359 = vsel %vm347, %v346, 0.0
        %368 = vrot.lane.b32.xlu0 %v348, 127
        %v369 = vpop.permute.xlu0 %368
        %370 = vrot.lane.b32.xlu0 %v349, 127
        %v371 = vpop.permute.xlu0 %370
        %372 = vrot.lane.b32.xlu0 %v351, 127
        %v373 = vpop.permute.xlu0 %372
        %374 = vrot.lane.b32.xlu0 %v352, 127
        %v375 = vpop.permute.xlu0 %374
        %376 = vrot.lane.b32.xlu0 %v354, 127
        %v377 = vpop.permute.xlu0 %376
        %378 = vrot.lane.b32.xlu0 %v355, 127
        %v379 = vpop.permute.xlu0 %378
        %380 = vrot.lane.b32.xlu0 %v357, 127
        %v381 = vpop.permute.xlu0 %380
        %382 = vrot.lane.b32.xlu0 %v358, 127
        %v383 = vpop.permute.xlu0 %382
        %392 = vrot.lane.b32.xlu0 %v348, 126
        %v393 = vpop.permute.xlu0 %392
        %394 = vrot.lane.b32.xlu0 %v349, 126
        %v395 = vpop.permute.xlu0 %394
        %396 = vrot.lane.b32.xlu0 %v351, 126
        %v397 = vpop.permute.xlu0 %396
        %398 = vrot.lane.b32.xlu0 %v352, 126
        %v399 = vpop.permute.xlu0 %398
        %400 = vrot.lane.b32.xlu0 %v354, 126
        %v401 = vpop.permute.xlu0 %400
        %402 = vrot.lane.b32.xlu0 %v355, 126
        %v403 = vpop.permute.xlu0 %402
        %404 = vrot.lane.b32.xlu0 %v357, 126
        %v405 = vpop.permute.xlu0 %404
        %406 = vrot.lane.b32.xlu0 %v358, 126
        %v407 = vpop.permute.xlu0 %406
        %vm420 = vcmask 1046528
        %v421 = vrot.slane %v348, 1
        %v422 = vrot.slane %v349, 1
        %v423 = vsel %vm420, %v421, %v422
        %v424 = vrot.slane %v350, 1
        %v425 = vsel %vm420, %v422, %v424
        %v426 = vrot.slane %v351, 1
        %v427 = vrot.slane %v352, 1
        %v428 = vsel %vm420, %v426, %v427
        %v429 = vrot.slane %v353, 1
        %v430 = vsel %vm420, %v427, %v429
        %v431 = vrot.slane %v354, 1
        %v432 = vrot.slane %v355, 1
        %v433 = vsel %vm420, %v431, %v432
        %v434 = vrot.slane %v356, 1
        %v435 = vsel %vm420, %v432, %v434
        %v436 = vrot.slane %v357, 1
        %v437 = vrot.slane %v358, 1
        %v438 = vsel %vm420, %v436, %v437
        %v439 = vrot.slane %v359, 1
        %v440 = vsel %vm420, %v437, %v439
        %449 = vrot.lane.b32.xlu0 %v423, 127
        %v450 = vpop.permute.xlu0 %449
        %451 = vrot.lane.b32.xlu0 %v425, 127
        %v452 = vpop.permute.xlu0 %451
        %453 = vrot.lane.b32.xlu0 %v428, 127
        %v454 = vpop.permute.xlu0 %453
        %455 = vrot.lane.b32.xlu0 %v430, 127
        %v456 = vpop.permute.xlu0 %455
        %457 = vrot.lane.b32.xlu0 %v433, 127
        %v458 = vpop.permute.xlu0 %457
        %459 = vrot.lane.b32.xlu0 %v435, 127
        %v460 = vpop.permute.xlu0 %459
        %461 = vrot.lane.b32.xlu0 %v438, 127
        %v462 = vpop.permute.xlu0 %461
        %463 = vrot.lane.b32.xlu0 %v440, 127
        %v464 = vpop.permute.xlu0 %463
        %473 = vrot.lane.b32.xlu0 %v423, 126
        %v474 = vpop.permute.xlu0 %473
        %475 = vrot.lane.b32.xlu0 %v425, 126
        %v476 = vpop.permute.xlu0 %475
        %477 = vrot.lane.b32.xlu0 %v428, 126
        %v478 = vpop.permute.xlu0 %477
        %479 = vrot.lane.b32.xlu0 %v430, 126
        %v480 = vpop.permute.xlu0 %479
        %481 = vrot.lane.b32.xlu0 %v433, 126
        %v482 = vpop.permute.xlu0 %481
        %483 = vrot.lane.b32.xlu0 %v435, 126
        %v484 = vpop.permute.xlu0 %483
        %485 = vrot.lane.b32.xlu0 %v438, 126
        %v486 = vpop.permute.xlu0 %485
        %487 = vrot.lane.b32.xlu0 %v440, 126
        %v488 = vpop.permute.xlu0 %487
        %vm497 = vcmask 1045504
        %v498 = vrot.slane %v348, 2
        %v499 = vrot.slane %v349, 2
        %v500 = vsel %vm497, %v498, %v499
        %v501 = vrot.slane %v350, 2
        %v502 = vsel %vm497, %v499, %v501
        %v503 = vrot.slane %v351, 2
        %v504 = vrot.slane %v352, 2
        %v505 = vsel %vm497, %v503, %v504
        %v506 = vrot.slane %v353, 2
        %v507 = vsel %vm497, %v504, %v506
        %v508 = vrot.slane %v354, 2
        %v509 = vrot.slane %v355, 2
        %v510 = vsel %vm497, %v508, %v509
        %v511 = vrot.slane %v356, 2
        %v512 = vsel %vm497, %v509, %v511
        %v513 = vrot.slane %v357, 2
        %v514 = vrot.slane %v358, 2
        %v515 = vsel %vm497, %v513, %v514
        %v516 = vrot.slane %v359, 2
        %v517 = vsel %vm497, %v514, %v516
        %526 = vrot.lane.b32.xlu0 %v500, 127
        %v527 = vpop.permute.xlu0 %526
        %528 = vrot.lane.b32.xlu0 %v502, 127
        %v529 = vpop.permute.xlu0 %528
        %530 = vrot.lane.b32.xlu0 %v505, 127
        %v531 = vpop.permute.xlu0 %530
        %532 = vrot.lane.b32.xlu0 %v507, 127
        %v533 = vpop.permute.xlu0 %532
        %534 = vrot.lane.b32.xlu0 %v510, 127
        %v535 = vpop.permute.xlu0 %534
        %536 = vrot.lane.b32.xlu0 %v512, 127
        %v537 = vpop.permute.xlu0 %536
        %538 = vrot.lane.b32.xlu0 %v515, 127
        %v539 = vpop.permute.xlu0 %538
        %540 = vrot.lane.b32.xlu0 %v517, 127
        %v541 = vpop.permute.xlu0 %540
        %550 = vrot.lane.b32.xlu0 %v500, 126
        %v551 = vpop.permute.xlu0 %550
        %552 = vrot.lane.b32.xlu0 %v502, 126
        %v553 = vpop.permute.xlu0 %552
        %554 = vrot.lane.b32.xlu0 %v505, 126
        %v555 = vpop.permute.xlu0 %554
        %556 = vrot.lane.b32.xlu0 %v507, 126
        %v557 = vpop.permute.xlu0 %556
        %558 = vrot.lane.b32.xlu0 %v510, 126
        %v559 = vpop.permute.xlu0 %558
        %560 = vrot.lane.b32.xlu0 %v512, 126
        %v561 = vpop.permute.xlu0 %560
        %562 = vrot.lane.b32.xlu0 %v515, 126
        %v563 = vpop.permute.xlu0 %562
        %564 = vrot.lane.b32.xlu0 %v517, 126
        %v565 = vpop.permute.xlu0 %564
        %v574 = vcombine.low %v348, %v354
        %v575 = vcombine.high %v348, %v354
        %v577 = vunpack.c.l.s4 1983009808
        %v578 = vunpack.c.0.s8 %v577
        %v579 = vlaneseq
        %v580 = vshrl.u32 %v579, 7
        %v581 = vsub.s32 %v578, %v580
        %v582 = vrot.slane %v574, %v581
        %v584 = vunpack.c.l.s4 1983009808
        %v585 = vunpack.c.0.s8 %v584
        %v586 = vlaneseq
        %v587 = vshrl.u32 %v586, 7
        %v588 = vsub.s32 %v585, %v587
        %v589 = vrot.slane %v575, %v588
        %v590 = vcombine.low %v351, %v357
        %v591 = vcombine.high %v351, %v357
        %v593 = vunpack.c.l.s4 1983009808
        %v594 = vunpack.c.0.s8 %v593
        %v595 = vlaneseq
        %v596 = vshrl.u32 %v595, 7
        %v597 = vsub.s32 %v594, %v596
        %v598 = vrot.slane %v590, %v597
        %v600 = vunpack.c.l.s4 1983009808
        %v601 = vunpack.c.0.s8 %v600
        %v602 = vlaneseq
        %v603 = vshrl.u32 %v602, 7
        %v604 = vsub.s32 %v601, %v603
        %v605 = vrot.slane %v591, %v604
        %v606 = vcombine.low %v369, %v377
        %v607 = vcombine.high %v369, %v377
        %v609 = vunpack.c.l.s4 1983009808
        %v610 = vunpack.c.0.s8 %v609
        %v611 = vlaneseq
        %v612 = vshrl.u32 %v611, 7
        %v613 = vsub.s32 %v610, %v612
        %v614 = vrot.slane %v606, %v613
        %v616 = vunpack.c.l.s4 1983009808
        %v617 = vunpack.c.0.s8 %v616
        %v618 = vlaneseq
        %v619 = vshrl.u32 %v618, 7
        %v620 = vsub.s32 %v617, %v619
        %v621 = vrot.slane %v607, %v620
        %v622 = vcombine.low %v373, %v381
        %v623 = vcombine.high %v373, %v381
        %v625 = vunpack.c.l.s4 1983009808
        %v626 = vunpack.c.0.s8 %v625
        %v627 = vlaneseq
        %v628 = vshrl.u32 %v627, 7
        %v629 = vsub.s32 %v626, %v628
        %v630 = vrot.slane %v622, %v629
        %v632 = vunpack.c.l.s4 1983009808
        %v633 = vunpack.c.0.s8 %v632
        %v634 = vlaneseq
        %v635 = vshrl.u32 %v634, 7
        %v636 = vsub.s32 %v633, %v635
        %v637 = vrot.slane %v623, %v636
        %v638 = vcombine.low %v582, %v598
        %v639 = vcombine.high %v582, %v598
        %v641 = vunpack.c.l.s4 1934713408
        %v642 = vunpack.c.0.s8 %v641
        %v643 = vlaneseq
        %v644 = vshrl.u32 %v643, 7
        %v645 = vsub.s32 %v642, %v644
        %v646 = vrot.slane %v638, %v645
        %v648 = vunpack.c.l.s4 1934713408
        %v649 = vunpack.c.0.s8 %v648
        %v650 = vlaneseq
        %v651 = vshrl.u32 %v650, 7
        %v652 = vsub.s32 %v649, %v651
        %v653 = vrot.slane %v639, %v652
        %v654 = vcombine.low %v589, %v605
        %v655 = vcombine.high %v589, %v605
        %v657 = vunpack.c.l.s4 1934713408
        %v658 = vunpack.c.0.s8 %v657
        %v659 = vlaneseq
        %v660 = vshrl.u32 %v659, 7
        %v661 = vsub.s32 %v658, %v660
        %v662 = vrot.slane %v654, %v661
        %v664 = vunpack.c.l.s4 1934713408
        %v665 = vunpack.c.0.s8 %v664
        %v666 = vlaneseq
        %v667 = vshrl.u32 %v666, 7
        %v668 = vsub.s32 %v665, %v667
        %v669 = vrot.slane %v655, %v668
        %v670 = vcombine.low %v614, %v630
        %v671 = vcombine.high %v614, %v630
        %v673 = vunpack.c.l.s4 1934713408
        %v674 = vunpack.c.0.s8 %v673
        %v675 = vlaneseq
        %v676 = vshrl.u32 %v675, 7
        %v677 = vsub.s32 %v674, %v676
        %v678 = vrot.slane %v670, %v677
        %v680 = vunpack.c.l.s4 1934713408
        %v681 = vunpack.c.0.s8 %v680
        %v682 = vlaneseq
        %v683 = vshrl.u32 %v682, 7
        %v684 = vsub.s32 %v681, %v683
        %v685 = vrot.slane %v671, %v684
        %v686 = vcombine.low %v621, %v637
        %v687 = vcombine.high %v621, %v637
        %v689 = vunpack.c.l.s4 1934713408
        %v690 = vunpack.c.0.s8 %v689
        %v691 = vlaneseq
        %v692 = vshrl.u32 %v691, 7
        %v693 = vsub.s32 %v690, %v692
        %v694 = vrot.slane %v686, %v693
        %v696 = vunpack.c.l.s4 1934713408
        %v697 = vunpack.c.0.s8 %v696
        %v698 = vlaneseq
        %v699 = vshrl.u32 %v698, 7
        %v700 = vsub.s32 %v697, %v699
        %v701 = vrot.slane %v687, %v700
        %v702 = vcombine.low %v646, %v678
        %v703 = vcombine.high %v646, %v678
        %v704 = vcombine.low %v653, %v685
        %v705 = vcombine.high %v653, %v685
        %v706 = vcombine.low %v662, %v694
        %v707 = vcombine.high %v662, %v694
        %v708 = vcombine.low %v669, %v701
        %v709 = vcombine.high %v669, %v701
        %v710 = vcombine.low %v393, %v401
        %v711 = vcombine.high %v393, %v401
        %v713 = vunpack.c.l.s4 1983009808
        %v714 = vunpack.c.0.s8 %v713
        %v715 = vlaneseq
        %v716 = vshrl.u32 %v715, 7
        %v717 = vsub.s32 %v714, %v716
        %v718 = vrot.slane %v710, %v717
        %v720 = vunpack.c.l.s4 1983009808
        %v721 = vunpack.c.0.s8 %v720
        %v722 = vlaneseq
        %v723 = vshrl.u32 %v722, 7
        %v724 = vsub.s32 %v721, %v723
        %v725 = vrot.slane %v711, %v724
        %v726 = vcombine.low %v397, %v405
        %v727 = vcombine.high %v397, %v405
        %v729 = vunpack.c.l.s4 1983009808
        %v730 = vunpack.c.0.s8 %v729
        %v731 = vlaneseq
        %v732 = vshrl.u32 %v731, 7
        %v733 = vsub.s32 %v730, %v732
        %v734 = vrot.slane %v726, %v733
        %v736 = vunpack.c.l.s4 1983009808
        %v737 = vunpack.c.0.s8 %v736
        %v738 = vlaneseq
        %v739 = vshrl.u32 %v738, 7
        %v740 = vsub.s32 %v737, %v739
        %v741 = vrot.slane %v727, %v740
        %v742 = vcombine.low %v423, %v433
        %v743 = vcombine.high %v423, %v433
        %v745 = vunpack.c.l.s4 1983009808
        %v746 = vunpack.c.0.s8 %v745
        %v747 = vlaneseq
        %v748 = vshrl.u32 %v747, 7
        %v749 = vsub.s32 %v746, %v748
        %v750 = vrot.slane %v742, %v749
        %v752 = vunpack.c.l.s4 1983009808
        %v753 = vunpack.c.0.s8 %v752
        %v754 = vlaneseq
        %v755 = vshrl.u32 %v754, 7
        %v756 = vsub.s32 %v753, %v755
        %v757 = vrot.slane %v743, %v756
        %v758 = vcombine.low %v428, %v438
        %v759 = vcombine.high %v428, %v438
        %v761 = vunpack.c.l.s4 1983009808
        %v762 = vunpack.c.0.s8 %v761
        %v763 = vlaneseq
        %v764 = vshrl.u32 %v763, 7
        %v765 = vsub.s32 %v762, %v764
        %v766 = vrot.slane %v758, %v765
        %v768 = vunpack.c.l.s4 1983009808
        %v769 = vunpack.c.0.s8 %v768
        %v770 = vlaneseq
        %v771 = vshrl.u32 %v770, 7
        %v772 = vsub.s32 %v769, %v771
        %v773 = vrot.slane %v759, %v772
        %v774 = vcombine.low %v718, %v734
        %v775 = vcombine.high %v718, %v734
        %v777 = vunpack.c.l.s4 1934713408
        %v778 = vunpack.c.0.s8 %v777
        %v779 = vlaneseq
        %v780 = vshrl.u32 %v779, 7
        %v781 = vsub.s32 %v778, %v780
        %v782 = vrot.slane %v774, %v781
        %v784 = vunpack.c.l.s4 1934713408
        %v785 = vunpack.c.0.s8 %v784
        %v786 = vlaneseq
        %v787 = vshrl.u32 %v786, 7
        %v788 = vsub.s32 %v785, %v787
        %v789 = vrot.slane %v775, %v788
        %v790 = vcombine.low %v725, %v741
        %v791 = vcombine.high %v725, %v741
        %v793 = vunpack.c.l.s4 1934713408
        %v794 = vunpack.c.0.s8 %v793
        %v795 = vlaneseq
        %v796 = vshrl.u32 %v795, 7
        %v797 = vsub.s32 %v794, %v796
        %v798 = vrot.slane %v790, %v797
        %v800 = vunpack.c.l.s4 1934713408
        %v801 = vunpack.c.0.s8 %v800
        %v802 = vlaneseq
        %v803 = vshrl.u32 %v802, 7
        %v804 = vsub.s32 %v801, %v803
        %v805 = vrot.slane %v791, %v804
        %v806 = vcombine.low %v750, %v766
        %v807 = vcombine.high %v750, %v766
        %v809 = vunpack.c.l.s4 1934713408
        %v810 = vunpack.c.0.s8 %v809
        %v811 = vlaneseq
        %v812 = vshrl.u32 %v811, 7
        %v813 = vsub.s32 %v810, %v812
        %v814 = vrot.slane %v806, %v813
        %v816 = vunpack.c.l.s4 1934713408
        %v817 = vunpack.c.0.s8 %v816
        %v818 = vlaneseq
        %v819 = vshrl.u32 %v818, 7
        %v820 = vsub.s32 %v817, %v819
        %v821 = vrot.slane %v807, %v820
        %v822 = vcombine.low %v757, %v773
        %v823 = vcombine.high %v757, %v773
        %v825 = vunpack.c.l.s4 1934713408
        %v826 = vunpack.c.0.s8 %v825
        %v827 = vlaneseq
        %v828 = vshrl.u32 %v827, 7
        %v829 = vsub.s32 %v826, %v828
        %v830 = vrot.slane %v822, %v829
        %v832 = vunpack.c.l.s4 1934713408
        %v833 = vunpack.c.0.s8 %v832
        %v834 = vlaneseq
        %v835 = vshrl.u32 %v834, 7
        %v836 = vsub.s32 %v833, %v835
        %v837 = vrot.slane %v823, %v836
        %v838 = vcombine.low %v782, %v814
        %v839 = vcombine.high %v782, %v814
        %v840 = vcombine.low %v789, %v821
        %v841 = vcombine.high %v789, %v821
        %v842 = vcombine.low %v798, %v830
        %v843 = vcombine.high %v798, %v830
        %v844 = vcombine.low %v805, %v837
        %v845 = vcombine.high %v805, %v837
        %v846 = vcombine.low %v450, %v458
        %v847 = vcombine.high %v450, %v458
        %v849 = vunpack.c.l.s4 1983009808
        %v850 = vunpack.c.0.s8 %v849
        %v851 = vlaneseq
        %v852 = vshrl.u32 %v851, 7
        %v853 = vsub.s32 %v850, %v852
        %v854 = vrot.slane %v846, %v853
        %v856 = vunpack.c.l.s4 1983009808
        %v857 = vunpack.c.0.s8 %v856
        %v858 = vlaneseq
        %v859 = vshrl.u32 %v858, 7
        %v860 = vsub.s32 %v857, %v859
        %v861 = vrot.slane %v847, %v860
        %v862 = vcombine.low %v454, %v462
        %v863 = vcombine.high %v454, %v462
        %v865 = vunpack.c.l.s4 1983009808
        %v866 = vunpack.c.0.s8 %v865
        %v867 = vlaneseq
        %v868 = vshrl.u32 %v867, 7
        %v869 = vsub.s32 %v866, %v868
        %v870 = vrot.slane %v862, %v869
        %v872 = vunpack.c.l.s4 1983009808
        %v873 = vunpack.c.0.s8 %v872
        %v874 = vlaneseq
        %v875 = vshrl.u32 %v874, 7
        %v876 = vsub.s32 %v873, %v875
        %v877 = vrot.slane %v863, %v876
        %v878 = vcombine.low %v474, %v482
        %v879 = vcombine.high %v474, %v482
        %v881 = vunpack.c.l.s4 1983009808
        %v882 = vunpack.c.0.s8 %v881
        %v883 = vlaneseq
        %v884 = vshrl.u32 %v883, 7
        %v885 = vsub.s32 %v882, %v884
        %v886 = vrot.slane %v878, %v885
        %v888 = vunpack.c.l.s4 1983009808
        %v889 = vunpack.c.0.s8 %v888
        %v890 = vlaneseq
        %v891 = vshrl.u32 %v890, 7
        %v892 = vsub.s32 %v889, %v891
        %v893 = vrot.slane %v879, %v892
        %v894 = vcombine.low %v478, %v486
        %v895 = vcombine.high %v478, %v486
        %v897 = vunpack.c.l.s4 1983009808
        %v898 = vunpack.c.0.s8 %v897
        %v899 = vlaneseq
        %v900 = vshrl.u32 %v899, 7
        %v901 = vsub.s32 %v898, %v900
        %v902 = vrot.slane %v894, %v901
        %v904 = vunpack.c.l.s4 1983009808
        %v905 = vunpack.c.0.s8 %v904
        %v906 = vlaneseq
        %v907 = vshrl.u32 %v906, 7
        %v908 = vsub.s32 %v905, %v907
        %v909 = vrot.slane %v895, %v908
        %v910 = vcombine.low %v854, %v870
        %v911 = vcombine.high %v854, %v870
        %v913 = vunpack.c.l.s4 1934713408
        %v914 = vunpack.c.0.s8 %v913
        %v915 = vlaneseq
        %v916 = vshrl.u32 %v915, 7
        %v917 = vsub.s32 %v914, %v916
        %v918 = vrot.slane %v910, %v917
        %v920 = vunpack.c.l.s4 1934713408
        %v921 = vunpack.c.0.s8 %v920
        %v922 = vlaneseq
        %v923 = vshrl.u32 %v922, 7
        %v924 = vsub.s32 %v921, %v923
        %v925 = vrot.slane %v911, %v924
        %v926 = vcombine.low %v861, %v877
        %v927 = vcombine.high %v861, %v877
        %v929 = vunpack.c.l.s4 1934713408
        %v930 = vunpack.c.0.s8 %v929
        %v931 = vlaneseq
        %v932 = vshrl.u32 %v931, 7
        %v933 = vsub.s32 %v930, %v932
        %v934 = vrot.slane %v926, %v933
        %v936 = vunpack.c.l.s4 1934713408
        %v937 = vunpack.c.0.s8 %v936
        %v938 = vlaneseq
        %v939 = vshrl.u32 %v938, 7
        %v940 = vsub.s32 %v937, %v939
        %v941 = vrot.slane %v927, %v940
        %v942 = vcombine.low %v886, %v902
        %v943 = vcombine.high %v886, %v902
        %v945 = vunpack.c.l.s4 1934713408
        %v946 = vunpack.c.0.s8 %v945
        %v947 = vlaneseq
        %v948 = vshrl.u32 %v947, 7
        %v949 = vsub.s32 %v946, %v948
        %v950 = vrot.slane %v942, %v949
        %v952 = vunpack.c.l.s4 1934713408
        %v953 = vunpack.c.0.s8 %v952
        %v954 = vlaneseq
        %v955 = vshrl.u32 %v954, 7
        %v956 = vsub.s32 %v953, %v955
        %v957 = vrot.slane %v943, %v956
        %v958 = vcombine.low %v893, %v909
        %v959 = vcombine.high %v893, %v909
        %v961 = vunpack.c.l.s4 1934713408
        %v962 = vunpack.c.0.s8 %v961
        %v963 = vlaneseq
        %v964 = vshrl.u32 %v963, 7
        %v965 = vsub.s32 %v962, %v964
        %v966 = vrot.slane %v958, %v965
        %v968 = vunpack.c.l.s4 1934713408
        %v969 = vunpack.c.0.s8 %v968
        %v970 = vlaneseq
        %v971 = vshrl.u32 %v970, 7
        %v972 = vsub.s32 %v969, %v971
        %v973 = vrot.slane %v959, %v972
        %v974 = vcombine.low %v918, %v950
        %v975 = vcombine.high %v918, %v950
        %v976 = vcombine.low %v925, %v957
        %v977 = vcombine.high %v925, %v957
        %v978 = vcombine.low %v934, %v966
        %v979 = vcombine.high %v934, %v966
        %v980 = vcombine.low %v941, %v973
        %v981 = vcombine.high %v941, %v973
        %v982 = vcombine.low %v500, %v510
        %v983 = vcombine.high %v500, %v510
        %v985 = vunpack.c.l.s4 1983009808
        %v986 = vunpack.c.0.s8 %v985
        %v987 = vlaneseq
        %v988 = vshrl.u32 %v987, 7
        %v989 = vsub.s32 %v986, %v988
        %v990 = vrot.slane %v982, %v989
        %v992 = vunpack.c.l.s4 1983009808
        %v993 = vunpack.c.0.s8 %v992
        %v994 = vlaneseq
        %v995 = vshrl.u32 %v994, 7
        %v996 = vsub.s32 %v993, %v995
        %v997 = vrot.slane %v983, %v996
        %v998 = vcombine.low %v505, %v515
        %v999 = vcombine.high %v505, %v515
        %v1001 = vunpack.c.l.s4 1983009808
        %v1002 = vunpack.c.0.s8 %v1001
        %v1003 = vlaneseq
        %v1004 = vshrl.u32 %v1003, 7
        %v1005 = vsub.s32 %v1002, %v1004
        %v1006 = vrot.slane %v998, %v1005
        %v1008 = vunpack.c.l.s4 1983009808
        %v1009 = vunpack.c.0.s8 %v1008
        %v1010 = vlaneseq
        %v1011 = vshrl.u32 %v1010, 7
        %v1012 = vsub.s32 %v1009, %v1011
        %v1013 = vrot.slane %v999, %v1012
        %v1014 = vcombine.low %v527, %v535
        %v1015 = vcombine.high %v527, %v535
        %v1017 = vunpack.c.l.s4 1983009808
        %v1018 = vunpack.c.0.s8 %v1017
        %v1019 = vlaneseq
        %v1020 = vshrl.u32 %v1019, 7
        %v1021 = vsub.s32 %v1018, %v1020
        %v1022 = vrot.slane %v1014, %v1021
        %v1024 = vunpack.c.l.s4 1983009808
        %v1025 = vunpack.c.0.s8 %v1024
        %v1026 = vlaneseq
        %v1027 = vshrl.u32 %v1026, 7
        %v1028 = vsub.s32 %v1025, %v1027
        %v1029 = vrot.slane %v1015, %v1028
        %v1030 = vcombine.low %v531, %v539
        %v1031 = vcombine.high %v531, %v539
        %v1033 = vunpack.c.l.s4 1983009808
        %v1034 = vunpack.c.0.s8 %v1033
        %v1035 = vlaneseq
        %v1036 = vshrl.u32 %v1035, 7
        %v1037 = vsub.s32 %v1034, %v1036
        %v1038 = vrot.slane %v1030, %v1037
        %v1040 = vunpack.c.l.s4 1983009808
        %v1041 = vunpack.c.0.s8 %v1040
        %v1042 = vlaneseq
        %v1043 = vshrl.u32 %v1042, 7
        %v1044 = vsub.s32 %v1041, %v1043
        %v1045 = vrot.slane %v1031, %v1044
        %v1046 = vcombine.low %v990, %v1006
        %v1047 = vcombine.high %v990, %v1006
        %v1049 = vunpack.c.l.s4 1934713408
        %v1050 = vunpack.c.0.s8 %v1049
        %v1051 = vlaneseq
        %v1052 = vshrl.u32 %v1051, 7
        %v1053 = vsub.s32 %v1050, %v1052
        %v1054 = vrot.slane %v1046, %v1053
        %v1056 = vunpack.c.l.s4 1934713408
        %v1057 = vunpack.c.0.s8 %v1056
        %v1058 = vlaneseq
        %v1059 = vshrl.u32 %v1058, 7
        %v1060 = vsub.s32 %v1057, %v1059
        %v1061 = vrot.slane %v1047, %v1060
        %v1062 = vcombine.low %v997, %v1013
        %v1063 = vcombine.high %v997, %v1013
        %v1065 = vunpack.c.l.s4 1934713408
        %v1066 = vunpack.c.0.s8 %v1065
        %v1067 = vlaneseq
        %v1068 = vshrl.u32 %v1067, 7
        %v1069 = vsub.s32 %v1066, %v1068
        %v1070 = vrot.slane %v1062, %v1069
        %v1072 = vunpack.c.l.s4 1934713408
        %v1073 = vunpack.c.0.s8 %v1072
        %v1074 = vlaneseq
        %v1075 = vshrl.u32 %v1074, 7
        %v1076 = vsub.s32 %v1073, %v1075
        %v1077 = vrot.slane %v1063, %v1076
        %v1078 = vcombine.low %v1022, %v1038
        %v1079 = vcombine.high %v1022, %v1038
        %v1081 = vunpack.c.l.s4 1934713408
        %v1082 = vunpack.c.0.s8 %v1081
        %v1083 = vlaneseq
        %v1084 = vshrl.u32 %v1083, 7
        %v1085 = vsub.s32 %v1082, %v1084
        %v1086 = vrot.slane %v1078, %v1085
        %v1088 = vunpack.c.l.s4 1934713408
        %v1089 = vunpack.c.0.s8 %v1088
        %v1090 = vlaneseq
        %v1091 = vshrl.u32 %v1090, 7
        %v1092 = vsub.s32 %v1089, %v1091
        %v1093 = vrot.slane %v1079, %v1092
        %v1094 = vcombine.low %v1029, %v1045
        %v1095 = vcombine.high %v1029, %v1045
        %v1097 = vunpack.c.l.s4 1934713408
        %v1098 = vunpack.c.0.s8 %v1097
        %v1099 = vlaneseq
        %v1100 = vshrl.u32 %v1099, 7
        %v1101 = vsub.s32 %v1098, %v1100
        %v1102 = vrot.slane %v1094, %v1101
        %v1104 = vunpack.c.l.s4 1934713408
        %v1105 = vunpack.c.0.s8 %v1104
        %v1106 = vlaneseq
        %v1107 = vshrl.u32 %v1106, 7
        %v1108 = vsub.s32 %v1105, %v1107
        %v1109 = vrot.slane %v1095, %v1108
        %v1110 = vcombine.low %v1054, %v1086
        %v1111 = vcombine.high %v1054, %v1086
        %v1112 = vcombine.low %v1061, %v1093
        %v1113 = vcombine.high %v1061, %v1093
        %v1114 = vcombine.low %v1070, %v1102
        %v1115 = vcombine.high %v1070, %v1102
        %v1116 = vcombine.low %v1077, %v1109
        %v1117 = vcombine.high %v1077, %v1109
        %v1118 = vcombine.low %v551, %v559
        %v1119 = vcombine.high %v551, %v559
        %v1121 = vunpack.c.l.s4 1983009808
        %v1122 = vunpack.c.0.s8 %v1121
        %v1123 = vlaneseq
        %v1124 = vshrl.u32 %v1123, 7
        %v1125 = vsub.s32 %v1122, %v1124
        %v1126 = vrot.slane %v1118, %v1125
        %v1128 = vunpack.c.l.s4 1983009808
        %v1129 = vunpack.c.0.s8 %v1128
        %v1130 = vlaneseq
        %v1131 = vshrl.u32 %v1130, 7
        %v1132 = vsub.s32 %v1129, %v1131
        %v1133 = vrot.slane %v1119, %v1132
        %v1134 = vcombine.low %v555, %v563
        %v1135 = vcombine.high %v555, %v563
        %v1137 = vunpack.c.l.s4 1983009808
        %v1138 = vunpack.c.0.s8 %v1137
        %v1139 = vlaneseq
        %v1140 = vshrl.u32 %v1139, 7
        %v1141 = vsub.s32 %v1138, %v1140
        %v1142 = vrot.slane %v1134, %v1141
        %v1144 = vunpack.c.l.s4 1983009808
        %v1145 = vunpack.c.0.s8 %v1144
        %v1146 = vlaneseq
        %v1147 = vshrl.u32 %v1146, 7
        %v1148 = vsub.s32 %v1145, %v1147
        %v1149 = vrot.slane %v1135, %v1148
        %v1150 = vcombine.low %v1126, %v1142
        %v1151 = vcombine.high %v1126, %v1142
        %v1153 = vunpack.c.l.s4 1934713408
        %v1154 = vunpack.c.0.s8 %v1153
        %v1155 = vlaneseq
        %v1156 = vshrl.u32 %v1155, 7
        %v1157 = vsub.s32 %v1154, %v1156
        %v1158 = vrot.slane %v1150, %v1157
        %v1160 = vunpack.c.l.s4 1934713408
        %v1161 = vunpack.c.0.s8 %v1160
        %v1162 = vlaneseq
        %v1163 = vshrl.u32 %v1162, 7
        %v1164 = vsub.s32 %v1161, %v1163
        %v1165 = vrot.slane %v1151, %v1164
        %v1166 = vcombine.low %v1133, %v1149
        %v1167 = vcombine.high %v1133, %v1149
        %v1169 = vunpack.c.l.s4 1934713408
        %v1170 = vunpack.c.0.s8 %v1169
        %v1171 = vlaneseq
        %v1172 = vshrl.u32 %v1171, 7
        %v1173 = vsub.s32 %v1170, %v1172
        %v1174 = vrot.slane %v1166, %v1173
        %v1176 = vunpack.c.l.s4 1934713408
        %v1177 = vunpack.c.0.s8 %v1176
        %v1178 = vlaneseq
        %v1179 = vshrl.u32 %v1178, 7
        %v1180 = vsub.s32 %v1177, %v1179
        %v1181 = vrot.slane %v1167, %v1180
        %v1182 = vcombine.high %v1158, 0.0
        %v1183 = vcombine.high %v1165, 0.0
        %v1184 = vcombine.high %v1174, 0.0
        %v1185 = vcombine.high %v1181, 0.0
        %v1186 = vcombine.low %v349, %v355
        %v1187 = vcombine.high %v349, %v355
        %v1189 = vunpack.c.l.s4 1983009808
        %v1190 = vunpack.c.0.s8 %v1189
        %v1191 = vlaneseq
        %v1192 = vshrl.u32 %v1191, 7
        %v1193 = vsub.s32 %v1190, %v1192
        %v1194 = vrot.slane %v1186, %v1193
        %v1196 = vunpack.c.l.s4 1983009808
        %v1197 = vunpack.c.0.s8 %v1196
        %v1198 = vlaneseq
        %v1199 = vshrl.u32 %v1198, 7
        %v1200 = vsub.s32 %v1197, %v1199
        %v1201 = vrot.slane %v1187, %v1200
        %v1202 = vcombine.low %v352, %v358
        %v1203 = vcombine.high %v352, %v358
        %v1205 = vunpack.c.l.s4 1983009808
        %v1206 = vunpack.c.0.s8 %v1205
        %v1207 = vlaneseq
        %v1208 = vshrl.u32 %v1207, 7
        %v1209 = vsub.s32 %v1206, %v1208
        %v1210 = vrot.slane %v1202, %v1209
        %v1212 = vunpack.c.l.s4 1983009808
        %v1213 = vunpack.c.0.s8 %v1212
        %v1214 = vlaneseq
        %v1215 = vshrl.u32 %v1214, 7
        %v1216 = vsub.s32 %v1213, %v1215
        %v1217 = vrot.slane %v1203, %v1216
        %v1218 = vcombine.low %v371, %v379
        %v1219 = vcombine.high %v371, %v379
        %v1221 = vunpack.c.l.s4 1983009808
        %v1222 = vunpack.c.0.s8 %v1221
        %v1223 = vlaneseq
        %v1224 = vshrl.u32 %v1223, 7
        %v1225 = vsub.s32 %v1222, %v1224
        %v1226 = vrot.slane %v1218, %v1225
        %v1228 = vunpack.c.l.s4 1983009808
        %v1229 = vunpack.c.0.s8 %v1228
        %v1230 = vlaneseq
        %v1231 = vshrl.u32 %v1230, 7
        %v1232 = vsub.s32 %v1229, %v1231
        %v1233 = vrot.slane %v1219, %v1232
        %v1234 = vcombine.low %v375, %v383
        %v1235 = vcombine.high %v375, %v383
        %v1237 = vunpack.c.l.s4 1983009808
        %v1238 = vunpack.c.0.s8 %v1237
        %v1239 = vlaneseq
        %v1240 = vshrl.u32 %v1239, 7
        %v1241 = vsub.s32 %v1238, %v1240
        %v1242 = vrot.slane %v1234, %v1241
        %v1244 = vunpack.c.l.s4 1983009808
        %v1245 = vunpack.c.0.s8 %v1244
        %v1246 = vlaneseq
        %v1247 = vshrl.u32 %v1246, 7
        %v1248 = vsub.s32 %v1245, %v1247
        %v1249 = vrot.slane %v1235, %v1248
        %v1250 = vcombine.low %v1194, %v1210
        %v1251 = vcombine.high %v1194, %v1210
        %v1253 = vunpack.c.l.s4 1934713408
        %v1254 = vunpack.c.0.s8 %v1253
        %v1255 = vlaneseq
        %v1256 = vshrl.u32 %v1255, 7
        %v1257 = vsub.s32 %v1254, %v1256
        %v1258 = vrot.slane %v1250, %v1257
        %v1260 = vunpack.c.l.s4 1934713408
        %v1261 = vunpack.c.0.s8 %v1260
        %v1262 = vlaneseq
        %v1263 = vshrl.u32 %v1262, 7
        %v1264 = vsub.s32 %v1261, %v1263
        %v1265 = vrot.slane %v1251, %v1264
        %v1266 = vcombine.low %v1201, %v1217
        %v1267 = vcombine.high %v1201, %v1217
        %v1269 = vunpack.c.l.s4 1934713408
        %v1270 = vunpack.c.0.s8 %v1269
        %v1271 = vlaneseq
        %v1272 = vshrl.u32 %v1271, 7
        %v1273 = vsub.s32 %v1270, %v1272
        %v1274 = vrot.slane %v1266, %v1273
        %v1276 = vunpack.c.l.s4 1934713408
        %v1277 = vunpack.c.0.s8 %v1276
        %v1278 = vlaneseq
        %v1279 = vshrl.u32 %v1278, 7
        %v1280 = vsub.s32 %v1277, %v1279
        %v1281 = vrot.slane %v1267, %v1280
        %v1282 = vcombine.low %v1226, %v1242
        %v1283 = vcombine.high %v1226, %v1242
        %v1285 = vunpack.c.l.s4 1934713408
        %v1286 = vunpack.c.0.s8 %v1285
        %v1287 = vlaneseq
        %v1288 = vshrl.u32 %v1287, 7
        %v1289 = vsub.s32 %v1286, %v1288
        %v1290 = vrot.slane %v1282, %v1289
        %v1292 = vunpack.c.l.s4 1934713408
        %v1293 = vunpack.c.0.s8 %v1292
        %v1294 = vlaneseq
        %v1295 = vshrl.u32 %v1294, 7
        %v1296 = vsub.s32 %v1293, %v1295
        %v1297 = vrot.slane %v1283, %v1296
        %v1298 = vcombine.low %v1233, %v1249
        %v1299 = vcombine.high %v1233, %v1249
        %v1301 = vunpack.c.l.s4 1934713408
        %v1302 = vunpack.c.0.s8 %v1301
        %v1303 = vlaneseq
        %v1304 = vshrl.u32 %v1303, 7
        %v1305 = vsub.s32 %v1302, %v1304
        %v1306 = vrot.slane %v1298, %v1305
        %v1308 = vunpack.c.l.s4 1934713408
        %v1309 = vunpack.c.0.s8 %v1308
        %v1310 = vlaneseq
        %v1311 = vshrl.u32 %v1310, 7
        %v1312 = vsub.s32 %v1309, %v1311
        %v1313 = vrot.slane %v1299, %v1312
        %v1314 = vcombine.low %v1258, %v1290
        %v1315 = vcombine.high %v1258, %v1290
        %v1316 = vcombine.low %v1265, %v1297
        %v1317 = vcombine.high %v1265, %v1297
        %v1318 = vcombine.low %v1274, %v1306
        %v1319 = vcombine.high %v1274, %v1306
        %v1320 = vcombine.low %v1281, %v1313
        %v1321 = vcombine.high %v1281, %v1313
        %v1322 = vcombine.low %v395, %v403
        %v1323 = vcombine.high %v395, %v403
        %v1325 = vunpack.c.l.s4 1983009808
        %v1326 = vunpack.c.0.s8 %v1325
        %v1327 = vlaneseq
        %v1328 = vshrl.u32 %v1327, 7
        %v1329 = vsub.s32 %v1326, %v1328
        %v1330 = vrot.slane %v1322, %v1329
        %v1332 = vunpack.c.l.s4 1983009808
        %v1333 = vunpack.c.0.s8 %v1332
        %v1334 = vlaneseq
        %v1335 = vshrl.u32 %v1334, 7
        %v1336 = vsub.s32 %v1333, %v1335
        %v1337 = vrot.slane %v1323, %v1336
        %v1338 = vcombine.low %v399, %v407
        %v1339 = vcombine.high %v399, %v407
        %v1341 = vunpack.c.l.s4 1983009808
        %v1342 = vunpack.c.0.s8 %v1341
        %v1343 = vlaneseq
        %v1344 = vshrl.u32 %v1343, 7
        %v1345 = vsub.s32 %v1342, %v1344
        %v1346 = vrot.slane %v1338, %v1345
        %v1348 = vunpack.c.l.s4 1983009808
        %v1349 = vunpack.c.0.s8 %v1348
        %v1350 = vlaneseq
        %v1351 = vshrl.u32 %v1350, 7
        %v1352 = vsub.s32 %v1349, %v1351
        %v1353 = vrot.slane %v1339, %v1352
        %v1354 = vcombine.low %v425, %v435
        %v1355 = vcombine.high %v425, %v435
        %v1357 = vunpack.c.l.s4 1983009808
        %v1358 = vunpack.c.0.s8 %v1357
        %v1359 = vlaneseq
        %v1360 = vshrl.u32 %v1359, 7
        %v1361 = vsub.s32 %v1358, %v1360
        %v1362 = vrot.slane %v1354, %v1361
        %v1364 = vunpack.c.l.s4 1983009808
        %v1365 = vunpack.c.0.s8 %v1364
        %v1366 = vlaneseq
        %v1367 = vshrl.u32 %v1366, 7
        %v1368 = vsub.s32 %v1365, %v1367
        %v1369 = vrot.slane %v1355, %v1368
        %v1370 = vcombine.low %v430, %v440
        %v1371 = vcombine.high %v430, %v440
        %v1373 = vunpack.c.l.s4 1983009808
        %v1374 = vunpack.c.0.s8 %v1373
        %v1375 = vlaneseq
        %v1376 = vshrl.u32 %v1375, 7
        %v1377 = vsub.s32 %v1374, %v1376
        %v1378 = vrot.slane %v1370, %v1377
        %v1380 = vunpack.c.l.s4 1983009808
        %v1381 = vunpack.c.0.s8 %v1380
        %v1382 = vlaneseq
        %v1383 = vshrl.u32 %v1382, 7
        %v1384 = vsub.s32 %v1381, %v1383
        %v1385 = vrot.slane %v1371, %v1384
        %v1386 = vcombine.low %v1330, %v1346
        %v1387 = vcombine.high %v1330, %v1346
        %v1389 = vunpack.c.l.s4 1934713408
        %v1390 = vunpack.c.0.s8 %v1389
        %v1391 = vlaneseq
        %v1392 = vshrl.u32 %v1391, 7
        %v1393 = vsub.s32 %v1390, %v1392
        %v1394 = vrot.slane %v1386, %v1393
        %v1396 = vunpack.c.l.s4 1934713408
        %v1397 = vunpack.c.0.s8 %v1396
        %v1398 = vlaneseq
        %v1399 = vshrl.u32 %v1398, 7
        %v1400 = vsub.s32 %v1397, %v1399
        %v1401 = vrot.slane %v1387, %v1400
        %v1402 = vcombine.low %v1337, %v1353
        %v1403 = vcombine.high %v1337, %v1353
        %v1405 = vunpack.c.l.s4 1934713408
        %v1406 = vunpack.c.0.s8 %v1405
        %v1407 = vlaneseq
        %v1408 = vshrl.u32 %v1407, 7
        %v1409 = vsub.s32 %v1406, %v1408
        %v1410 = vrot.slane %v1402, %v1409
        %v1412 = vunpack.c.l.s4 1934713408
        %v1413 = vunpack.c.0.s8 %v1412
        %v1414 = vlaneseq
        %v1415 = vshrl.u32 %v1414, 7
        %v1416 = vsub.s32 %v1413, %v1415
        %v1417 = vrot.slane %v1403, %v1416
        %v1418 = vcombine.low %v1362, %v1378
        %v1419 = vcombine.high %v1362, %v1378
        %v1421 = vunpack.c.l.s4 1934713408
        %v1422 = vunpack.c.0.s8 %v1421
        %v1423 = vlaneseq
        %v1424 = vshrl.u32 %v1423, 7
        %v1425 = vsub.s32 %v1422, %v1424
        %v1426 = vrot.slane %v1418, %v1425
        %v1428 = vunpack.c.l.s4 1934713408
        %v1429 = vunpack.c.0.s8 %v1428
        %v1430 = vlaneseq
        %v1431 = vshrl.u32 %v1430, 7
        %v1432 = vsub.s32 %v1429, %v1431
        %v1433 = vrot.slane %v1419, %v1432
        %v1434 = vcombine.low %v1369, %v1385
        %v1435 = vcombine.high %v1369, %v1385
        %v1437 = vunpack.c.l.s4 1934713408
        %v1438 = vunpack.c.0.s8 %v1437
        %v1439 = vlaneseq
        %v1440 = vshrl.u32 %v1439, 7
        %v1441 = vsub.s32 %v1438, %v1440
        %v1442 = vrot.slane %v1434, %v1441
        %v1444 = vunpack.c.l.s4 1934713408
        %v1445 = vunpack.c.0.s8 %v1444
        %v1446 = vlaneseq
        %v1447 = vshrl.u32 %v1446, 7
        %v1448 = vsub.s32 %v1445, %v1447
        %v1449 = vrot.slane %v1435, %v1448
        %v1450 = vcombine.low %v1394, %v1426
        %v1451 = vcombine.high %v1394, %v1426
        %v1452 = vcombine.low %v1401, %v1433
        %v1453 = vcombine.high %v1401, %v1433
        %v1454 = vcombine.low %v1410, %v1442
        %v1455 = vcombine.high %v1410, %v1442
        %v1456 = vcombine.low %v1417, %v1449
        %v1457 = vcombine.high %v1417, %v1449
        %v1458 = vcombine.low %v452, %v460
        %v1459 = vcombine.high %v452, %v460
        %v1461 = vunpack.c.l.s4 1983009808
        %v1462 = vunpack.c.0.s8 %v1461
        %v1463 = vlaneseq
        %v1464 = vshrl.u32 %v1463, 7
        %v1465 = vsub.s32 %v1462, %v1464
        %v1466 = vrot.slane %v1458, %v1465
        %v1468 = vunpack.c.l.s4 1983009808
        %v1469 = vunpack.c.0.s8 %v1468
        %v1470 = vlaneseq
        %v1471 = vshrl.u32 %v1470, 7
        %v1472 = vsub.s32 %v1469, %v1471
        %v1473 = vrot.slane %v1459, %v1472
        %v1474 = vcombine.low %v456, %v464
        %v1475 = vcombine.high %v456, %v464
        %v1477 = vunpack.c.l.s4 1983009808
        %v1478 = vunpack.c.0.s8 %v1477
        %v1479 = vlaneseq
        %v1480 = vshrl.u32 %v1479, 7
        %v1481 = vsub.s32 %v1478, %v1480
        %v1482 = vrot.slane %v1474, %v1481
        %v1484 = vunpack.c.l.s4 1983009808
        %v1485 = vunpack.c.0.s8 %v1484
        %v1486 = vlaneseq
        %v1487 = vshrl.u32 %v1486, 7
        %v1488 = vsub.s32 %v1485, %v1487
        %v1489 = vrot.slane %v1475, %v1488
        %v1490 = vcombine.low %v476, %v484
        %v1491 = vcombine.high %v476, %v484
        %v1493 = vunpack.c.l.s4 1983009808
        %v1494 = vunpack.c.0.s8 %v1493
        %v1495 = vlaneseq
        %v1496 = vshrl.u32 %v1495, 7
        %v1497 = vsub.s32 %v1494, %v1496
        %v1498 = vrot.slane %v1490, %v1497
        %v1500 = vunpack.c.l.s4 1983009808
        %v1501 = vunpack.c.0.s8 %v1500
        %v1502 = vlaneseq
        %v1503 = vshrl.u32 %v1502, 7
        %v1504 = vsub.s32 %v1501, %v1503
        %v1505 = vrot.slane %v1491, %v1504
        %v1506 = vcombine.low %v480, %v488
        %v1507 = vcombine.high %v480, %v488
        %v1509 = vunpack.c.l.s4 1983009808
        %v1510 = vunpack.c.0.s8 %v1509
        %v1511 = vlaneseq
        %v1512 = vshrl.u32 %v1511, 7
        %v1513 = vsub.s32 %v1510, %v1512
        %v1514 = vrot.slane %v1506, %v1513
        %v1516 = vunpack.c.l.s4 1983009808
        %v1517 = vunpack.c.0.s8 %v1516
        %v1518 = vlaneseq
        %v1519 = vshrl.u32 %v1518, 7
        %v1520 = vsub.s32 %v1517, %v1519
        %v1521 = vrot.slane %v1507, %v1520
        %v1522 = vcombine.low %v1466, %v1482
        %v1523 = vcombine.high %v1466, %v1482
        %v1525 = vunpack.c.l.s4 1934713408
        %v1526 = vunpack.c.0.s8 %v1525
        %v1527 = vlaneseq
        %v1528 = vshrl.u32 %v1527, 7
        %v1529 = vsub.s32 %v1526, %v1528
        %v1530 = vrot.slane %v1522, %v1529
        %v1532 = vunpack.c.l.s4 1934713408
        %v1533 = vunpack.c.0.s8 %v1532
        %v1534 = vlaneseq
        %v1535 = vshrl.u32 %v1534, 7
        %v1536 = vsub.s32 %v1533, %v1535
        %v1537 = vrot.slane %v1523, %v1536
        %v1538 = vcombine.low %v1473, %v1489
        %v1539 = vcombine.high %v1473, %v1489
        %v1541 = vunpack.c.l.s4 1934713408
        %v1542 = vunpack.c.0.s8 %v1541
        %v1543 = vlaneseq
        %v1544 = vshrl.u32 %v1543, 7
        %v1545 = vsub.s32 %v1542, %v1544
        %v1546 = vrot.slane %v1538, %v1545
        %v1548 = vunpack.c.l.s4 1934713408
        %v1549 = vunpack.c.0.s8 %v1548
        %v1550 = vlaneseq
        %v1551 = vshrl.u32 %v1550, 7
        %v1552 = vsub.s32 %v1549, %v1551
        %v1553 = vrot.slane %v1539, %v1552
        %v1554 = vcombine.low %v1498, %v1514
        %v1555 = vcombine.high %v1498, %v1514
        %v1557 = vunpack.c.l.s4 1934713408
        %v1558 = vunpack.c.0.s8 %v1557
        %v1559 = vlaneseq
        %v1560 = vshrl.u32 %v1559, 7
        %v1561 = vsub.s32 %v1558, %v1560
        %v1562 = vrot.slane %v1554, %v1561
        %v1564 = vunpack.c.l.s4 1934713408
        %v1565 = vunpack.c.0.s8 %v1564
        %v1566 = vlaneseq
        %v1567 = vshrl.u32 %v1566, 7
        %v1568 = vsub.s32 %v1565, %v1567
        %v1569 = vrot.slane %v1555, %v1568
        %v1570 = vcombine.low %v1505, %v1521
        %v1571 = vcombine.high %v1505, %v1521
        %v1573 = vunpack.c.l.s4 1934713408
        %v1574 = vunpack.c.0.s8 %v1573
        %v1575 = vlaneseq
        %v1576 = vshrl.u32 %v1575, 7
        %v1577 = vsub.s32 %v1574, %v1576
        %v1578 = vrot.slane %v1570, %v1577
        %v1580 = vunpack.c.l.s4 1934713408
        %v1581 = vunpack.c.0.s8 %v1580
        %v1582 = vlaneseq
        %v1583 = vshrl.u32 %v1582, 7
        %v1584 = vsub.s32 %v1581, %v1583
        %v1585 = vrot.slane %v1571, %v1584
        %v1586 = vcombine.low %v1530, %v1562
        %v1587 = vcombine.high %v1530, %v1562
        %v1588 = vcombine.low %v1537, %v1569
        %v1589 = vcombine.high %v1537, %v1569
        %v1590 = vcombine.low %v1546, %v1578
        %v1591 = vcombine.high %v1546, %v1578
        %v1592 = vcombine.low %v1553, %v1585
        %v1593 = vcombine.high %v1553, %v1585
        %v1594 = vcombine.low %v502, %v512
        %v1595 = vcombine.high %v502, %v512
        %v1597 = vunpack.c.l.s4 1983009808
        %v1598 = vunpack.c.0.s8 %v1597
        %v1599 = vlaneseq
        %v1600 = vshrl.u32 %v1599, 7
        %v1601 = vsub.s32 %v1598, %v1600
        %v1602 = vrot.slane %v1594, %v1601
        %v1604 = vunpack.c.l.s4 1983009808
        %v1605 = vunpack.c.0.s8 %v1604
        %v1606 = vlaneseq
        %v1607 = vshrl.u32 %v1606, 7
        %v1608 = vsub.s32 %v1605, %v1607
        %v1609 = vrot.slane %v1595, %v1608
        %v1610 = vcombine.low %v507, %v517
        %v1611 = vcombine.high %v507, %v517
        %v1613 = vunpack.c.l.s4 1983009808
        %v1614 = vunpack.c.0.s8 %v1613
        %v1615 = vlaneseq
        %v1616 = vshrl.u32 %v1615, 7
        %v1617 = vsub.s32 %v1614, %v1616
        %v1618 = vrot.slane %v1610, %v1617
        %v1620 = vunpack.c.l.s4 1983009808
        %v1621 = vunpack.c.0.s8 %v1620
        %v1622 = vlaneseq
        %v1623 = vshrl.u32 %v1622, 7
        %v1624 = vsub.s32 %v1621, %v1623
        %v1625 = vrot.slane %v1611, %v1624
        %v1626 = vcombine.low %v529, %v537
        %v1627 = vcombine.high %v529, %v537
        %v1629 = vunpack.c.l.s4 1983009808
        %v1630 = vunpack.c.0.s8 %v1629
        %v1631 = vlaneseq
        %v1632 = vshrl.u32 %v1631, 7
        %v1633 = vsub.s32 %v1630, %v1632
        %v1634 = vrot.slane %v1626, %v1633
        %v1636 = vunpack.c.l.s4 1983009808
        %v1637 = vunpack.c.0.s8 %v1636
        %v1638 = vlaneseq
        %v1639 = vshrl.u32 %v1638, 7
        %v1640 = vsub.s32 %v1637, %v1639
        %v1641 = vrot.slane %v1627, %v1640
        %v1642 = vcombine.low %v533, %v541
        %v1643 = vcombine.high %v533, %v541
        %v1645 = vunpack.c.l.s4 1983009808
        %v1646 = vunpack.c.0.s8 %v1645
        %v1647 = vlaneseq
        %v1648 = vshrl.u32 %v1647, 7
        %v1649 = vsub.s32 %v1646, %v1648
        %v1650 = vrot.slane %v1642, %v1649
        %v1652 = vunpack.c.l.s4 1983009808
        %v1653 = vunpack.c.0.s8 %v1652
        %v1654 = vlaneseq
        %v1655 = vshrl.u32 %v1654, 7
        %v1656 = vsub.s32 %v1653, %v1655
        %v1657 = vrot.slane %v1643, %v1656
        %v1658 = vcombine.low %v1602, %v1618
        %v1659 = vcombine.high %v1602, %v1618
        %v1661 = vunpack.c.l.s4 1934713408
        %v1662 = vunpack.c.0.s8 %v1661
        %v1663 = vlaneseq
        %v1664 = vshrl.u32 %v1663, 7
        %v1665 = vsub.s32 %v1662, %v1664
        %v1666 = vrot.slane %v1658, %v1665
        %v1668 = vunpack.c.l.s4 1934713408
        %v1669 = vunpack.c.0.s8 %v1668
        %v1670 = vlaneseq
        %v1671 = vshrl.u32 %v1670, 7
        %v1672 = vsub.s32 %v1669, %v1671
        %v1673 = vrot.slane %v1659, %v1672
        %v1674 = vcombine.low %v1609, %v1625
        %v1675 = vcombine.high %v1609, %v1625
        %v1677 = vunpack.c.l.s4 1934713408
        %v1678 = vunpack.c.0.s8 %v1677
        %v1679 = vlaneseq
        %v1680 = vshrl.u32 %v1679, 7
        %v1681 = vsub.s32 %v1678, %v1680
        %v1682 = vrot.slane %v1674, %v1681
        %v1684 = vunpack.c.l.s4 1934713408
        %v1685 = vunpack.c.0.s8 %v1684
        %v1686 = vlaneseq
        %v1687 = vshrl.u32 %v1686, 7
        %v1688 = vsub.s32 %v1685, %v1687
        %v1689 = vrot.slane %v1675, %v1688
        %v1690 = vcombine.low %v1634, %v1650
        %v1691 = vcombine.high %v1634, %v1650
        %v1693 = vunpack.c.l.s4 1934713408
        %v1694 = vunpack.c.0.s8 %v1693
        %v1695 = vlaneseq
        %v1696 = vshrl.u32 %v1695, 7
        %v1697 = vsub.s32 %v1694, %v1696
        %v1698 = vrot.slane %v1690, %v1697
        %v1700 = vunpack.c.l.s4 1934713408
        %v1701 = vunpack.c.0.s8 %v1700
        %v1702 = vlaneseq
        %v1703 = vshrl.u32 %v1702, 7
        %v1704 = vsub.s32 %v1701, %v1703
        %v1705 = vrot.slane %v1691, %v1704
        %v1706 = vcombine.low %v1641, %v1657
        %v1707 = vcombine.high %v1641, %v1657
        %v1709 = vunpack.c.l.s4 1934713408
        %v1710 = vunpack.c.0.s8 %v1709
        %v1711 = vlaneseq
        %v1712 = vshrl.u32 %v1711, 7
        %v1713 = vsub.s32 %v1710, %v1712
        %v1714 = vrot.slane %v1706, %v1713
        %v1716 = vunpack.c.l.s4 1934713408
        %v1717 = vunpack.c.0.s8 %v1716
        %v1718 = vlaneseq
        %v1719 = vshrl.u32 %v1718, 7
        %v1720 = vsub.s32 %v1717, %v1719
        %v1721 = vrot.slane %v1707, %v1720
        %v1722 = vcombine.low %v1666, %v1698
        %v1723 = vcombine.high %v1666, %v1698
        %v1724 = vcombine.low %v1673, %v1705
        %v1725 = vcombine.high %v1673, %v1705
        %v1726 = vcombine.low %v1682, %v1714
        %v1727 = vcombine.high %v1682, %v1714
        %v1728 = vcombine.low %v1689, %v1721
        %v1729 = vcombine.high %v1689, %v1721
        %v1730 = vcombine.low %v553, %v561
        %v1731 = vcombine.high %v553, %v561
        %v1733 = vunpack.c.l.s4 1983009808
        %v1734 = vunpack.c.0.s8 %v1733
        %v1735 = vlaneseq
        %v1736 = vshrl.u32 %v1735, 7
        %v1737 = vsub.s32 %v1734, %v1736
        %v1738 = vrot.slane %v1730, %v1737
        %v1740 = vunpack.c.l.s4 1983009808
        %v1741 = vunpack.c.0.s8 %v1740
        %v1742 = vlaneseq
        %v1743 = vshrl.u32 %v1742, 7
        %v1744 = vsub.s32 %v1741, %v1743
        %v1745 = vrot.slane %v1731, %v1744
        %v1746 = vcombine.low %v557, %v565
        %v1747 = vcombine.high %v557, %v565
        %v1749 = vunpack.c.l.s4 1983009808
        %v1750 = vunpack.c.0.s8 %v1749
        %v1751 = vlaneseq
        %v1752 = vshrl.u32 %v1751, 7
        %v1753 = vsub.s32 %v1750, %v1752
        %v1754 = vrot.slane %v1746, %v1753
        %v1756 = vunpack.c.l.s4 1983009808
        %v1757 = vunpack.c.0.s8 %v1756
        %v1758 = vlaneseq
        %v1759 = vshrl.u32 %v1758, 7
        %v1760 = vsub.s32 %v1757, %v1759
        %v1761 = vrot.slane %v1747, %v1760
        %v1762 = vcombine.low %v1738, %v1754
        %v1763 = vcombine.high %v1738, %v1754
        %v1765 = vunpack.c.l.s4 1934713408
        %v1766 = vunpack.c.0.s8 %v1765
        %v1767 = vlaneseq
        %v1768 = vshrl.u32 %v1767, 7
        %v1769 = vsub.s32 %v1766, %v1768
        %v1770 = vrot.slane %v1762, %v1769
        %v1772 = vunpack.c.l.s4 1934713408
        %v1773 = vunpack.c.0.s8 %v1772
        %v1774 = vlaneseq
        %v1775 = vshrl.u32 %v1774, 7
        %v1776 = vsub.s32 %v1773, %v1775
        %v1777 = vrot.slane %v1763, %v1776
        %v1778 = vcombine.low %v1745, %v1761
        %v1779 = vcombine.high %v1745, %v1761
        %v1781 = vunpack.c.l.s4 1934713408
        %v1782 = vunpack.c.0.s8 %v1781
        %v1783 = vlaneseq
        %v1784 = vshrl.u32 %v1783, 7
        %v1785 = vsub.s32 %v1782, %v1784
        %v1786 = vrot.slane %v1778, %v1785
        %v1788 = vunpack.c.l.s4 1934713408
        %v1789 = vunpack.c.0.s8 %v1788
        %v1790 = vlaneseq
        %v1791 = vshrl.u32 %v1790, 7
        %v1792 = vsub.s32 %v1789, %v1791
        %v1793 = vrot.slane %v1779, %v1792
        %v1794 = vcombine.high %v1770, 0.0
        %v1795 = vcombine.high %v1777, 0.0
        %v1796 = vcombine.high %v1786, 0.0
        %v1797 = vcombine.high %v1793, 0.0
        %1803 = vrot.lane.b32.xlu0 %v703, 16
        %v1804 = vpop.permute.xlu0 %1803
        %1805 = vrot.lane.b32.xlu0 %v839, 16
        %v1806 = vpop.permute.xlu0 %1805
        %1807 = vrot.lane.b32.xlu0 %v975, 16
        %v1808 = vpop.permute.xlu0 %1807
        %1809 = vrot.lane.b32.xlu0 %v1111, 16
        %v1810 = vpop.permute.xlu0 %1809
        %1811 = vrot.lane.b32.xlu0 %v1182, 16
        %v1812 = vpop.permute.xlu0 %1811
        %1823 = vrot.lane.b32.xlu0 %v704, 32
        %v1824 = vpop.permute.xlu0 %1823
        %1825 = vrot.lane.b32.xlu0 %v840, 32
        %v1826 = vpop.permute.xlu0 %1825
        %1827 = vrot.lane.b32.xlu0 %v976, 32
        %v1828 = vpop.permute.xlu0 %1827
        %1829 = vrot.lane.b32.xlu0 %v1112, 32
        %v1830 = vpop.permute.xlu0 %1829
        %1831 = vrot.lane.b32.xlu0 %v1165, 32
        %v1832 = vpop.permute.xlu0 %1831
        %1843 = vrot.lane.b32.xlu0 %v705, 48
        %v1844 = vpop.permute.xlu0 %1843
        %1845 = vrot.lane.b32.xlu0 %v841, 48
        %v1846 = vpop.permute.xlu0 %1845
        %1847 = vrot.lane.b32.xlu0 %v977, 48
        %v1848 = vpop.permute.xlu0 %1847
        %1849 = vrot.lane.b32.xlu0 %v1113, 48
        %v1850 = vpop.permute.xlu0 %1849
        %1851 = vrot.lane.b32.xlu0 %v1183, 48
        %v1852 = vpop.permute.xlu0 %1851
        %1863 = vrot.lane.b32.xlu0 %v706, 64
        %v1864 = vpop.permute.xlu0 %1863
        %1865 = vrot.lane.b32.xlu0 %v842, 64
        %v1866 = vpop.permute.xlu0 %1865
        %1867 = vrot.lane.b32.xlu0 %v978, 64
        %v1868 = vpop.permute.xlu0 %1867
        %1869 = vrot.lane.b32.xlu0 %v1114, 64
        %v1870 = vpop.permute.xlu0 %1869
        %1871 = vrot.lane.b32.xlu0 %v1174, 64
        %v1872 = vpop.permute.xlu0 %1871
        %1883 = vrot.lane.b32.xlu0 %v707, 80
        %v1884 = vpop.permute.xlu0 %1883
        %1885 = vrot.lane.b32.xlu0 %v843, 80
        %v1886 = vpop.permute.xlu0 %1885
        %1887 = vrot.lane.b32.xlu0 %v979, 80
        %v1888 = vpop.permute.xlu0 %1887
        %1889 = vrot.lane.b32.xlu0 %v1115, 80
        %v1890 = vpop.permute.xlu0 %1889
        %1891 = vrot.lane.b32.xlu0 %v1184, 80
        %v1892 = vpop.permute.xlu0 %1891
        %1903 = vrot.lane.b32.xlu0 %v708, 96
        %v1904 = vpop.permute.xlu0 %1903
        %1905 = vrot.lane.b32.xlu0 %v844, 96
        %v1906 = vpop.permute.xlu0 %1905
        %1907 = vrot.lane.b32.xlu0 %v980, 96
        %v1908 = vpop.permute.xlu0 %1907
        %1909 = vrot.lane.b32.xlu0 %v1116, 96
        %v1910 = vpop.permute.xlu0 %1909
        %1911 = vrot.lane.b32.xlu0 %v1181, 96
        %v1912 = vpop.permute.xlu0 %1911
        %1923 = vrot.lane.b32.xlu0 %v709, 112
        %v1924 = vpop.permute.xlu0 %1923
        %1925 = vrot.lane.b32.xlu0 %v845, 112
        %v1926 = vpop.permute.xlu0 %1925
        %1927 = vrot.lane.b32.xlu0 %v981, 112
        %v1928 = vpop.permute.xlu0 %1927
        %1929 = vrot.lane.b32.xlu0 %v1117, 112
        %v1930 = vpop.permute.xlu0 %1929
        %1931 = vrot.lane.b32.xlu0 %v1185, 112
        %v1932 = vpop.permute.xlu0 %1931
        %1943 = vrot.lane.b32.xlu0 %v1315, 16
        %v1944 = vpop.permute.xlu0 %1943
        %1945 = vrot.lane.b32.xlu0 %v1451, 16
        %v1946 = vpop.permute.xlu0 %1945
        %1947 = vrot.lane.b32.xlu0 %v1587, 16
        %v1948 = vpop.permute.xlu0 %1947
        %1949 = vrot.lane.b32.xlu0 %v1723, 16
        %v1950 = vpop.permute.xlu0 %1949
        %1951 = vrot.lane.b32.xlu0 %v1794, 16
        %v1952 = vpop.permute.xlu0 %1951
        %1963 = vrot.lane.b32.xlu0 %v1316, 32
        %v1964 = vpop.permute.xlu0 %1963
        %1965 = vrot.lane.b32.xlu0 %v1452, 32
        %v1966 = vpop.permute.xlu0 %1965
        %1967 = vrot.lane.b32.xlu0 %v1588, 32
        %v1968 = vpop.permute.xlu0 %1967
        %1969 = vrot.lane.b32.xlu0 %v1724, 32
        %v1970 = vpop.permute.xlu0 %1969
        %1971 = vrot.lane.b32.xlu0 %v1777, 32
        %v1972 = vpop.permute.xlu0 %1971
        %1983 = vrot.lane.b32.xlu0 %v1317, 48
        %v1984 = vpop.permute.xlu0 %1983
        %1985 = vrot.lane.b32.xlu0 %v1453, 48
        %v1986 = vpop.permute.xlu0 %1985
        %1987 = vrot.lane.b32.xlu0 %v1589, 48
        %v1988 = vpop.permute.xlu0 %1987
        %1989 = vrot.lane.b32.xlu0 %v1725, 48
        %v1990 = vpop.permute.xlu0 %1989
        %1991 = vrot.lane.b32.xlu0 %v1795, 48
        %v1992 = vpop.permute.xlu0 %1991
        %2003 = vrot.lane.b32.xlu0 %v1318, 64
        %v2004 = vpop.permute.xlu0 %2003
        %2005 = vrot.lane.b32.xlu0 %v1454, 64
        %v2006 = vpop.permute.xlu0 %2005
        %2007 = vrot.lane.b32.xlu0 %v1590, 64
        %v2008 = vpop.permute.xlu0 %2007
        %2009 = vrot.lane.b32.xlu0 %v1726, 64
        %v2010 = vpop.permute.xlu0 %2009
        %2011 = vrot.lane.b32.xlu0 %v1786, 64
        %v2012 = vpop.permute.xlu0 %2011
        %2023 = vrot.lane.b32.xlu0 %v1319, 80
        %v2024 = vpop.permute.xlu0 %2023
        %2025 = vrot.lane.b32.xlu0 %v1455, 80
        %v2026 = vpop.permute.xlu0 %2025
        %2027 = vrot.lane.b32.xlu0 %v1591, 80
        %v2028 = vpop.permute.xlu0 %2027
        %2029 = vrot.lane.b32.xlu0 %v1727, 80
        %v2030 = vpop.permute.xlu0 %2029
        %2031 = vrot.lane.b32.xlu0 %v1796, 80
        %v2032 = vpop.permute.xlu0 %2031
        %2043 = vrot.lane.b32.xlu0 %v1320, 96
        %v2044 = vpop.permute.xlu0 %2043
        %2045 = vrot.lane.b32.xlu0 %v1456, 96
        %v2046 = vpop.permute.xlu0 %2045
        %2047 = vrot.lane.b32.xlu0 %v1592, 96
        %v2048 = vpop.permute.xlu0 %2047
        %2049 = vrot.lane.b32.xlu0 %v1728, 96
        %v2050 = vpop.permute.xlu0 %2049
        %2051 = vrot.lane.b32.xlu0 %v1793, 96
        %v2052 = vpop.permute.xlu0 %2051
        %2063 = vrot.lane.b32.xlu0 %v1321, 112
        %v2064 = vpop.permute.xlu0 %2063
        %2065 = vrot.lane.b32.xlu0 %v1457, 112
        %v2066 = vpop.permute.xlu0 %2065
        %2067 = vrot.lane.b32.xlu0 %v1593, 112
        %v2068 = vpop.permute.xlu0 %2067
        %2069 = vrot.lane.b32.xlu0 %v1729, 112
        %v2070 = vpop.permute.xlu0 %2069
        %2071 = vrot.lane.b32.xlu0 %v1797, 112
        %v2072 = vpop.permute.xlu0 %2071
        %vm2078 = vcmask 130048
        %v2079 = vsel %vm2078, %v702, %v1804
        %v2080 = vsel %vm2078, %v838, %v1806
        %v2081 = vsel %vm2078, %v974, %v1808
        %v2082 = vsel %vm2078, %v1110, %v1810
        %v2083 = vsel %vm2078, %v1158, %v1812
        %vm2084 = vcmask 261120
        %v2085 = vsel %vm2084, %v2079, %v1824
        %v2086 = vsel %vm2084, %v2080, %v1826
        %v2087 = vsel %vm2084, %v2081, %v1828
        %v2088 = vsel %vm2084, %v2082, %v1830
        %v2089 = vsel %vm2084, %v2083, %v1832
        %vm2090 = vcmask 392192
        %v2091 = vsel %vm2090, %v2085, %v1844
        %v2092 = vsel %vm2090, %v2086, %v1846
        %v2093 = vsel %vm2090, %v2087, %v1848
        %v2094 = vsel %vm2090, %v2088, %v1850
        %v2095 = vsel %vm2090, %v2089, %v1852
        %vm2096 = vcmask 523264
        %v2097 = vsel %vm2096, %v2091, %v1864
        %v2098 = vsel %vm2096, %v2092, %v1866
        %v2099 = vsel %vm2096, %v2093, %v1868
        %v2100 = vsel %vm2096, %v2094, %v1870
        %v2101 = vsel %vm2096, %v2095, %v1872
        %vm2102 = vcmask 654336
        %v2103 = vsel %vm2102, %v2097, %v1884
        %v2104 = vsel %vm2102, %v2098, %v1886
        %v2105 = vsel %vm2102, %v2099, %v1888
        %v2106 = vsel %vm2102, %v2100, %v1890
        %v2107 = vsel %vm2102, %v2101, %v1892
        %vm2108 = vcmask 785408
        %v2109 = vsel %vm2108, %v2103, %v1904
        %v2110 = vsel %vm2108, %v2104, %v1906
        %v2111 = vsel %vm2108, %v2105, %v1908
        %v2112 = vsel %vm2108, %v2106, %v1910
        %v2113 = vsel %vm2108, %v2107, %v1912
        %vm2114 = vcmask 916480
        %v2115 = vsel %vm2114, %v2109, %v1924
        %v2116 = vsel %vm2114, %v2110, %v1926
        %v2117 = vsel %vm2114, %v2111, %v1928
        %v2118 = vsel %vm2114, %v2112, %v1930
        %v2119 = vsel %vm2114, %v2113, %v1932
        %v2120 = vsel %vm2078, %v1314, %v1944
        %v2121 = vsel %vm2078, %v1450, %v1946
        %v2122 = vsel %vm2078, %v1586, %v1948
        %v2123 = vsel %vm2078, %v1722, %v1950
        %v2124 = vsel %vm2078, %v1770, %v1952
        %v2125 = vsel %vm2084, %v2120, %v1964
        %v2126 = vsel %vm2084, %v2121, %v1966
        %v2127 = vsel %vm2084, %v2122, %v1968
        %v2128 = vsel %vm2084, %v2123, %v1970
        %v2129 = vsel %vm2084, %v2124, %v1972
        %v2130 = vsel %vm2090, %v2125, %v1984
        %v2131 = vsel %vm2090, %v2126, %v1986
        %v2132 = vsel %vm2090, %v2127, %v1988
        %v2133 = vsel %vm2090, %v2128, %v1990
        %v2134 = vsel %vm2090, %v2129, %v1992
        %v2135 = vsel %vm2096, %v2130, %v2004
        %v2136 = vsel %vm2096, %v2131, %v2006
        %v2137 = vsel %vm2096, %v2132, %v2008
        %v2138 = vsel %vm2096, %v2133, %v2010
        %v2139 = vsel %vm2096, %v2134, %v2012
        %v2140 = vsel %vm2102, %v2135, %v2024
        %v2141 = vsel %vm2102, %v2136, %v2026
        %v2142 = vsel %vm2102, %v2137, %v2028
        %v2143 = vsel %vm2102, %v2138, %v2030
        %v2144 = vsel %vm2102, %v2139, %v2032
        %v2145 = vsel %vm2108, %v2140, %v2044
        %v2146 = vsel %vm2108, %v2141, %v2046
        %v2147 = vsel %vm2108, %v2142, %v2048
        %v2148 = vsel %vm2108, %v2143, %v2050
        %v2149 = vsel %vm2108, %v2144, %v2052
        %v2150 = vsel %vm2114, %v2145, %v2064
        %v2151 = vsel %vm2114, %v2146, %v2066
        %v2152 = vsel %vm2114, %v2147, %v2068
        %v2153 = vsel %vm2114, %v2148, %v2070
        %v2154 = vsel %vm2114, %v2149, %v2072
        %s2155 = scalar_lea.vmem %s213, 16 [#allocation2]
        %v2156 = vld [vmem:[%s2155] sm:$0xff]
        %v2157 = vld [vmem:[%s2155 + $0x8] sm:$0xff]
        %v2158 = vld [vmem:[%s2155 + $0x60] sm:$0xff]
        %v2159 = vld [vmem:[%s2155 + $0x68] sm:$0xff]
        %v2160 = vld [vmem:[%s2155 + $0xc0] sm:$0xff]
        %v2161 = vld [vmem:[%s2155 + $0xc8] sm:$0xff]
        %v2162 = vld [vmem:[%s2155 + $0x120] sm:$0xff]
        %v2163 = vld [vmem:[%s2155 + $0x128] sm:$0xff]
        %v2172 = vrot.slane %v2156, 7
        %v2173 = vrot.slane %v2157, 7
        %v2174 = vsel %vm261, %v2172, %v2173
        %v2175 = vrot.slane %v2158, 7
        %v2176 = vrot.slane %v2159, 7
        %v2177 = vsel %vm261, %v2175, %v2176
        %v2178 = vrot.slane %v2160, 7
        %v2179 = vrot.slane %v2161, 7
        %v2180 = vsel %vm261, %v2178, %v2179
        %v2181 = vrot.slane %v2162, 7
        %v2182 = vrot.slane %v2163, 7
        %v2183 = vsel %vm261, %v2181, %v2182
        %v2192 = vsel %vm261, 0.0, %v2172
        %v2193 = vsel %vm261, 0.0, %v2175
        %v2194 = vsel %vm261, 0.0, %v2178
        %v2195 = vsel %vm261, 0.0, %v2181
        %v2196 = vsel %vm261, %v2173, 0.0
        %v2197 = vsel %vm261, %v2176, 0.0
        %v2198 = vsel %vm261, %v2179, 0.0
        %v2199 = vsel %vm261, %v2182, 0.0
        %2208 = vrot.lane.b32.xlu0 %v2192, 1
        %v2209 = vpop.permute.xlu0 %2208
        %2210 = vrot.lane.b32.xlu0 %v2174, 1
        %v2211 = vpop.permute.xlu0 %2210
        %2212 = vrot.lane.b32.xlu0 %v2196, 1
        %v2213 = vpop.permute.xlu0 %2212
        %2214 = vrot.lane.b32.xlu0 %v2193, 1
        %v2215 = vpop.permute.xlu0 %2214
        %2216 = vrot.lane.b32.xlu0 %v2177, 1
        %v2217 = vpop.permute.xlu0 %2216
        %2218 = vrot.lane.b32.xlu0 %v2197, 1
        %v2219 = vpop.permute.xlu0 %2218
        %2220 = vrot.lane.b32.xlu0 %v2194, 1
        %v2221 = vpop.permute.xlu0 %2220
        %2222 = vrot.lane.b32.xlu0 %v2180, 1
        %v2223 = vpop.permute.xlu0 %2222
        %2224 = vrot.lane.b32.xlu0 %v2198, 1
        %v2225 = vpop.permute.xlu0 %2224
        %2226 = vrot.lane.b32.xlu0 %v2195, 1
        %v2227 = vpop.permute.xlu0 %2226
        %2228 = vrot.lane.b32.xlu0 %v2183, 1
        %v2229 = vpop.permute.xlu0 %2228
        %2230 = vrot.lane.b32.xlu0 %v2199, 1
        %v2231 = vpop.permute.xlu0 %2230
        %v2244 = vsel %vm334, 0.0, %v2209
        %v2245 = vsel %vm334, 0.0, %v2211
        %v2246 = vsel %vm334, 0.0, %v2213
        %v2247 = vsel %vm334, 0.0, %v2215
        %v2248 = vsel %vm334, 0.0, %v2217
        %v2249 = vsel %vm334, 0.0, %v2219
        %v2250 = vsel %vm334, 0.0, %v2221
        %v2251 = vsel %vm334, 0.0, %v2223
        %v2252 = vsel %vm334, 0.0, %v2225
        %v2253 = vsel %vm334, 0.0, %v2227
        %v2254 = vsel %vm334, 0.0, %v2229
        %v2255 = vsel %vm334, 0.0, %v2231
        %v2256 = vsel %vm347, %v2244, 0.0
        %v2257 = vsel %vm347, %v2245, 0.0
        %v2258 = vsel %vm347, %v2246, 0.0
        %v2259 = vsel %vm347, %v2247, 0.0
        %v2260 = vsel %vm347, %v2248, 0.0
        %v2261 = vsel %vm347, %v2249, 0.0
        %v2262 = vsel %vm347, %v2250, 0.0
        %v2263 = vsel %vm347, %v2251, 0.0
        %v2264 = vsel %vm347, %v2252, 0.0
        %v2265 = vsel %vm347, %v2253, 0.0
        %v2266 = vsel %vm347, %v2254, 0.0
        %v2267 = vsel %vm347, %v2255, 0.0
        %2276 = vrot.lane.b32.xlu0 %v2256, 127
        %v2277 = vpop.permute.xlu0 %2276
        %2278 = vrot.lane.b32.xlu0 %v2257, 127
        %v2279 = vpop.permute.xlu0 %2278
        %2280 = vrot.lane.b32.xlu0 %v2259, 127
        %v2281 = vpop.permute.xlu0 %2280
        %2282 = vrot.lane.b32.xlu0 %v2260, 127
        %v2283 = vpop.permute.xlu0 %2282
        %2284 = vrot.lane.b32.xlu0 %v2262, 127
        %v2285 = vpop.permute.xlu0 %2284
        %2286 = vrot.lane.b32.xlu0 %v2263, 127
        %v2287 = vpop.permute.xlu0 %2286
        %2288 = vrot.lane.b32.xlu0 %v2265, 127
        %v2289 = vpop.permute.xlu0 %2288
        %2290 = vrot.lane.b32.xlu0 %v2266, 127
        %v2291 = vpop.permute.xlu0 %2290
        %2300 = vrot.lane.b32.xlu0 %v2256, 126
        %v2301 = vpop.permute.xlu0 %2300
        %2302 = vrot.lane.b32.xlu0 %v2257, 126
        %v2303 = vpop.permute.xlu0 %2302
        %2304 = vrot.lane.b32.xlu0 %v2259, 126
        %v2305 = vpop.permute.xlu0 %2304
        %2306 = vrot.lane.b32.xlu0 %v2260, 126
        %v2307 = vpop.permute.xlu0 %2306
        %2308 = vrot.lane.b32.xlu0 %v2262, 126
        %v2309 = vpop.permute.xlu0 %2308
        %2310 = vrot.lane.b32.xlu0 %v2263, 126
        %v2311 = vpop.permute.xlu0 %2310
        %2312 = vrot.lane.b32.xlu0 %v2265, 126
        %v2313 = vpop.permute.xlu0 %2312
        %2314 = vrot.lane.b32.xlu0 %v2266, 126
        %v2315 = vpop.permute.xlu0 %2314
        %v2328 = vrot.slane %v2256, 1
        %v2329 = vrot.slane %v2257, 1
        %v2330 = vsel %vm420, %v2328, %v2329
        %v2331 = vrot.slane %v2258, 1
        %v2332 = vsel %vm420, %v2329, %v2331
        %v2333 = vrot.slane %v2259, 1
        %v2334 = vrot.slane %v2260, 1
        %v2335 = vsel %vm420, %v2333, %v2334
        %v2336 = vrot.slane %v2261, 1
        %v2337 = vsel %vm420, %v2334, %v2336
        %v2338 = vrot.slane %v2262, 1
        %v2339 = vrot.slane %v2263, 1
        %v2340 = vsel %vm420, %v2338, %v2339
        %v2341 = vrot.slane %v2264, 1
        %v2342 = vsel %vm420, %v2339, %v2341
        %v2343 = vrot.slane %v2265, 1
        %v2344 = vrot.slane %v2266, 1
        %v2345 = vsel %vm420, %v2343, %v2344
        %v2346 = vrot.slane %v2267, 1
        %v2347 = vsel %vm420, %v2344, %v2346
        %2356 = vrot.lane.b32.xlu0 %v2330, 127
        %v2357 = vpop.permute.xlu0 %2356
        %2358 = vrot.lane.b32.xlu0 %v2332, 127
        %v2359 = vpop.permute.xlu0 %2358
        %2360 = vrot.lane.b32.xlu0 %v2335, 127
        %v2361 = vpop.permute.xlu0 %2360
        %2362 = vrot.lane.b32.xlu0 %v2337, 127
        %v2363 = vpop.permute.xlu0 %2362
        %2364 = vrot.lane.b32.xlu0 %v2340, 127
        %v2365 = vpop.permute.xlu0 %2364
        %2366 = vrot.lane.b32.xlu0 %v2342, 127
        %v2367 = vpop.permute.xlu0 %2366
        %2368 = vrot.lane.b32.xlu0 %v2345, 127
        %v2369 = vpop.permute.xlu0 %2368
        %2370 = vrot.lane.b32.xlu0 %v2347, 127
        %v2371 = vpop.permute.xlu0 %2370
        %2380 = vrot.lane.b32.xlu0 %v2330, 126
        %v2381 = vpop.permute.xlu0 %2380
        %2382 = vrot.lane.b32.xlu0 %v2332, 126
        %v2383 = vpop.permute.xlu0 %2382
        %2384 = vrot.lane.b32.xlu0 %v2335, 126
        %v2385 = vpop.permute.xlu0 %2384
        %2386 = vrot.lane.b32.xlu0 %v2337, 126
        %v2387 = vpop.permute.xlu0 %2386
        %2388 = vrot.lane.b32.xlu0 %v2340, 126
        %v2389 = vpop.permute.xlu0 %2388
        %2390 = vrot.lane.b32.xlu0 %v2342, 126
        %v2391 = vpop.permute.xlu0 %2390
        %2392 = vrot.lane.b32.xlu0 %v2345, 126
        %v2393 = vpop.permute.xlu0 %2392
        %2394 = vrot.lane.b32.xlu0 %v2347, 126
        %v2395 = vpop.permute.xlu0 %2394
        %v2404 = vrot.slane %v2256, 2
        %v2405 = vrot.slane %v2257, 2
        %v2406 = vsel %vm497, %v2404, %v2405
        %v2407 = vrot.slane %v2258, 2
        %v2408 = vsel %vm497, %v2405, %v2407
        %v2409 = vrot.slane %v2259, 2
        %v2410 = vrot.slane %v2260, 2
        %v2411 = vsel %vm497, %v2409, %v2410
        %v2412 = vrot.slane %v2261, 2
        %v2413 = vsel %vm497, %v2410, %v2412
        %v2414 = vrot.slane %v2262, 2
        %v2415 = vrot.slane %v2263, 2
        %v2416 = vsel %vm497, %v2414, %v2415
        %v2417 = vrot.slane %v2264, 2
        %v2418 = vsel %vm497, %v2415, %v2417
        %v2419 = vrot.slane %v2265, 2
        %v2420 = vrot.slane %v2266, 2
        %v2421 = vsel %vm497, %v2419, %v2420
        %v2422 = vrot.slane %v2267, 2
        %v2423 = vsel %vm497, %v2420, %v2422
        %2432 = vrot.lane.b32.xlu0 %v2406, 127
        %v2433 = vpop.permute.xlu0 %2432
        %2434 = vrot.lane.b32.xlu0 %v2408, 127
        %v2435 = vpop.permute.xlu0 %2434
        %2436 = vrot.lane.b32.xlu0 %v2411, 127
        %v2437 = vpop.permute.xlu0 %2436
        %2438 = vrot.lane.b32.xlu0 %v2413, 127
        %v2439 = vpop.permute.xlu0 %2438
        %2440 = vrot.lane.b32.xlu0 %v2416, 127
        %v2441 = vpop.permute.xlu0 %2440
        %2442 = vrot.lane.b32.xlu0 %v2418, 127
        %v2443 = vpop.permute.xlu0 %2442
        %2444 = vrot.lane.b32.xlu0 %v2421, 127
        %v2445 = vpop.permute.xlu0 %2444
        %2446 = vrot.lane.b32.xlu0 %v2423, 127
        %v2447 = vpop.permute.xlu0 %2446
        %2456 = vrot.lane.b32.xlu0 %v2406, 126
        %v2457 = vpop.permute.xlu0 %2456
        %2458 = vrot.lane.b32.xlu0 %v2408, 126
        %v2459 = vpop.permute.xlu0 %2458
        %2460 = vrot.lane.b32.xlu0 %v2411, 126
        %v2461 = vpop.permute.xlu0 %2460
        %2462 = vrot.lane.b32.xlu0 %v2413, 126
        %v2463 = vpop.permute.xlu0 %2462
        %2464 = vrot.lane.b32.xlu0 %v2416, 126
        %v2465 = vpop.permute.xlu0 %2464
        %2466 = vrot.lane.b32.xlu0 %v2418, 126
        %v2467 = vpop.permute.xlu0 %2466
        %2468 = vrot.lane.b32.xlu0 %v2421, 126
        %v2469 = vpop.permute.xlu0 %2468
        %2470 = vrot.lane.b32.xlu0 %v2423, 126
        %v2471 = vpop.permute.xlu0 %2470
        %v2480 = vcombine.low %v2256, %v2262
        %v2481 = vcombine.high %v2256, %v2262
        %v2483 = vunpack.c.l.s4 1983009808
        %v2484 = vunpack.c.0.s8 %v2483
        %v2485 = vlaneseq
        %v2486 = vshrl.u32 %v2485, 7
        %v2487 = vsub.s32 %v2484, %v2486
        %v2488 = vrot.slane %v2480, %v2487
        %v2490 = vunpack.c.l.s4 1983009808
        %v2491 = vunpack.c.0.s8 %v2490
        %v2492 = vlaneseq
        %v2493 = vshrl.u32 %v2492, 7
        %v2494 = vsub.s32 %v2491, %v2493
        %v2495 = vrot.slane %v2481, %v2494
        %v2496 = vcombine.low %v2259, %v2265
        %v2497 = vcombine.high %v2259, %v2265
        %v2499 = vunpack.c.l.s4 1983009808
        %v2500 = vunpack.c.0.s8 %v2499
        %v2501 = vlaneseq
        %v2502 = vshrl.u32 %v2501, 7
        %v2503 = vsub.s32 %v2500, %v2502
        %v2504 = vrot.slane %v2496, %v2503
        %v2506 = vunpack.c.l.s4 1983009808
        %v2507 = vunpack.c.0.s8 %v2506
        %v2508 = vlaneseq
        %v2509 = vshrl.u32 %v2508, 7
        %v2510 = vsub.s32 %v2507, %v2509
        %v2511 = vrot.slane %v2497, %v2510
        %v2512 = vcombine.low %v2277, %v2285
        %v2513 = vcombine.high %v2277, %v2285
        %v2515 = vunpack.c.l.s4 1983009808
        %v2516 = vunpack.c.0.s8 %v2515
        %v2517 = vlaneseq
        %v2518 = vshrl.u32 %v2517, 7
        %v2519 = vsub.s32 %v2516, %v2518
        %v2520 = vrot.slane %v2512, %v2519
        %v2522 = vunpack.c.l.s4 1983009808
        %v2523 = vunpack.c.0.s8 %v2522
        %v2524 = vlaneseq
        %v2525 = vshrl.u32 %v2524, 7
        %v2526 = vsub.s32 %v2523, %v2525
        %v2527 = vrot.slane %v2513, %v2526
        %v2528 = vcombine.low %v2281, %v2289
        %v2529 = vcombine.high %v2281, %v2289
        %v2531 = vunpack.c.l.s4 1983009808
        %v2532 = vunpack.c.0.s8 %v2531
        %v2533 = vlaneseq
        %v2534 = vshrl.u32 %v2533, 7
        %v2535 = vsub.s32 %v2532, %v2534
        %v2536 = vrot.slane %v2528, %v2535
        %v2538 = vunpack.c.l.s4 1983009808
        %v2539 = vunpack.c.0.s8 %v2538
        %v2540 = vlaneseq
        %v2541 = vshrl.u32 %v2540, 7
        %v2542 = vsub.s32 %v2539, %v2541
        %v2543 = vrot.slane %v2529, %v2542
        %v2544 = vcombine.low %v2488, %v2504
        %v2545 = vcombine.high %v2488, %v2504
        %v2547 = vunpack.c.l.s4 1934713408
        %v2548 = vunpack.c.0.s8 %v2547
        %v2549 = vlaneseq
        %v2550 = vshrl.u32 %v2549, 7
        %v2551 = vsub.s32 %v2548, %v2550
        %v2552 = vrot.slane %v2544, %v2551
        %v2554 = vunpack.c.l.s4 1934713408
        %v2555 = vunpack.c.0.s8 %v2554
        %v2556 = vlaneseq
        %v2557 = vshrl.u32 %v2556, 7
        %v2558 = vsub.s32 %v2555, %v2557
        %v2559 = vrot.slane %v2545, %v2558
        %v2560 = vcombine.low %v2495, %v2511
        %v2561 = vcombine.high %v2495, %v2511
        %v2563 = vunpack.c.l.s4 1934713408
        %v2564 = vunpack.c.0.s8 %v2563
        %v2565 = vlaneseq
        %v2566 = vshrl.u32 %v2565, 7
        %v2567 = vsub.s32 %v2564, %v2566
        %v2568 = vrot.slane %v2560, %v2567
        %v2570 = vunpack.c.l.s4 1934713408
        %v2571 = vunpack.c.0.s8 %v2570
        %v2572 = vlaneseq
        %v2573 = vshrl.u32 %v2572, 7
        %v2574 = vsub.s32 %v2571, %v2573
        %v2575 = vrot.slane %v2561, %v2574
        %v2576 = vcombine.low %v2520, %v2536
        %v2577 = vcombine.high %v2520, %v2536
        %v2579 = vunpack.c.l.s4 1934713408
        %v2580 = vunpack.c.0.s8 %v2579
        %v2581 = vlaneseq
        %v2582 = vshrl.u32 %v2581, 7
        %v2583 = vsub.s32 %v2580, %v2582
        %v2584 = vrot.slane %v2576, %v2583
        %v2586 = vunpack.c.l.s4 1934713408
        %v2587 = vunpack.c.0.s8 %v2586
        %v2588 = vlaneseq
        %v2589 = vshrl.u32 %v2588, 7
        %v2590 = vsub.s32 %v2587, %v2589
        %v2591 = vrot.slane %v2577, %v2590
        %v2592 = vcombine.low %v2527, %v2543
        %v2593 = vcombine.high %v2527, %v2543
        %v2595 = vunpack.c.l.s4 1934713408
        %v2596 = vunpack.c.0.s8 %v2595
        %v2597 = vlaneseq
        %v2598 = vshrl.u32 %v2597, 7
        %v2599 = vsub.s32 %v2596, %v2598
        %v2600 = vrot.slane %v2592, %v2599
        %v2602 = vunpack.c.l.s4 1934713408
        %v2603 = vunpack.c.0.s8 %v2602
        %v2604 = vlaneseq
        %v2605 = vshrl.u32 %v2604, 7
        %v2606 = vsub.s32 %v2603, %v2605
        %v2607 = vrot.slane %v2593, %v2606
        %v2608 = vcombine.low %v2552, %v2584
        %v2609 = vcombine.high %v2552, %v2584
        %v2610 = vcombine.low %v2559, %v2591
        %v2611 = vcombine.high %v2559, %v2591
        %v2612 = vcombine.low %v2568, %v2600
        %v2613 = vcombine.high %v2568, %v2600
        %v2614 = vcombine.low %v2575, %v2607
        %v2615 = vcombine.high %v2575, %v2607
        %v2616 = vcombine.low %v2301, %v2309
        %v2617 = vcombine.high %v2301, %v2309
        %v2619 = vunpack.c.l.s4 1983009808
        %v2620 = vunpack.c.0.s8 %v2619
        %v2621 = vlaneseq
        %v2622 = vshrl.u32 %v2621, 7
        %v2623 = vsub.s32 %v2620, %v2622
        %v2624 = vrot.slane %v2616, %v2623
        %v2626 = vunpack.c.l.s4 1983009808
        %v2627 = vunpack.c.0.s8 %v2626
        %v2628 = vlaneseq
        %v2629 = vshrl.u32 %v2628, 7
        %v2630 = vsub.s32 %v2627, %v2629
        %v2631 = vrot.slane %v2617, %v2630
        %v2632 = vcombine.low %v2305, %v2313
        %v2633 = vcombine.high %v2305, %v2313
        %v2635 = vunpack.c.l.s4 1983009808
        %v2636 = vunpack.c.0.s8 %v2635
        %v2637 = vlaneseq
        %v2638 = vshrl.u32 %v2637, 7
        %v2639 = vsub.s32 %v2636, %v2638
        %v2640 = vrot.slane %v2632, %v2639
        %v2642 = vunpack.c.l.s4 1983009808
        %v2643 = vunpack.c.0.s8 %v2642
        %v2644 = vlaneseq
        %v2645 = vshrl.u32 %v2644, 7
        %v2646 = vsub.s32 %v2643, %v2645
        %v2647 = vrot.slane %v2633, %v2646
        %v2648 = vcombine.low %v2330, %v2340
        %v2649 = vcombine.high %v2330, %v2340
        %v2651 = vunpack.c.l.s4 1983009808
        %v2652 = vunpack.c.0.s8 %v2651
        %v2653 = vlaneseq
        %v2654 = vshrl.u32 %v2653, 7
        %v2655 = vsub.s32 %v2652, %v2654
        %v2656 = vrot.slane %v2648, %v2655
        %v2658 = vunpack.c.l.s4 1983009808
        %v2659 = vunpack.c.0.s8 %v2658
        %v2660 = vlaneseq
        %v2661 = vshrl.u32 %v2660, 7
        %v2662 = vsub.s32 %v2659, %v2661
        %v2663 = vrot.slane %v2649, %v2662
        %v2664 = vcombine.low %v2335, %v2345
        %v2665 = vcombine.high %v2335, %v2345
        %v2667 = vunpack.c.l.s4 1983009808
        %v2668 = vunpack.c.0.s8 %v2667
        %v2669 = vlaneseq
        %v2670 = vshrl.u32 %v2669, 7
        %v2671 = vsub.s32 %v2668, %v2670
        %v2672 = vrot.slane %v2664, %v2671
        %v2674 = vunpack.c.l.s4 1983009808
        %v2675 = vunpack.c.0.s8 %v2674
        %v2676 = vlaneseq
        %v2677 = vshrl.u32 %v2676, 7
        %v2678 = vsub.s32 %v2675, %v2677
        %v2679 = vrot.slane %v2665, %v2678
        %v2680 = vcombine.low %v2624, %v2640
        %v2681 = vcombine.high %v2624, %v2640
        %v2683 = vunpack.c.l.s4 1934713408
        %v2684 = vunpack.c.0.s8 %v2683
        %v2685 = vlaneseq
        %v2686 = vshrl.u32 %v2685, 7
        %v2687 = vsub.s32 %v2684, %v2686
        %v2688 = vrot.slane %v2680, %v2687
        %v2690 = vunpack.c.l.s4 1934713408
        %v2691 = vunpack.c.0.s8 %v2690
        %v2692 = vlaneseq
        %v2693 = vshrl.u32 %v2692, 7
        %v2694 = vsub.s32 %v2691, %v2693
        %v2695 = vrot.slane %v2681, %v2694
        %v2696 = vcombine.low %v2631, %v2647
        %v2697 = vcombine.high %v2631, %v2647
        %v2699 = vunpack.c.l.s4 1934713408
        %v2700 = vunpack.c.0.s8 %v2699
        %v2701 = vlaneseq
        %v2702 = vshrl.u32 %v2701, 7
        %v2703 = vsub.s32 %v2700, %v2702
        %v2704 = vrot.slane %v2696, %v2703
        %v2706 = vunpack.c.l.s4 1934713408
        %v2707 = vunpack.c.0.s8 %v2706
        %v2708 = vlaneseq
        %v2709 = vshrl.u32 %v2708, 7
        %v2710 = vsub.s32 %v2707, %v2709
        %v2711 = vrot.slane %v2697, %v2710
        %v2712 = vcombine.low %v2656, %v2672
        %v2713 = vcombine.high %v2656, %v2672
        %v2715 = vunpack.c.l.s4 1934713408
        %v2716 = vunpack.c.0.s8 %v2715
        %v2717 = vlaneseq
        %v2718 = vshrl.u32 %v2717, 7
        %v2719 = vsub.s32 %v2716, %v2718
        %v2720 = vrot.slane %v2712, %v2719
        %v2722 = vunpack.c.l.s4 1934713408
        %v2723 = vunpack.c.0.s8 %v2722
        %v2724 = vlaneseq
        %v2725 = vshrl.u32 %v2724, 7
        %v2726 = vsub.s32 %v2723, %v2725
        %v2727 = vrot.slane %v2713, %v2726
        %v2728 = vcombine.low %v2663, %v2679
        %v2729 = vcombine.high %v2663, %v2679
        %v2731 = vunpack.c.l.s4 1934713408
        %v2732 = vunpack.c.0.s8 %v2731
        %v2733 = vlaneseq
        %v2734 = vshrl.u32 %v2733, 7
        %v2735 = vsub.s32 %v2732, %v2734
        %v2736 = vrot.slane %v2728, %v2735
        %v2738 = vunpack.c.l.s4 1934713408
        %v2739 = vunpack.c.0.s8 %v2738
        %v2740 = vlaneseq
        %v2741 = vshrl.u32 %v2740, 7
        %v2742 = vsub.s32 %v2739, %v2741
        %v2743 = vrot.slane %v2729, %v2742
        %v2744 = vcombine.low %v2688, %v2720
        %v2745 = vcombine.high %v2688, %v2720
        %v2746 = vcombine.low %v2695, %v2727
        %v2747 = vcombine.high %v2695, %v2727
        %v2748 = vcombine.low %v2704, %v2736
        %v2749 = vcombine.high %v2704, %v2736
        %v2750 = vcombine.low %v2711, %v2743
        %v2751 = vcombine.high %v2711, %v2743
        %v2752 = vcombine.low %v2357, %v2365
        %v2753 = vcombine.high %v2357, %v2365
        %v2755 = vunpack.c.l.s4 1983009808
        %v2756 = vunpack.c.0.s8 %v2755
        %v2757 = vlaneseq
        %v2758 = vshrl.u32 %v2757, 7
        %v2759 = vsub.s32 %v2756, %v2758
        %v2760 = vrot.slane %v2752, %v2759
        %v2762 = vunpack.c.l.s4 1983009808
        %v2763 = vunpack.c.0.s8 %v2762
        %v2764 = vlaneseq
        %v2765 = vshrl.u32 %v2764, 7
        %v2766 = vsub.s32 %v2763, %v2765
        %v2767 = vrot.slane %v2753, %v2766
        %v2768 = vcombine.low %v2361, %v2369
        %v2769 = vcombine.high %v2361, %v2369
        %v2771 = vunpack.c.l.s4 1983009808
        %v2772 = vunpack.c.0.s8 %v2771
        %v2773 = vlaneseq
        %v2774 = vshrl.u32 %v2773, 7
        %v2775 = vsub.s32 %v2772, %v2774
        %v2776 = vrot.slane %v2768, %v2775
        %v2778 = vunpack.c.l.s4 1983009808
        %v2779 = vunpack.c.0.s8 %v2778
        %v2780 = vlaneseq
        %v2781 = vshrl.u32 %v2780, 7
        %v2782 = vsub.s32 %v2779, %v2781
        %v2783 = vrot.slane %v2769, %v2782
        %v2784 = vcombine.low %v2381, %v2389
        %v2785 = vcombine.high %v2381, %v2389
        %v2787 = vunpack.c.l.s4 1983009808
        %v2788 = vunpack.c.0.s8 %v2787
        %v2789 = vlaneseq
        %v2790 = vshrl.u32 %v2789, 7
        %v2791 = vsub.s32 %v2788, %v2790
        %v2792 = vrot.slane %v2784, %v2791
        %v2794 = vunpack.c.l.s4 1983009808
        %v2795 = vunpack.c.0.s8 %v2794
        %v2796 = vlaneseq
        %v2797 = vshrl.u32 %v2796, 7
        %v2798 = vsub.s32 %v2795, %v2797
        %v2799 = vrot.slane %v2785, %v2798
        %v2800 = vcombine.low %v2385, %v2393
        %v2801 = vcombine.high %v2385, %v2393
        %v2803 = vunpack.c.l.s4 1983009808
        %v2804 = vunpack.c.0.s8 %v2803
        %v2805 = vlaneseq
        %v2806 = vshrl.u32 %v2805, 7
        %v2807 = vsub.s32 %v2804, %v2806
        %v2808 = vrot.slane %v2800, %v2807
        %v2810 = vunpack.c.l.s4 1983009808
        %v2811 = vunpack.c.0.s8 %v2810
        %v2812 = vlaneseq
        %v2813 = vshrl.u32 %v2812, 7
        %v2814 = vsub.s32 %v2811, %v2813
        %v2815 = vrot.slane %v2801, %v2814
        %v2816 = vcombine.low %v2760, %v2776
        %v2817 = vcombine.high %v2760, %v2776
        %v2819 = vunpack.c.l.s4 1934713408
        %v2820 = vunpack.c.0.s8 %v2819
        %v2821 = vlaneseq
        %v2822 = vshrl.u32 %v2821, 7
        %v2823 = vsub.s32 %v2820, %v2822
        %v2824 = vrot.slane %v2816, %v2823
        %v2826 = vunpack.c.l.s4 1934713408
        %v2827 = vunpack.c.0.s8 %v2826
        %v2828 = vlaneseq
        %v2829 = vshrl.u32 %v2828, 7
        %v2830 = vsub.s32 %v2827, %v2829
        %v2831 = vrot.slane %v2817, %v2830
        %v2832 = vcombine.low %v2767, %v2783
        %v2833 = vcombine.high %v2767, %v2783
        %v2835 = vunpack.c.l.s4 1934713408
        %v2836 = vunpack.c.0.s8 %v2835
        %v2837 = vlaneseq
        %v2838 = vshrl.u32 %v2837, 7
        %v2839 = vsub.s32 %v2836, %v2838
        %v2840 = vrot.slane %v2832, %v2839
        %v2842 = vunpack.c.l.s4 1934713408
        %v2843 = vunpack.c.0.s8 %v2842
        %v2844 = vlaneseq
        %v2845 = vshrl.u32 %v2844, 7
        %v2846 = vsub.s32 %v2843, %v2845
        %v2847 = vrot.slane %v2833, %v2846
        %v2848 = vcombine.low %v2792, %v2808
        %v2849 = vcombine.high %v2792, %v2808
        %v2851 = vunpack.c.l.s4 1934713408
        %v2852 = vunpack.c.0.s8 %v2851
        %v2853 = vlaneseq
        %v2854 = vshrl.u32 %v2853, 7
        %v2855 = vsub.s32 %v2852, %v2854
        %v2856 = vrot.slane %v2848, %v2855
        %v2858 = vunpack.c.l.s4 1934713408
        %v2859 = vunpack.c.0.s8 %v2858
        %v2860 = vlaneseq
        %v2861 = vshrl.u32 %v2860, 7
        %v2862 = vsub.s32 %v2859, %v2861
        %v2863 = vrot.slane %v2849, %v2862
        %v2864 = vcombine.low %v2799, %v2815
        %v2865 = vcombine.high %v2799, %v2815
        %v2867 = vunpack.c.l.s4 1934713408
        %v2868 = vunpack.c.0.s8 %v2867
        %v2869 = vlaneseq
        %v2870 = vshrl.u32 %v2869, 7
        %v2871 = vsub.s32 %v2868, %v2870
        %v2872 = vrot.slane %v2864, %v2871
        %v2874 = vunpack.c.l.s4 1934713408
        %v2875 = vunpack.c.0.s8 %v2874
        %v2876 = vlaneseq
        %v2877 = vshrl.u32 %v2876, 7
        %v2878 = vsub.s32 %v2875, %v2877
        %v2879 = vrot.slane %v2865, %v2878
        %v2880 = vcombine.low %v2824, %v2856
        %v2881 = vcombine.high %v2824, %v2856
        %v2882 = vcombine.low %v2831, %v2863
        %v2883 = vcombine.high %v2831, %v2863
        %v2884 = vcombine.low %v2840, %v2872
        %v2885 = vcombine.high %v2840, %v2872
        %v2886 = vcombine.low %v2847, %v2879
        %v2887 = vcombine.high %v2847, %v2879
        %v2888 = vcombine.low %v2406, %v2416
        %v2889 = vcombine.high %v2406, %v2416
        %v2891 = vunpack.c.l.s4 1983009808
        %v2892 = vunpack.c.0.s8 %v2891
        %v2893 = vlaneseq
        %v2894 = vshrl.u32 %v2893, 7
        %v2895 = vsub.s32 %v2892, %v2894
        %v2896 = vrot.slane %v2888, %v2895
        %v2898 = vunpack.c.l.s4 1983009808
        %v2899 = vunpack.c.0.s8 %v2898
        %v2900 = vlaneseq
        %v2901 = vshrl.u32 %v2900, 7
        %v2902 = vsub.s32 %v2899, %v2901
        %v2903 = vrot.slane %v2889, %v2902
        %v2904 = vcombine.low %v2411, %v2421
        %v2905 = vcombine.high %v2411, %v2421
        %v2907 = vunpack.c.l.s4 1983009808
        %v2908 = vunpack.c.0.s8 %v2907
        %v2909 = vlaneseq
        %v2910 = vshrl.u32 %v2909, 7
        %v2911 = vsub.s32 %v2908, %v2910
        %v2912 = vrot.slane %v2904, %v2911
        %v2914 = vunpack.c.l.s4 1983009808
        %v2915 = vunpack.c.0.s8 %v2914
        %v2916 = vlaneseq
        %v2917 = vshrl.u32 %v2916, 7
        %v2918 = vsub.s32 %v2915, %v2917
        %v2919 = vrot.slane %v2905, %v2918
        %v2920 = vcombine.low %v2433, %v2441
        %v2921 = vcombine.high %v2433, %v2441
        %v2923 = vunpack.c.l.s4 1983009808
        %v2924 = vunpack.c.0.s8 %v2923
        %v2925 = vlaneseq
        %v2926 = vshrl.u32 %v2925, 7
        %v2927 = vsub.s32 %v2924, %v2926
        %v2928 = vrot.slane %v2920, %v2927
        %v2930 = vunpack.c.l.s4 1983009808
        %v2931 = vunpack.c.0.s8 %v2930
        %v2932 = vlaneseq
        %v2933 = vshrl.u32 %v2932, 7
        %v2934 = vsub.s32 %v2931, %v2933
        %v2935 = vrot.slane %v2921, %v2934
        %v2936 = vcombine.low %v2437, %v2445
        %v2937 = vcombine.high %v2437, %v2445
        %v2939 = vunpack.c.l.s4 1983009808
        %v2940 = vunpack.c.0.s8 %v2939
        %v2941 = vlaneseq
        %v2942 = vshrl.u32 %v2941, 7
        %v2943 = vsub.s32 %v2940, %v2942
        %v2944 = vrot.slane %v2936, %v2943
        %v2946 = vunpack.c.l.s4 1983009808
        %v2947 = vunpack.c.0.s8 %v2946
        %v2948 = vlaneseq
        %v2949 = vshrl.u32 %v2948, 7
        %v2950 = vsub.s32 %v2947, %v2949
        %v2951 = vrot.slane %v2937, %v2950
        %v2952 = vcombine.low %v2896, %v2912
        %v2953 = vcombine.high %v2896, %v2912
        %v2955 = vunpack.c.l.s4 1934713408
        %v2956 = vunpack.c.0.s8 %v2955
        %v2957 = vlaneseq
        %v2958 = vshrl.u32 %v2957, 7
        %v2959 = vsub.s32 %v2956, %v2958
        %v2960 = vrot.slane %v2952, %v2959
        %v2962 = vunpack.c.l.s4 1934713408
        %v2963 = vunpack.c.0.s8 %v2962
        %v2964 = vlaneseq
        %v2965 = vshrl.u32 %v2964, 7
        %v2966 = vsub.s32 %v2963, %v2965
        %v2967 = vrot.slane %v2953, %v2966
        %v2968 = vcombine.low %v2903, %v2919
        %v2969 = vcombine.high %v2903, %v2919
        %v2971 = vunpack.c.l.s4 1934713408
        %v2972 = vunpack.c.0.s8 %v2971
        %v2973 = vlaneseq
        %v2974 = vshrl.u32 %v2973, 7
        %v2975 = vsub.s32 %v2972, %v2974
        %v2976 = vrot.slane %v2968, %v2975
        %v2978 = vunpack.c.l.s4 1934713408
        %v2979 = vunpack.c.0.s8 %v2978
        %v2980 = vlaneseq
        %v2981 = vshrl.u32 %v2980, 7
        %v2982 = vsub.s32 %v2979, %v2981
        %v2983 = vrot.slane %v2969, %v2982
        %v2984 = vcombine.low %v2928, %v2944
        %v2985 = vcombine.high %v2928, %v2944
        %v2987 = vunpack.c.l.s4 1934713408
        %v2988 = vunpack.c.0.s8 %v2987
        %v2989 = vlaneseq
        %v2990 = vshrl.u32 %v2989, 7
        %v2991 = vsub.s32 %v2988, %v2990
        %v2992 = vrot.slane %v2984, %v2991
        %v2994 = vunpack.c.l.s4 1934713408
        %v2995 = vunpack.c.0.s8 %v2994
        %v2996 = vlaneseq
        %v2997 = vshrl.u32 %v2996, 7
        %v2998 = vsub.s32 %v2995, %v2997
        %v2999 = vrot.slane %v2985, %v2998
        %v3000 = vcombine.low %v2935, %v2951
        %v3001 = vcombine.high %v2935, %v2951
        %v3003 = vunpack.c.l.s4 1934713408
        %v3004 = vunpack.c.0.s8 %v3003
        %v3005 = vlaneseq
        %v3006 = vshrl.u32 %v3005, 7
        %v3007 = vsub.s32 %v3004, %v3006
        %v3008 = vrot.slane %v3000, %v3007
        %v3010 = vunpack.c.l.s4 1934713408
        %v3011 = vunpack.c.0.s8 %v3010
        %v3012 = vlaneseq
        %v3013 = vshrl.u32 %v3012, 7
        %v3014 = vsub.s32 %v3011, %v3013
        %v3015 = vrot.slane %v3001, %v3014
        %v3016 = vcombine.low %v2960, %v2992
        %v3017 = vcombine.high %v2960, %v2992
        %v3018 = vcombine.low %v2967, %v2999
        %v3019 = vcombine.high %v2967, %v2999
        %v3020 = vcombine.low %v2976, %v3008
        %v3021 = vcombine.high %v2976, %v3008
        %v3022 = vcombine.low %v2983, %v3015
        %v3023 = vcombine.high %v2983, %v3015
        %v3024 = vcombine.low %v2457, %v2465
        %v3025 = vcombine.high %v2457, %v2465
        %v3027 = vunpack.c.l.s4 1983009808
        %v3028 = vunpack.c.0.s8 %v3027
        %v3029 = vlaneseq
        %v3030 = vshrl.u32 %v3029, 7
        %v3031 = vsub.s32 %v3028, %v3030
        %v3032 = vrot.slane %v3024, %v3031
        %v3034 = vunpack.c.l.s4 1983009808
        %v3035 = vunpack.c.0.s8 %v3034
        %v3036 = vlaneseq
        %v3037 = vshrl.u32 %v3036, 7
        %v3038 = vsub.s32 %v3035, %v3037
        %v3039 = vrot.slane %v3025, %v3038
        %v3040 = vcombine.low %v2461, %v2469
        %v3041 = vcombine.high %v2461, %v2469
        %v3043 = vunpack.c.l.s4 1983009808
        %v3044 = vunpack.c.0.s8 %v3043
        %v3045 = vlaneseq
        %v3046 = vshrl.u32 %v3045, 7
        %v3047 = vsub.s32 %v3044, %v3046
        %v3048 = vrot.slane %v3040, %v3047
        %v3050 = vunpack.c.l.s4 1983009808
        %v3051 = vunpack.c.0.s8 %v3050
        %v3052 = vlaneseq
        %v3053 = vshrl.u32 %v3052, 7
        %v3054 = vsub.s32 %v3051, %v3053
        %v3055 = vrot.slane %v3041, %v3054
        %v3056 = vcombine.low %v3032, %v3048
        %v3057 = vcombine.high %v3032, %v3048
        %v3059 = vunpack.c.l.s4 1934713408
        %v3060 = vunpack.c.0.s8 %v3059
        %v3061 = vlaneseq
        %v3062 = vshrl.u32 %v3061, 7
        %v3063 = vsub.s32 %v3060, %v3062
        %v3064 = vrot.slane %v3056, %v3063
        %v3066 = vunpack.c.l.s4 1934713408
        %v3067 = vunpack.c.0.s8 %v3066
        %v3068 = vlaneseq
        %v3069 = vshrl.u32 %v3068, 7
        %v3070 = vsub.s32 %v3067, %v3069
        %v3071 = vrot.slane %v3057, %v3070
        %v3072 = vcombine.low %v3039, %v3055
        %v3073 = vcombine.high %v3039, %v3055
        %v3075 = vunpack.c.l.s4 1934713408
        %v3076 = vunpack.c.0.s8 %v3075
        %v3077 = vlaneseq
        %v3078 = vshrl.u32 %v3077, 7
        %v3079 = vsub.s32 %v3076, %v3078
        %v3080 = vrot.slane %v3072, %v3079
        %v3082 = vunpack.c.l.s4 1934713408
        %v3083 = vunpack.c.0.s8 %v3082
        %v3084 = vlaneseq
        %v3085 = vshrl.u32 %v3084, 7
        %v3086 = vsub.s32 %v3083, %v3085
        %v3087 = vrot.slane %v3073, %v3086
        %v3088 = vcombine.high %v3064, 0.0
        %v3089 = vcombine.high %v3071, 0.0
        %v3090 = vcombine.high %v3080, 0.0
        %v3091 = vcombine.high %v3087, 0.0
        %v3092 = vcombine.low %v2257, %v2263
        %v3093 = vcombine.high %v2257, %v2263
        %v3095 = vunpack.c.l.s4 1983009808
        %v3096 = vunpack.c.0.s8 %v3095
        %v3097 = vlaneseq
        %v3098 = vshrl.u32 %v3097, 7
        %v3099 = vsub.s32 %v3096, %v3098
        %v3100 = vrot.slane %v3092, %v3099
        %v3102 = vunpack.c.l.s4 1983009808
        %v3103 = vunpack.c.0.s8 %v3102
        %v3104 = vlaneseq
        %v3105 = vshrl.u32 %v3104, 7
        %v3106 = vsub.s32 %v3103, %v3105
        %v3107 = vrot.slane %v3093, %v3106
        %v3108 = vcombine.low %v2260, %v2266
        %v3109 = vcombine.high %v2260, %v2266
        %v3111 = vunpack.c.l.s4 1983009808
        %v3112 = vunpack.c.0.s8 %v3111
        %v3113 = vlaneseq
        %v3114 = vshrl.u32 %v3113, 7
        %v3115 = vsub.s32 %v3112, %v3114
        %v3116 = vrot.slane %v3108, %v3115
        %v3118 = vunpack.c.l.s4 1983009808
        %v3119 = vunpack.c.0.s8 %v3118
        %v3120 = vlaneseq
        %v3121 = vshrl.u32 %v3120, 7
        %v3122 = vsub.s32 %v3119, %v3121
        %v3123 = vrot.slane %v3109, %v3122
        %v3124 = vcombine.low %v2279, %v2287
        %v3125 = vcombine.high %v2279, %v2287
        %v3127 = vunpack.c.l.s4 1983009808
        %v3128 = vunpack.c.0.s8 %v3127
        %v3129 = vlaneseq
        %v3130 = vshrl.u32 %v3129, 7
        %v3131 = vsub.s32 %v3128, %v3130
        %v3132 = vrot.slane %v3124, %v3131
        %v3134 = vunpack.c.l.s4 1983009808
        %v3135 = vunpack.c.0.s8 %v3134
        %v3136 = vlaneseq
        %v3137 = vshrl.u32 %v3136, 7
        %v3138 = vsub.s32 %v3135, %v3137
        %v3139 = vrot.slane %v3125, %v3138
        %v3140 = vcombine.low %v2283, %v2291
        %v3141 = vcombine.high %v2283, %v2291
        %v3143 = vunpack.c.l.s4 1983009808
        %v3144 = vunpack.c.0.s8 %v3143
        %v3145 = vlaneseq
        %v3146 = vshrl.u32 %v3145, 7
        %v3147 = vsub.s32 %v3144, %v3146
        %v3148 = vrot.slane %v3140, %v3147
        %v3150 = vunpack.c.l.s4 1983009808
        %v3151 = vunpack.c.0.s8 %v3150
        %v3152 = vlaneseq
        %v3153 = vshrl.u32 %v3152, 7
        %v3154 = vsub.s32 %v3151, %v3153
        %v3155 = vrot.slane %v3141, %v3154
        %v3156 = vcombine.low %v3100, %v3116
        %v3157 = vcombine.high %v3100, %v3116
        %v3159 = vunpack.c.l.s4 1934713408
        %v3160 = vunpack.c.0.s8 %v3159
        %v3161 = vlaneseq
        %v3162 = vshrl.u32 %v3161, 7
        %v3163 = vsub.s32 %v3160, %v3162
        %v3164 = vrot.slane %v3156, %v3163
        %v3166 = vunpack.c.l.s4 1934713408
        %v3167 = vunpack.c.0.s8 %v3166
        %v3168 = vlaneseq
        %v3169 = vshrl.u32 %v3168, 7
        %v3170 = vsub.s32 %v3167, %v3169
        %v3171 = vrot.slane %v3157, %v3170
        %v3172 = vcombine.low %v3107, %v3123
        %v3173 = vcombine.high %v3107, %v3123
        %v3175 = vunpack.c.l.s4 1934713408
        %v3176 = vunpack.c.0.s8 %v3175
        %v3177 = vlaneseq
        %v3178 = vshrl.u32 %v3177, 7
        %v3179 = vsub.s32 %v3176, %v3178
        %v3180 = vrot.slane %v3172, %v3179
        %v3182 = vunpack.c.l.s4 1934713408
        %v3183 = vunpack.c.0.s8 %v3182
        %v3184 = vlaneseq
        %v3185 = vshrl.u32 %v3184, 7
        %v3186 = vsub.s32 %v3183, %v3185
        %v3187 = vrot.slane %v3173, %v3186
        %v3188 = vcombine.low %v3132, %v3148
        %v3189 = vcombine.high %v3132, %v3148
        %v3191 = vunpack.c.l.s4 1934713408
        %v3192 = vunpack.c.0.s8 %v3191
        %v3193 = vlaneseq
        %v3194 = vshrl.u32 %v3193, 7
        %v3195 = vsub.s32 %v3192, %v3194
        %v3196 = vrot.slane %v3188, %v3195
        %v3198 = vunpack.c.l.s4 1934713408
        %v3199 = vunpack.c.0.s8 %v3198
        %v3200 = vlaneseq
        %v3201 = vshrl.u32 %v3200, 7
        %v3202 = vsub.s32 %v3199, %v3201
        %v3203 = vrot.slane %v3189, %v3202
        %v3204 = vcombine.low %v3139, %v3155
        %v3205 = vcombine.high %v3139, %v3155
        %v3207 = vunpack.c.l.s4 1934713408
        %v3208 = vunpack.c.0.s8 %v3207
        %v3209 = vlaneseq
        %v3210 = vshrl.u32 %v3209, 7
        %v3211 = vsub.s32 %v3208, %v3210
        %v3212 = vrot.slane %v3204, %v3211
        %v3214 = vunpack.c.l.s4 1934713408
        %v3215 = vunpack.c.0.s8 %v3214
        %v3216 = vlaneseq
        %v3217 = vshrl.u32 %v3216, 7
        %v3218 = vsub.s32 %v3215, %v3217
        %v3219 = vrot.slane %v3205, %v3218
        %v3220 = vcombine.low %v3164, %v3196
        %v3221 = vcombine.high %v3164, %v3196
        %v3222 = vcombine.low %v3171, %v3203
        %v3223 = vcombine.high %v3171, %v3203
        %v3224 = vcombine.low %v3180, %v3212
        %v3225 = vcombine.high %v3180, %v3212
        %v3226 = vcombine.low %v3187, %v3219
        %v3227 = vcombine.high %v3187, %v3219
        %v3228 = vcombine.low %v2303, %v2311
        %v3229 = vcombine.high %v2303, %v2311
        %v3231 = vunpack.c.l.s4 1983009808
        %v3232 = vunpack.c.0.s8 %v3231
        %v3233 = vlaneseq
        %v3234 = vshrl.u32 %v3233, 7
        %v3235 = vsub.s32 %v3232, %v3234
        %v3236 = vrot.slane %v3228, %v3235
        %v3238 = vunpack.c.l.s4 1983009808
        %v3239 = vunpack.c.0.s8 %v3238
        %v3240 = vlaneseq
        %v3241 = vshrl.u32 %v3240, 7
        %v3242 = vsub.s32 %v3239, %v3241
        %v3243 = vrot.slane %v3229, %v3242
        %v3244 = vcombine.low %v2307, %v2315
        %v3245 = vcombine.high %v2307, %v2315
        %v3247 = vunpack.c.l.s4 1983009808
        %v3248 = vunpack.c.0.s8 %v3247
        %v3249 = vlaneseq
        %v3250 = vshrl.u32 %v3249, 7
        %v3251 = vsub.s32 %v3248, %v3250
        %v3252 = vrot.slane %v3244, %v3251
        %v3254 = vunpack.c.l.s4 1983009808
        %v3255 = vunpack.c.0.s8 %v3254
        %v3256 = vlaneseq
        %v3257 = vshrl.u32 %v3256, 7
        %v3258 = vsub.s32 %v3255, %v3257
        %v3259 = vrot.slane %v3245, %v3258
        %v3260 = vcombine.low %v2332, %v2342
        %v3261 = vcombine.high %v2332, %v2342
        %v3263 = vunpack.c.l.s4 1983009808
        %v3264 = vunpack.c.0.s8 %v3263
        %v3265 = vlaneseq
        %v3266 = vshrl.u32 %v3265, 7
        %v3267 = vsub.s32 %v3264, %v3266
        %v3268 = vrot.slane %v3260, %v3267
        %v3270 = vunpack.c.l.s4 1983009808
        %v3271 = vunpack.c.0.s8 %v3270
        %v3272 = vlaneseq
        %v3273 = vshrl.u32 %v3272, 7
        %v3274 = vsub.s32 %v3271, %v3273
        %v3275 = vrot.slane %v3261, %v3274
        %v3276 = vcombine.low %v2337, %v2347
        %v3277 = vcombine.high %v2337, %v2347
        %v3279 = vunpack.c.l.s4 1983009808
        %v3280 = vunpack.c.0.s8 %v3279
        %v3281 = vlaneseq
        %v3282 = vshrl.u32 %v3281, 7
        %v3283 = vsub.s32 %v3280, %v3282
        %v3284 = vrot.slane %v3276, %v3283
        %v3286 = vunpack.c.l.s4 1983009808
        %v3287 = vunpack.c.0.s8 %v3286
        %v3288 = vlaneseq
        %v3289 = vshrl.u32 %v3288, 7
        %v3290 = vsub.s32 %v3287, %v3289
        %v3291 = vrot.slane %v3277, %v3290
        %v3292 = vcombine.low %v3236, %v3252
        %v3293 = vcombine.high %v3236, %v3252
        %v3295 = vunpack.c.l.s4 1934713408
        %v3296 = vunpack.c.0.s8 %v3295
        %v3297 = vlaneseq
        %v3298 = vshrl.u32 %v3297, 7
        %v3299 = vsub.s32 %v3296, %v3298
        %v3300 = vrot.slane %v3292, %v3299
        %v3302 = vunpack.c.l.s4 1934713408
        %v3303 = vunpack.c.0.s8 %v3302
        %v3304 = vlaneseq
        %v3305 = vshrl.u32 %v3304, 7
        %v3306 = vsub.s32 %v3303, %v3305
        %v3307 = vrot.slane %v3293, %v3306
        %v3308 = vcombine.low %v3243, %v3259
        %v3309 = vcombine.high %v3243, %v3259
        %v3311 = vunpack.c.l.s4 1934713408
        %v3312 = vunpack.c.0.s8 %v3311
        %v3313 = vlaneseq
        %v3314 = vshrl.u32 %v3313, 7
        %v3315 = vsub.s32 %v3312, %v3314
        %v3316 = vrot.slane %v3308, %v3315
        %v3318 = vunpack.c.l.s4 1934713408
        %v3319 = vunpack.c.0.s8 %v3318
        %v3320 = vlaneseq
        %v3321 = vshrl.u32 %v3320, 7
        %v3322 = vsub.s32 %v3319, %v3321
        %v3323 = vrot.slane %v3309, %v3322
        %v3324 = vcombine.low %v3268, %v3284
        %v3325 = vcombine.high %v3268, %v3284
        %v3327 = vunpack.c.l.s4 1934713408
        %v3328 = vunpack.c.0.s8 %v3327
        %v3329 = vlaneseq
        %v3330 = vshrl.u32 %v3329, 7
        %v3331 = vsub.s32 %v3328, %v3330
        %v3332 = vrot.slane %v3324, %v3331
        %v3334 = vunpack.c.l.s4 1934713408
        %v3335 = vunpack.c.0.s8 %v3334
        %v3336 = vlaneseq
        %v3337 = vshrl.u32 %v3336, 7
        %v3338 = vsub.s32 %v3335, %v3337
        %v3339 = vrot.slane %v3325, %v3338
        %v3340 = vcombine.low %v3275, %v3291
        %v3341 = vcombine.high %v3275, %v3291
        %v3343 = vunpack.c.l.s4 1934713408
        %v3344 = vunpack.c.0.s8 %v3343
        %v3345 = vlaneseq
        %v3346 = vshrl.u32 %v3345, 7
        %v3347 = vsub.s32 %v3344, %v3346
        %v3348 = vrot.slane %v3340, %v3347
        %v3350 = vunpack.c.l.s4 1934713408
        %v3351 = vunpack.c.0.s8 %v3350
        %v3352 = vlaneseq
        %v3353 = vshrl.u32 %v3352, 7
        %v3354 = vsub.s32 %v3351, %v3353
        %v3355 = vrot.slane %v3341, %v3354
        %v3356 = vcombine.low %v3300, %v3332
        %v3357 = vcombine.high %v3300, %v3332
        %v3358 = vcombine.low %v3307, %v3339
        %v3359 = vcombine.high %v3307, %v3339
        %v3360 = vcombine.low %v3316, %v3348
        %v3361 = vcombine.high %v3316, %v3348
        %v3362 = vcombine.low %v3323, %v3355
        %v3363 = vcombine.high %v3323, %v3355
        %v3364 = vcombine.low %v2359, %v2367
        %v3365 = vcombine.high %v2359, %v2367
        %v3367 = vunpack.c.l.s4 1983009808
        %v3368 = vunpack.c.0.s8 %v3367
        %v3369 = vlaneseq
        %v3370 = vshrl.u32 %v3369, 7
        %v3371 = vsub.s32 %v3368, %v3370
        %v3372 = vrot.slane %v3364, %v3371
        %v3374 = vunpack.c.l.s4 1983009808
        %v3375 = vunpack.c.0.s8 %v3374
        %v3376 = vlaneseq
        %v3377 = vshrl.u32 %v3376, 7
        %v3378 = vsub.s32 %v3375, %v3377
        %v3379 = vrot.slane %v3365, %v3378
        %v3380 = vcombine.low %v2363, %v2371
        %v3381 = vcombine.high %v2363, %v2371
        %v3383 = vunpack.c.l.s4 1983009808
        %v3384 = vunpack.c.0.s8 %v3383
        %v3385 = vlaneseq
        %v3386 = vshrl.u32 %v3385, 7
        %v3387 = vsub.s32 %v3384, %v3386
        %v3388 = vrot.slane %v3380, %v3387
        %v3390 = vunpack.c.l.s4 1983009808
        %v3391 = vunpack.c.0.s8 %v3390
        %v3392 = vlaneseq
        %v3393 = vshrl.u32 %v3392, 7
        %v3394 = vsub.s32 %v3391, %v3393
        %v3395 = vrot.slane %v3381, %v3394
        %v3396 = vcombine.low %v2383, %v2391
        %v3397 = vcombine.high %v2383, %v2391
        %v3399 = vunpack.c.l.s4 1983009808
        %v3400 = vunpack.c.0.s8 %v3399
        %v3401 = vlaneseq
        %v3402 = vshrl.u32 %v3401, 7
        %v3403 = vsub.s32 %v3400, %v3402
        %v3404 = vrot.slane %v3396, %v3403
        %v3406 = vunpack.c.l.s4 1983009808
        %v3407 = vunpack.c.0.s8 %v3406
        %v3408 = vlaneseq
        %v3409 = vshrl.u32 %v3408, 7
        %v3410 = vsub.s32 %v3407, %v3409
        %v3411 = vrot.slane %v3397, %v3410
        %v3412 = vcombine.low %v2387, %v2395
        %v3413 = vcombine.high %v2387, %v2395
        %v3415 = vunpack.c.l.s4 1983009808
        %v3416 = vunpack.c.0.s8 %v3415
        %v3417 = vlaneseq
        %v3418 = vshrl.u32 %v3417, 7
        %v3419 = vsub.s32 %v3416, %v3418
        %v3420 = vrot.slane %v3412, %v3419
        %v3422 = vunpack.c.l.s4 1983009808
        %v3423 = vunpack.c.0.s8 %v3422
        %v3424 = vlaneseq
        %v3425 = vshrl.u32 %v3424, 7
        %v3426 = vsub.s32 %v3423, %v3425
        %v3427 = vrot.slane %v3413, %v3426
        %v3428 = vcombine.low %v3372, %v3388
        %v3429 = vcombine.high %v3372, %v3388
        %v3431 = vunpack.c.l.s4 1934713408
        %v3432 = vunpack.c.0.s8 %v3431
        %v3433 = vlaneseq
        %v3434 = vshrl.u32 %v3433, 7
        %v3435 = vsub.s32 %v3432, %v3434
        %v3436 = vrot.slane %v3428, %v3435
        %v3438 = vunpack.c.l.s4 1934713408
        %v3439 = vunpack.c.0.s8 %v3438
        %v3440 = vlaneseq
        %v3441 = vshrl.u32 %v3440, 7
        %v3442 = vsub.s32 %v3439, %v3441
        %v3443 = vrot.slane %v3429, %v3442
        %v3444 = vcombine.low %v3379, %v3395
        %v3445 = vcombine.high %v3379, %v3395
        %v3447 = vunpack.c.l.s4 1934713408
        %v3448 = vunpack.c.0.s8 %v3447
        %v3449 = vlaneseq
        %v3450 = vshrl.u32 %v3449, 7
        %v3451 = vsub.s32 %v3448, %v3450
        %v3452 = vrot.slane %v3444, %v3451
        %v3454 = vunpack.c.l.s4 1934713408
        %v3455 = vunpack.c.0.s8 %v3454
        %v3456 = vlaneseq
        %v3457 = vshrl.u32 %v3456, 7
        %v3458 = vsub.s32 %v3455, %v3457
        %v3459 = vrot.slane %v3445, %v3458
        %v3460 = vcombine.low %v3404, %v3420
        %v3461 = vcombine.high %v3404, %v3420
        %v3463 = vunpack.c.l.s4 1934713408
        %v3464 = vunpack.c.0.s8 %v3463
        %v3465 = vlaneseq
        %v3466 = vshrl.u32 %v3465, 7
        %v3467 = vsub.s32 %v3464, %v3466
        %v3468 = vrot.slane %v3460, %v3467
        %v3470 = vunpack.c.l.s4 1934713408
        %v3471 = vunpack.c.0.s8 %v3470
        %v3472 = vlaneseq
        %v3473 = vshrl.u32 %v3472, 7
        %v3474 = vsub.s32 %v3471, %v3473
        %v3475 = vrot.slane %v3461, %v3474
        %v3476 = vcombine.low %v3411, %v3427
        %v3477 = vcombine.high %v3411, %v3427
        %v3479 = vunpack.c.l.s4 1934713408
        %v3480 = vunpack.c.0.s8 %v3479
        %v3481 = vlaneseq
        %v3482 = vshrl.u32 %v3481, 7
        %v3483 = vsub.s32 %v3480, %v3482
        %v3484 = vrot.slane %v3476, %v3483
        %v3486 = vunpack.c.l.s4 1934713408
        %v3487 = vunpack.c.0.s8 %v3486
        %v3488 = vlaneseq
        %v3489 = vshrl.u32 %v3488, 7
        %v3490 = vsub.s32 %v3487, %v3489
        %v3491 = vrot.slane %v3477, %v3490
        %v3492 = vcombine.low %v3436, %v3468
        %v3493 = vcombine.high %v3436, %v3468
        %v3494 = vcombine.low %v3443, %v3475
        %v3495 = vcombine.high %v3443, %v3475
        %v3496 = vcombine.low %v3452, %v3484
        %v3497 = vcombine.high %v3452, %v3484
        %v3498 = vcombine.low %v3459, %v3491
        %v3499 = vcombine.high %v3459, %v3491
        %v3500 = vcombine.low %v2408, %v2418
        %v3501 = vcombine.high %v2408, %v2418
        %v3503 = vunpack.c.l.s4 1983009808
        %v3504 = vunpack.c.0.s8 %v3503
        %v3505 = vlaneseq
        %v3506 = vshrl.u32 %v3505, 7
        %v3507 = vsub.s32 %v3504, %v3506
        %v3508 = vrot.slane %v3500, %v3507
        %v3510 = vunpack.c.l.s4 1983009808
        %v3511 = vunpack.c.0.s8 %v3510
        %v3512 = vlaneseq
        %v3513 = vshrl.u32 %v3512, 7
        %v3514 = vsub.s32 %v3511, %v3513
        %v3515 = vrot.slane %v3501, %v3514
        %v3516 = vcombine.low %v2413, %v2423
        %v3517 = vcombine.high %v2413, %v2423
        %v3519 = vunpack.c.l.s4 1983009808
        %v3520 = vunpack.c.0.s8 %v3519
        %v3521 = vlaneseq
        %v3522 = vshrl.u32 %v3521, 7
        %v3523 = vsub.s32 %v3520, %v3522
        %v3524 = vrot.slane %v3516, %v3523
        %v3526 = vunpack.c.l.s4 1983009808
        %v3527 = vunpack.c.0.s8 %v3526
        %v3528 = vlaneseq
        %v3529 = vshrl.u32 %v3528, 7
        %v3530 = vsub.s32 %v3527, %v3529
        %v3531 = vrot.slane %v3517, %v3530
        %v3532 = vcombine.low %v2435, %v2443
        %v3533 = vcombine.high %v2435, %v2443
        %v3535 = vunpack.c.l.s4 1983009808
        %v3536 = vunpack.c.0.s8 %v3535
        %v3537 = vlaneseq
        %v3538 = vshrl.u32 %v3537, 7
        %v3539 = vsub.s32 %v3536, %v3538
        %v3540 = vrot.slane %v3532, %v3539
        %v3542 = vunpack.c.l.s4 1983009808
        %v3543 = vunpack.c.0.s8 %v3542
        %v3544 = vlaneseq
        %v3545 = vshrl.u32 %v3544, 7
        %v3546 = vsub.s32 %v3543, %v3545
        %v3547 = vrot.slane %v3533, %v3546
        %v3548 = vcombine.low %v2439, %v2447
        %v3549 = vcombine.high %v2439, %v2447
        %v3551 = vunpack.c.l.s4 1983009808
        %v3552 = vunpack.c.0.s8 %v3551
        %v3553 = vlaneseq
        %v3554 = vshrl.u32 %v3553, 7
        %v3555 = vsub.s32 %v3552, %v3554
        %v3556 = vrot.slane %v3548, %v3555
        %v3558 = vunpack.c.l.s4 1983009808
        %v3559 = vunpack.c.0.s8 %v3558
        %v3560 = vlaneseq
        %v3561 = vshrl.u32 %v3560, 7
        %v3562 = vsub.s32 %v3559, %v3561
        %v3563 = vrot.slane %v3549, %v3562
        %v3564 = vcombine.low %v3508, %v3524
        %v3565 = vcombine.high %v3508, %v3524
        %v3567 = vunpack.c.l.s4 1934713408
        %v3568 = vunpack.c.0.s8 %v3567
        %v3569 = vlaneseq
        %v3570 = vshrl.u32 %v3569, 7
        %v3571 = vsub.s32 %v3568, %v3570
        %v3572 = vrot.slane %v3564, %v3571
        %v3574 = vunpack.c.l.s4 1934713408
        %v3575 = vunpack.c.0.s8 %v3574
        %v3576 = vlaneseq
        %v3577 = vshrl.u32 %v3576, 7
        %v3578 = vsub.s32 %v3575, %v3577
        %v3579 = vrot.slane %v3565, %v3578
        %v3580 = vcombine.low %v3515, %v3531
        %v3581 = vcombine.high %v3515, %v3531
        %v3583 = vunpack.c.l.s4 1934713408
        %v3584 = vunpack.c.0.s8 %v3583
        %v3585 = vlaneseq
        %v3586 = vshrl.u32 %v3585, 7
        %v3587 = vsub.s32 %v3584, %v3586
        %v3588 = vrot.slane %v3580, %v3587
        %v3590 = vunpack.c.l.s4 1934713408
        %v3591 = vunpack.c.0.s8 %v3590
        %v3592 = vlaneseq
        %v3593 = vshrl.u32 %v3592, 7
        %v3594 = vsub.s32 %v3591, %v3593
        %v3595 = vrot.slane %v3581, %v3594
        %v3596 = vcombine.low %v3540, %v3556
        %v3597 = vcombine.high %v3540, %v3556
        %v3599 = vunpack.c.l.s4 1934713408
        %v3600 = vunpack.c.0.s8 %v3599
        %v3601 = vlaneseq
        %v3602 = vshrl.u32 %v3601, 7
        %v3603 = vsub.s32 %v3600, %v3602
        %v3604 = vrot.slane %v3596, %v3603
        %v3606 = vunpack.c.l.s4 1934713408
        %v3607 = vunpack.c.0.s8 %v3606
        %v3608 = vlaneseq
        %v3609 = vshrl.u32 %v3608, 7
        %v3610 = vsub.s32 %v3607, %v3609
        %v3611 = vrot.slane %v3597, %v3610
        %v3612 = vcombine.low %v3547, %v3563
        %v3613 = vcombine.high %v3547, %v3563
        %v3615 = vunpack.c.l.s4 1934713408
        %v3616 = vunpack.c.0.s8 %v3615
        %v3617 = vlaneseq
        %v3618 = vshrl.u32 %v3617, 7
        %v3619 = vsub.s32 %v3616, %v3618
        %v3620 = vrot.slane %v3612, %v3619
        %v3622 = vunpack.c.l.s4 1934713408
        %v3623 = vunpack.c.0.s8 %v3622
        %v3624 = vlaneseq
        %v3625 = vshrl.u32 %v3624, 7
        %v3626 = vsub.s32 %v3623, %v3625
        %v3627 = vrot.slane %v3613, %v3626
        %v3628 = vcombine.low %v3572, %v3604
        %v3629 = vcombine.high %v3572, %v3604
        %v3630 = vcombine.low %v3579, %v3611
        %v3631 = vcombine.high %v3579, %v3611
        %v3632 = vcombine.low %v3588, %v3620
        %v3633 = vcombine.high %v3588, %v3620
        %v3634 = vcombine.low %v3595, %v3627
        %v3635 = vcombine.high %v3595, %v3627
        %v3636 = vcombine.low %v2459, %v2467
        %v3637 = vcombine.high %v2459, %v2467
        %v3639 = vunpack.c.l.s4 1983009808
        %v3640 = vunpack.c.0.s8 %v3639
        %v3641 = vlaneseq
        %v3642 = vshrl.u32 %v3641, 7
        %v3643 = vsub.s32 %v3640, %v3642
        %v3644 = vrot.slane %v3636, %v3643
        %v3646 = vunpack.c.l.s4 1983009808
        %v3647 = vunpack.c.0.s8 %v3646
        %v3648 = vlaneseq
        %v3649 = vshrl.u32 %v3648, 7
        %v3650 = vsub.s32 %v3647, %v3649
        %v3651 = vrot.slane %v3637, %v3650
        %v3652 = vcombine.low %v2463, %v2471
        %v3653 = vcombine.high %v2463, %v2471
        %v3655 = vunpack.c.l.s4 1983009808
        %v3656 = vunpack.c.0.s8 %v3655
        %v3657 = vlaneseq
        %v3658 = vshrl.u32 %v3657, 7
        %v3659 = vsub.s32 %v3656, %v3658
        %v3660 = vrot.slane %v3652, %v3659
        %v3662 = vunpack.c.l.s4 1983009808
        %v3663 = vunpack.c.0.s8 %v3662
        %v3664 = vlaneseq
        %v3665 = vshrl.u32 %v3664, 7
        %v3666 = vsub.s32 %v3663, %v3665
        %v3667 = vrot.slane %v3653, %v3666
        %v3668 = vcombine.low %v3644, %v3660
        %v3669 = vcombine.high %v3644, %v3660
        %v3671 = vunpack.c.l.s4 1934713408
        %v3672 = vunpack.c.0.s8 %v3671
        %v3673 = vlaneseq
        %v3674 = vshrl.u32 %v3673, 7
        %v3675 = vsub.s32 %v3672, %v3674
        %v3676 = vrot.slane %v3668, %v3675
        %v3678 = vunpack.c.l.s4 1934713408
        %v3679 = vunpack.c.0.s8 %v3678
        %v3680 = vlaneseq
        %v3681 = vshrl.u32 %v3680, 7
        %v3682 = vsub.s32 %v3679, %v3681
        %v3683 = vrot.slane %v3669, %v3682
        %v3684 = vcombine.low %v3651, %v3667
        %v3685 = vcombine.high %v3651, %v3667
        %v3687 = vunpack.c.l.s4 1934713408
        %v3688 = vunpack.c.0.s8 %v3687
        %v3689 = vlaneseq
        %v3690 = vshrl.u32 %v3689, 7
        %v3691 = vsub.s32 %v3688, %v3690
        %v3692 = vrot.slane %v3684, %v3691
        %v3694 = vunpack.c.l.s4 1934713408
        %v3695 = vunpack.c.0.s8 %v3694
        %v3696 = vlaneseq
        %v3697 = vshrl.u32 %v3696, 7
        %v3698 = vsub.s32 %v3695, %v3697
        %v3699 = vrot.slane %v3685, %v3698
        %v3700 = vcombine.high %v3676, 0.0
        %v3701 = vcombine.high %v3683, 0.0
        %v3702 = vcombine.high %v3692, 0.0
        %v3703 = vcombine.high %v3699, 0.0
        %3709 = vrot.lane.b32.xlu0 %v2609, 16
        %v3710 = vpop.permute.xlu0 %3709
        %3711 = vrot.lane.b32.xlu0 %v2745, 16
        %v3712 = vpop.permute.xlu0 %3711
        %3713 = vrot.lane.b32.xlu0 %v2881, 16
        %v3714 = vpop.permute.xlu0 %3713
        %3715 = vrot.lane.b32.xlu0 %v3017, 16
        %v3716 = vpop.permute.xlu0 %3715
        %3717 = vrot.lane.b32.xlu0 %v3088, 16
        %v3718 = vpop.permute.xlu0 %3717
        %3729 = vrot.lane.b32.xlu0 %v2610, 32
        %v3730 = vpop.permute.xlu0 %3729
        %3731 = vrot.lane.b32.xlu0 %v2746, 32
        %v3732 = vpop.permute.xlu0 %3731
        %3733 = vrot.lane.b32.xlu0 %v2882, 32
        %v3734 = vpop.permute.xlu0 %3733
        %3735 = vrot.lane.b32.xlu0 %v3018, 32
        %v3736 = vpop.permute.xlu0 %3735
        %3737 = vrot.lane.b32.xlu0 %v3071, 32
        %v3738 = vpop.permute.xlu0 %3737
        %3749 = vrot.lane.b32.xlu0 %v2611, 48
        %v3750 = vpop.permute.xlu0 %3749
        %3751 = vrot.lane.b32.xlu0 %v2747, 48
        %v3752 = vpop.permute.xlu0 %3751
        %3753 = vrot.lane.b32.xlu0 %v2883, 48
        %v3754 = vpop.permute.xlu0 %3753
        %3755 = vrot.lane.b32.xlu0 %v3019, 48
        %v3756 = vpop.permute.xlu0 %3755
        %3757 = vrot.lane.b32.xlu0 %v3089, 48
        %v3758 = vpop.permute.xlu0 %3757
        %3769 = vrot.lane.b32.xlu0 %v2612, 64
        %v3770 = vpop.permute.xlu0 %3769
        %3771 = vrot.lane.b32.xlu0 %v2748, 64
        %v3772 = vpop.permute.xlu0 %3771
        %3773 = vrot.lane.b32.xlu0 %v2884, 64
        %v3774 = vpop.permute.xlu0 %3773
        %3775 = vrot.lane.b32.xlu0 %v3020, 64
        %v3776 = vpop.permute.xlu0 %3775
        %3777 = vrot.lane.b32.xlu0 %v3080, 64
        %v3778 = vpop.permute.xlu0 %3777
        %3789 = vrot.lane.b32.xlu0 %v2613, 80
        %v3790 = vpop.permute.xlu0 %3789
        %3791 = vrot.lane.b32.xlu0 %v2749, 80
        %v3792 = vpop.permute.xlu0 %3791
        %3793 = vrot.lane.b32.xlu0 %v2885, 80
        %v3794 = vpop.permute.xlu0 %3793
        %3795 = vrot.lane.b32.xlu0 %v3021, 80
        %v3796 = vpop.permute.xlu0 %3795
        %3797 = vrot.lane.b32.xlu0 %v3090, 80
        %v3798 = vpop.permute.xlu0 %3797
        %3809 = vrot.lane.b32.xlu0 %v2614, 96
        %v3810 = vpop.permute.xlu0 %3809
        %3811 = vrot.lane.b32.xlu0 %v2750, 96
        %v3812 = vpop.permute.xlu0 %3811
        %3813 = vrot.lane.b32.xlu0 %v2886, 96
        %v3814 = vpop.permute.xlu0 %3813
        %3815 = vrot.lane.b32.xlu0 %v3022, 96
        %v3816 = vpop.permute.xlu0 %3815
        %3817 = vrot.lane.b32.xlu0 %v3087, 96
        %v3818 = vpop.permute.xlu0 %3817
        %3829 = vrot.lane.b32.xlu0 %v2615, 112
        %v3830 = vpop.permute.xlu0 %3829
        %3831 = vrot.lane.b32.xlu0 %v2751, 112
        %v3832 = vpop.permute.xlu0 %3831
        %3833 = vrot.lane.b32.xlu0 %v2887, 112
        %v3834 = vpop.permute.xlu0 %3833
        %3835 = vrot.lane.b32.xlu0 %v3023, 112
        %v3836 = vpop.permute.xlu0 %3835
        %3837 = vrot.lane.b32.xlu0 %v3091, 112
        %v3838 = vpop.permute.xlu0 %3837
        %3849 = vrot.lane.b32.xlu0 %v3221, 16
        %v3850 = vpop.permute.xlu0 %3849
        %3851 = vrot.lane.b32.xlu0 %v3357, 16
        %v3852 = vpop.permute.xlu0 %3851
        %3853 = vrot.lane.b32.xlu0 %v3493, 16
        %v3854 = vpop.permute.xlu0 %3853
        %3855 = vrot.lane.b32.xlu0 %v3629, 16
        %v3856 = vpop.permute.xlu0 %3855
        %3857 = vrot.lane.b32.xlu0 %v3700, 16
        %v3858 = vpop.permute.xlu0 %3857
        %3869 = vrot.lane.b32.xlu0 %v3222, 32
        %v3870 = vpop.permute.xlu0 %3869
        %3871 = vrot.lane.b32.xlu0 %v3358, 32
        %v3872 = vpop.permute.xlu0 %3871
        %3873 = vrot.lane.b32.xlu0 %v3494, 32
        %v3874 = vpop.permute.xlu0 %3873
        %3875 = vrot.lane.b32.xlu0 %v3630, 32
        %v3876 = vpop.permute.xlu0 %3875
        %3877 = vrot.lane.b32.xlu0 %v3683, 32
        %v3878 = vpop.permute.xlu0 %3877
        %3889 = vrot.lane.b32.xlu0 %v3223, 48
        %v3890 = vpop.permute.xlu0 %3889
        %3891 = vrot.lane.b32.xlu0 %v3359, 48
        %v3892 = vpop.permute.xlu0 %3891
        %3893 = vrot.lane.b32.xlu0 %v3495, 48
        %v3894 = vpop.permute.xlu0 %3893
        %3895 = vrot.lane.b32.xlu0 %v3631, 48
        %v3896 = vpop.permute.xlu0 %3895
        %3897 = vrot.lane.b32.xlu0 %v3701, 48
        %v3898 = vpop.permute.xlu0 %3897
        %3909 = vrot.lane.b32.xlu0 %v3224, 64
        %v3910 = vpop.permute.xlu0 %3909
        %3911 = vrot.lane.b32.xlu0 %v3360, 64
        %v3912 = vpop.permute.xlu0 %3911
        %3913 = vrot.lane.b32.xlu0 %v3496, 64
        %v3914 = vpop.permute.xlu0 %3913
        %3915 = vrot.lane.b32.xlu0 %v3632, 64
        %v3916 = vpop.permute.xlu0 %3915
        %3917 = vrot.lane.b32.xlu0 %v3692, 64
        %v3918 = vpop.permute.xlu0 %3917
        %3929 = vrot.lane.b32.xlu0 %v3225, 80
        %v3930 = vpop.permute.xlu0 %3929
        %3931 = vrot.lane.b32.xlu0 %v3361, 80
        %v3932 = vpop.permute.xlu0 %3931
        %3933 = vrot.lane.b32.xlu0 %v3497, 80
        %v3934 = vpop.permute.xlu0 %3933
        %3935 = vrot.lane.b32.xlu0 %v3633, 80
        %v3936 = vpop.permute.xlu0 %3935
        %3937 = vrot.lane.b32.xlu0 %v3702, 80
        %v3938 = vpop.permute.xlu0 %3937
        %3949 = vrot.lane.b32.xlu0 %v3226, 96
        %v3950 = vpop.permute.xlu0 %3949
        %3951 = vrot.lane.b32.xlu0 %v3362, 96
        %v3952 = vpop.permute.xlu0 %3951
        %3953 = vrot.lane.b32.xlu0 %v3498, 96
        %v3954 = vpop.permute.xlu0 %3953
        %3955 = vrot.lane.b32.xlu0 %v3634, 96
        %v3956 = vpop.permute.xlu0 %3955
        %3957 = vrot.lane.b32.xlu0 %v3699, 96
        %v3958 = vpop.permute.xlu0 %3957
        %3969 = vrot.lane.b32.xlu0 %v3227, 112
        %v3970 = vpop.permute.xlu0 %3969
        %3971 = vrot.lane.b32.xlu0 %v3363, 112
        %v3972 = vpop.permute.xlu0 %3971
        %3973 = vrot.lane.b32.xlu0 %v3499, 112
        %v3974 = vpop.permute.xlu0 %3973
        %3975 = vrot.lane.b32.xlu0 %v3635, 112
        %v3976 = vpop.permute.xlu0 %3975
        %3977 = vrot.lane.b32.xlu0 %v3703, 112
        %v3978 = vpop.permute.xlu0 %3977
        %v3984 = vsel %vm2078, %v2608, %v3710
        %v3985 = vsel %vm2078, %v2744, %v3712
        %v3986 = vsel %vm2078, %v2880, %v3714
        %v3987 = vsel %vm2078, %v3016, %v3716
        %v3988 = vsel %vm2078, %v3064, %v3718
        %v3989 = vsel %vm2084, %v3984, %v3730
        %v3990 = vsel %vm2084, %v3985, %v3732
        %v3991 = vsel %vm2084, %v3986, %v3734
        %v3992 = vsel %vm2084, %v3987, %v3736
        %v3993 = vsel %vm2084, %v3988, %v3738
        %v3994 = vsel %vm2090, %v3989, %v3750
        %v3995 = vsel %vm2090, %v3990, %v3752
        %v3996 = vsel %vm2090, %v3991, %v3754
        %v3997 = vsel %vm2090, %v3992, %v3756
        %v3998 = vsel %vm2090, %v3993, %v3758
        %v3999 = vsel %vm2096, %v3994, %v3770
        %v4000 = vsel %vm2096, %v3995, %v3772
        %v4001 = vsel %vm2096, %v3996, %v3774
        %v4002 = vsel %vm2096, %v3997, %v3776
        %v4003 = vsel %vm2096, %v3998, %v3778
        %v4004 = vsel %vm2102, %v3999, %v3790
        %v4005 = vsel %vm2102, %v4000, %v3792
        %v4006 = vsel %vm2102, %v4001, %v3794
        %v4007 = vsel %vm2102, %v4002, %v3796
        %v4008 = vsel %vm2102, %v4003, %v3798
        %v4009 = vsel %vm2108, %v4004, %v3810
        %v4010 = vsel %vm2108, %v4005, %v3812
        %v4011 = vsel %vm2108, %v4006, %v3814
        %v4012 = vsel %vm2108, %v4007, %v3816
        %v4013 = vsel %vm2108, %v4008, %v3818
        %v4014 = vsel %vm2114, %v4009, %v3830
        %v4015 = vsel %vm2114, %v4010, %v3832
        %v4016 = vsel %vm2114, %v4011, %v3834
        %v4017 = vsel %vm2114, %v4012, %v3836
        %v4018 = vsel %vm2114, %v4013, %v3838
        %v4019 = vsel %vm2078, %v3220, %v3850
        %v4020 = vsel %vm2078, %v3356, %v3852
        %v4021 = vsel %vm2078, %v3492, %v3854
        %v4022 = vsel %vm2078, %v3628, %v3856
        %v4023 = vsel %vm2078, %v3676, %v3858
        %v4024 = vsel %vm2084, %v4019, %v3870
        %v4025 = vsel %vm2084, %v4020, %v3872
        %v4026 = vsel %vm2084, %v4021, %v3874
        %v4027 = vsel %vm2084, %v4022, %v3876
        %v4028 = vsel %vm2084, %v4023, %v3878
        %v4029 = vsel %vm2090, %v4024, %v3890
        %v4030 = vsel %vm2090, %v4025, %v3892
        %v4031 = vsel %vm2090, %v4026, %v3894
        %v4032 = vsel %vm2090, %v4027, %v3896
        %v4033 = vsel %vm2090, %v4028, %v3898
        %v4034 = vsel %vm2096, %v4029, %v3910
        %v4035 = vsel %vm2096, %v4030, %v3912
        %v4036 = vsel %vm2096, %v4031, %v3914
        %v4037 = vsel %vm2096, %v4032, %v3916
        %v4038 = vsel %vm2096, %v4033, %v3918
        %v4039 = vsel %vm2102, %v4034, %v3930
        %v4040 = vsel %vm2102, %v4035, %v3932
        %v4041 = vsel %vm2102, %v4036, %v3934
        %v4042 = vsel %vm2102, %v4037, %v3936
        %v4043 = vsel %vm2102, %v4038, %v3938
        %v4044 = vsel %vm2108, %v4039, %v3950
        %v4045 = vsel %vm2108, %v4040, %v3952
        %v4046 = vsel %vm2108, %v4041, %v3954
        %v4047 = vsel %vm2108, %v4042, %v3956
        %v4048 = vsel %vm2108, %v4043, %v3958
        %v4049 = vsel %vm2114, %v4044, %v3970
        %v4050 = vsel %vm2114, %v4045, %v3972
        %v4051 = vsel %vm2114, %v4046, %v3974
        %v4052 = vsel %vm2114, %v4047, %v3976
        %v4053 = vsel %vm2114, %v4048, %v3978
        %s4054 = scalar_lea.vmem %s213, 32 [#allocation2]
        %v4055 = vld [vmem:[%s4054] sm:$0xff]
        %v4056 = vld [vmem:[%s4054 + $0x8] sm:$0xff]
        %v4057 = vld [vmem:[%s4054 + $0x60] sm:$0xff]
        %v4058 = vld [vmem:[%s4054 + $0x68] sm:$0xff]
        %v4059 = vld [vmem:[%s4054 + $0xc0] sm:$0xff]
        %v4060 = vld [vmem:[%s4054 + $0xc8] sm:$0xff]
        %v4061 = vld [vmem:[%s4054 + $0x120] sm:$0xff]
        %v4062 = vld [vmem:[%s4054 + $0x128] sm:$0xff]
        %v4071 = vrot.slane %v4055, 7
        %v4072 = vrot.slane %v4056, 7
        %v4073 = vsel %vm261, %v4071, %v4072
        %v4074 = vrot.slane %v4057, 7
        %v4075 = vrot.slane %v4058, 7
        %v4076 = vsel %vm261, %v4074, %v4075
        %v4077 = vrot.slane %v4059, 7
        %v4078 = vrot.slane %v4060, 7
        %v4079 = vsel %vm261, %v4077, %v4078
        %v4080 = vrot.slane %v4061, 7
        %v4081 = vrot.slane %v4062, 7
        %v4082 = vsel %vm261, %v4080, %v4081
        %v4091 = vsel %vm261, 0.0, %v4071
        %v4092 = vsel %vm261, 0.0, %v4074
        %v4093 = vsel %vm261, 0.0, %v4077
        %v4094 = vsel %vm261, 0.0, %v4080
        %v4095 = vsel %vm261, %v4072, 0.0
        %v4096 = vsel %vm261, %v4075, 0.0
        %v4097 = vsel %vm261, %v4078, 0.0
        %v4098 = vsel %vm261, %v4081, 0.0
        %4107 = vrot.lane.b32.xlu0 %v4091, 1
        %v4108 = vpop.permute.xlu0 %4107
        %4109 = vrot.lane.b32.xlu0 %v4073, 1
        %v4110 = vpop.permute.xlu0 %4109
        %4111 = vrot.lane.b32.xlu0 %v4095, 1
        %v4112 = vpop.permute.xlu0 %4111
        %4113 = vrot.lane.b32.xlu0 %v4092, 1
        %v4114 = vpop.permute.xlu0 %4113
        %4115 = vrot.lane.b32.xlu0 %v4076, 1
        %v4116 = vpop.permute.xlu0 %4115
        %4117 = vrot.lane.b32.xlu0 %v4096, 1
        %v4118 = vpop.permute.xlu0 %4117
        %4119 = vrot.lane.b32.xlu0 %v4093, 1
        %v4120 = vpop.permute.xlu0 %4119
        %4121 = vrot.lane.b32.xlu0 %v4079, 1
        %v4122 = vpop.permute.xlu0 %4121
        %4123 = vrot.lane.b32.xlu0 %v4097, 1
        %v4124 = vpop.permute.xlu0 %4123
        %4125 = vrot.lane.b32.xlu0 %v4094, 1
        %v4126 = vpop.permute.xlu0 %4125
        %4127 = vrot.lane.b32.xlu0 %v4082, 1
        %v4128 = vpop.permute.xlu0 %4127
        %4129 = vrot.lane.b32.xlu0 %v4098, 1
        %v4130 = vpop.permute.xlu0 %4129
        %v4143 = vsel %vm334, 0.0, %v4108
        %v4144 = vsel %vm334, 0.0, %v4110
        %v4145 = vsel %vm334, 0.0, %v4112
        %v4146 = vsel %vm334, 0.0, %v4114
        %v4147 = vsel %vm334, 0.0, %v4116
        %v4148 = vsel %vm334, 0.0, %v4118
        %v4149 = vsel %vm334, 0.0, %v4120
        %v4150 = vsel %vm334, 0.0, %v4122
        %v4151 = vsel %vm334, 0.0, %v4124
        %v4152 = vsel %vm334, 0.0, %v4126
        %v4153 = vsel %vm334, 0.0, %v4128
        %v4154 = vsel %vm334, 0.0, %v4130
        %v4155 = vsel %vm347, %v4143, 0.0
        %v4156 = vsel %vm347, %v4144, 0.0
        %v4157 = vsel %vm347, %v4145, 0.0
        %v4158 = vsel %vm347, %v4146, 0.0
        %v4159 = vsel %vm347, %v4147, 0.0
        %v4160 = vsel %vm347, %v4148, 0.0
        %v4161 = vsel %vm347, %v4149, 0.0
        %v4162 = vsel %vm347, %v4150, 0.0
        %v4163 = vsel %vm347, %v4151, 0.0
        %v4164 = vsel %vm347, %v4152, 0.0
        %v4165 = vsel %vm347, %v4153, 0.0
        %v4166 = vsel %vm347, %v4154, 0.0
        %4175 = vrot.lane.b32.xlu0 %v4155, 127
        %v4176 = vpop.permute.xlu0 %4175
        %4177 = vrot.lane.b32.xlu0 %v4156, 127
        %v4178 = vpop.permute.xlu0 %4177
        %4179 = vrot.lane.b32.xlu0 %v4158, 127
        %v4180 = vpop.permute.xlu0 %4179
        %4181 = vrot.lane.b32.xlu0 %v4159, 127
        %v4182 = vpop.permute.xlu0 %4181
        %4183 = vrot.lane.b32.xlu0 %v4161, 127
        %v4184 = vpop.permute.xlu0 %4183
        %4185 = vrot.lane.b32.xlu0 %v4162, 127
        %v4186 = vpop.permute.xlu0 %4185
        %4187 = vrot.lane.b32.xlu0 %v4164, 127
        %v4188 = vpop.permute.xlu0 %4187
        %4189 = vrot.lane.b32.xlu0 %v4165, 127
        %v4190 = vpop.permute.xlu0 %4189
        %4199 = vrot.lane.b32.xlu0 %v4155, 126
        %v4200 = vpop.permute.xlu0 %4199
        %4201 = vrot.lane.b32.xlu0 %v4156, 126
        %v4202 = vpop.permute.xlu0 %4201
        %4203 = vrot.lane.b32.xlu0 %v4158, 126
        %v4204 = vpop.permute.xlu0 %4203
        %4205 = vrot.lane.b32.xlu0 %v4159, 126
        %v4206 = vpop.permute.xlu0 %4205
        %4207 = vrot.lane.b32.xlu0 %v4161, 126
        %v4208 = vpop.permute.xlu0 %4207
        %4209 = vrot.lane.b32.xlu0 %v4162, 126
        %v4210 = vpop.permute.xlu0 %4209
        %4211 = vrot.lane.b32.xlu0 %v4164, 126
        %v4212 = vpop.permute.xlu0 %4211
        %4213 = vrot.lane.b32.xlu0 %v4165, 126
        %v4214 = vpop.permute.xlu0 %4213
        %v4227 = vrot.slane %v4155, 1
        %v4228 = vrot.slane %v4156, 1
        %v4229 = vsel %vm420, %v4227, %v4228
        %v4230 = vrot.slane %v4157, 1
        %v4231 = vsel %vm420, %v4228, %v4230
        %v4232 = vrot.slane %v4158, 1
        %v4233 = vrot.slane %v4159, 1
        %v4234 = vsel %vm420, %v4232, %v4233
        %v4235 = vrot.slane %v4160, 1
        %v4236 = vsel %vm420, %v4233, %v4235
        %v4237 = vrot.slane %v4161, 1
        %v4238 = vrot.slane %v4162, 1
        %v4239 = vsel %vm420, %v4237, %v4238
        %v4240 = vrot.slane %v4163, 1
        %v4241 = vsel %vm420, %v4238, %v4240
        %v4242 = vrot.slane %v4164, 1
        %v4243 = vrot.slane %v4165, 1
        %v4244 = vsel %vm420, %v4242, %v4243
        %v4245 = vrot.slane %v4166, 1
        %v4246 = vsel %vm420, %v4243, %v4245
        %4255 = vrot.lane.b32.xlu0 %v4229, 127
        %v4256 = vpop.permute.xlu0 %4255
        %4257 = vrot.lane.b32.xlu0 %v4231, 127
        %v4258 = vpop.permute.xlu0 %4257
        %4259 = vrot.lane.b32.xlu0 %v4234, 127
        %v4260 = vpop.permute.xlu0 %4259
        %4261 = vrot.lane.b32.xlu0 %v4236, 127
        %v4262 = vpop.permute.xlu0 %4261
        %4263 = vrot.lane.b32.xlu0 %v4239, 127
        %v4264 = vpop.permute.xlu0 %4263
        %4265 = vrot.lane.b32.xlu0 %v4241, 127
        %v4266 = vpop.permute.xlu0 %4265
        %4267 = vrot.lane.b32.xlu0 %v4244, 127
        %v4268 = vpop.permute.xlu0 %4267
        %4269 = vrot.lane.b32.xlu0 %v4246, 127
        %v4270 = vpop.permute.xlu0 %4269
        %4279 = vrot.lane.b32.xlu0 %v4229, 126
        %v4280 = vpop.permute.xlu0 %4279
        %4281 = vrot.lane.b32.xlu0 %v4231, 126
        %v4282 = vpop.permute.xlu0 %4281
        %4283 = vrot.lane.b32.xlu0 %v4234, 126
        %v4284 = vpop.permute.xlu0 %4283
        %4285 = vrot.lane.b32.xlu0 %v4236, 126
        %v4286 = vpop.permute.xlu0 %4285
        %4287 = vrot.lane.b32.xlu0 %v4239, 126
        %v4288 = vpop.permute.xlu0 %4287
        %4289 = vrot.lane.b32.xlu0 %v4241, 126
        %v4290 = vpop.permute.xlu0 %4289
        %4291 = vrot.lane.b32.xlu0 %v4244, 126
        %v4292 = vpop.permute.xlu0 %4291
        %4293 = vrot.lane.b32.xlu0 %v4246, 126
        %v4294 = vpop.permute.xlu0 %4293
        %v4303 = vrot.slane %v4155, 2
        %v4304 = vrot.slane %v4156, 2
        %v4305 = vsel %vm497, %v4303, %v4304
        %v4306 = vrot.slane %v4157, 2
        %v4307 = vsel %vm497, %v4304, %v4306
        %v4308 = vrot.slane %v4158, 2
        %v4309 = vrot.slane %v4159, 2
        %v4310 = vsel %vm497, %v4308, %v4309
        %v4311 = vrot.slane %v4160, 2
        %v4312 = vsel %vm497, %v4309, %v4311
        %v4313 = vrot.slane %v4161, 2
        %v4314 = vrot.slane %v4162, 2
        %v4315 = vsel %vm497, %v4313, %v4314
        %v4316 = vrot.slane %v4163, 2
        %v4317 = vsel %vm497, %v4314, %v4316
        %v4318 = vrot.slane %v4164, 2
        %v4319 = vrot.slane %v4165, 2
        %v4320 = vsel %vm497, %v4318, %v4319
        %v4321 = vrot.slane %v4166, 2
        %v4322 = vsel %vm497, %v4319, %v4321
        %4331 = vrot.lane.b32.xlu0 %v4305, 127
        %v4332 = vpop.permute.xlu0 %4331
        %4333 = vrot.lane.b32.xlu0 %v4307, 127
        %v4334 = vpop.permute.xlu0 %4333
        %4335 = vrot.lane.b32.xlu0 %v4310, 127
        %v4336 = vpop.permute.xlu0 %4335
        %4337 = vrot.lane.b32.xlu0 %v4312, 127
        %v4338 = vpop.permute.xlu0 %4337
        %4339 = vrot.lane.b32.xlu0 %v4315, 127
        %v4340 = vpop.permute.xlu0 %4339
        %4341 = vrot.lane.b32.xlu0 %v4317, 127
        %v4342 = vpop.permute.xlu0 %4341
        %4343 = vrot.lane.b32.xlu0 %v4320, 127
        %v4344 = vpop.permute.xlu0 %4343
        %4345 = vrot.lane.b32.xlu0 %v4322, 127
        %v4346 = vpop.permute.xlu0 %4345
        %4355 = vrot.lane.b32.xlu0 %v4305, 126
        %v4356 = vpop.permute.xlu0 %4355
        %4357 = vrot.lane.b32.xlu0 %v4307, 126
        %v4358 = vpop.permute.xlu0 %4357
        %4359 = vrot.lane.b32.xlu0 %v4310, 126
        %v4360 = vpop.permute.xlu0 %4359
        %4361 = vrot.lane.b32.xlu0 %v4312, 126
        %v4362 = vpop.permute.xlu0 %4361
        %4363 = vrot.lane.b32.xlu0 %v4315, 126
        %v4364 = vpop.permute.xlu0 %4363
        %4365 = vrot.lane.b32.xlu0 %v4317, 126
        %v4366 = vpop.permute.xlu0 %4365
        %4367 = vrot.lane.b32.xlu0 %v4320, 126
        %v4368 = vpop.permute.xlu0 %4367
        %4369 = vrot.lane.b32.xlu0 %v4322, 126
        %v4370 = vpop.permute.xlu0 %4369
        %v4379 = vcombine.low %v4155, %v4161
        %v4380 = vcombine.high %v4155, %v4161
        %v4382 = vunpack.c.l.s4 1983009808
        %v4383 = vunpack.c.0.s8 %v4382
        %v4384 = vlaneseq
        %v4385 = vshrl.u32 %v4384, 7
        %v4386 = vsub.s32 %v4383, %v4385
        %v4387 = vrot.slane %v4379, %v4386
        %v4389 = vunpack.c.l.s4 1983009808
        %v4390 = vunpack.c.0.s8 %v4389
        %v4391 = vlaneseq
        %v4392 = vshrl.u32 %v4391, 7
        %v4393 = vsub.s32 %v4390, %v4392
        %v4394 = vrot.slane %v4380, %v4393
        %v4395 = vcombine.low %v4158, %v4164
        %v4396 = vcombine.high %v4158, %v4164
        %v4398 = vunpack.c.l.s4 1983009808
        %v4399 = vunpack.c.0.s8 %v4398
        %v4400 = vlaneseq
        %v4401 = vshrl.u32 %v4400, 7
        %v4402 = vsub.s32 %v4399, %v4401
        %v4403 = vrot.slane %v4395, %v4402
        %v4405 = vunpack.c.l.s4 1983009808
        %v4406 = vunpack.c.0.s8 %v4405
        %v4407 = vlaneseq
        %v4408 = vshrl.u32 %v4407, 7
        %v4409 = vsub.s32 %v4406, %v4408
        %v4410 = vrot.slane %v4396, %v4409
        %v4411 = vcombine.low %v4176, %v4184
        %v4412 = vcombine.high %v4176, %v4184
        %v4414 = vunpack.c.l.s4 1983009808
        %v4415 = vunpack.c.0.s8 %v4414
        %v4416 = vlaneseq
        %v4417 = vshrl.u32 %v4416, 7
        %v4418 = vsub.s32 %v4415, %v4417
        %v4419 = vrot.slane %v4411, %v4418
        %v4421 = vunpack.c.l.s4 1983009808
        %v4422 = vunpack.c.0.s8 %v4421
        %v4423 = vlaneseq
        %v4424 = vshrl.u32 %v4423, 7
        %v4425 = vsub.s32 %v4422, %v4424
        %v4426 = vrot.slane %v4412, %v4425
        %v4427 = vcombine.low %v4180, %v4188
        %v4428 = vcombine.high %v4180, %v4188
        %v4430 = vunpack.c.l.s4 1983009808
        %v4431 = vunpack.c.0.s8 %v4430
        %v4432 = vlaneseq
        %v4433 = vshrl.u32 %v4432, 7
        %v4434 = vsub.s32 %v4431, %v4433
        %v4435 = vrot.slane %v4427, %v4434
        %v4437 = vunpack.c.l.s4 1983009808
        %v4438 = vunpack.c.0.s8 %v4437
        %v4439 = vlaneseq
        %v4440 = vshrl.u32 %v4439, 7
        %v4441 = vsub.s32 %v4438, %v4440
        %v4442 = vrot.slane %v4428, %v4441
        %v4443 = vcombine.low %v4387, %v4403
        %v4444 = vcombine.high %v4387, %v4403
        %v4446 = vunpack.c.l.s4 1934713408
        %v4447 = vunpack.c.0.s8 %v4446
        %v4448 = vlaneseq
        %v4449 = vshrl.u32 %v4448, 7
        %v4450 = vsub.s32 %v4447, %v4449
        %v4451 = vrot.slane %v4443, %v4450
        %v4453 = vunpack.c.l.s4 1934713408
        %v4454 = vunpack.c.0.s8 %v4453
        %v4455 = vlaneseq
        %v4456 = vshrl.u32 %v4455, 7
        %v4457 = vsub.s32 %v4454, %v4456
        %v4458 = vrot.slane %v4444, %v4457
        %v4459 = vcombine.low %v4394, %v4410
        %v4460 = vcombine.high %v4394, %v4410
        %v4462 = vunpack.c.l.s4 1934713408
        %v4463 = vunpack.c.0.s8 %v4462
        %v4464 = vlaneseq
        %v4465 = vshrl.u32 %v4464, 7
        %v4466 = vsub.s32 %v4463, %v4465
        %v4467 = vrot.slane %v4459, %v4466
        %v4469 = vunpack.c.l.s4 1934713408
        %v4470 = vunpack.c.0.s8 %v4469
        %v4471 = vlaneseq
        %v4472 = vshrl.u32 %v4471, 7
        %v4473 = vsub.s32 %v4470, %v4472
        %v4474 = vrot.slane %v4460, %v4473
        %v4475 = vcombine.low %v4419, %v4435
        %v4476 = vcombine.high %v4419, %v4435
        %v4478 = vunpack.c.l.s4 1934713408
        %v4479 = vunpack.c.0.s8 %v4478
        %v4480 = vlaneseq
        %v4481 = vshrl.u32 %v4480, 7
        %v4482 = vsub.s32 %v4479, %v4481
        %v4483 = vrot.slane %v4475, %v4482
        %v4485 = vunpack.c.l.s4 1934713408
        %v4486 = vunpack.c.0.s8 %v4485
        %v4487 = vlaneseq
        %v4488 = vshrl.u32 %v4487, 7
        %v4489 = vsub.s32 %v4486, %v4488
        %v4490 = vrot.slane %v4476, %v4489
        %v4491 = vcombine.low %v4426, %v4442
        %v4492 = vcombine.high %v4426, %v4442
        %v4494 = vunpack.c.l.s4 1934713408
        %v4495 = vunpack.c.0.s8 %v4494
        %v4496 = vlaneseq
        %v4497 = vshrl.u32 %v4496, 7
        %v4498 = vsub.s32 %v4495, %v4497
        %v4499 = vrot.slane %v4491, %v4498
        %v4501 = vunpack.c.l.s4 1934713408
        %v4502 = vunpack.c.0.s8 %v4501
        %v4503 = vlaneseq
        %v4504 = vshrl.u32 %v4503, 7
        %v4505 = vsub.s32 %v4502, %v4504
        %v4506 = vrot.slane %v4492, %v4505
        %v4507 = vcombine.low %v4451, %v4483
        %v4508 = vcombine.high %v4451, %v4483
        %v4509 = vcombine.low %v4458, %v4490
        %v4510 = vcombine.high %v4458, %v4490
        %v4511 = vcombine.low %v4467, %v4499
        %v4512 = vcombine.high %v4467, %v4499
        %v4513 = vcombine.low %v4474, %v4506
        %v4514 = vcombine.high %v4474, %v4506
        %v4515 = vcombine.low %v4200, %v4208
        %v4516 = vcombine.high %v4200, %v4208
        %v4518 = vunpack.c.l.s4 1983009808
        %v4519 = vunpack.c.0.s8 %v4518
        %v4520 = vlaneseq
        %v4521 = vshrl.u32 %v4520, 7
        %v4522 = vsub.s32 %v4519, %v4521
        %v4523 = vrot.slane %v4515, %v4522
        %v4525 = vunpack.c.l.s4 1983009808
        %v4526 = vunpack.c.0.s8 %v4525
        %v4527 = vlaneseq
        %v4528 = vshrl.u32 %v4527, 7
        %v4529 = vsub.s32 %v4526, %v4528
        %v4530 = vrot.slane %v4516, %v4529
        %v4531 = vcombine.low %v4204, %v4212
        %v4532 = vcombine.high %v4204, %v4212
        %v4534 = vunpack.c.l.s4 1983009808
        %v4535 = vunpack.c.0.s8 %v4534
        %v4536 = vlaneseq
        %v4537 = vshrl.u32 %v4536, 7
        %v4538 = vsub.s32 %v4535, %v4537
        %v4539 = vrot.slane %v4531, %v4538
        %v4541 = vunpack.c.l.s4 1983009808
        %v4542 = vunpack.c.0.s8 %v4541
        %v4543 = vlaneseq
        %v4544 = vshrl.u32 %v4543, 7
        %v4545 = vsub.s32 %v4542, %v4544
        %v4546 = vrot.slane %v4532, %v4545
        %v4547 = vcombine.low %v4229, %v4239
        %v4548 = vcombine.high %v4229, %v4239
        %v4550 = vunpack.c.l.s4 1983009808
        %v4551 = vunpack.c.0.s8 %v4550
        %v4552 = vlaneseq
        %v4553 = vshrl.u32 %v4552, 7
        %v4554 = vsub.s32 %v4551, %v4553
        %v4555 = vrot.slane %v4547, %v4554
        %v4557 = vunpack.c.l.s4 1983009808
        %v4558 = vunpack.c.0.s8 %v4557
        %v4559 = vlaneseq
        %v4560 = vshrl.u32 %v4559, 7
        %v4561 = vsub.s32 %v4558, %v4560
        %v4562 = vrot.slane %v4548, %v4561
        %v4563 = vcombine.low %v4234, %v4244
        %v4564 = vcombine.high %v4234, %v4244
        %v4566 = vunpack.c.l.s4 1983009808
        %v4567 = vunpack.c.0.s8 %v4566
        %v4568 = vlaneseq
        %v4569 = vshrl.u32 %v4568, 7
        %v4570 = vsub.s32 %v4567, %v4569
        %v4571 = vrot.slane %v4563, %v4570
        %v4573 = vunpack.c.l.s4 1983009808
        %v4574 = vunpack.c.0.s8 %v4573
        %v4575 = vlaneseq
        %v4576 = vshrl.u32 %v4575, 7
        %v4577 = vsub.s32 %v4574, %v4576
        %v4578 = vrot.slane %v4564, %v4577
        %v4579 = vcombine.low %v4523, %v4539
        %v4580 = vcombine.high %v4523, %v4539
        %v4582 = vunpack.c.l.s4 1934713408
        %v4583 = vunpack.c.0.s8 %v4582
        %v4584 = vlaneseq
        %v4585 = vshrl.u32 %v4584, 7
        %v4586 = vsub.s32 %v4583, %v4585
        %v4587 = vrot.slane %v4579, %v4586
        %v4589 = vunpack.c.l.s4 1934713408
        %v4590 = vunpack.c.0.s8 %v4589
        %v4591 = vlaneseq
        %v4592 = vshrl.u32 %v4591, 7
        %v4593 = vsub.s32 %v4590, %v4592
        %v4594 = vrot.slane %v4580, %v4593
        %v4595 = vcombine.low %v4530, %v4546
        %v4596 = vcombine.high %v4530, %v4546
        %v4598 = vunpack.c.l.s4 1934713408
        %v4599 = vunpack.c.0.s8 %v4598
        %v4600 = vlaneseq
        %v4601 = vshrl.u32 %v4600, 7
        %v4602 = vsub.s32 %v4599, %v4601
        %v4603 = vrot.slane %v4595, %v4602
        %v4605 = vunpack.c.l.s4 1934713408
        %v4606 = vunpack.c.0.s8 %v4605
        %v4607 = vlaneseq
        %v4608 = vshrl.u32 %v4607, 7
        %v4609 = vsub.s32 %v4606, %v4608
        %v4610 = vrot.slane %v4596, %v4609
        %v4611 = vcombine.low %v4555, %v4571
        %v4612 = vcombine.high %v4555, %v4571
        %v4614 = vunpack.c.l.s4 1934713408
        %v4615 = vunpack.c.0.s8 %v4614
        %v4616 = vlaneseq
        %v4617 = vshrl.u32 %v4616, 7
        %v4618 = vsub.s32 %v4615, %v4617
        %v4619 = vrot.slane %v4611, %v4618
        %v4621 = vunpack.c.l.s4 1934713408
        %v4622 = vunpack.c.0.s8 %v4621
        %v4623 = vlaneseq
        %v4624 = vshrl.u32 %v4623, 7
        %v4625 = vsub.s32 %v4622, %v4624
        %v4626 = vrot.slane %v4612, %v4625
        %v4627 = vcombine.low %v4562, %v4578
        %v4628 = vcombine.high %v4562, %v4578
        %v4630 = vunpack.c.l.s4 1934713408
        %v4631 = vunpack.c.0.s8 %v4630
        %v4632 = vlaneseq
        %v4633 = vshrl.u32 %v4632, 7
        %v4634 = vsub.s32 %v4631, %v4633
        %v4635 = vrot.slane %v4627, %v4634
        %v4637 = vunpack.c.l.s4 1934713408
        %v4638 = vunpack.c.0.s8 %v4637
        %v4639 = vlaneseq
        %v4640 = vshrl.u32 %v4639, 7
        %v4641 = vsub.s32 %v4638, %v4640
        %v4642 = vrot.slane %v4628, %v4641
        %v4643 = vcombine.low %v4587, %v4619
        %v4644 = vcombine.high %v4587, %v4619
        %v4645 = vcombine.low %v4594, %v4626
        %v4646 = vcombine.high %v4594, %v4626
        %v4647 = vcombine.low %v4603, %v4635
        %v4648 = vcombine.high %v4603, %v4635
        %v4649 = vcombine.low %v4610, %v4642
        %v4650 = vcombine.high %v4610, %v4642
        %v4651 = vcombine.low %v4256, %v4264
        %v4652 = vcombine.high %v4256, %v4264
        %v4654 = vunpack.c.l.s4 1983009808
        %v4655 = vunpack.c.0.s8 %v4654
        %v4656 = vlaneseq
        %v4657 = vshrl.u32 %v4656, 7
        %v4658 = vsub.s32 %v4655, %v4657
        %v4659 = vrot.slane %v4651, %v4658
        %v4661 = vunpack.c.l.s4 1983009808
        %v4662 = vunpack.c.0.s8 %v4661
        %v4663 = vlaneseq
        %v4664 = vshrl.u32 %v4663, 7
        %v4665 = vsub.s32 %v4662, %v4664
        %v4666 = vrot.slane %v4652, %v4665
        %v4667 = vcombine.low %v4260, %v4268
        %v4668 = vcombine.high %v4260, %v4268
        %v4670 = vunpack.c.l.s4 1983009808
        %v4671 = vunpack.c.0.s8 %v4670
        %v4672 = vlaneseq
        %v4673 = vshrl.u32 %v4672, 7
        %v4674 = vsub.s32 %v4671, %v4673
        %v4675 = vrot.slane %v4667, %v4674
        %v4677 = vunpack.c.l.s4 1983009808
        %v4678 = vunpack.c.0.s8 %v4677
        %v4679 = vlaneseq
        %v4680 = vshrl.u32 %v4679, 7
        %v4681 = vsub.s32 %v4678, %v4680
        %v4682 = vrot.slane %v4668, %v4681
        %v4683 = vcombine.low %v4280, %v4288
        %v4684 = vcombine.high %v4280, %v4288
        %v4686 = vunpack.c.l.s4 1983009808
        %v4687 = vunpack.c.0.s8 %v4686
        %v4688 = vlaneseq
        %v4689 = vshrl.u32 %v4688, 7
        %v4690 = vsub.s32 %v4687, %v4689
        %v4691 = vrot.slane %v4683, %v4690
        %v4693 = vunpack.c.l.s4 1983009808
        %v4694 = vunpack.c.0.s8 %v4693
        %v4695 = vlaneseq
        %v4696 = vshrl.u32 %v4695, 7
        %v4697 = vsub.s32 %v4694, %v4696
        %v4698 = vrot.slane %v4684, %v4697
        %v4699 = vcombine.low %v4284, %v4292
        %v4700 = vcombine.high %v4284, %v4292
        %v4702 = vunpack.c.l.s4 1983009808
        %v4703 = vunpack.c.0.s8 %v4702
        %v4704 = vlaneseq
        %v4705 = vshrl.u32 %v4704, 7
        %v4706 = vsub.s32 %v4703, %v4705
        %v4707 = vrot.slane %v4699, %v4706
        %v4709 = vunpack.c.l.s4 1983009808
        %v4710 = vunpack.c.0.s8 %v4709
        %v4711 = vlaneseq
        %v4712 = vshrl.u32 %v4711, 7
        %v4713 = vsub.s32 %v4710, %v4712
        %v4714 = vrot.slane %v4700, %v4713
        %v4715 = vcombine.low %v4659, %v4675
        %v4716 = vcombine.high %v4659, %v4675
        %v4718 = vunpack.c.l.s4 1934713408
        %v4719 = vunpack.c.0.s8 %v4718
        %v4720 = vlaneseq
        %v4721 = vshrl.u32 %v4720, 7
        %v4722 = vsub.s32 %v4719, %v4721
        %v4723 = vrot.slane %v4715, %v4722
        %v4725 = vunpack.c.l.s4 1934713408
        %v4726 = vunpack.c.0.s8 %v4725
        %v4727 = vlaneseq
        %v4728 = vshrl.u32 %v4727, 7
        %v4729 = vsub.s32 %v4726, %v4728
        %v4730 = vrot.slane %v4716, %v4729
        %v4731 = vcombine.low %v4666, %v4682
        %v4732 = vcombine.high %v4666, %v4682
        %v4734 = vunpack.c.l.s4 1934713408
        %v4735 = vunpack.c.0.s8 %v4734
        %v4736 = vlaneseq
        %v4737 = vshrl.u32 %v4736, 7
        %v4738 = vsub.s32 %v4735, %v4737
        %v4739 = vrot.slane %v4731, %v4738
        %v4741 = vunpack.c.l.s4 1934713408
        %v4742 = vunpack.c.0.s8 %v4741
        %v4743 = vlaneseq
        %v4744 = vshrl.u32 %v4743, 7
        %v4745 = vsub.s32 %v4742, %v4744
        %v4746 = vrot.slane %v4732, %v4745
        %v4747 = vcombine.low %v4691, %v4707
        %v4748 = vcombine.high %v4691, %v4707
        %v4750 = vunpack.c.l.s4 1934713408
        %v4751 = vunpack.c.0.s8 %v4750
        %v4752 = vlaneseq
        %v4753 = vshrl.u32 %v4752, 7
        %v4754 = vsub.s32 %v4751, %v4753
        %v4755 = vrot.slane %v4747, %v4754
        %v4757 = vunpack.c.l.s4 1934713408
        %v4758 = vunpack.c.0.s8 %v4757
        %v4759 = vlaneseq
        %v4760 = vshrl.u32 %v4759, 7
        %v4761 = vsub.s32 %v4758, %v4760
        %v4762 = vrot.slane %v4748, %v4761
        %v4763 = vcombine.low %v4698, %v4714
        %v4764 = vcombine.high %v4698, %v4714
        %v4766 = vunpack.c.l.s4 1934713408
        %v4767 = vunpack.c.0.s8 %v4766
        %v4768 = vlaneseq
        %v4769 = vshrl.u32 %v4768, 7
        %v4770 = vsub.s32 %v4767, %v4769
        %v4771 = vrot.slane %v4763, %v4770
        %v4773 = vunpack.c.l.s4 1934713408
        %v4774 = vunpack.c.0.s8 %v4773
        %v4775 = vlaneseq
        %v4776 = vshrl.u32 %v4775, 7
        %v4777 = vsub.s32 %v4774, %v4776
        %v4778 = vrot.slane %v4764, %v4777
        %v4779 = vcombine.low %v4723, %v4755
        %v4780 = vcombine.high %v4723, %v4755
        %v4781 = vcombine.low %v4730, %v4762
        %v4782 = vcombine.high %v4730, %v4762
        %v4783 = vcombine.low %v4739, %v4771
        %v4784 = vcombine.high %v4739, %v4771
        %v4785 = vcombine.low %v4746, %v4778
        %v4786 = vcombine.high %v4746, %v4778
        %v4787 = vcombine.low %v4305, %v4315
        %v4788 = vcombine.high %v4305, %v4315
        %v4790 = vunpack.c.l.s4 1983009808
        %v4791 = vunpack.c.0.s8 %v4790
        %v4792 = vlaneseq
        %v4793 = vshrl.u32 %v4792, 7
        %v4794 = vsub.s32 %v4791, %v4793
        %v4795 = vrot.slane %v4787, %v4794
        %v4797 = vunpack.c.l.s4 1983009808
        %v4798 = vunpack.c.0.s8 %v4797
        %v4799 = vlaneseq
        %v4800 = vshrl.u32 %v4799, 7
        %v4801 = vsub.s32 %v4798, %v4800
        %v4802 = vrot.slane %v4788, %v4801
        %v4803 = vcombine.low %v4310, %v4320
        %v4804 = vcombine.high %v4310, %v4320
        %v4806 = vunpack.c.l.s4 1983009808
        %v4807 = vunpack.c.0.s8 %v4806
        %v4808 = vlaneseq
        %v4809 = vshrl.u32 %v4808, 7
        %v4810 = vsub.s32 %v4807, %v4809
        %v4811 = vrot.slane %v4803, %v4810
        %v4813 = vunpack.c.l.s4 1983009808
        %v4814 = vunpack.c.0.s8 %v4813
        %v4815 = vlaneseq
        %v4816 = vshrl.u32 %v4815, 7
        %v4817 = vsub.s32 %v4814, %v4816
        %v4818 = vrot.slane %v4804, %v4817
        %v4819 = vcombine.low %v4332, %v4340
        %v4820 = vcombine.high %v4332, %v4340
        %v4822 = vunpack.c.l.s4 1983009808
        %v4823 = vunpack.c.0.s8 %v4822
        %v4824 = vlaneseq
        %v4825 = vshrl.u32 %v4824, 7
        %v4826 = vsub.s32 %v4823, %v4825
        %v4827 = vrot.slane %v4819, %v4826
        %v4829 = vunpack.c.l.s4 1983009808
        %v4830 = vunpack.c.0.s8 %v4829
        %v4831 = vlaneseq
        %v4832 = vshrl.u32 %v4831, 7
        %v4833 = vsub.s32 %v4830, %v4832
        %v4834 = vrot.slane %v4820, %v4833
        %v4835 = vcombine.low %v4336, %v4344
        %v4836 = vcombine.high %v4336, %v4344
        %v4838 = vunpack.c.l.s4 1983009808
        %v4839 = vunpack.c.0.s8 %v4838
        %v4840 = vlaneseq
        %v4841 = vshrl.u32 %v4840, 7
        %v4842 = vsub.s32 %v4839, %v4841
        %v4843 = vrot.slane %v4835, %v4842
        %v4845 = vunpack.c.l.s4 1983009808
        %v4846 = vunpack.c.0.s8 %v4845
        %v4847 = vlaneseq
        %v4848 = vshrl.u32 %v4847, 7
        %v4849 = vsub.s32 %v4846, %v4848
        %v4850 = vrot.slane %v4836, %v4849
        %v4851 = vcombine.low %v4795, %v4811
        %v4852 = vcombine.high %v4795, %v4811
        %v4854 = vunpack.c.l.s4 1934713408
        %v4855 = vunpack.c.0.s8 %v4854
        %v4856 = vlaneseq
        %v4857 = vshrl.u32 %v4856, 7
        %v4858 = vsub.s32 %v4855, %v4857
        %v4859 = vrot.slane %v4851, %v4858
        %v4861 = vunpack.c.l.s4 1934713408
        %v4862 = vunpack.c.0.s8 %v4861
        %v4863 = vlaneseq
        %v4864 = vshrl.u32 %v4863, 7
        %v4865 = vsub.s32 %v4862, %v4864
        %v4866 = vrot.slane %v4852, %v4865
        %v4867 = vcombine.low %v4802, %v4818
        %v4868 = vcombine.high %v4802, %v4818
        %v4870 = vunpack.c.l.s4 1934713408
        %v4871 = vunpack.c.0.s8 %v4870
        %v4872 = vlaneseq
        %v4873 = vshrl.u32 %v4872, 7
        %v4874 = vsub.s32 %v4871, %v4873
        %v4875 = vrot.slane %v4867, %v4874
        %v4877 = vunpack.c.l.s4 1934713408
        %v4878 = vunpack.c.0.s8 %v4877
        %v4879 = vlaneseq
        %v4880 = vshrl.u32 %v4879, 7
        %v4881 = vsub.s32 %v4878, %v4880
        %v4882 = vrot.slane %v4868, %v4881
        %v4883 = vcombine.low %v4827, %v4843
        %v4884 = vcombine.high %v4827, %v4843
        %v4886 = vunpack.c.l.s4 1934713408
        %v4887 = vunpack.c.0.s8 %v4886
        %v4888 = vlaneseq
        %v4889 = vshrl.u32 %v4888, 7
        %v4890 = vsub.s32 %v4887, %v4889
        %v4891 = vrot.slane %v4883, %v4890
        %v4893 = vunpack.c.l.s4 1934713408
        %v4894 = vunpack.c.0.s8 %v4893
        %v4895 = vlaneseq
        %v4896 = vshrl.u32 %v4895, 7
        %v4897 = vsub.s32 %v4894, %v4896
        %v4898 = vrot.slane %v4884, %v4897
        %v4899 = vcombine.low %v4834, %v4850
        %v4900 = vcombine.high %v4834, %v4850
        %v4902 = vunpack.c.l.s4 1934713408
        %v4903 = vunpack.c.0.s8 %v4902
        %v4904 = vlaneseq
        %v4905 = vshrl.u32 %v4904, 7
        %v4906 = vsub.s32 %v4903, %v4905
        %v4907 = vrot.slane %v4899, %v4906
        %v4909 = vunpack.c.l.s4 1934713408
        %v4910 = vunpack.c.0.s8 %v4909
        %v4911 = vlaneseq
        %v4912 = vshrl.u32 %v4911, 7
        %v4913 = vsub.s32 %v4910, %v4912
        %v4914 = vrot.slane %v4900, %v4913
        %v4915 = vcombine.low %v4859, %v4891
        %v4916 = vcombine.high %v4859, %v4891
        %v4917 = vcombine.low %v4866, %v4898
        %v4918 = vcombine.high %v4866, %v4898
        %v4919 = vcombine.low %v4875, %v4907
        %v4920 = vcombine.high %v4875, %v4907
        %v4921 = vcombine.low %v4882, %v4914
        %v4922 = vcombine.high %v4882, %v4914
        %v4923 = vcombine.low %v4356, %v4364
        %v4924 = vcombine.high %v4356, %v4364
        %v4926 = vunpack.c.l.s4 1983009808
        %v4927 = vunpack.c.0.s8 %v4926
        %v4928 = vlaneseq
        %v4929 = vshrl.u32 %v4928, 7
        %v4930 = vsub.s32 %v4927, %v4929
        %v4931 = vrot.slane %v4923, %v4930
        %v4933 = vunpack.c.l.s4 1983009808
        %v4934 = vunpack.c.0.s8 %v4933
        %v4935 = vlaneseq
        %v4936 = vshrl.u32 %v4935, 7
        %v4937 = vsub.s32 %v4934, %v4936
        %v4938 = vrot.slane %v4924, %v4937
        %v4939 = vcombine.low %v4360, %v4368
        %v4940 = vcombine.high %v4360, %v4368
        %v4942 = vunpack.c.l.s4 1983009808
        %v4943 = vunpack.c.0.s8 %v4942
        %v4944 = vlaneseq
        %v4945 = vshrl.u32 %v4944, 7
        %v4946 = vsub.s32 %v4943, %v4945
        %v4947 = vrot.slane %v4939, %v4946
        %v4949 = vunpack.c.l.s4 1983009808
        %v4950 = vunpack.c.0.s8 %v4949
        %v4951 = vlaneseq
        %v4952 = vshrl.u32 %v4951, 7
        %v4953 = vsub.s32 %v4950, %v4952
        %v4954 = vrot.slane %v4940, %v4953
        %v4955 = vcombine.low %v4931, %v4947
        %v4956 = vcombine.high %v4931, %v4947
        %v4958 = vunpack.c.l.s4 1934713408
        %v4959 = vunpack.c.0.s8 %v4958
        %v4960 = vlaneseq
        %v4961 = vshrl.u32 %v4960, 7
        %v4962 = vsub.s32 %v4959, %v4961
        %v4963 = vrot.slane %v4955, %v4962
        %v4965 = vunpack.c.l.s4 1934713408
        %v4966 = vunpack.c.0.s8 %v4965
        %v4967 = vlaneseq
        %v4968 = vshrl.u32 %v4967, 7
        %v4969 = vsub.s32 %v4966, %v4968
        %v4970 = vrot.slane %v4956, %v4969
        %v4971 = vcombine.low %v4938, %v4954
        %v4972 = vcombine.high %v4938, %v4954
        %v4974 = vunpack.c.l.s4 1934713408
        %v4975 = vunpack.c.0.s8 %v4974
        %v4976 = vlaneseq
        %v4977 = vshrl.u32 %v4976, 7
        %v4978 = vsub.s32 %v4975, %v4977
        %v4979 = vrot.slane %v4971, %v4978
        %v4981 = vunpack.c.l.s4 1934713408
        %v4982 = vunpack.c.0.s8 %v4981
        %v4983 = vlaneseq
        %v4984 = vshrl.u32 %v4983, 7
        %v4985 = vsub.s32 %v4982, %v4984
        %v4986 = vrot.slane %v4972, %v4985
        %v4987 = vcombine.high %v4963, 0.0
        %v4988 = vcombine.high %v4970, 0.0
        %v4989 = vcombine.high %v4979, 0.0
        %v4990 = vcombine.high %v4986, 0.0
        %v4991 = vcombine.low %v4156, %v4162
        %v4992 = vcombine.high %v4156, %v4162
        %v4994 = vunpack.c.l.s4 1983009808
        %v4995 = vunpack.c.0.s8 %v4994
        %v4996 = vlaneseq
        %v4997 = vshrl.u32 %v4996, 7
        %v4998 = vsub.s32 %v4995, %v4997
        %v4999 = vrot.slane %v4991, %v4998
        %v5001 = vunpack.c.l.s4 1983009808
        %v5002 = vunpack.c.0.s8 %v5001
        %v5003 = vlaneseq
        %v5004 = vshrl.u32 %v5003, 7
        %v5005 = vsub.s32 %v5002, %v5004
        %v5006 = vrot.slane %v4992, %v5005
        %v5007 = vcombine.low %v4159, %v4165
        %v5008 = vcombine.high %v4159, %v4165
        %v5010 = vunpack.c.l.s4 1983009808
        %v5011 = vunpack.c.0.s8 %v5010
        %v5012 = vlaneseq
        %v5013 = vshrl.u32 %v5012, 7
        %v5014 = vsub.s32 %v5011, %v5013
        %v5015 = vrot.slane %v5007, %v5014
        %v5017 = vunpack.c.l.s4 1983009808
        %v5018 = vunpack.c.0.s8 %v5017
        %v5019 = vlaneseq
        %v5020 = vshrl.u32 %v5019, 7
        %v5021 = vsub.s32 %v5018, %v5020
        %v5022 = vrot.slane %v5008, %v5021
        %v5023 = vcombine.low %v4178, %v4186
        %v5024 = vcombine.high %v4178, %v4186
        %v5026 = vunpack.c.l.s4 1983009808
        %v5027 = vunpack.c.0.s8 %v5026
        %v5028 = vlaneseq
        %v5029 = vshrl.u32 %v5028, 7
        %v5030 = vsub.s32 %v5027, %v5029
        %v5031 = vrot.slane %v5023, %v5030
        %v5033 = vunpack.c.l.s4 1983009808
        %v5034 = vunpack.c.0.s8 %v5033
        %v5035 = vlaneseq
        %v5036 = vshrl.u32 %v5035, 7
        %v5037 = vsub.s32 %v5034, %v5036
        %v5038 = vrot.slane %v5024, %v5037
        %v5039 = vcombine.low %v4182, %v4190
        %v5040 = vcombine.high %v4182, %v4190
        %v5042 = vunpack.c.l.s4 1983009808
        %v5043 = vunpack.c.0.s8 %v5042
        %v5044 = vlaneseq
        %v5045 = vshrl.u32 %v5044, 7
        %v5046 = vsub.s32 %v5043, %v5045
        %v5047 = vrot.slane %v5039, %v5046
        %v5049 = vunpack.c.l.s4 1983009808
        %v5050 = vunpack.c.0.s8 %v5049
        %v5051 = vlaneseq
        %v5052 = vshrl.u32 %v5051, 7
        %v5053 = vsub.s32 %v5050, %v5052
        %v5054 = vrot.slane %v5040, %v5053
        %v5055 = vcombine.low %v4999, %v5015
        %v5056 = vcombine.high %v4999, %v5015
        %v5058 = vunpack.c.l.s4 1934713408
        %v5059 = vunpack.c.0.s8 %v5058
        %v5060 = vlaneseq
        %v5061 = vshrl.u32 %v5060, 7
        %v5062 = vsub.s32 %v5059, %v5061
        %v5063 = vrot.slane %v5055, %v5062
        %v5065 = vunpack.c.l.s4 1934713408
        %v5066 = vunpack.c.0.s8 %v5065
        %v5067 = vlaneseq
        %v5068 = vshrl.u32 %v5067, 7
        %v5069 = vsub.s32 %v5066, %v5068
        %v5070 = vrot.slane %v5056, %v5069
        %v5071 = vcombine.low %v5006, %v5022
        %v5072 = vcombine.high %v5006, %v5022
        %v5074 = vunpack.c.l.s4 1934713408
        %v5075 = vunpack.c.0.s8 %v5074
        %v5076 = vlaneseq
        %v5077 = vshrl.u32 %v5076, 7
        %v5078 = vsub.s32 %v5075, %v5077
        %v5079 = vrot.slane %v5071, %v5078
        %v5081 = vunpack.c.l.s4 1934713408
        %v5082 = vunpack.c.0.s8 %v5081
        %v5083 = vlaneseq
        %v5084 = vshrl.u32 %v5083, 7
        %v5085 = vsub.s32 %v5082, %v5084
        %v5086 = vrot.slane %v5072, %v5085
        %v5087 = vcombine.low %v5031, %v5047
        %v5088 = vcombine.high %v5031, %v5047
        %v5090 = vunpack.c.l.s4 1934713408
        %v5091 = vunpack.c.0.s8 %v5090
        %v5092 = vlaneseq
        %v5093 = vshrl.u32 %v5092, 7
        %v5094 = vsub.s32 %v5091, %v5093
        %v5095 = vrot.slane %v5087, %v5094
        %v5097 = vunpack.c.l.s4 1934713408
        %v5098 = vunpack.c.0.s8 %v5097
        %v5099 = vlaneseq
        %v5100 = vshrl.u32 %v5099, 7
        %v5101 = vsub.s32 %v5098, %v5100
        %v5102 = vrot.slane %v5088, %v5101
        %v5103 = vcombine.low %v5038, %v5054
        %v5104 = vcombine.high %v5038, %v5054
        %v5106 = vunpack.c.l.s4 1934713408
        %v5107 = vunpack.c.0.s8 %v5106
        %v5108 = vlaneseq
        %v5109 = vshrl.u32 %v5108, 7
        %v5110 = vsub.s32 %v5107, %v5109
        %v5111 = vrot.slane %v5103, %v5110
        %v5113 = vunpack.c.l.s4 1934713408
        %v5114 = vunpack.c.0.s8 %v5113
        %v5115 = vlaneseq
        %v5116 = vshrl.u32 %v5115, 7
        %v5117 = vsub.s32 %v5114, %v5116
        %v5118 = vrot.slane %v5104, %v5117
        %v5119 = vcombine.low %v5063, %v5095
        %v5120 = vcombine.high %v5063, %v5095
        %v5121 = vcombine.low %v5070, %v5102
        %v5122 = vcombine.high %v5070, %v5102
        %v5123 = vcombine.low %v5079, %v5111
        %v5124 = vcombine.high %v5079, %v5111
        %v5125 = vcombine.low %v5086, %v5118
        %v5126 = vcombine.high %v5086, %v5118
        %v5127 = vcombine.low %v4202, %v4210
        %v5128 = vcombine.high %v4202, %v4210
        %v5130 = vunpack.c.l.s4 1983009808
        %v5131 = vunpack.c.0.s8 %v5130
        %v5132 = vlaneseq
        %v5133 = vshrl.u32 %v5132, 7
        %v5134 = vsub.s32 %v5131, %v5133
        %v5135 = vrot.slane %v5127, %v5134
        %v5137 = vunpack.c.l.s4 1983009808
        %v5138 = vunpack.c.0.s8 %v5137
        %v5139 = vlaneseq
        %v5140 = vshrl.u32 %v5139, 7
        %v5141 = vsub.s32 %v5138, %v5140
        %v5142 = vrot.slane %v5128, %v5141
        %v5143 = vcombine.low %v4206, %v4214
        %v5144 = vcombine.high %v4206, %v4214
        %v5146 = vunpack.c.l.s4 1983009808
        %v5147 = vunpack.c.0.s8 %v5146
        %v5148 = vlaneseq
        %v5149 = vshrl.u32 %v5148, 7
        %v5150 = vsub.s32 %v5147, %v5149
        %v5151 = vrot.slane %v5143, %v5150
        %v5153 = vunpack.c.l.s4 1983009808
        %v5154 = vunpack.c.0.s8 %v5153
        %v5155 = vlaneseq
        %v5156 = vshrl.u32 %v5155, 7
        %v5157 = vsub.s32 %v5154, %v5156
        %v5158 = vrot.slane %v5144, %v5157
        %v5159 = vcombine.low %v4231, %v4241
        %v5160 = vcombine.high %v4231, %v4241
        %v5162 = vunpack.c.l.s4 1983009808
        %v5163 = vunpack.c.0.s8 %v5162
        %v5164 = vlaneseq
        %v5165 = vshrl.u32 %v5164, 7
        %v5166 = vsub.s32 %v5163, %v5165
        %v5167 = vrot.slane %v5159, %v5166
        %v5169 = vunpack.c.l.s4 1983009808
        %v5170 = vunpack.c.0.s8 %v5169
        %v5171 = vlaneseq
        %v5172 = vshrl.u32 %v5171, 7
        %v5173 = vsub.s32 %v5170, %v5172
        %v5174 = vrot.slane %v5160, %v5173
        %v5175 = vcombine.low %v4236, %v4246
        %v5176 = vcombine.high %v4236, %v4246
        %v5178 = vunpack.c.l.s4 1983009808
        %v5179 = vunpack.c.0.s8 %v5178
        %v5180 = vlaneseq
        %v5181 = vshrl.u32 %v5180, 7
        %v5182 = vsub.s32 %v5179, %v5181
        %v5183 = vrot.slane %v5175, %v5182
        %v5185 = vunpack.c.l.s4 1983009808
        %v5186 = vunpack.c.0.s8 %v5185
        %v5187 = vlaneseq
        %v5188 = vshrl.u32 %v5187, 7
        %v5189 = vsub.s32 %v5186, %v5188
        %v5190 = vrot.slane %v5176, %v5189
        %v5191 = vcombine.low %v5135, %v5151
        %v5192 = vcombine.high %v5135, %v5151
        %v5194 = vunpack.c.l.s4 1934713408
        %v5195 = vunpack.c.0.s8 %v5194
        %v5196 = vlaneseq
        %v5197 = vshrl.u32 %v5196, 7
        %v5198 = vsub.s32 %v5195, %v5197
        %v5199 = vrot.slane %v5191, %v5198
        %v5201 = vunpack.c.l.s4 1934713408
        %v5202 = vunpack.c.0.s8 %v5201
        %v5203 = vlaneseq
        %v5204 = vshrl.u32 %v5203, 7
        %v5205 = vsub.s32 %v5202, %v5204
        %v5206 = vrot.slane %v5192, %v5205
        %v5207 = vcombine.low %v5142, %v5158
        %v5208 = vcombine.high %v5142, %v5158
        %v5210 = vunpack.c.l.s4 1934713408
        %v5211 = vunpack.c.0.s8 %v5210
        %v5212 = vlaneseq
        %v5213 = vshrl.u32 %v5212, 7
        %v5214 = vsub.s32 %v5211, %v5213
        %v5215 = vrot.slane %v5207, %v5214
        %v5217 = vunpack.c.l.s4 1934713408
        %v5218 = vunpack.c.0.s8 %v5217
        %v5219 = vlaneseq
        %v5220 = vshrl.u32 %v5219, 7
        %v5221 = vsub.s32 %v5218, %v5220
        %v5222 = vrot.slane %v5208, %v5221
        %v5223 = vcombine.low %v5167, %v5183
        %v5224 = vcombine.high %v5167, %v5183
        %v5226 = vunpack.c.l.s4 1934713408
        %v5227 = vunpack.c.0.s8 %v5226
        %v5228 = vlaneseq
        %v5229 = vshrl.u32 %v5228, 7
        %v5230 = vsub.s32 %v5227, %v5229
        %v5231 = vrot.slane %v5223, %v5230
        %v5233 = vunpack.c.l.s4 1934713408
        %v5234 = vunpack.c.0.s8 %v5233
        %v5235 = vlaneseq
        %v5236 = vshrl.u32 %v5235, 7
        %v5237 = vsub.s32 %v5234, %v5236
        %v5238 = vrot.slane %v5224, %v5237
        %v5239 = vcombine.low %v5174, %v5190
        %v5240 = vcombine.high %v5174, %v5190
        %v5242 = vunpack.c.l.s4 1934713408
        %v5243 = vunpack.c.0.s8 %v5242
        %v5244 = vlaneseq
        %v5245 = vshrl.u32 %v5244, 7
        %v5246 = vsub.s32 %v5243, %v5245
        %v5247 = vrot.slane %v5239, %v5246
        %v5249 = vunpack.c.l.s4 1934713408
        %v5250 = vunpack.c.0.s8 %v5249
        %v5251 = vlaneseq
        %v5252 = vshrl.u32 %v5251, 7
        %v5253 = vsub.s32 %v5250, %v5252
        %v5254 = vrot.slane %v5240, %v5253
        %v5255 = vcombine.low %v5199, %v5231
        %v5256 = vcombine.high %v5199, %v5231
        %v5257 = vcombine.low %v5206, %v5238
        %v5258 = vcombine.high %v5206, %v5238
        %v5259 = vcombine.low %v5215, %v5247
        %v5260 = vcombine.high %v5215, %v5247
        %v5261 = vcombine.low %v5222, %v5254
        %v5262 = vcombine.high %v5222, %v5254
        %v5263 = vcombine.low %v4258, %v4266
        %v5264 = vcombine.high %v4258, %v4266
        %v5266 = vunpack.c.l.s4 1983009808
        %v5267 = vunpack.c.0.s8 %v5266
        %v5268 = vlaneseq
        %v5269 = vshrl.u32 %v5268, 7
        %v5270 = vsub.s32 %v5267, %v5269
        %v5271 = vrot.slane %v5263, %v5270
        %v5273 = vunpack.c.l.s4 1983009808
        %v5274 = vunpack.c.0.s8 %v5273
        %v5275 = vlaneseq
        %v5276 = vshrl.u32 %v5275, 7
        %v5277 = vsub.s32 %v5274, %v5276
        %v5278 = vrot.slane %v5264, %v5277
        %v5279 = vcombine.low %v4262, %v4270
        %v5280 = vcombine.high %v4262, %v4270
        %v5282 = vunpack.c.l.s4 1983009808
        %v5283 = vunpack.c.0.s8 %v5282
        %v5284 = vlaneseq
        %v5285 = vshrl.u32 %v5284, 7
        %v5286 = vsub.s32 %v5283, %v5285
        %v5287 = vrot.slane %v5279, %v5286
        %v5289 = vunpack.c.l.s4 1983009808
        %v5290 = vunpack.c.0.s8 %v5289
        %v5291 = vlaneseq
        %v5292 = vshrl.u32 %v5291, 7
        %v5293 = vsub.s32 %v5290, %v5292
        %v5294 = vrot.slane %v5280, %v5293
        %v5295 = vcombine.low %v4282, %v4290
        %v5296 = vcombine.high %v4282, %v4290
        %v5298 = vunpack.c.l.s4 1983009808
        %v5299 = vunpack.c.0.s8 %v5298
        %v5300 = vlaneseq
        %v5301 = vshrl.u32 %v5300, 7
        %v5302 = vsub.s32 %v5299, %v5301
        %v5303 = vrot.slane %v5295, %v5302
        %v5305 = vunpack.c.l.s4 1983009808
        %v5306 = vunpack.c.0.s8 %v5305
        %v5307 = vlaneseq
        %v5308 = vshrl.u32 %v5307, 7
        %v5309 = vsub.s32 %v5306, %v5308
        %v5310 = vrot.slane %v5296, %v5309
        %v5311 = vcombine.low %v4286, %v4294
        %v5312 = vcombine.high %v4286, %v4294
        %v5314 = vunpack.c.l.s4 1983009808
        %v5315 = vunpack.c.0.s8 %v5314
        %v5316 = vlaneseq
        %v5317 = vshrl.u32 %v5316, 7
        %v5318 = vsub.s32 %v5315, %v5317
        %v5319 = vrot.slane %v5311, %v5318
        %v5321 = vunpack.c.l.s4 1983009808
        %v5322 = vunpack.c.0.s8 %v5321
        %v5323 = vlaneseq
        %v5324 = vshrl.u32 %v5323, 7
        %v5325 = vsub.s32 %v5322, %v5324
        %v5326 = vrot.slane %v5312, %v5325
        %v5327 = vcombine.low %v5271, %v5287
        %v5328 = vcombine.high %v5271, %v5287
        %v5330 = vunpack.c.l.s4 1934713408
        %v5331 = vunpack.c.0.s8 %v5330
        %v5332 = vlaneseq
        %v5333 = vshrl.u32 %v5332, 7
        %v5334 = vsub.s32 %v5331, %v5333
        %v5335 = vrot.slane %v5327, %v5334
        %v5337 = vunpack.c.l.s4 1934713408
        %v5338 = vunpack.c.0.s8 %v5337
        %v5339 = vlaneseq
        %v5340 = vshrl.u32 %v5339, 7
        %v5341 = vsub.s32 %v5338, %v5340
        %v5342 = vrot.slane %v5328, %v5341
        %v5343 = vcombine.low %v5278, %v5294
        %v5344 = vcombine.high %v5278, %v5294
        %v5346 = vunpack.c.l.s4 1934713408
        %v5347 = vunpack.c.0.s8 %v5346
        %v5348 = vlaneseq
        %v5349 = vshrl.u32 %v5348, 7
        %v5350 = vsub.s32 %v5347, %v5349
        %v5351 = vrot.slane %v5343, %v5350
        %v5353 = vunpack.c.l.s4 1934713408
        %v5354 = vunpack.c.0.s8 %v5353
        %v5355 = vlaneseq
        %v5356 = vshrl.u32 %v5355, 7
        %v5357 = vsub.s32 %v5354, %v5356
        %v5358 = vrot.slane %v5344, %v5357
        %v5359 = vcombine.low %v5303, %v5319
        %v5360 = vcombine.high %v5303, %v5319
        %v5362 = vunpack.c.l.s4 1934713408
        %v5363 = vunpack.c.0.s8 %v5362
        %v5364 = vlaneseq
        %v5365 = vshrl.u32 %v5364, 7
        %v5366 = vsub.s32 %v5363, %v5365
        %v5367 = vrot.slane %v5359, %v5366
        %v5369 = vunpack.c.l.s4 1934713408
        %v5370 = vunpack.c.0.s8 %v5369
        %v5371 = vlaneseq
        %v5372 = vshrl.u32 %v5371, 7
        %v5373 = vsub.s32 %v5370, %v5372
        %v5374 = vrot.slane %v5360, %v5373
        %v5375 = vcombine.low %v5310, %v5326
        %v5376 = vcombine.high %v5310, %v5326
        %v5378 = vunpack.c.l.s4 1934713408
        %v5379 = vunpack.c.0.s8 %v5378
        %v5380 = vlaneseq
        %v5381 = vshrl.u32 %v5380, 7
        %v5382 = vsub.s32 %v5379, %v5381
        %v5383 = vrot.slane %v5375, %v5382
        %v5385 = vunpack.c.l.s4 1934713408
        %v5386 = vunpack.c.0.s8 %v5385
        %v5387 = vlaneseq
        %v5388 = vshrl.u32 %v5387, 7
        %v5389 = vsub.s32 %v5386, %v5388
        %v5390 = vrot.slane %v5376, %v5389
        %v5391 = vcombine.low %v5335, %v5367
        %v5392 = vcombine.high %v5335, %v5367
        %v5393 = vcombine.low %v5342, %v5374
        %v5394 = vcombine.high %v5342, %v5374
        %v5395 = vcombine.low %v5351, %v5383
        %v5396 = vcombine.high %v5351, %v5383
        %v5397 = vcombine.low %v5358, %v5390
        %v5398 = vcombine.high %v5358, %v5390
        %v5399 = vcombine.low %v4307, %v4317
        %v5400 = vcombine.high %v4307, %v4317
        %v5402 = vunpack.c.l.s4 1983009808
        %v5403 = vunpack.c.0.s8 %v5402
        %v5404 = vlaneseq
        %v5405 = vshrl.u32 %v5404, 7
        %v5406 = vsub.s32 %v5403, %v5405
        %v5407 = vrot.slane %v5399, %v5406
        %v5409 = vunpack.c.l.s4 1983009808
        %v5410 = vunpack.c.0.s8 %v5409
        %v5411 = vlaneseq
        %v5412 = vshrl.u32 %v5411, 7
        %v5413 = vsub.s32 %v5410, %v5412
        %v5414 = vrot.slane %v5400, %v5413
        %v5415 = vcombine.low %v4312, %v4322
        %v5416 = vcombine.high %v4312, %v4322
        %v5418 = vunpack.c.l.s4 1983009808
        %v5419 = vunpack.c.0.s8 %v5418
        %v5420 = vlaneseq
        %v5421 = vshrl.u32 %v5420, 7
        %v5422 = vsub.s32 %v5419, %v5421
        %v5423 = vrot.slane %v5415, %v5422
        %v5425 = vunpack.c.l.s4 1983009808
        %v5426 = vunpack.c.0.s8 %v5425
        %v5427 = vlaneseq
        %v5428 = vshrl.u32 %v5427, 7
        %v5429 = vsub.s32 %v5426, %v5428
        %v5430 = vrot.slane %v5416, %v5429
        %v5431 = vcombine.low %v4334, %v4342
        %v5432 = vcombine.high %v4334, %v4342
        %v5434 = vunpack.c.l.s4 1983009808
        %v5435 = vunpack.c.0.s8 %v5434
        %v5436 = vlaneseq
        %v5437 = vshrl.u32 %v5436, 7
        %v5438 = vsub.s32 %v5435, %v5437
        %v5439 = vrot.slane %v5431, %v5438
        %v5441 = vunpack.c.l.s4 1983009808
        %v5442 = vunpack.c.0.s8 %v5441
        %v5443 = vlaneseq
        %v5444 = vshrl.u32 %v5443, 7
        %v5445 = vsub.s32 %v5442, %v5444
        %v5446 = vrot.slane %v5432, %v5445
        %v5447 = vcombine.low %v4338, %v4346
        %v5448 = vcombine.high %v4338, %v4346
        %v5450 = vunpack.c.l.s4 1983009808
        %v5451 = vunpack.c.0.s8 %v5450
        %v5452 = vlaneseq
        %v5453 = vshrl.u32 %v5452, 7
        %v5454 = vsub.s32 %v5451, %v5453
        %v5455 = vrot.slane %v5447, %v5454
        %v5457 = vunpack.c.l.s4 1983009808
        %v5458 = vunpack.c.0.s8 %v5457
        %v5459 = vlaneseq
        %v5460 = vshrl.u32 %v5459, 7
        %v5461 = vsub.s32 %v5458, %v5460
        %v5462 = vrot.slane %v5448, %v5461
        %v5463 = vcombine.low %v5407, %v5423
        %v5464 = vcombine.high %v5407, %v5423
        %v5466 = vunpack.c.l.s4 1934713408
        %v5467 = vunpack.c.0.s8 %v5466
        %v5468 = vlaneseq
        %v5469 = vshrl.u32 %v5468, 7
        %v5470 = vsub.s32 %v5467, %v5469
        %v5471 = vrot.slane %v5463, %v5470
        %v5473 = vunpack.c.l.s4 1934713408
        %v5474 = vunpack.c.0.s8 %v5473
        %v5475 = vlaneseq
        %v5476 = vshrl.u32 %v5475, 7
        %v5477 = vsub.s32 %v5474, %v5476
        %v5478 = vrot.slane %v5464, %v5477
        %v5479 = vcombine.low %v5414, %v5430
        %v5480 = vcombine.high %v5414, %v5430
        %v5482 = vunpack.c.l.s4 1934713408
        %v5483 = vunpack.c.0.s8 %v5482
        %v5484 = vlaneseq
        %v5485 = vshrl.u32 %v5484, 7
        %v5486 = vsub.s32 %v5483, %v5485
        %v5487 = vrot.slane %v5479, %v5486
        %v5489 = vunpack.c.l.s4 1934713408
        %v5490 = vunpack.c.0.s8 %v5489
        %v5491 = vlaneseq
        %v5492 = vshrl.u32 %v5491, 7
        %v5493 = vsub.s32 %v5490, %v5492
        %v5494 = vrot.slane %v5480, %v5493
        %v5495 = vcombine.low %v5439, %v5455
        %v5496 = vcombine.high %v5439, %v5455
        %v5498 = vunpack.c.l.s4 1934713408
        %v5499 = vunpack.c.0.s8 %v5498
        %v5500 = vlaneseq
        %v5501 = vshrl.u32 %v5500, 7
        %v5502 = vsub.s32 %v5499, %v5501
        %v5503 = vrot.slane %v5495, %v5502
        %v5505 = vunpack.c.l.s4 1934713408
        %v5506 = vunpack.c.0.s8 %v5505
        %v5507 = vlaneseq
        %v5508 = vshrl.u32 %v5507, 7
        %v5509 = vsub.s32 %v5506, %v5508
        %v5510 = vrot.slane %v5496, %v5509
        %v5511 = vcombine.low %v5446, %v5462
        %v5512 = vcombine.high %v5446, %v5462
        %v5514 = vunpack.c.l.s4 1934713408
        %v5515 = vunpack.c.0.s8 %v5514
        %v5516 = vlaneseq
        %v5517 = vshrl.u32 %v5516, 7
        %v5518 = vsub.s32 %v5515, %v5517
        %v5519 = vrot.slane %v5511, %v5518
        %v5521 = vunpack.c.l.s4 1934713408
        %v5522 = vunpack.c.0.s8 %v5521
        %v5523 = vlaneseq
        %v5524 = vshrl.u32 %v5523, 7
        %v5525 = vsub.s32 %v5522, %v5524
        %v5526 = vrot.slane %v5512, %v5525
        %v5527 = vcombine.low %v5471, %v5503
        %v5528 = vcombine.high %v5471, %v5503
        %v5529 = vcombine.low %v5478, %v5510
        %v5530 = vcombine.high %v5478, %v5510
        %v5531 = vcombine.low %v5487, %v5519
        %v5532 = vcombine.high %v5487, %v5519
        %v5533 = vcombine.low %v5494, %v5526
        %v5534 = vcombine.high %v5494, %v5526
        %v5535 = vcombine.low %v4358, %v4366
        %v5536 = vcombine.high %v4358, %v4366
        %v5538 = vunpack.c.l.s4 1983009808
        %v5539 = vunpack.c.0.s8 %v5538
        %v5540 = vlaneseq
        %v5541 = vshrl.u32 %v5540, 7
        %v5542 = vsub.s32 %v5539, %v5541
        %v5543 = vrot.slane %v5535, %v5542
        %v5545 = vunpack.c.l.s4 1983009808
        %v5546 = vunpack.c.0.s8 %v5545
        %v5547 = vlaneseq
        %v5548 = vshrl.u32 %v5547, 7
        %v5549 = vsub.s32 %v5546, %v5548
        %v5550 = vrot.slane %v5536, %v5549
        %v5551 = vcombine.low %v4362, %v4370
        %v5552 = vcombine.high %v4362, %v4370
        %v5554 = vunpack.c.l.s4 1983009808
        %v5555 = vunpack.c.0.s8 %v5554
        %v5556 = vlaneseq
        %v5557 = vshrl.u32 %v5556, 7
        %v5558 = vsub.s32 %v5555, %v5557
        %v5559 = vrot.slane %v5551, %v5558
        %v5561 = vunpack.c.l.s4 1983009808
        %v5562 = vunpack.c.0.s8 %v5561
        %v5563 = vlaneseq
        %v5564 = vshrl.u32 %v5563, 7
        %v5565 = vsub.s32 %v5562, %v5564
        %v5566 = vrot.slane %v5552, %v5565
        %v5567 = vcombine.low %v5543, %v5559
        %v5568 = vcombine.high %v5543, %v5559
        %v5570 = vunpack.c.l.s4 1934713408
        %v5571 = vunpack.c.0.s8 %v5570
        %v5572 = vlaneseq
        %v5573 = vshrl.u32 %v5572, 7
        %v5574 = vsub.s32 %v5571, %v5573
        %v5575 = vrot.slane %v5567, %v5574
        %v5577 = vunpack.c.l.s4 1934713408
        %v5578 = vunpack.c.0.s8 %v5577
        %v5579 = vlaneseq
        %v5580 = vshrl.u32 %v5579, 7
        %v5581 = vsub.s32 %v5578, %v5580
        %v5582 = vrot.slane %v5568, %v5581
        %v5583 = vcombine.low %v5550, %v5566
        %v5584 = vcombine.high %v5550, %v5566
        %v5586 = vunpack.c.l.s4 1934713408
        %v5587 = vunpack.c.0.s8 %v5586
        %v5588 = vlaneseq
        %v5589 = vshrl.u32 %v5588, 7
        %v5590 = vsub.s32 %v5587, %v5589
        %v5591 = vrot.slane %v5583, %v5590
        %v5593 = vunpack.c.l.s4 1934713408
        %v5594 = vunpack.c.0.s8 %v5593
        %v5595 = vlaneseq
        %v5596 = vshrl.u32 %v5595, 7
        %v5597 = vsub.s32 %v5594, %v5596
        %v5598 = vrot.slane %v5584, %v5597
        %v5599 = vcombine.high %v5575, 0.0
        %v5600 = vcombine.high %v5582, 0.0
        %v5601 = vcombine.high %v5591, 0.0
        %v5602 = vcombine.high %v5598, 0.0
        %5608 = vrot.lane.b32.xlu0 %v4508, 16
        %v5609 = vpop.permute.xlu0 %5608
        %5610 = vrot.lane.b32.xlu0 %v4644, 16
        %v5611 = vpop.permute.xlu0 %5610
        %5612 = vrot.lane.b32.xlu0 %v4780, 16
        %v5613 = vpop.permute.xlu0 %5612
        %5614 = vrot.lane.b32.xlu0 %v4916, 16
        %v5615 = vpop.permute.xlu0 %5614
        %5616 = vrot.lane.b32.xlu0 %v4987, 16
        %v5617 = vpop.permute.xlu0 %5616
        %5628 = vrot.lane.b32.xlu0 %v4509, 32
        %v5629 = vpop.permute.xlu0 %5628
        %5630 = vrot.lane.b32.xlu0 %v4645, 32
        %v5631 = vpop.permute.xlu0 %5630
        %5632 = vrot.lane.b32.xlu0 %v4781, 32
        %v5633 = vpop.permute.xlu0 %5632
        %5634 = vrot.lane.b32.xlu0 %v4917, 32
        %v5635 = vpop.permute.xlu0 %5634
        %5636 = vrot.lane.b32.xlu0 %v4970, 32
        %v5637 = vpop.permute.xlu0 %5636
        %5648 = vrot.lane.b32.xlu0 %v4510, 48
        %v5649 = vpop.permute.xlu0 %5648
        %5650 = vrot.lane.b32.xlu0 %v4646, 48
        %v5651 = vpop.permute.xlu0 %5650
        %5652 = vrot.lane.b32.xlu0 %v4782, 48
        %v5653 = vpop.permute.xlu0 %5652
        %5654 = vrot.lane.b32.xlu0 %v4918, 48
        %v5655 = vpop.permute.xlu0 %5654
        %5656 = vrot.lane.b32.xlu0 %v4988, 48
        %v5657 = vpop.permute.xlu0 %5656
        %5668 = vrot.lane.b32.xlu0 %v4511, 64
        %v5669 = vpop.permute.xlu0 %5668
        %5670 = vrot.lane.b32.xlu0 %v4647, 64
        %v5671 = vpop.permute.xlu0 %5670
        %5672 = vrot.lane.b32.xlu0 %v4783, 64
        %v5673 = vpop.permute.xlu0 %5672
        %5674 = vrot.lane.b32.xlu0 %v4919, 64
        %v5675 = vpop.permute.xlu0 %5674
        %5676 = vrot.lane.b32.xlu0 %v4979, 64
        %v5677 = vpop.permute.xlu0 %5676
        %5688 = vrot.lane.b32.xlu0 %v4512, 80
        %v5689 = vpop.permute.xlu0 %5688
        %5690 = vrot.lane.b32.xlu0 %v4648, 80
        %v5691 = vpop.permute.xlu0 %5690
        %5692 = vrot.lane.b32.xlu0 %v4784, 80
        %v5693 = vpop.permute.xlu0 %5692
        %5694 = vrot.lane.b32.xlu0 %v4920, 80
        %v5695 = vpop.permute.xlu0 %5694
        %5696 = vrot.lane.b32.xlu0 %v4989, 80
        %v5697 = vpop.permute.xlu0 %5696
        %5708 = vrot.lane.b32.xlu0 %v4513, 96
        %v5709 = vpop.permute.xlu0 %5708
        %5710 = vrot.lane.b32.xlu0 %v4649, 96
        %v5711 = vpop.permute.xlu0 %5710
        %5712 = vrot.lane.b32.xlu0 %v4785, 96
        %v5713 = vpop.permute.xlu0 %5712
        %5714 = vrot.lane.b32.xlu0 %v4921, 96
        %v5715 = vpop.permute.xlu0 %5714
        %5716 = vrot.lane.b32.xlu0 %v4986, 96
        %v5717 = vpop.permute.xlu0 %5716
        %5728 = vrot.lane.b32.xlu0 %v4514, 112
        %v5729 = vpop.permute.xlu0 %5728
        %5730 = vrot.lane.b32.xlu0 %v4650, 112
        %v5731 = vpop.permute.xlu0 %5730
        %5732 = vrot.lane.b32.xlu0 %v4786, 112
        %v5733 = vpop.permute.xlu0 %5732
        %5734 = vrot.lane.b32.xlu0 %v4922, 112
        %v5735 = vpop.permute.xlu0 %5734
        %5736 = vrot.lane.b32.xlu0 %v4990, 112
        %v5737 = vpop.permute.xlu0 %5736
        %5748 = vrot.lane.b32.xlu0 %v5120, 16
        %v5749 = vpop.permute.xlu0 %5748
        %5750 = vrot.lane.b32.xlu0 %v5256, 16
        %v5751 = vpop.permute.xlu0 %5750
        %5752 = vrot.lane.b32.xlu0 %v5392, 16
        %v5753 = vpop.permute.xlu0 %5752
        %5754 = vrot.lane.b32.xlu0 %v5528, 16
        %v5755 = vpop.permute.xlu0 %5754
        %5756 = vrot.lane.b32.xlu0 %v5599, 16
        %v5757 = vpop.permute.xlu0 %5756
        %5768 = vrot.lane.b32.xlu0 %v5121, 32
        %v5769 = vpop.permute.xlu0 %5768
        %5770 = vrot.lane.b32.xlu0 %v5257, 32
        %v5771 = vpop.permute.xlu0 %5770
        %5772 = vrot.lane.b32.xlu0 %v5393, 32
        %v5773 = vpop.permute.xlu0 %5772
        %5774 = vrot.lane.b32.xlu0 %v5529, 32
        %v5775 = vpop.permute.xlu0 %5774
        %5776 = vrot.lane.b32.xlu0 %v5582, 32
        %v5777 = vpop.permute.xlu0 %5776
        %5788 = vrot.lane.b32.xlu0 %v5122, 48
        %v5789 = vpop.permute.xlu0 %5788
        %5790 = vrot.lane.b32.xlu0 %v5258, 48
        %v5791 = vpop.permute.xlu0 %5790
        %5792 = vrot.lane.b32.xlu0 %v5394, 48
        %v5793 = vpop.permute.xlu0 %5792
        %5794 = vrot.lane.b32.xlu0 %v5530, 48
        %v5795 = vpop.permute.xlu0 %5794
        %5796 = vrot.lane.b32.xlu0 %v5600, 48
        %v5797 = vpop.permute.xlu0 %5796
        %5808 = vrot.lane.b32.xlu0 %v5123, 64
        %v5809 = vpop.permute.xlu0 %5808
        %5810 = vrot.lane.b32.xlu0 %v5259, 64
        %v5811 = vpop.permute.xlu0 %5810
        %5812 = vrot.lane.b32.xlu0 %v5395, 64
        %v5813 = vpop.permute.xlu0 %5812
        %5814 = vrot.lane.b32.xlu0 %v5531, 64
        %v5815 = vpop.permute.xlu0 %5814
        %5816 = vrot.lane.b32.xlu0 %v5591, 64
        %v5817 = vpop.permute.xlu0 %5816
        %5828 = vrot.lane.b32.xlu0 %v5124, 80
        %v5829 = vpop.permute.xlu0 %5828
        %5830 = vrot.lane.b32.xlu0 %v5260, 80
        %v5831 = vpop.permute.xlu0 %5830
        %5832 = vrot.lane.b32.xlu0 %v5396, 80
        %v5833 = vpop.permute.xlu0 %5832
        %5834 = vrot.lane.b32.xlu0 %v5532, 80
        %v5835 = vpop.permute.xlu0 %5834
        %5836 = vrot.lane.b32.xlu0 %v5601, 80
        %v5837 = vpop.permute.xlu0 %5836
        %5848 = vrot.lane.b32.xlu0 %v5125, 96
        %v5849 = vpop.permute.xlu0 %5848
        %5850 = vrot.lane.b32.xlu0 %v5261, 96
        %v5851 = vpop.permute.xlu0 %5850
        %5852 = vrot.lane.b32.xlu0 %v5397, 96
        %v5853 = vpop.permute.xlu0 %5852
        %5854 = vrot.lane.b32.xlu0 %v5533, 96
        %v5855 = vpop.permute.xlu0 %5854
        %5856 = vrot.lane.b32.xlu0 %v5598, 96
        %v5857 = vpop.permute.xlu0 %5856
        %5868 = vrot.lane.b32.xlu0 %v5126, 112
        %v5869 = vpop.permute.xlu0 %5868
        %5870 = vrot.lane.b32.xlu0 %v5262, 112
        %v5871 = vpop.permute.xlu0 %5870
        %5872 = vrot.lane.b32.xlu0 %v5398, 112
        %v5873 = vpop.permute.xlu0 %5872
        %5874 = vrot.lane.b32.xlu0 %v5534, 112
        %v5875 = vpop.permute.xlu0 %5874
        %5876 = vrot.lane.b32.xlu0 %v5602, 112
        %v5877 = vpop.permute.xlu0 %5876
        %v5883 = vsel %vm2078, %v4507, %v5609
        %v5884 = vsel %vm2078, %v4643, %v5611
        %v5885 = vsel %vm2078, %v4779, %v5613
        %v5886 = vsel %vm2078, %v4915, %v5615
        %v5887 = vsel %vm2078, %v4963, %v5617
        %v5888 = vsel %vm2084, %v5883, %v5629
        %v5889 = vsel %vm2084, %v5884, %v5631
        %v5890 = vsel %vm2084, %v5885, %v5633
        %v5891 = vsel %vm2084, %v5886, %v5635
        %v5892 = vsel %vm2084, %v5887, %v5637
        %v5893 = vsel %vm2090, %v5888, %v5649
        %v5894 = vsel %vm2090, %v5889, %v5651
        %v5895 = vsel %vm2090, %v5890, %v5653
        %v5896 = vsel %vm2090, %v5891, %v5655
        %v5897 = vsel %vm2090, %v5892, %v5657
        %v5898 = vsel %vm2096, %v5893, %v5669
        %v5899 = vsel %vm2096, %v5894, %v5671
        %v5900 = vsel %vm2096, %v5895, %v5673
        %v5901 = vsel %vm2096, %v5896, %v5675
        %v5902 = vsel %vm2096, %v5897, %v5677
        %v5903 = vsel %vm2102, %v5898, %v5689
        %v5904 = vsel %vm2102, %v5899, %v5691
        %v5905 = vsel %vm2102, %v5900, %v5693
        %v5906 = vsel %vm2102, %v5901, %v5695
        %v5907 = vsel %vm2102, %v5902, %v5697
        %v5908 = vsel %vm2108, %v5903, %v5709
        %v5909 = vsel %vm2108, %v5904, %v5711
        %v5910 = vsel %vm2108, %v5905, %v5713
        %v5911 = vsel %vm2108, %v5906, %v5715
        %v5912 = vsel %vm2108, %v5907, %v5717
        %v5913 = vsel %vm2114, %v5908, %v5729
        %v5914 = vsel %vm2114, %v5909, %v5731
        %v5915 = vsel %vm2114, %v5910, %v5733
        %v5916 = vsel %vm2114, %v5911, %v5735
        %v5917 = vsel %vm2114, %v5912, %v5737
        %v5918 = vsel %vm2078, %v5119, %v5749
        %v5919 = vsel %vm2078, %v5255, %v5751
        %v5920 = vsel %vm2078, %v5391, %v5753
        %v5921 = vsel %vm2078, %v5527, %v5755
        %v5922 = vsel %vm2078, %v5575, %v5757
        %v5923 = vsel %vm2084, %v5918, %v5769
        %v5924 = vsel %vm2084, %v5919, %v5771
        %v5925 = vsel %vm2084, %v5920, %v5773
        %v5926 = vsel %vm2084, %v5921, %v5775
        %v5927 = vsel %vm2084, %v5922, %v5777
        %v5928 = vsel %vm2090, %v5923, %v5789
        %v5929 = vsel %vm2090, %v5924, %v5791
        %v5930 = vsel %vm2090, %v5925, %v5793
        %v5931 = vsel %vm2090, %v5926, %v5795
        %v5932 = vsel %vm2090, %v5927, %v5797
        %v5933 = vsel %vm2096, %v5928, %v5809
        %v5934 = vsel %vm2096, %v5929, %v5811
        %v5935 = vsel %vm2096, %v5930, %v5813
        %v5936 = vsel %vm2096, %v5931, %v5815
        %v5937 = vsel %vm2096, %v5932, %v5817
        %v5938 = vsel %vm2102, %v5933, %v5829
        %v5939 = vsel %vm2102, %v5934, %v5831
        %v5940 = vsel %vm2102, %v5935, %v5833
        %v5941 = vsel %vm2102, %v5936, %v5835
        %v5942 = vsel %vm2102, %v5937, %v5837
        %v5943 = vsel %vm2108, %v5938, %v5849
        %v5944 = vsel %vm2108, %v5939, %v5851
        %v5945 = vsel %vm2108, %v5940, %v5853
        %v5946 = vsel %vm2108, %v5941, %v5855
        %v5947 = vsel %vm2108, %v5942, %v5857
        %v5948 = vsel %vm2114, %v5943, %v5869
        %v5949 = vsel %vm2114, %v5944, %v5871
        %v5950 = vsel %vm2114, %v5945, %v5873
        %v5951 = vsel %vm2114, %v5946, %v5875
        %v5952 = vsel %vm2114, %v5947, %v5877
        %s5953 = scalar_lea.vmem %s213, 48 [#allocation2]
        %v5954 = vld [vmem:[%s5953] sm:$0xff]
        %v5955 = vld [vmem:[%s5953 + $0x8] sm:$0xff]
        %v5956 = vld [vmem:[%s5953 + $0x60] sm:$0xff]
        %v5957 = vld [vmem:[%s5953 + $0x68] sm:$0xff]
        %v5958 = vld [vmem:[%s5953 + $0xc0] sm:$0xff]
        %v5959 = vld [vmem:[%s5953 + $0xc8] sm:$0xff]
        %v5960 = vld [vmem:[%s5953 + $0x120] sm:$0xff]
        %v5961 = vld [vmem:[%s5953 + $0x128] sm:$0xff]
        %v5970 = vrot.slane %v5954, 7
        %v5971 = vrot.slane %v5955, 7
        %v5972 = vsel %vm261, %v5970, %v5971
        %v5973 = vrot.slane %v5956, 7
        %v5974 = vrot.slane %v5957, 7
        %v5975 = vsel %vm261, %v5973, %v5974
        %v5976 = vrot.slane %v5958, 7
        %v5977 = vrot.slane %v5959, 7
        %v5978 = vsel %vm261, %v5976, %v5977
        %v5979 = vrot.slane %v5960, 7
        %v5980 = vrot.slane %v5961, 7
        %v5981 = vsel %vm261, %v5979, %v5980
        %v5990 = vsel %vm261, 0.0, %v5970
        %v5991 = vsel %vm261, 0.0, %v5973
        %v5992 = vsel %vm261, 0.0, %v5976
        %v5993 = vsel %vm261, 0.0, %v5979
        %v5994 = vsel %vm261, %v5971, 0.0
        %v5995 = vsel %vm261, %v5974, 0.0
        %v5996 = vsel %vm261, %v5977, 0.0
        %v5997 = vsel %vm261, %v5980, 0.0
        %6006 = vrot.lane.b32.xlu0 %v5990, 1
        %v6007 = vpop.permute.xlu0 %6006
        %6008 = vrot.lane.b32.xlu0 %v5972, 1
        %v6009 = vpop.permute.xlu0 %6008
        %6010 = vrot.lane.b32.xlu0 %v5994, 1
        %v6011 = vpop.permute.xlu0 %6010
        %6012 = vrot.lane.b32.xlu0 %v5991, 1
        %v6013 = vpop.permute.xlu0 %6012
        %6014 = vrot.lane.b32.xlu0 %v5975, 1
        %v6015 = vpop.permute.xlu0 %6014
        %6016 = vrot.lane.b32.xlu0 %v5995, 1
        %v6017 = vpop.permute.xlu0 %6016
        %6018 = vrot.lane.b32.xlu0 %v5992, 1
        %v6019 = vpop.permute.xlu0 %6018
        %6020 = vrot.lane.b32.xlu0 %v5978, 1
        %v6021 = vpop.permute.xlu0 %6020
        %6022 = vrot.lane.b32.xlu0 %v5996, 1
        %v6023 = vpop.permute.xlu0 %6022
        %6024 = vrot.lane.b32.xlu0 %v5993, 1
        %v6025 = vpop.permute.xlu0 %6024
        %6026 = vrot.lane.b32.xlu0 %v5981, 1
        %v6027 = vpop.permute.xlu0 %6026
        %6028 = vrot.lane.b32.xlu0 %v5997, 1
        %v6029 = vpop.permute.xlu0 %6028
        %v6042 = vsel %vm334, 0.0, %v6007
        %v6043 = vsel %vm334, 0.0, %v6009
        %v6044 = vsel %vm334, 0.0, %v6011
        %v6045 = vsel %vm334, 0.0, %v6013
        %v6046 = vsel %vm334, 0.0, %v6015
        %v6047 = vsel %vm334, 0.0, %v6017
        %v6048 = vsel %vm334, 0.0, %v6019
        %v6049 = vsel %vm334, 0.0, %v6021
        %v6050 = vsel %vm334, 0.0, %v6023
        %v6051 = vsel %vm334, 0.0, %v6025
        %v6052 = vsel %vm334, 0.0, %v6027
        %v6053 = vsel %vm334, 0.0, %v6029
        %v6054 = vsel %vm347, %v6042, 0.0
        %v6055 = vsel %vm347, %v6043, 0.0
        %v6056 = vsel %vm347, %v6044, 0.0
        %v6057 = vsel %vm347, %v6045, 0.0
        %v6058 = vsel %vm347, %v6046, 0.0
        %v6059 = vsel %vm347, %v6047, 0.0
        %v6060 = vsel %vm347, %v6048, 0.0
        %v6061 = vsel %vm347, %v6049, 0.0
        %v6062 = vsel %vm347, %v6050, 0.0
        %v6063 = vsel %vm347, %v6051, 0.0
        %v6064 = vsel %vm347, %v6052, 0.0
        %v6065 = vsel %vm347, %v6053, 0.0
        %6074 = vrot.lane.b32.xlu0 %v6054, 127
        %v6075 = vpop.permute.xlu0 %6074
        %6076 = vrot.lane.b32.xlu0 %v6055, 127
        %v6077 = vpop.permute.xlu0 %6076
        %6078 = vrot.lane.b32.xlu0 %v6057, 127
        %v6079 = vpop.permute.xlu0 %6078
        %6080 = vrot.lane.b32.xlu0 %v6058, 127
        %v6081 = vpop.permute.xlu0 %6080
        %6082 = vrot.lane.b32.xlu0 %v6060, 127
        %v6083 = vpop.permute.xlu0 %6082
        %6084 = vrot.lane.b32.xlu0 %v6061, 127
        %v6085 = vpop.permute.xlu0 %6084
        %6086 = vrot.lane.b32.xlu0 %v6063, 127
        %v6087 = vpop.permute.xlu0 %6086
        %6088 = vrot.lane.b32.xlu0 %v6064, 127
        %v6089 = vpop.permute.xlu0 %6088
        %6098 = vrot.lane.b32.xlu0 %v6054, 126
        %v6099 = vpop.permute.xlu0 %6098
        %6100 = vrot.lane.b32.xlu0 %v6055, 126
        %v6101 = vpop.permute.xlu0 %6100
        %6102 = vrot.lane.b32.xlu0 %v6057, 126
        %v6103 = vpop.permute.xlu0 %6102
        %6104 = vrot.lane.b32.xlu0 %v6058, 126
        %v6105 = vpop.permute.xlu0 %6104
        %6106 = vrot.lane.b32.xlu0 %v6060, 126
        %v6107 = vpop.permute.xlu0 %6106
        %6108 = vrot.lane.b32.xlu0 %v6061, 126
        %v6109 = vpop.permute.xlu0 %6108
        %6110 = vrot.lane.b32.xlu0 %v6063, 126
        %v6111 = vpop.permute.xlu0 %6110
        %6112 = vrot.lane.b32.xlu0 %v6064, 126
        %v6113 = vpop.permute.xlu0 %6112
        %v6126 = vrot.slane %v6054, 1
        %v6127 = vrot.slane %v6055, 1
        %v6128 = vsel %vm420, %v6126, %v6127
        %v6129 = vrot.slane %v6056, 1
        %v6130 = vsel %vm420, %v6127, %v6129
        %v6131 = vrot.slane %v6057, 1
        %v6132 = vrot.slane %v6058, 1
        %v6133 = vsel %vm420, %v6131, %v6132
        %v6134 = vrot.slane %v6059, 1
        %v6135 = vsel %vm420, %v6132, %v6134
        %v6136 = vrot.slane %v6060, 1
        %v6137 = vrot.slane %v6061, 1
        %v6138 = vsel %vm420, %v6136, %v6137
        %v6139 = vrot.slane %v6062, 1
        %v6140 = vsel %vm420, %v6137, %v6139
        %v6141 = vrot.slane %v6063, 1
        %v6142 = vrot.slane %v6064, 1
        %v6143 = vsel %vm420, %v6141, %v6142
        %v6144 = vrot.slane %v6065, 1
        %v6145 = vsel %vm420, %v6142, %v6144
        %6154 = vrot.lane.b32.xlu0 %v6128, 127
        %v6155 = vpop.permute.xlu0 %6154
        %6156 = vrot.lane.b32.xlu0 %v6130, 127
        %v6157 = vpop.permute.xlu0 %6156
        %6158 = vrot.lane.b32.xlu0 %v6133, 127
        %v6159 = vpop.permute.xlu0 %6158
        %6160 = vrot.lane.b32.xlu0 %v6135, 127
        %v6161 = vpop.permute.xlu0 %6160
        %6162 = vrot.lane.b32.xlu0 %v6138, 127
        %v6163 = vpop.permute.xlu0 %6162
        %6164 = vrot.lane.b32.xlu0 %v6140, 127
        %v6165 = vpop.permute.xlu0 %6164
        %6166 = vrot.lane.b32.xlu0 %v6143, 127
        %v6167 = vpop.permute.xlu0 %6166
        %6168 = vrot.lane.b32.xlu0 %v6145, 127
        %v6169 = vpop.permute.xlu0 %6168
        %6178 = vrot.lane.b32.xlu0 %v6128, 126
        %v6179 = vpop.permute.xlu0 %6178
        %6180 = vrot.lane.b32.xlu0 %v6130, 126
        %v6181 = vpop.permute.xlu0 %6180
        %6182 = vrot.lane.b32.xlu0 %v6133, 126
        %v6183 = vpop.permute.xlu0 %6182
        %6184 = vrot.lane.b32.xlu0 %v6135, 126
        %v6185 = vpop.permute.xlu0 %6184
        %6186 = vrot.lane.b32.xlu0 %v6138, 126
        %v6187 = vpop.permute.xlu0 %6186
        %6188 = vrot.lane.b32.xlu0 %v6140, 126
        %v6189 = vpop.permute.xlu0 %6188
        %6190 = vrot.lane.b32.xlu0 %v6143, 126
        %v6191 = vpop.permute.xlu0 %6190
        %6192 = vrot.lane.b32.xlu0 %v6145, 126
        %v6193 = vpop.permute.xlu0 %6192
        %v6202 = vrot.slane %v6054, 2
        %v6203 = vrot.slane %v6055, 2
        %v6204 = vsel %vm497, %v6202, %v6203
        %v6205 = vrot.slane %v6056, 2
        %v6206 = vsel %vm497, %v6203, %v6205
        %v6207 = vrot.slane %v6057, 2
        %v6208 = vrot.slane %v6058, 2
        %v6209 = vsel %vm497, %v6207, %v6208
        %v6210 = vrot.slane %v6059, 2
        %v6211 = vsel %vm497, %v6208, %v6210
        %v6212 = vrot.slane %v6060, 2
        %v6213 = vrot.slane %v6061, 2
        %v6214 = vsel %vm497, %v6212, %v6213
        %v6215 = vrot.slane %v6062, 2
        %v6216 = vsel %vm497, %v6213, %v6215
        %v6217 = vrot.slane %v6063, 2
        %v6218 = vrot.slane %v6064, 2
        %v6219 = vsel %vm497, %v6217, %v6218
        %v6220 = vrot.slane %v6065, 2
        %v6221 = vsel %vm497, %v6218, %v6220
        %6230 = vrot.lane.b32.xlu0 %v6204, 127
        %v6231 = vpop.permute.xlu0 %6230
        %6232 = vrot.lane.b32.xlu0 %v6206, 127
        %v6233 = vpop.permute.xlu0 %6232
        %6234 = vrot.lane.b32.xlu0 %v6209, 127
        %v6235 = vpop.permute.xlu0 %6234
        %6236 = vrot.lane.b32.xlu0 %v6211, 127
        %v6237 = vpop.permute.xlu0 %6236
        %6238 = vrot.lane.b32.xlu0 %v6214, 127
        %v6239 = vpop.permute.xlu0 %6238
        %6240 = vrot.lane.b32.xlu0 %v6216, 127
        %v6241 = vpop.permute.xlu0 %6240
        %6242 = vrot.lane.b32.xlu0 %v6219, 127
        %v6243 = vpop.permute.xlu0 %6242
        %6244 = vrot.lane.b32.xlu0 %v6221, 127
        %v6245 = vpop.permute.xlu0 %6244
        %6254 = vrot.lane.b32.xlu0 %v6204, 126
        %v6255 = vpop.permute.xlu0 %6254
        %6256 = vrot.lane.b32.xlu0 %v6206, 126
        %v6257 = vpop.permute.xlu0 %6256
        %6258 = vrot.lane.b32.xlu0 %v6209, 126
        %v6259 = vpop.permute.xlu0 %6258
        %6260 = vrot.lane.b32.xlu0 %v6211, 126
        %v6261 = vpop.permute.xlu0 %6260
        %6262 = vrot.lane.b32.xlu0 %v6214, 126
        %v6263 = vpop.permute.xlu0 %6262
        %6264 = vrot.lane.b32.xlu0 %v6216, 126
        %v6265 = vpop.permute.xlu0 %6264
        %6266 = vrot.lane.b32.xlu0 %v6219, 126
        %v6267 = vpop.permute.xlu0 %6266
        %6268 = vrot.lane.b32.xlu0 %v6221, 126
        %v6269 = vpop.permute.xlu0 %6268
        %v6278 = vcombine.low %v6054, %v6060
        %v6279 = vcombine.high %v6054, %v6060
        %v6281 = vunpack.c.l.s4 1983009808
        %v6282 = vunpack.c.0.s8 %v6281
        %v6283 = vlaneseq
        %v6284 = vshrl.u32 %v6283, 7
        %v6285 = vsub.s32 %v6282, %v6284
        %v6286 = vrot.slane %v6278, %v6285
        %v6288 = vunpack.c.l.s4 1983009808
        %v6289 = vunpack.c.0.s8 %v6288
        %v6290 = vlaneseq
        %v6291 = vshrl.u32 %v6290, 7
        %v6292 = vsub.s32 %v6289, %v6291
        %v6293 = vrot.slane %v6279, %v6292
        %v6294 = vcombine.low %v6057, %v6063
        %v6295 = vcombine.high %v6057, %v6063
        %v6297 = vunpack.c.l.s4 1983009808
        %v6298 = vunpack.c.0.s8 %v6297
        %v6299 = vlaneseq
        %v6300 = vshrl.u32 %v6299, 7
        %v6301 = vsub.s32 %v6298, %v6300
        %v6302 = vrot.slane %v6294, %v6301
        %v6304 = vunpack.c.l.s4 1983009808
        %v6305 = vunpack.c.0.s8 %v6304
        %v6306 = vlaneseq
        %v6307 = vshrl.u32 %v6306, 7
        %v6308 = vsub.s32 %v6305, %v6307
        %v6309 = vrot.slane %v6295, %v6308
        %v6310 = vcombine.low %v6075, %v6083
        %v6311 = vcombine.high %v6075, %v6083
        %v6313 = vunpack.c.l.s4 1983009808
        %v6314 = vunpack.c.0.s8 %v6313
        %v6315 = vlaneseq
        %v6316 = vshrl.u32 %v6315, 7
        %v6317 = vsub.s32 %v6314, %v6316
        %v6318 = vrot.slane %v6310, %v6317
        %v6320 = vunpack.c.l.s4 1983009808
        %v6321 = vunpack.c.0.s8 %v6320
        %v6322 = vlaneseq
        %v6323 = vshrl.u32 %v6322, 7
        %v6324 = vsub.s32 %v6321, %v6323
        %v6325 = vrot.slane %v6311, %v6324
        %v6326 = vcombine.low %v6079, %v6087
        %v6327 = vcombine.high %v6079, %v6087
        %v6329 = vunpack.c.l.s4 1983009808
        %v6330 = vunpack.c.0.s8 %v6329
        %v6331 = vlaneseq
        %v6332 = vshrl.u32 %v6331, 7
        %v6333 = vsub.s32 %v6330, %v6332
        %v6334 = vrot.slane %v6326, %v6333
        %v6336 = vunpack.c.l.s4 1983009808
        %v6337 = vunpack.c.0.s8 %v6336
        %v6338 = vlaneseq
        %v6339 = vshrl.u32 %v6338, 7
        %v6340 = vsub.s32 %v6337, %v6339
        %v6341 = vrot.slane %v6327, %v6340
        %v6342 = vcombine.low %v6286, %v6302
        %v6343 = vcombine.high %v6286, %v6302
        %v6345 = vunpack.c.l.s4 1934713408
        %v6346 = vunpack.c.0.s8 %v6345
        %v6347 = vlaneseq
        %v6348 = vshrl.u32 %v6347, 7
        %v6349 = vsub.s32 %v6346, %v6348
        %v6350 = vrot.slane %v6342, %v6349
        %v6352 = vunpack.c.l.s4 1934713408
        %v6353 = vunpack.c.0.s8 %v6352
        %v6354 = vlaneseq
        %v6355 = vshrl.u32 %v6354, 7
        %v6356 = vsub.s32 %v6353, %v6355
        %v6357 = vrot.slane %v6343, %v6356
        %v6358 = vcombine.low %v6293, %v6309
        %v6359 = vcombine.high %v6293, %v6309
        %v6361 = vunpack.c.l.s4 1934713408
        %v6362 = vunpack.c.0.s8 %v6361
        %v6363 = vlaneseq
        %v6364 = vshrl.u32 %v6363, 7
        %v6365 = vsub.s32 %v6362, %v6364
        %v6366 = vrot.slane %v6358, %v6365
        %v6368 = vunpack.c.l.s4 1934713408
        %v6369 = vunpack.c.0.s8 %v6368
        %v6370 = vlaneseq
        %v6371 = vshrl.u32 %v6370, 7
        %v6372 = vsub.s32 %v6369, %v6371
        %v6373 = vrot.slane %v6359, %v6372
        %v6374 = vcombine.low %v6318, %v6334
        %v6375 = vcombine.high %v6318, %v6334
        %v6377 = vunpack.c.l.s4 1934713408
        %v6378 = vunpack.c.0.s8 %v6377
        %v6379 = vlaneseq
        %v6380 = vshrl.u32 %v6379, 7
        %v6381 = vsub.s32 %v6378, %v6380
        %v6382 = vrot.slane %v6374, %v6381
        %v6384 = vunpack.c.l.s4 1934713408
        %v6385 = vunpack.c.0.s8 %v6384
        %v6386 = vlaneseq
        %v6387 = vshrl.u32 %v6386, 7
        %v6388 = vsub.s32 %v6385, %v6387
        %v6389 = vrot.slane %v6375, %v6388
        %v6390 = vcombine.low %v6325, %v6341
        %v6391 = vcombine.high %v6325, %v6341
        %v6393 = vunpack.c.l.s4 1934713408
        %v6394 = vunpack.c.0.s8 %v6393
        %v6395 = vlaneseq
        %v6396 = vshrl.u32 %v6395, 7
        %v6397 = vsub.s32 %v6394, %v6396
        %v6398 = vrot.slane %v6390, %v6397
        %v6400 = vunpack.c.l.s4 1934713408
        %v6401 = vunpack.c.0.s8 %v6400
        %v6402 = vlaneseq
        %v6403 = vshrl.u32 %v6402, 7
        %v6404 = vsub.s32 %v6401, %v6403
        %v6405 = vrot.slane %v6391, %v6404
        %v6406 = vcombine.low %v6350, %v6382
        %v6407 = vcombine.high %v6350, %v6382
        %v6408 = vcombine.low %v6357, %v6389
        %v6409 = vcombine.high %v6357, %v6389
        %v6410 = vcombine.low %v6366, %v6398
        %v6411 = vcombine.high %v6366, %v6398
        %v6412 = vcombine.low %v6373, %v6405
        %v6413 = vcombine.high %v6373, %v6405
        %v6414 = vcombine.low %v6099, %v6107
        %v6415 = vcombine.high %v6099, %v6107
        %v6417 = vunpack.c.l.s4 1983009808
        %v6418 = vunpack.c.0.s8 %v6417
        %v6419 = vlaneseq
        %v6420 = vshrl.u32 %v6419, 7
        %v6421 = vsub.s32 %v6418, %v6420
        %v6422 = vrot.slane %v6414, %v6421
        %v6424 = vunpack.c.l.s4 1983009808
        %v6425 = vunpack.c.0.s8 %v6424
        %v6426 = vlaneseq
        %v6427 = vshrl.u32 %v6426, 7
        %v6428 = vsub.s32 %v6425, %v6427
        %v6429 = vrot.slane %v6415, %v6428
        %v6430 = vcombine.low %v6103, %v6111
        %v6431 = vcombine.high %v6103, %v6111
        %v6433 = vunpack.c.l.s4 1983009808
        %v6434 = vunpack.c.0.s8 %v6433
        %v6435 = vlaneseq
        %v6436 = vshrl.u32 %v6435, 7
        %v6437 = vsub.s32 %v6434, %v6436
        %v6438 = vrot.slane %v6430, %v6437
        %v6440 = vunpack.c.l.s4 1983009808
        %v6441 = vunpack.c.0.s8 %v6440
        %v6442 = vlaneseq
        %v6443 = vshrl.u32 %v6442, 7
        %v6444 = vsub.s32 %v6441, %v6443
        %v6445 = vrot.slane %v6431, %v6444
        %v6446 = vcombine.low %v6128, %v6138
        %v6447 = vcombine.high %v6128, %v6138
        %v6449 = vunpack.c.l.s4 1983009808
        %v6450 = vunpack.c.0.s8 %v6449
        %v6451 = vlaneseq
        %v6452 = vshrl.u32 %v6451, 7
        %v6453 = vsub.s32 %v6450, %v6452
        %v6454 = vrot.slane %v6446, %v6453
        %v6456 = vunpack.c.l.s4 1983009808
        %v6457 = vunpack.c.0.s8 %v6456
        %v6458 = vlaneseq
        %v6459 = vshrl.u32 %v6458, 7
        %v6460 = vsub.s32 %v6457, %v6459
        %v6461 = vrot.slane %v6447, %v6460
        %v6462 = vcombine.low %v6133, %v6143
        %v6463 = vcombine.high %v6133, %v6143
        %v6465 = vunpack.c.l.s4 1983009808
        %v6466 = vunpack.c.0.s8 %v6465
        %v6467 = vlaneseq
        %v6468 = vshrl.u32 %v6467, 7
        %v6469 = vsub.s32 %v6466, %v6468
        %v6470 = vrot.slane %v6462, %v6469
        %v6472 = vunpack.c.l.s4 1983009808
        %v6473 = vunpack.c.0.s8 %v6472
        %v6474 = vlaneseq
        %v6475 = vshrl.u32 %v6474, 7
        %v6476 = vsub.s32 %v6473, %v6475
        %v6477 = vrot.slane %v6463, %v6476
        %v6478 = vcombine.low %v6422, %v6438
        %v6479 = vcombine.high %v6422, %v6438
        %v6481 = vunpack.c.l.s4 1934713408
        %v6482 = vunpack.c.0.s8 %v6481
        %v6483 = vlaneseq
        %v6484 = vshrl.u32 %v6483, 7
        %v6485 = vsub.s32 %v6482, %v6484
        %v6486 = vrot.slane %v6478, %v6485
        %v6488 = vunpack.c.l.s4 1934713408
        %v6489 = vunpack.c.0.s8 %v6488
        %v6490 = vlaneseq
        %v6491 = vshrl.u32 %v6490, 7
        %v6492 = vsub.s32 %v6489, %v6491
        %v6493 = vrot.slane %v6479, %v6492
        %v6494 = vcombine.low %v6429, %v6445
        %v6495 = vcombine.high %v6429, %v6445
        %v6497 = vunpack.c.l.s4 1934713408
        %v6498 = vunpack.c.0.s8 %v6497
        %v6499 = vlaneseq
        %v6500 = vshrl.u32 %v6499, 7
        %v6501 = vsub.s32 %v6498, %v6500
        %v6502 = vrot.slane %v6494, %v6501
        %v6504 = vunpack.c.l.s4 1934713408
        %v6505 = vunpack.c.0.s8 %v6504
        %v6506 = vlaneseq
        %v6507 = vshrl.u32 %v6506, 7
        %v6508 = vsub.s32 %v6505, %v6507
        %v6509 = vrot.slane %v6495, %v6508
        %v6510 = vcombine.low %v6454, %v6470
        %v6511 = vcombine.high %v6454, %v6470
        %v6513 = vunpack.c.l.s4 1934713408
        %v6514 = vunpack.c.0.s8 %v6513
        %v6515 = vlaneseq
        %v6516 = vshrl.u32 %v6515, 7
        %v6517 = vsub.s32 %v6514, %v6516
        %v6518 = vrot.slane %v6510, %v6517
        %v6520 = vunpack.c.l.s4 1934713408
        %v6521 = vunpack.c.0.s8 %v6520
        %v6522 = vlaneseq
        %v6523 = vshrl.u32 %v6522, 7
        %v6524 = vsub.s32 %v6521, %v6523
        %v6525 = vrot.slane %v6511, %v6524
        %v6526 = vcombine.low %v6461, %v6477
        %v6527 = vcombine.high %v6461, %v6477
        %v6529 = vunpack.c.l.s4 1934713408
        %v6530 = vunpack.c.0.s8 %v6529
        %v6531 = vlaneseq
        %v6532 = vshrl.u32 %v6531, 7
        %v6533 = vsub.s32 %v6530, %v6532
        %v6534 = vrot.slane %v6526, %v6533
        %v6536 = vunpack.c.l.s4 1934713408
        %v6537 = vunpack.c.0.s8 %v6536
        %v6538 = vlaneseq
        %v6539 = vshrl.u32 %v6538, 7
        %v6540 = vsub.s32 %v6537, %v6539
        %v6541 = vrot.slane %v6527, %v6540
        %v6542 = vcombine.low %v6486, %v6518
        %v6543 = vcombine.high %v6486, %v6518
        %v6544 = vcombine.low %v6493, %v6525
        %v6545 = vcombine.high %v6493, %v6525
        %v6546 = vcombine.low %v6502, %v6534
        %v6547 = vcombine.high %v6502, %v6534
        %v6548 = vcombine.low %v6509, %v6541
        %v6549 = vcombine.high %v6509, %v6541
        %v6550 = vcombine.low %v6155, %v6163
        %v6551 = vcombine.high %v6155, %v6163
        %v6553 = vunpack.c.l.s4 1983009808
        %v6554 = vunpack.c.0.s8 %v6553
        %v6555 = vlaneseq
        %v6556 = vshrl.u32 %v6555, 7
        %v6557 = vsub.s32 %v6554, %v6556
        %v6558 = vrot.slane %v6550, %v6557
        %v6560 = vunpack.c.l.s4 1983009808
        %v6561 = vunpack.c.0.s8 %v6560
        %v6562 = vlaneseq
        %v6563 = vshrl.u32 %v6562, 7
        %v6564 = vsub.s32 %v6561, %v6563
        %v6565 = vrot.slane %v6551, %v6564
        %v6566 = vcombine.low %v6159, %v6167
        %v6567 = vcombine.high %v6159, %v6167
        %v6569 = vunpack.c.l.s4 1983009808
        %v6570 = vunpack.c.0.s8 %v6569
        %v6571 = vlaneseq
        %v6572 = vshrl.u32 %v6571, 7
        %v6573 = vsub.s32 %v6570, %v6572
        %v6574 = vrot.slane %v6566, %v6573
        %v6576 = vunpack.c.l.s4 1983009808
        %v6577 = vunpack.c.0.s8 %v6576
        %v6578 = vlaneseq
        %v6579 = vshrl.u32 %v6578, 7
        %v6580 = vsub.s32 %v6577, %v6579
        %v6581 = vrot.slane %v6567, %v6580
        %v6582 = vcombine.low %v6179, %v6187
        %v6583 = vcombine.high %v6179, %v6187
        %v6585 = vunpack.c.l.s4 1983009808
        %v6586 = vunpack.c.0.s8 %v6585
        %v6587 = vlaneseq
        %v6588 = vshrl.u32 %v6587, 7
        %v6589 = vsub.s32 %v6586, %v6588
        %v6590 = vrot.slane %v6582, %v6589
        %v6592 = vunpack.c.l.s4 1983009808
        %v6593 = vunpack.c.0.s8 %v6592
        %v6594 = vlaneseq
        %v6595 = vshrl.u32 %v6594, 7
        %v6596 = vsub.s32 %v6593, %v6595
        %v6597 = vrot.slane %v6583, %v6596
        %v6598 = vcombine.low %v6183, %v6191
        %v6599 = vcombine.high %v6183, %v6191
        %v6601 = vunpack.c.l.s4 1983009808
        %v6602 = vunpack.c.0.s8 %v6601
        %v6603 = vlaneseq
        %v6604 = vshrl.u32 %v6603, 7
        %v6605 = vsub.s32 %v6602, %v6604
        %v6606 = vrot.slane %v6598, %v6605
        %v6608 = vunpack.c.l.s4 1983009808
        %v6609 = vunpack.c.0.s8 %v6608
        %v6610 = vlaneseq
        %v6611 = vshrl.u32 %v6610, 7
        %v6612 = vsub.s32 %v6609, %v6611
        %v6613 = vrot.slane %v6599, %v6612
        %v6614 = vcombine.low %v6558, %v6574
        %v6615 = vcombine.high %v6558, %v6574
        %v6617 = vunpack.c.l.s4 1934713408
        %v6618 = vunpack.c.0.s8 %v6617
        %v6619 = vlaneseq
        %v6620 = vshrl.u32 %v6619, 7
        %v6621 = vsub.s32 %v6618, %v6620
        %v6622 = vrot.slane %v6614, %v6621
        %v6624 = vunpack.c.l.s4 1934713408
        %v6625 = vunpack.c.0.s8 %v6624
        %v6626 = vlaneseq
        %v6627 = vshrl.u32 %v6626, 7
        %v6628 = vsub.s32 %v6625, %v6627
        %v6629 = vrot.slane %v6615, %v6628
        %v6630 = vcombine.low %v6565, %v6581
        %v6631 = vcombine.high %v6565, %v6581
        %v6633 = vunpack.c.l.s4 1934713408
        %v6634 = vunpack.c.0.s8 %v6633
        %v6635 = vlaneseq
        %v6636 = vshrl.u32 %v6635, 7
        %v6637 = vsub.s32 %v6634, %v6636
        %v6638 = vrot.slane %v6630, %v6637
        %v6640 = vunpack.c.l.s4 1934713408
        %v6641 = vunpack.c.0.s8 %v6640
        %v6642 = vlaneseq
        %v6643 = vshrl.u32 %v6642, 7
        %v6644 = vsub.s32 %v6641, %v6643
        %v6645 = vrot.slane %v6631, %v6644
        %v6646 = vcombine.low %v6590, %v6606
        %v6647 = vcombine.high %v6590, %v6606
        %v6649 = vunpack.c.l.s4 1934713408
        %v6650 = vunpack.c.0.s8 %v6649
        %v6651 = vlaneseq
        %v6652 = vshrl.u32 %v6651, 7
        %v6653 = vsub.s32 %v6650, %v6652
        %v6654 = vrot.slane %v6646, %v6653
        %v6656 = vunpack.c.l.s4 1934713408
        %v6657 = vunpack.c.0.s8 %v6656
        %v6658 = vlaneseq
        %v6659 = vshrl.u32 %v6658, 7
        %v6660 = vsub.s32 %v6657, %v6659
        %v6661 = vrot.slane %v6647, %v6660
        %v6662 = vcombine.low %v6597, %v6613
        %v6663 = vcombine.high %v6597, %v6613
        %v6665 = vunpack.c.l.s4 1934713408
        %v6666 = vunpack.c.0.s8 %v6665
        %v6667 = vlaneseq
        %v6668 = vshrl.u32 %v6667, 7
        %v6669 = vsub.s32 %v6666, %v6668
        %v6670 = vrot.slane %v6662, %v6669
        %v6672 = vunpack.c.l.s4 1934713408
        %v6673 = vunpack.c.0.s8 %v6672
        %v6674 = vlaneseq
        %v6675 = vshrl.u32 %v6674, 7
        %v6676 = vsub.s32 %v6673, %v6675
        %v6677 = vrot.slane %v6663, %v6676
        %v6678 = vcombine.low %v6622, %v6654
        %v6679 = vcombine.high %v6622, %v6654
        %v6680 = vcombine.low %v6629, %v6661
        %v6681 = vcombine.high %v6629, %v6661
        %v6682 = vcombine.low %v6638, %v6670
        %v6683 = vcombine.high %v6638, %v6670
        %v6684 = vcombine.low %v6645, %v6677
        %v6685 = vcombine.high %v6645, %v6677
        %v6686 = vcombine.low %v6204, %v6214
        %v6687 = vcombine.high %v6204, %v6214
        %v6689 = vunpack.c.l.s4 1983009808
        %v6690 = vunpack.c.0.s8 %v6689
        %v6691 = vlaneseq
        %v6692 = vshrl.u32 %v6691, 7
        %v6693 = vsub.s32 %v6690, %v6692
        %v6694 = vrot.slane %v6686, %v6693
        %v6696 = vunpack.c.l.s4 1983009808
        %v6697 = vunpack.c.0.s8 %v6696
        %v6698 = vlaneseq
        %v6699 = vshrl.u32 %v6698, 7
        %v6700 = vsub.s32 %v6697, %v6699
        %v6701 = vrot.slane %v6687, %v6700
        %v6702 = vcombine.low %v6209, %v6219
        %v6703 = vcombine.high %v6209, %v6219
        %v6705 = vunpack.c.l.s4 1983009808
        %v6706 = vunpack.c.0.s8 %v6705
        %v6707 = vlaneseq
        %v6708 = vshrl.u32 %v6707, 7
        %v6709 = vsub.s32 %v6706, %v6708
        %v6710 = vrot.slane %v6702, %v6709
        %v6712 = vunpack.c.l.s4 1983009808
        %v6713 = vunpack.c.0.s8 %v6712
        %v6714 = vlaneseq
        %v6715 = vshrl.u32 %v6714, 7
        %v6716 = vsub.s32 %v6713, %v6715
        %v6717 = vrot.slane %v6703, %v6716
        %v6718 = vcombine.low %v6231, %v6239
        %v6719 = vcombine.high %v6231, %v6239
        %v6721 = vunpack.c.l.s4 1983009808
        %v6722 = vunpack.c.0.s8 %v6721
        %v6723 = vlaneseq
        %v6724 = vshrl.u32 %v6723, 7
        %v6725 = vsub.s32 %v6722, %v6724
        %v6726 = vrot.slane %v6718, %v6725
        %v6728 = vunpack.c.l.s4 1983009808
        %v6729 = vunpack.c.0.s8 %v6728
        %v6730 = vlaneseq
        %v6731 = vshrl.u32 %v6730, 7
        %v6732 = vsub.s32 %v6729, %v6731
        %v6733 = vrot.slane %v6719, %v6732
        %v6734 = vcombine.low %v6235, %v6243
        %v6735 = vcombine.high %v6235, %v6243
        %v6737 = vunpack.c.l.s4 1983009808
        %v6738 = vunpack.c.0.s8 %v6737
        %v6739 = vlaneseq
        %v6740 = vshrl.u32 %v6739, 7
        %v6741 = vsub.s32 %v6738, %v6740
        %v6742 = vrot.slane %v6734, %v6741
        %v6744 = vunpack.c.l.s4 1983009808
        %v6745 = vunpack.c.0.s8 %v6744
        %v6746 = vlaneseq
        %v6747 = vshrl.u32 %v6746, 7
        %v6748 = vsub.s32 %v6745, %v6747
        %v6749 = vrot.slane %v6735, %v6748
        %v6750 = vcombine.low %v6694, %v6710
        %v6751 = vcombine.high %v6694, %v6710
        %v6753 = vunpack.c.l.s4 1934713408
        %v6754 = vunpack.c.0.s8 %v6753
        %v6755 = vlaneseq
        %v6756 = vshrl.u32 %v6755, 7
        %v6757 = vsub.s32 %v6754, %v6756
        %v6758 = vrot.slane %v6750, %v6757
        %v6760 = vunpack.c.l.s4 1934713408
        %v6761 = vunpack.c.0.s8 %v6760
        %v6762 = vlaneseq
        %v6763 = vshrl.u32 %v6762, 7
        %v6764 = vsub.s32 %v6761, %v6763
        %v6765 = vrot.slane %v6751, %v6764
        %v6766 = vcombine.low %v6701, %v6717
        %v6767 = vcombine.high %v6701, %v6717
        %v6769 = vunpack.c.l.s4 1934713408
        %v6770 = vunpack.c.0.s8 %v6769
        %v6771 = vlaneseq
        %v6772 = vshrl.u32 %v6771, 7
        %v6773 = vsub.s32 %v6770, %v6772
        %v6774 = vrot.slane %v6766, %v6773
        %v6776 = vunpack.c.l.s4 1934713408
        %v6777 = vunpack.c.0.s8 %v6776
        %v6778 = vlaneseq
        %v6779 = vshrl.u32 %v6778, 7
        %v6780 = vsub.s32 %v6777, %v6779
        %v6781 = vrot.slane %v6767, %v6780
        %v6782 = vcombine.low %v6726, %v6742
        %v6783 = vcombine.high %v6726, %v6742
        %v6785 = vunpack.c.l.s4 1934713408
        %v6786 = vunpack.c.0.s8 %v6785
        %v6787 = vlaneseq
        %v6788 = vshrl.u32 %v6787, 7
        %v6789 = vsub.s32 %v6786, %v6788
        %v6790 = vrot.slane %v6782, %v6789
        %v6792 = vunpack.c.l.s4 1934713408
        %v6793 = vunpack.c.0.s8 %v6792
        %v6794 = vlaneseq
        %v6795 = vshrl.u32 %v6794, 7
        %v6796 = vsub.s32 %v6793, %v6795
        %v6797 = vrot.slane %v6783, %v6796
        %v6798 = vcombine.low %v6733, %v6749
        %v6799 = vcombine.high %v6733, %v6749
        %v6801 = vunpack.c.l.s4 1934713408
        %v6802 = vunpack.c.0.s8 %v6801
        %v6803 = vlaneseq
        %v6804 = vshrl.u32 %v6803, 7
        %v6805 = vsub.s32 %v6802, %v6804
        %v6806 = vrot.slane %v6798, %v6805
        %v6808 = vunpack.c.l.s4 1934713408
        %v6809 = vunpack.c.0.s8 %v6808
        %v6810 = vlaneseq
        %v6811 = vshrl.u32 %v6810, 7
        %v6812 = vsub.s32 %v6809, %v6811
        %v6813 = vrot.slane %v6799, %v6812
        %v6814 = vcombine.low %v6758, %v6790
        %v6815 = vcombine.high %v6758, %v6790
        %v6816 = vcombine.low %v6765, %v6797
        %v6817 = vcombine.high %v6765, %v6797
        %v6818 = vcombine.low %v6774, %v6806
        %v6819 = vcombine.high %v6774, %v6806
        %v6820 = vcombine.low %v6781, %v6813
        %v6821 = vcombine.high %v6781, %v6813
        %v6822 = vcombine.low %v6255, %v6263
        %v6823 = vcombine.high %v6255, %v6263
        %v6825 = vunpack.c.l.s4 1983009808
        %v6826 = vunpack.c.0.s8 %v6825
        %v6827 = vlaneseq
        %v6828 = vshrl.u32 %v6827, 7
        %v6829 = vsub.s32 %v6826, %v6828
        %v6830 = vrot.slane %v6822, %v6829
        %v6832 = vunpack.c.l.s4 1983009808
        %v6833 = vunpack.c.0.s8 %v6832
        %v6834 = vlaneseq
        %v6835 = vshrl.u32 %v6834, 7
        %v6836 = vsub.s32 %v6833, %v6835
        %v6837 = vrot.slane %v6823, %v6836
        %v6838 = vcombine.low %v6259, %v6267
        %v6839 = vcombine.high %v6259, %v6267
        %v6841 = vunpack.c.l.s4 1983009808
        %v6842 = vunpack.c.0.s8 %v6841
        %v6843 = vlaneseq
        %v6844 = vshrl.u32 %v6843, 7
        %v6845 = vsub.s32 %v6842, %v6844
        %v6846 = vrot.slane %v6838, %v6845
        %v6848 = vunpack.c.l.s4 1983009808
        %v6849 = vunpack.c.0.s8 %v6848
        %v6850 = vlaneseq
        %v6851 = vshrl.u32 %v6850, 7
        %v6852 = vsub.s32 %v6849, %v6851
        %v6853 = vrot.slane %v6839, %v6852
        %v6854 = vcombine.low %v6830, %v6846
        %v6855 = vcombine.high %v6830, %v6846
        %v6857 = vunpack.c.l.s4 1934713408
        %v6858 = vunpack.c.0.s8 %v6857
        %v6859 = vlaneseq
        %v6860 = vshrl.u32 %v6859, 7
        %v6861 = vsub.s32 %v6858, %v6860
        %v6862 = vrot.slane %v6854, %v6861
        %v6864 = vunpack.c.l.s4 1934713408
        %v6865 = vunpack.c.0.s8 %v6864
        %v6866 = vlaneseq
        %v6867 = vshrl.u32 %v6866, 7
        %v6868 = vsub.s32 %v6865, %v6867
        %v6869 = vrot.slane %v6855, %v6868
        %v6870 = vcombine.low %v6837, %v6853
        %v6871 = vcombine.high %v6837, %v6853
        %v6873 = vunpack.c.l.s4 1934713408
        %v6874 = vunpack.c.0.s8 %v6873
        %v6875 = vlaneseq
        %v6876 = vshrl.u32 %v6875, 7
        %v6877 = vsub.s32 %v6874, %v6876
        %v6878 = vrot.slane %v6870, %v6877
        %v6880 = vunpack.c.l.s4 1934713408
        %v6881 = vunpack.c.0.s8 %v6880
        %v6882 = vlaneseq
        %v6883 = vshrl.u32 %v6882, 7
        %v6884 = vsub.s32 %v6881, %v6883
        %v6885 = vrot.slane %v6871, %v6884
        %v6886 = vcombine.high %v6862, 0.0
        %v6887 = vcombine.high %v6869, 0.0
        %v6888 = vcombine.high %v6878, 0.0
        %v6889 = vcombine.high %v6885, 0.0
        %v6890 = vcombine.low %v6055, %v6061
        %v6891 = vcombine.high %v6055, %v6061
        %v6893 = vunpack.c.l.s4 1983009808
        %v6894 = vunpack.c.0.s8 %v6893
        %v6895 = vlaneseq
        %v6896 = vshrl.u32 %v6895, 7
        %v6897 = vsub.s32 %v6894, %v6896
        %v6898 = vrot.slane %v6890, %v6897
        %v6900 = vunpack.c.l.s4 1983009808
        %v6901 = vunpack.c.0.s8 %v6900
        %v6902 = vlaneseq
        %v6903 = vshrl.u32 %v6902, 7
        %v6904 = vsub.s32 %v6901, %v6903
        %v6905 = vrot.slane %v6891, %v6904
        %v6906 = vcombine.low %v6058, %v6064
        %v6907 = vcombine.high %v6058, %v6064
        %v6909 = vunpack.c.l.s4 1983009808
        %v6910 = vunpack.c.0.s8 %v6909
        %v6911 = vlaneseq
        %v6912 = vshrl.u32 %v6911, 7
        %v6913 = vsub.s32 %v6910, %v6912
        %v6914 = vrot.slane %v6906, %v6913
        %v6916 = vunpack.c.l.s4 1983009808
        %v6917 = vunpack.c.0.s8 %v6916
        %v6918 = vlaneseq
        %v6919 = vshrl.u32 %v6918, 7
        %v6920 = vsub.s32 %v6917, %v6919
        %v6921 = vrot.slane %v6907, %v6920
        %v6922 = vcombine.low %v6077, %v6085
        %v6923 = vcombine.high %v6077, %v6085
        %v6925 = vunpack.c.l.s4 1983009808
        %v6926 = vunpack.c.0.s8 %v6925
        %v6927 = vlaneseq
        %v6928 = vshrl.u32 %v6927, 7
        %v6929 = vsub.s32 %v6926, %v6928
        %v6930 = vrot.slane %v6922, %v6929
        %v6932 = vunpack.c.l.s4 1983009808
        %v6933 = vunpack.c.0.s8 %v6932
        %v6934 = vlaneseq
        %v6935 = vshrl.u32 %v6934, 7
        %v6936 = vsub.s32 %v6933, %v6935
        %v6937 = vrot.slane %v6923, %v6936
        %v6938 = vcombine.low %v6081, %v6089
        %v6939 = vcombine.high %v6081, %v6089
        %v6941 = vunpack.c.l.s4 1983009808
        %v6942 = vunpack.c.0.s8 %v6941
        %v6943 = vlaneseq
        %v6944 = vshrl.u32 %v6943, 7
        %v6945 = vsub.s32 %v6942, %v6944
        %v6946 = vrot.slane %v6938, %v6945
        %v6948 = vunpack.c.l.s4 1983009808
        %v6949 = vunpack.c.0.s8 %v6948
        %v6950 = vlaneseq
        %v6951 = vshrl.u32 %v6950, 7
        %v6952 = vsub.s32 %v6949, %v6951
        %v6953 = vrot.slane %v6939, %v6952
        %v6954 = vcombine.low %v6898, %v6914
        %v6955 = vcombine.high %v6898, %v6914
        %v6957 = vunpack.c.l.s4 1934713408
        %v6958 = vunpack.c.0.s8 %v6957
        %v6959 = vlaneseq
        %v6960 = vshrl.u32 %v6959, 7
        %v6961 = vsub.s32 %v6958, %v6960
        %v6962 = vrot.slane %v6954, %v6961
        %v6964 = vunpack.c.l.s4 1934713408
        %v6965 = vunpack.c.0.s8 %v6964
        %v6966 = vlaneseq
        %v6967 = vshrl.u32 %v6966, 7
        %v6968 = vsub.s32 %v6965, %v6967
        %v6969 = vrot.slane %v6955, %v6968
        %v6970 = vcombine.low %v6905, %v6921
        %v6971 = vcombine.high %v6905, %v6921
        %v6973 = vunpack.c.l.s4 1934713408
        %v6974 = vunpack.c.0.s8 %v6973
        %v6975 = vlaneseq
        %v6976 = vshrl.u32 %v6975, 7
        %v6977 = vsub.s32 %v6974, %v6976
        %v6978 = vrot.slane %v6970, %v6977
        %v6980 = vunpack.c.l.s4 1934713408
        %v6981 = vunpack.c.0.s8 %v6980
        %v6982 = vlaneseq
        %v6983 = vshrl.u32 %v6982, 7
        %v6984 = vsub.s32 %v6981, %v6983
        %v6985 = vrot.slane %v6971, %v6984
        %v6986 = vcombine.low %v6930, %v6946
        %v6987 = vcombine.high %v6930, %v6946
        %v6989 = vunpack.c.l.s4 1934713408
        %v6990 = vunpack.c.0.s8 %v6989
        %v6991 = vlaneseq
        %v6992 = vshrl.u32 %v6991, 7
        %v6993 = vsub.s32 %v6990, %v6992
        %v6994 = vrot.slane %v6986, %v6993
        %v6996 = vunpack.c.l.s4 1934713408
        %v6997 = vunpack.c.0.s8 %v6996
        %v6998 = vlaneseq
        %v6999 = vshrl.u32 %v6998, 7
        %v7000 = vsub.s32 %v6997, %v6999
        %v7001 = vrot.slane %v6987, %v7000
        %v7002 = vcombine.low %v6937, %v6953
        %v7003 = vcombine.high %v6937, %v6953
        %v7005 = vunpack.c.l.s4 1934713408
        %v7006 = vunpack.c.0.s8 %v7005
        %v7007 = vlaneseq
        %v7008 = vshrl.u32 %v7007, 7
        %v7009 = vsub.s32 %v7006, %v7008
        %v7010 = vrot.slane %v7002, %v7009
        %v7012 = vunpack.c.l.s4 1934713408
        %v7013 = vunpack.c.0.s8 %v7012
        %v7014 = vlaneseq
        %v7015 = vshrl.u32 %v7014, 7
        %v7016 = vsub.s32 %v7013, %v7015
        %v7017 = vrot.slane %v7003, %v7016
        %v7018 = vcombine.low %v6962, %v6994
        %v7019 = vcombine.high %v6962, %v6994
        %v7020 = vcombine.low %v6969, %v7001
        %v7021 = vcombine.high %v6969, %v7001
        %v7022 = vcombine.low %v6978, %v7010
        %v7023 = vcombine.high %v6978, %v7010
        %v7024 = vcombine.low %v6985, %v7017
        %v7025 = vcombine.high %v6985, %v7017
        %v7026 = vcombine.low %v6101, %v6109
        %v7027 = vcombine.high %v6101, %v6109
        %v7029 = vunpack.c.l.s4 1983009808
        %v7030 = vunpack.c.0.s8 %v7029
        %v7031 = vlaneseq
        %v7032 = vshrl.u32 %v7031, 7
        %v7033 = vsub.s32 %v7030, %v7032
        %v7034 = vrot.slane %v7026, %v7033
        %v7036 = vunpack.c.l.s4 1983009808
        %v7037 = vunpack.c.0.s8 %v7036
        %v7038 = vlaneseq
        %v7039 = vshrl.u32 %v7038, 7
        %v7040 = vsub.s32 %v7037, %v7039
        %v7041 = vrot.slane %v7027, %v7040
        %v7042 = vcombine.low %v6105, %v6113
        %v7043 = vcombine.high %v6105, %v6113
        %v7045 = vunpack.c.l.s4 1983009808
        %v7046 = vunpack.c.0.s8 %v7045
        %v7047 = vlaneseq
        %v7048 = vshrl.u32 %v7047, 7
        %v7049 = vsub.s32 %v7046, %v7048
        %v7050 = vrot.slane %v7042, %v7049
        %v7052 = vunpack.c.l.s4 1983009808
        %v7053 = vunpack.c.0.s8 %v7052
        %v7054 = vlaneseq
        %v7055 = vshrl.u32 %v7054, 7
        %v7056 = vsub.s32 %v7053, %v7055
        %v7057 = vrot.slane %v7043, %v7056
        %v7058 = vcombine.low %v6130, %v6140
        %v7059 = vcombine.high %v6130, %v6140
        %v7061 = vunpack.c.l.s4 1983009808
        %v7062 = vunpack.c.0.s8 %v7061
        %v7063 = vlaneseq
        %v7064 = vshrl.u32 %v7063, 7
        %v7065 = vsub.s32 %v7062, %v7064
        %v7066 = vrot.slane %v7058, %v7065
        %v7068 = vunpack.c.l.s4 1983009808
        %v7069 = vunpack.c.0.s8 %v7068
        %v7070 = vlaneseq
        %v7071 = vshrl.u32 %v7070, 7
        %v7072 = vsub.s32 %v7069, %v7071
        %v7073 = vrot.slane %v7059, %v7072
        %v7074 = vcombine.low %v6135, %v6145
        %v7075 = vcombine.high %v6135, %v6145
        %v7077 = vunpack.c.l.s4 1983009808
        %v7078 = vunpack.c.0.s8 %v7077
        %v7079 = vlaneseq
        %v7080 = vshrl.u32 %v7079, 7
        %v7081 = vsub.s32 %v7078, %v7080
        %v7082 = vrot.slane %v7074, %v7081
        %v7084 = vunpack.c.l.s4 1983009808
        %v7085 = vunpack.c.0.s8 %v7084
        %v7086 = vlaneseq
        %v7087 = vshrl.u32 %v7086, 7
        %v7088 = vsub.s32 %v7085, %v7087
        %v7089 = vrot.slane %v7075, %v7088
        %v7090 = vcombine.low %v7034, %v7050
        %v7091 = vcombine.high %v7034, %v7050
        %v7093 = vunpack.c.l.s4 1934713408
        %v7094 = vunpack.c.0.s8 %v7093
        %v7095 = vlaneseq
        %v7096 = vshrl.u32 %v7095, 7
        %v7097 = vsub.s32 %v7094, %v7096
        %v7098 = vrot.slane %v7090, %v7097
        %v7100 = vunpack.c.l.s4 1934713408
        %v7101 = vunpack.c.0.s8 %v7100
        %v7102 = vlaneseq
        %v7103 = vshrl.u32 %v7102, 7
        %v7104 = vsub.s32 %v7101, %v7103
        %v7105 = vrot.slane %v7091, %v7104
        %v7106 = vcombine.low %v7041, %v7057
        %v7107 = vcombine.high %v7041, %v7057
        %v7109 = vunpack.c.l.s4 1934713408
        %v7110 = vunpack.c.0.s8 %v7109
        %v7111 = vlaneseq
        %v7112 = vshrl.u32 %v7111, 7
        %v7113 = vsub.s32 %v7110, %v7112
        %v7114 = vrot.slane %v7106, %v7113
        %v7116 = vunpack.c.l.s4 1934713408
        %v7117 = vunpack.c.0.s8 %v7116
        %v7118 = vlaneseq
        %v7119 = vshrl.u32 %v7118, 7
        %v7120 = vsub.s32 %v7117, %v7119
        %v7121 = vrot.slane %v7107, %v7120
        %v7122 = vcombine.low %v7066, %v7082
        %v7123 = vcombine.high %v7066, %v7082
        %v7125 = vunpack.c.l.s4 1934713408
        %v7126 = vunpack.c.0.s8 %v7125
        %v7127 = vlaneseq
        %v7128 = vshrl.u32 %v7127, 7
        %v7129 = vsub.s32 %v7126, %v7128
        %v7130 = vrot.slane %v7122, %v7129
        %v7132 = vunpack.c.l.s4 1934713408
        %v7133 = vunpack.c.0.s8 %v7132
        %v7134 = vlaneseq
        %v7135 = vshrl.u32 %v7134, 7
        %v7136 = vsub.s32 %v7133, %v7135
        %v7137 = vrot.slane %v7123, %v7136
        %v7138 = vcombine.low %v7073, %v7089
        %v7139 = vcombine.high %v7073, %v7089
        %v7141 = vunpack.c.l.s4 1934713408
        %v7142 = vunpack.c.0.s8 %v7141
        %v7143 = vlaneseq
        %v7144 = vshrl.u32 %v7143, 7
        %v7145 = vsub.s32 %v7142, %v7144
        %v7146 = vrot.slane %v7138, %v7145
        %v7148 = vunpack.c.l.s4 1934713408
        %v7149 = vunpack.c.0.s8 %v7148
        %v7150 = vlaneseq
        %v7151 = vshrl.u32 %v7150, 7
        %v7152 = vsub.s32 %v7149, %v7151
        %v7153 = vrot.slane %v7139, %v7152
        %v7154 = vcombine.low %v7098, %v7130
        %v7155 = vcombine.high %v7098, %v7130
        %v7156 = vcombine.low %v7105, %v7137
        %v7157 = vcombine.high %v7105, %v7137
        %v7158 = vcombine.low %v7114, %v7146
        %v7159 = vcombine.high %v7114, %v7146
        %v7160 = vcombine.low %v7121, %v7153
        %v7161 = vcombine.high %v7121, %v7153
        %v7162 = vcombine.low %v6157, %v6165
        %v7163 = vcombine.high %v6157, %v6165
        %v7165 = vunpack.c.l.s4 1983009808
        %v7166 = vunpack.c.0.s8 %v7165
        %v7167 = vlaneseq
        %v7168 = vshrl.u32 %v7167, 7
        %v7169 = vsub.s32 %v7166, %v7168
        %v7170 = vrot.slane %v7162, %v7169
        %v7172 = vunpack.c.l.s4 1983009808
        %v7173 = vunpack.c.0.s8 %v7172
        %v7174 = vlaneseq
        %v7175 = vshrl.u32 %v7174, 7
        %v7176 = vsub.s32 %v7173, %v7175
        %v7177 = vrot.slane %v7163, %v7176
        %v7178 = vcombine.low %v6161, %v6169
        %v7179 = vcombine.high %v6161, %v6169
        %v7181 = vunpack.c.l.s4 1983009808
        %v7182 = vunpack.c.0.s8 %v7181
        %v7183 = vlaneseq
        %v7184 = vshrl.u32 %v7183, 7
        %v7185 = vsub.s32 %v7182, %v7184
        %v7186 = vrot.slane %v7178, %v7185
        %v7188 = vunpack.c.l.s4 1983009808
        %v7189 = vunpack.c.0.s8 %v7188
        %v7190 = vlaneseq
        %v7191 = vshrl.u32 %v7190, 7
        %v7192 = vsub.s32 %v7189, %v7191
        %v7193 = vrot.slane %v7179, %v7192
        %v7194 = vcombine.low %v6181, %v6189
        %v7195 = vcombine.high %v6181, %v6189
        %v7197 = vunpack.c.l.s4 1983009808
        %v7198 = vunpack.c.0.s8 %v7197
        %v7199 = vlaneseq
        %v7200 = vshrl.u32 %v7199, 7
        %v7201 = vsub.s32 %v7198, %v7200
        %v7202 = vrot.slane %v7194, %v7201
        %v7204 = vunpack.c.l.s4 1983009808
        %v7205 = vunpack.c.0.s8 %v7204
        %v7206 = vlaneseq
        %v7207 = vshrl.u32 %v7206, 7
        %v7208 = vsub.s32 %v7205, %v7207
        %v7209 = vrot.slane %v7195, %v7208
        %v7210 = vcombine.low %v6185, %v6193
        %v7211 = vcombine.high %v6185, %v6193
        %v7213 = vunpack.c.l.s4 1983009808
        %v7214 = vunpack.c.0.s8 %v7213
        %v7215 = vlaneseq
        %v7216 = vshrl.u32 %v7215, 7
        %v7217 = vsub.s32 %v7214, %v7216
        %v7218 = vrot.slane %v7210, %v7217
        %v7220 = vunpack.c.l.s4 1983009808
        %v7221 = vunpack.c.0.s8 %v7220
        %v7222 = vlaneseq
        %v7223 = vshrl.u32 %v7222, 7
        %v7224 = vsub.s32 %v7221, %v7223
        %v7225 = vrot.slane %v7211, %v7224
        %v7226 = vcombine.low %v7170, %v7186
        %v7227 = vcombine.high %v7170, %v7186
        %v7229 = vunpack.c.l.s4 1934713408
        %v7230 = vunpack.c.0.s8 %v7229
        %v7231 = vlaneseq
        %v7232 = vshrl.u32 %v7231, 7
        %v7233 = vsub.s32 %v7230, %v7232
        %v7234 = vrot.slane %v7226, %v7233
        %v7236 = vunpack.c.l.s4 1934713408
        %v7237 = vunpack.c.0.s8 %v7236
        %v7238 = vlaneseq
        %v7239 = vshrl.u32 %v7238, 7
        %v7240 = vsub.s32 %v7237, %v7239
        %v7241 = vrot.slane %v7227, %v7240
        %v7242 = vcombine.low %v7177, %v7193
        %v7243 = vcombine.high %v7177, %v7193
        %v7245 = vunpack.c.l.s4 1934713408
        %v7246 = vunpack.c.0.s8 %v7245
        %v7247 = vlaneseq
        %v7248 = vshrl.u32 %v7247, 7
        %v7249 = vsub.s32 %v7246, %v7248
        %v7250 = vrot.slane %v7242, %v7249
        %v7252 = vunpack.c.l.s4 1934713408
        %v7253 = vunpack.c.0.s8 %v7252
        %v7254 = vlaneseq
        %v7255 = vshrl.u32 %v7254, 7
        %v7256 = vsub.s32 %v7253, %v7255
        %v7257 = vrot.slane %v7243, %v7256
        %v7258 = vcombine.low %v7202, %v7218
        %v7259 = vcombine.high %v7202, %v7218
        %v7261 = vunpack.c.l.s4 1934713408
        %v7262 = vunpack.c.0.s8 %v7261
        %v7263 = vlaneseq
        %v7264 = vshrl.u32 %v7263, 7
        %v7265 = vsub.s32 %v7262, %v7264
        %v7266 = vrot.slane %v7258, %v7265
        %v7268 = vunpack.c.l.s4 1934713408
        %v7269 = vunpack.c.0.s8 %v7268
        %v7270 = vlaneseq
        %v7271 = vshrl.u32 %v7270, 7
        %v7272 = vsub.s32 %v7269, %v7271
        %v7273 = vrot.slane %v7259, %v7272
        %v7274 = vcombine.low %v7209, %v7225
        %v7275 = vcombine.high %v7209, %v7225
        %v7277 = vunpack.c.l.s4 1934713408
        %v7278 = vunpack.c.0.s8 %v7277
        %v7279 = vlaneseq
        %v7280 = vshrl.u32 %v7279, 7
        %v7281 = vsub.s32 %v7278, %v7280
        %v7282 = vrot.slane %v7274, %v7281
        %v7284 = vunpack.c.l.s4 1934713408
        %v7285 = vunpack.c.0.s8 %v7284
        %v7286 = vlaneseq
        %v7287 = vshrl.u32 %v7286, 7
        %v7288 = vsub.s32 %v7285, %v7287
        %v7289 = vrot.slane %v7275, %v7288
        %v7290 = vcombine.low %v7234, %v7266
        %v7291 = vcombine.high %v7234, %v7266
        %v7292 = vcombine.low %v7241, %v7273
        %v7293 = vcombine.high %v7241, %v7273
        %v7294 = vcombine.low %v7250, %v7282
        %v7295 = vcombine.high %v7250, %v7282
        %v7296 = vcombine.low %v7257, %v7289
        %v7297 = vcombine.high %v7257, %v7289
        %v7298 = vcombine.low %v6206, %v6216
        %v7299 = vcombine.high %v6206, %v6216
        %v7301 = vunpack.c.l.s4 1983009808
        %v7302 = vunpack.c.0.s8 %v7301
        %v7303 = vlaneseq
        %v7304 = vshrl.u32 %v7303, 7
        %v7305 = vsub.s32 %v7302, %v7304
        %v7306 = vrot.slane %v7298, %v7305
        %v7308 = vunpack.c.l.s4 1983009808
        %v7309 = vunpack.c.0.s8 %v7308
        %v7310 = vlaneseq
        %v7311 = vshrl.u32 %v7310, 7
        %v7312 = vsub.s32 %v7309, %v7311
        %v7313 = vrot.slane %v7299, %v7312
        %v7314 = vcombine.low %v6211, %v6221
        %v7315 = vcombine.high %v6211, %v6221
        %v7317 = vunpack.c.l.s4 1983009808
        %v7318 = vunpack.c.0.s8 %v7317
        %v7319 = vlaneseq
        %v7320 = vshrl.u32 %v7319, 7
        %v7321 = vsub.s32 %v7318, %v7320
        %v7322 = vrot.slane %v7314, %v7321
        %v7324 = vunpack.c.l.s4 1983009808
        %v7325 = vunpack.c.0.s8 %v7324
        %v7326 = vlaneseq
        %v7327 = vshrl.u32 %v7326, 7
        %v7328 = vsub.s32 %v7325, %v7327
        %v7329 = vrot.slane %v7315, %v7328
        %v7330 = vcombine.low %v6233, %v6241
        %v7331 = vcombine.high %v6233, %v6241
        %v7333 = vunpack.c.l.s4 1983009808
        %v7334 = vunpack.c.0.s8 %v7333
        %v7335 = vlaneseq
        %v7336 = vshrl.u32 %v7335, 7
        %v7337 = vsub.s32 %v7334, %v7336
        %v7338 = vrot.slane %v7330, %v7337
        %v7340 = vunpack.c.l.s4 1983009808
        %v7341 = vunpack.c.0.s8 %v7340
        %v7342 = vlaneseq
        %v7343 = vshrl.u32 %v7342, 7
        %v7344 = vsub.s32 %v7341, %v7343
        %v7345 = vrot.slane %v7331, %v7344
        %v7346 = vcombine.low %v6237, %v6245
        %v7347 = vcombine.high %v6237, %v6245
        %v7349 = vunpack.c.l.s4 1983009808
        %v7350 = vunpack.c.0.s8 %v7349
        %v7351 = vlaneseq
        %v7352 = vshrl.u32 %v7351, 7
        %v7353 = vsub.s32 %v7350, %v7352
        %v7354 = vrot.slane %v7346, %v7353
        %v7356 = vunpack.c.l.s4 1983009808
        %v7357 = vunpack.c.0.s8 %v7356
        %v7358 = vlaneseq
        %v7359 = vshrl.u32 %v7358, 7
        %v7360 = vsub.s32 %v7357, %v7359
        %v7361 = vrot.slane %v7347, %v7360
        %v7362 = vcombine.low %v7306, %v7322
        %v7363 = vcombine.high %v7306, %v7322
        %v7365 = vunpack.c.l.s4 1934713408
        %v7366 = vunpack.c.0.s8 %v7365
        %v7367 = vlaneseq
        %v7368 = vshrl.u32 %v7367, 7
        %v7369 = vsub.s32 %v7366, %v7368
        %v7370 = vrot.slane %v7362, %v7369
        %v7372 = vunpack.c.l.s4 1934713408
        %v7373 = vunpack.c.0.s8 %v7372
        %v7374 = vlaneseq
        %v7375 = vshrl.u32 %v7374, 7
        %v7376 = vsub.s32 %v7373, %v7375
        %v7377 = vrot.slane %v7363, %v7376
        %v7378 = vcombine.low %v7313, %v7329
        %v7379 = vcombine.high %v7313, %v7329
        %v7381 = vunpack.c.l.s4 1934713408
        %v7382 = vunpack.c.0.s8 %v7381
        %v7383 = vlaneseq
        %v7384 = vshrl.u32 %v7383, 7
        %v7385 = vsub.s32 %v7382, %v7384
        %v7386 = vrot.slane %v7378, %v7385
        %v7388 = vunpack.c.l.s4 1934713408
        %v7389 = vunpack.c.0.s8 %v7388
        %v7390 = vlaneseq
        %v7391 = vshrl.u32 %v7390, 7
        %v7392 = vsub.s32 %v7389, %v7391
        %v7393 = vrot.slane %v7379, %v7392
        %v7394 = vcombine.low %v7338, %v7354
        %v7395 = vcombine.high %v7338, %v7354
        %v7397 = vunpack.c.l.s4 1934713408
        %v7398 = vunpack.c.0.s8 %v7397
        %v7399 = vlaneseq
        %v7400 = vshrl.u32 %v7399, 7
        %v7401 = vsub.s32 %v7398, %v7400
        %v7402 = vrot.slane %v7394, %v7401
        %v7404 = vunpack.c.l.s4 1934713408
        %v7405 = vunpack.c.0.s8 %v7404
        %v7406 = vlaneseq
        %v7407 = vshrl.u32 %v7406, 7
        %v7408 = vsub.s32 %v7405, %v7407
        %v7409 = vrot.slane %v7395, %v7408
        %v7410 = vcombine.low %v7345, %v7361
        %v7411 = vcombine.high %v7345, %v7361
        %v7413 = vunpack.c.l.s4 1934713408
        %v7414 = vunpack.c.0.s8 %v7413
        %v7415 = vlaneseq
        %v7416 = vshrl.u32 %v7415, 7
        %v7417 = vsub.s32 %v7414, %v7416
        %v7418 = vrot.slane %v7410, %v7417
        %v7420 = vunpack.c.l.s4 1934713408
        %v7421 = vunpack.c.0.s8 %v7420
        %v7422 = vlaneseq
        %v7423 = vshrl.u32 %v7422, 7
        %v7424 = vsub.s32 %v7421, %v7423
        %v7425 = vrot.slane %v7411, %v7424
        %v7426 = vcombine.low %v7370, %v7402
        %v7427 = vcombine.high %v7370, %v7402
        %v7428 = vcombine.low %v7377, %v7409
        %v7429 = vcombine.high %v7377, %v7409
        %v7430 = vcombine.low %v7386, %v7418
        %v7431 = vcombine.high %v7386, %v7418
        %v7432 = vcombine.low %v7393, %v7425
        %v7433 = vcombine.high %v7393, %v7425
        %v7434 = vcombine.low %v6257, %v6265
        %v7435 = vcombine.high %v6257, %v6265
        %v7437 = vunpack.c.l.s4 1983009808
        %v7438 = vunpack.c.0.s8 %v7437
        %v7439 = vlaneseq
        %v7440 = vshrl.u32 %v7439, 7
        %v7441 = vsub.s32 %v7438, %v7440
        %v7442 = vrot.slane %v7434, %v7441
        %v7444 = vunpack.c.l.s4 1983009808
        %v7445 = vunpack.c.0.s8 %v7444
        %v7446 = vlaneseq
        %v7447 = vshrl.u32 %v7446, 7
        %v7448 = vsub.s32 %v7445, %v7447
        %v7449 = vrot.slane %v7435, %v7448
        %v7450 = vcombine.low %v6261, %v6269
        %v7451 = vcombine.high %v6261, %v6269
        %v7453 = vunpack.c.l.s4 1983009808
        %v7454 = vunpack.c.0.s8 %v7453
        %v7455 = vlaneseq
        %v7456 = vshrl.u32 %v7455, 7
        %v7457 = vsub.s32 %v7454, %v7456
        %v7458 = vrot.slane %v7450, %v7457
        %v7460 = vunpack.c.l.s4 1983009808
        %v7461 = vunpack.c.0.s8 %v7460
        %v7462 = vlaneseq
        %v7463 = vshrl.u32 %v7462, 7
        %v7464 = vsub.s32 %v7461, %v7463
        %v7465 = vrot.slane %v7451, %v7464
        %v7466 = vcombine.low %v7442, %v7458
        %v7467 = vcombine.high %v7442, %v7458
        %v7469 = vunpack.c.l.s4 1934713408
        %v7470 = vunpack.c.0.s8 %v7469
        %v7471 = vlaneseq
        %v7472 = vshrl.u32 %v7471, 7
        %v7473 = vsub.s32 %v7470, %v7472
        %v7474 = vrot.slane %v7466, %v7473
        %v7476 = vunpack.c.l.s4 1934713408
        %v7477 = vunpack.c.0.s8 %v7476
        %v7478 = vlaneseq
        %v7479 = vshrl.u32 %v7478, 7
        %v7480 = vsub.s32 %v7477, %v7479
        %v7481 = vrot.slane %v7467, %v7480
        %v7482 = vcombine.low %v7449, %v7465
        %v7483 = vcombine.high %v7449, %v7465
        %v7485 = vunpack.c.l.s4 1934713408
        %v7486 = vunpack.c.0.s8 %v7485
        %v7487 = vlaneseq
        %v7488 = vshrl.u32 %v7487, 7
        %v7489 = vsub.s32 %v7486, %v7488
        %v7490 = vrot.slane %v7482, %v7489
        %v7492 = vunpack.c.l.s4 1934713408
        %v7493 = vunpack.c.0.s8 %v7492
        %v7494 = vlaneseq
        %v7495 = vshrl.u32 %v7494, 7
        %v7496 = vsub.s32 %v7493, %v7495
        %v7497 = vrot.slane %v7483, %v7496
        %v7498 = vcombine.high %v7474, 0.0
        %v7499 = vcombine.high %v7481, 0.0
        %v7500 = vcombine.high %v7490, 0.0
        %v7501 = vcombine.high %v7497, 0.0
        %7507 = vrot.lane.b32.xlu0 %v6407, 16
        %v7508 = vpop.permute.xlu0 %7507
        %7509 = vrot.lane.b32.xlu0 %v6543, 16
        %v7510 = vpop.permute.xlu0 %7509
        %7511 = vrot.lane.b32.xlu0 %v6679, 16
        %v7512 = vpop.permute.xlu0 %7511
        %7513 = vrot.lane.b32.xlu0 %v6815, 16
        %v7514 = vpop.permute.xlu0 %7513
        %7515 = vrot.lane.b32.xlu0 %v6886, 16
        %v7516 = vpop.permute.xlu0 %7515
        %7527 = vrot.lane.b32.xlu0 %v6408, 32
        %v7528 = vpop.permute.xlu0 %7527
        %7529 = vrot.lane.b32.xlu0 %v6544, 32
        %v7530 = vpop.permute.xlu0 %7529
        %7531 = vrot.lane.b32.xlu0 %v6680, 32
        %v7532 = vpop.permute.xlu0 %7531
        %7533 = vrot.lane.b32.xlu0 %v6816, 32
        %v7534 = vpop.permute.xlu0 %7533
        %7535 = vrot.lane.b32.xlu0 %v6869, 32
        %v7536 = vpop.permute.xlu0 %7535
        %7547 = vrot.lane.b32.xlu0 %v6409, 48
        %v7548 = vpop.permute.xlu0 %7547
        %7549 = vrot.lane.b32.xlu0 %v6545, 48
        %v7550 = vpop.permute.xlu0 %7549
        %7551 = vrot.lane.b32.xlu0 %v6681, 48
        %v7552 = vpop.permute.xlu0 %7551
        %7553 = vrot.lane.b32.xlu0 %v6817, 48
        %v7554 = vpop.permute.xlu0 %7553
        %7555 = vrot.lane.b32.xlu0 %v6887, 48
        %v7556 = vpop.permute.xlu0 %7555
        %7567 = vrot.lane.b32.xlu0 %v6410, 64
        %v7568 = vpop.permute.xlu0 %7567
        %7569 = vrot.lane.b32.xlu0 %v6546, 64
        %v7570 = vpop.permute.xlu0 %7569
        %7571 = vrot.lane.b32.xlu0 %v6682, 64
        %v7572 = vpop.permute.xlu0 %7571
        %7573 = vrot.lane.b32.xlu0 %v6818, 64
        %v7574 = vpop.permute.xlu0 %7573
        %7575 = vrot.lane.b32.xlu0 %v6878, 64
        %v7576 = vpop.permute.xlu0 %7575
        %7587 = vrot.lane.b32.xlu0 %v6411, 80
        %v7588 = vpop.permute.xlu0 %7587
        %7589 = vrot.lane.b32.xlu0 %v6547, 80
        %v7590 = vpop.permute.xlu0 %7589
        %7591 = vrot.lane.b32.xlu0 %v6683, 80
        %v7592 = vpop.permute.xlu0 %7591
        %7593 = vrot.lane.b32.xlu0 %v6819, 80
        %v7594 = vpop.permute.xlu0 %7593
        %7595 = vrot.lane.b32.xlu0 %v6888, 80
        %v7596 = vpop.permute.xlu0 %7595
        %7607 = vrot.lane.b32.xlu0 %v6412, 96
        %v7608 = vpop.permute.xlu0 %7607
        %7609 = vrot.lane.b32.xlu0 %v6548, 96
        %v7610 = vpop.permute.xlu0 %7609
        %7611 = vrot.lane.b32.xlu0 %v6684, 96
        %v7612 = vpop.permute.xlu0 %7611
        %7613 = vrot.lane.b32.xlu0 %v6820, 96
        %v7614 = vpop.permute.xlu0 %7613
        %7615 = vrot.lane.b32.xlu0 %v6885, 96
        %v7616 = vpop.permute.xlu0 %7615
        %7627 = vrot.lane.b32.xlu0 %v6413, 112
        %v7628 = vpop.permute.xlu0 %7627
        %7629 = vrot.lane.b32.xlu0 %v6549, 112
        %v7630 = vpop.permute.xlu0 %7629
        %7631 = vrot.lane.b32.xlu0 %v6685, 112
        %v7632 = vpop.permute.xlu0 %7631
        %7633 = vrot.lane.b32.xlu0 %v6821, 112
        %v7634 = vpop.permute.xlu0 %7633
        %7635 = vrot.lane.b32.xlu0 %v6889, 112
        %v7636 = vpop.permute.xlu0 %7635
        %7647 = vrot.lane.b32.xlu0 %v7019, 16
        %v7648 = vpop.permute.xlu0 %7647
        %7649 = vrot.lane.b32.xlu0 %v7155, 16
        %v7650 = vpop.permute.xlu0 %7649
        %7651 = vrot.lane.b32.xlu0 %v7291, 16
        %v7652 = vpop.permute.xlu0 %7651
        %7653 = vrot.lane.b32.xlu0 %v7427, 16
        %v7654 = vpop.permute.xlu0 %7653
        %7655 = vrot.lane.b32.xlu0 %v7498, 16
        %v7656 = vpop.permute.xlu0 %7655
        %7667 = vrot.lane.b32.xlu0 %v7020, 32
        %v7668 = vpop.permute.xlu0 %7667
        %7669 = vrot.lane.b32.xlu0 %v7156, 32
        %v7670 = vpop.permute.xlu0 %7669
        %7671 = vrot.lane.b32.xlu0 %v7292, 32
        %v7672 = vpop.permute.xlu0 %7671
        %7673 = vrot.lane.b32.xlu0 %v7428, 32
        %v7674 = vpop.permute.xlu0 %7673
        %7675 = vrot.lane.b32.xlu0 %v7481, 32
        %v7676 = vpop.permute.xlu0 %7675
        %7687 = vrot.lane.b32.xlu0 %v7021, 48
        %v7688 = vpop.permute.xlu0 %7687
        %7689 = vrot.lane.b32.xlu0 %v7157, 48
        %v7690 = vpop.permute.xlu0 %7689
        %7691 = vrot.lane.b32.xlu0 %v7293, 48
        %v7692 = vpop.permute.xlu0 %7691
        %7693 = vrot.lane.b32.xlu0 %v7429, 48
        %v7694 = vpop.permute.xlu0 %7693
        %7695 = vrot.lane.b32.xlu0 %v7499, 48
        %v7696 = vpop.permute.xlu0 %7695
        %7707 = vrot.lane.b32.xlu0 %v7022, 64
        %v7708 = vpop.permute.xlu0 %7707
        %7709 = vrot.lane.b32.xlu0 %v7158, 64
        %v7710 = vpop.permute.xlu0 %7709
        %7711 = vrot.lane.b32.xlu0 %v7294, 64
        %v7712 = vpop.permute.xlu0 %7711
        %7713 = vrot.lane.b32.xlu0 %v7430, 64
        %v7714 = vpop.permute.xlu0 %7713
        %7715 = vrot.lane.b32.xlu0 %v7490, 64
        %v7716 = vpop.permute.xlu0 %7715
        %7727 = vrot.lane.b32.xlu0 %v7023, 80
        %v7728 = vpop.permute.xlu0 %7727
        %7729 = vrot.lane.b32.xlu0 %v7159, 80
        %v7730 = vpop.permute.xlu0 %7729
        %7731 = vrot.lane.b32.xlu0 %v7295, 80
        %v7732 = vpop.permute.xlu0 %7731
        %7733 = vrot.lane.b32.xlu0 %v7431, 80
        %v7734 = vpop.permute.xlu0 %7733
        %7735 = vrot.lane.b32.xlu0 %v7500, 80
        %v7736 = vpop.permute.xlu0 %7735
        %7747 = vrot.lane.b32.xlu0 %v7024, 96
        %v7748 = vpop.permute.xlu0 %7747
        %7749 = vrot.lane.b32.xlu0 %v7160, 96
        %v7750 = vpop.permute.xlu0 %7749
        %7751 = vrot.lane.b32.xlu0 %v7296, 96
        %v7752 = vpop.permute.xlu0 %7751
        %7753 = vrot.lane.b32.xlu0 %v7432, 96
        %v7754 = vpop.permute.xlu0 %7753
        %7755 = vrot.lane.b32.xlu0 %v7497, 96
        %v7756 = vpop.permute.xlu0 %7755
        %7767 = vrot.lane.b32.xlu0 %v7025, 112
        %v7768 = vpop.permute.xlu0 %7767
        %7769 = vrot.lane.b32.xlu0 %v7161, 112
        %v7770 = vpop.permute.xlu0 %7769
        %7771 = vrot.lane.b32.xlu0 %v7297, 112
        %v7772 = vpop.permute.xlu0 %7771
        %7773 = vrot.lane.b32.xlu0 %v7433, 112
        %v7774 = vpop.permute.xlu0 %7773
        %7775 = vrot.lane.b32.xlu0 %v7501, 112
        %v7776 = vpop.permute.xlu0 %7775
        %v7782 = vsel %vm2078, %v6406, %v7508
        %v7783 = vsel %vm2078, %v6542, %v7510
        %v7784 = vsel %vm2078, %v6678, %v7512
        %v7785 = vsel %vm2078, %v6814, %v7514
        %v7786 = vsel %vm2078, %v6862, %v7516
        %v7787 = vsel %vm2084, %v7782, %v7528
        %v7788 = vsel %vm2084, %v7783, %v7530
        %v7789 = vsel %vm2084, %v7784, %v7532
        %v7790 = vsel %vm2084, %v7785, %v7534
        %v7791 = vsel %vm2084, %v7786, %v7536
        %v7792 = vsel %vm2090, %v7787, %v7548
        %v7793 = vsel %vm2090, %v7788, %v7550
        %v7794 = vsel %vm2090, %v7789, %v7552
        %v7795 = vsel %vm2090, %v7790, %v7554
        %v7796 = vsel %vm2090, %v7791, %v7556
        %v7797 = vsel %vm2096, %v7792, %v7568
        %v7798 = vsel %vm2096, %v7793, %v7570
        %v7799 = vsel %vm2096, %v7794, %v7572
        %v7800 = vsel %vm2096, %v7795, %v7574
        %v7801 = vsel %vm2096, %v7796, %v7576
        %v7802 = vsel %vm2102, %v7797, %v7588
        %v7803 = vsel %vm2102, %v7798, %v7590
        %v7804 = vsel %vm2102, %v7799, %v7592
        %v7805 = vsel %vm2102, %v7800, %v7594
        %v7806 = vsel %vm2102, %v7801, %v7596
        %v7807 = vsel %vm2108, %v7802, %v7608
        %v7808 = vsel %vm2108, %v7803, %v7610
        %v7809 = vsel %vm2108, %v7804, %v7612
        %v7810 = vsel %vm2108, %v7805, %v7614
        %v7811 = vsel %vm2108, %v7806, %v7616
        %v7812 = vsel %vm2114, %v7807, %v7628
        %v7813 = vsel %vm2114, %v7808, %v7630
        %v7814 = vsel %vm2114, %v7809, %v7632
        %v7815 = vsel %vm2114, %v7810, %v7634
        %v7816 = vsel %vm2114, %v7811, %v7636
        %v7817 = vsel %vm2078, %v7018, %v7648
        %v7818 = vsel %vm2078, %v7154, %v7650
        %v7819 = vsel %vm2078, %v7290, %v7652
        %v7820 = vsel %vm2078, %v7426, %v7654
        %v7821 = vsel %vm2078, %v7474, %v7656
        %v7822 = vsel %vm2084, %v7817, %v7668
        %v7823 = vsel %vm2084, %v7818, %v7670
        %v7824 = vsel %vm2084, %v7819, %v7672
        %v7825 = vsel %vm2084, %v7820, %v7674
        %v7826 = vsel %vm2084, %v7821, %v7676
        %v7827 = vsel %vm2090, %v7822, %v7688
        %v7828 = vsel %vm2090, %v7823, %v7690
        %v7829 = vsel %vm2090, %v7824, %v7692
        %v7830 = vsel %vm2090, %v7825, %v7694
        %v7831 = vsel %vm2090, %v7826, %v7696
        %v7832 = vsel %vm2096, %v7827, %v7708
        %v7833 = vsel %vm2096, %v7828, %v7710
        %v7834 = vsel %vm2096, %v7829, %v7712
        %v7835 = vsel %vm2096, %v7830, %v7714
        %v7836 = vsel %vm2096, %v7831, %v7716
        %v7837 = vsel %vm2102, %v7832, %v7728
        %v7838 = vsel %vm2102, %v7833, %v7730
        %v7839 = vsel %vm2102, %v7834, %v7732
        %v7840 = vsel %vm2102, %v7835, %v7734
        %v7841 = vsel %vm2102, %v7836, %v7736
        %v7842 = vsel %vm2108, %v7837, %v7748
        %v7843 = vsel %vm2108, %v7838, %v7750
        %v7844 = vsel %vm2108, %v7839, %v7752
        %v7845 = vsel %vm2108, %v7840, %v7754
        %v7846 = vsel %vm2108, %v7841, %v7756
        %v7847 = vsel %vm2114, %v7842, %v7768
        %v7848 = vsel %vm2114, %v7843, %v7770
        %v7849 = vsel %vm2114, %v7844, %v7772
        %v7850 = vsel %vm2114, %v7845, %v7774
        %v7851 = vsel %vm2114, %v7846, %v7776
        %s7852 = scalar_lea.vmem %s213, 64 [#allocation2]
        %v7853 = vld [vmem:[%s7852] sm:$0xff]
        %v7854 = vld [vmem:[%s7852 + $0x8] sm:$0xff]
        %v7855 = vld [vmem:[%s7852 + $0x60] sm:$0xff]
        %v7856 = vld [vmem:[%s7852 + $0x68] sm:$0xff]
        %v7857 = vld [vmem:[%s7852 + $0xc0] sm:$0xff]
        %v7858 = vld [vmem:[%s7852 + $0xc8] sm:$0xff]
        %v7859 = vld [vmem:[%s7852 + $0x120] sm:$0xff]
        %v7860 = vld [vmem:[%s7852 + $0x128] sm:$0xff]
        %v7869 = vrot.slane %v7853, 7
        %v7870 = vrot.slane %v7854, 7
        %v7871 = vsel %vm261, %v7869, %v7870
        %v7872 = vrot.slane %v7855, 7
        %v7873 = vrot.slane %v7856, 7
        %v7874 = vsel %vm261, %v7872, %v7873
        %v7875 = vrot.slane %v7857, 7
        %v7876 = vrot.slane %v7858, 7
        %v7877 = vsel %vm261, %v7875, %v7876
        %v7878 = vrot.slane %v7859, 7
        %v7879 = vrot.slane %v7860, 7
        %v7880 = vsel %vm261, %v7878, %v7879
        %v7889 = vsel %vm261, 0.0, %v7869
        %v7890 = vsel %vm261, 0.0, %v7872
        %v7891 = vsel %vm261, 0.0, %v7875
        %v7892 = vsel %vm261, 0.0, %v7878
        %v7893 = vsel %vm261, %v7870, 0.0
        %v7894 = vsel %vm261, %v7873, 0.0
        %v7895 = vsel %vm261, %v7876, 0.0
        %v7896 = vsel %vm261, %v7879, 0.0
        %7905 = vrot.lane.b32.xlu0 %v7889, 1
        %v7906 = vpop.permute.xlu0 %7905
        %7907 = vrot.lane.b32.xlu0 %v7871, 1
        %v7908 = vpop.permute.xlu0 %7907
        %7909 = vrot.lane.b32.xlu0 %v7893, 1
        %v7910 = vpop.permute.xlu0 %7909
        %7911 = vrot.lane.b32.xlu0 %v7890, 1
        %v7912 = vpop.permute.xlu0 %7911
        %7913 = vrot.lane.b32.xlu0 %v7874, 1
        %v7914 = vpop.permute.xlu0 %7913
        %7915 = vrot.lane.b32.xlu0 %v7894, 1
        %v7916 = vpop.permute.xlu0 %7915
        %7917 = vrot.lane.b32.xlu0 %v7891, 1
        %v7918 = vpop.permute.xlu0 %7917
        %7919 = vrot.lane.b32.xlu0 %v7877, 1
        %v7920 = vpop.permute.xlu0 %7919
        %7921 = vrot.lane.b32.xlu0 %v7895, 1
        %v7922 = vpop.permute.xlu0 %7921
        %7923 = vrot.lane.b32.xlu0 %v7892, 1
        %v7924 = vpop.permute.xlu0 %7923
        %7925 = vrot.lane.b32.xlu0 %v7880, 1
        %v7926 = vpop.permute.xlu0 %7925
        %7927 = vrot.lane.b32.xlu0 %v7896, 1
        %v7928 = vpop.permute.xlu0 %7927
        %v7941 = vsel %vm334, 0.0, %v7906
        %v7942 = vsel %vm334, 0.0, %v7908
        %v7943 = vsel %vm334, 0.0, %v7910
        %v7944 = vsel %vm334, 0.0, %v7912
        %v7945 = vsel %vm334, 0.0, %v7914
        %v7946 = vsel %vm334, 0.0, %v7916
        %v7947 = vsel %vm334, 0.0, %v7918
        %v7948 = vsel %vm334, 0.0, %v7920
        %v7949 = vsel %vm334, 0.0, %v7922
        %v7950 = vsel %vm334, 0.0, %v7924
        %v7951 = vsel %vm334, 0.0, %v7926
        %v7952 = vsel %vm334, 0.0, %v7928
        %v7953 = vsel %vm347, %v7941, 0.0
        %v7954 = vsel %vm347, %v7942, 0.0
        %v7955 = vsel %vm347, %v7943, 0.0
        %v7956 = vsel %vm347, %v7944, 0.0
        %v7957 = vsel %vm347, %v7945, 0.0
        %v7958 = vsel %vm347, %v7946, 0.0
        %v7959 = vsel %vm347, %v7947, 0.0
        %v7960 = vsel %vm347, %v7948, 0.0
        %v7961 = vsel %vm347, %v7949, 0.0
        %v7962 = vsel %vm347, %v7950, 0.0
        %v7963 = vsel %vm347, %v7951, 0.0
        %v7964 = vsel %vm347, %v7952, 0.0
        %7973 = vrot.lane.b32.xlu0 %v7953, 127
        %v7974 = vpop.permute.xlu0 %7973
        %7975 = vrot.lane.b32.xlu0 %v7954, 127
        %v7976 = vpop.permute.xlu0 %7975
        %7977 = vrot.lane.b32.xlu0 %v7956, 127
        %v7978 = vpop.permute.xlu0 %7977
        %7979 = vrot.lane.b32.xlu0 %v7957, 127
        %v7980 = vpop.permute.xlu0 %7979
        %7981 = vrot.lane.b32.xlu0 %v7959, 127
        %v7982 = vpop.permute.xlu0 %7981
        %7983 = vrot.lane.b32.xlu0 %v7960, 127
        %v7984 = vpop.permute.xlu0 %7983
        %7985 = vrot.lane.b32.xlu0 %v7962, 127
        %v7986 = vpop.permute.xlu0 %7985
        %7987 = vrot.lane.b32.xlu0 %v7963, 127
        %v7988 = vpop.permute.xlu0 %7987
        %7997 = vrot.lane.b32.xlu0 %v7953, 126
        %v7998 = vpop.permute.xlu0 %7997
        %7999 = vrot.lane.b32.xlu0 %v7954, 126
        %v8000 = vpop.permute.xlu0 %7999
        %8001 = vrot.lane.b32.xlu0 %v7956, 126
        %v8002 = vpop.permute.xlu0 %8001
        %8003 = vrot.lane.b32.xlu0 %v7957, 126
        %v8004 = vpop.permute.xlu0 %8003
        %8005 = vrot.lane.b32.xlu0 %v7959, 126
        %v8006 = vpop.permute.xlu0 %8005
        %8007 = vrot.lane.b32.xlu0 %v7960, 126
        %v8008 = vpop.permute.xlu0 %8007
        %8009 = vrot.lane.b32.xlu0 %v7962, 126
        %v8010 = vpop.permute.xlu0 %8009
        %8011 = vrot.lane.b32.xlu0 %v7963, 126
        %v8012 = vpop.permute.xlu0 %8011
        %v8025 = vrot.slane %v7953, 1
        %v8026 = vrot.slane %v7954, 1
        %v8027 = vsel %vm420, %v8025, %v8026
        %v8028 = vrot.slane %v7955, 1
        %v8029 = vsel %vm420, %v8026, %v8028
        %v8030 = vrot.slane %v7956, 1
        %v8031 = vrot.slane %v7957, 1
        %v8032 = vsel %vm420, %v8030, %v8031
        %v8033 = vrot.slane %v7958, 1
        %v8034 = vsel %vm420, %v8031, %v8033
        %v8035 = vrot.slane %v7959, 1
        %v8036 = vrot.slane %v7960, 1
        %v8037 = vsel %vm420, %v8035, %v8036
        %v8038 = vrot.slane %v7961, 1
        %v8039 = vsel %vm420, %v8036, %v8038
        %v8040 = vrot.slane %v7962, 1
        %v8041 = vrot.slane %v7963, 1
        %v8042 = vsel %vm420, %v8040, %v8041
        %v8043 = vrot.slane %v7964, 1
        %v8044 = vsel %vm420, %v8041, %v8043
        %8053 = vrot.lane.b32.xlu0 %v8027, 127
        %v8054 = vpop.permute.xlu0 %8053
        %8055 = vrot.lane.b32.xlu0 %v8029, 127
        %v8056 = vpop.permute.xlu0 %8055
        %8057 = vrot.lane.b32.xlu0 %v8032, 127
        %v8058 = vpop.permute.xlu0 %8057
        %8059 = vrot.lane.b32.xlu0 %v8034, 127
        %v8060 = vpop.permute.xlu0 %8059
        %8061 = vrot.lane.b32.xlu0 %v8037, 127
        %v8062 = vpop.permute.xlu0 %8061
        %8063 = vrot.lane.b32.xlu0 %v8039, 127
        %v8064 = vpop.permute.xlu0 %8063
        %8065 = vrot.lane.b32.xlu0 %v8042, 127
        %v8066 = vpop.permute.xlu0 %8065
        %8067 = vrot.lane.b32.xlu0 %v8044, 127
        %v8068 = vpop.permute.xlu0 %8067
        %8077 = vrot.lane.b32.xlu0 %v8027, 126
        %v8078 = vpop.permute.xlu0 %8077
        %8079 = vrot.lane.b32.xlu0 %v8029, 126
        %v8080 = vpop.permute.xlu0 %8079
        %8081 = vrot.lane.b32.xlu0 %v8032, 126
        %v8082 = vpop.permute.xlu0 %8081
        %8083 = vrot.lane.b32.xlu0 %v8034, 126
        %v8084 = vpop.permute.xlu0 %8083
        %8085 = vrot.lane.b32.xlu0 %v8037, 126
        %v8086 = vpop.permute.xlu0 %8085
        %8087 = vrot.lane.b32.xlu0 %v8039, 126
        %v8088 = vpop.permute.xlu0 %8087
        %8089 = vrot.lane.b32.xlu0 %v8042, 126
        %v8090 = vpop.permute.xlu0 %8089
        %8091 = vrot.lane.b32.xlu0 %v8044, 126
        %v8092 = vpop.permute.xlu0 %8091
        %v8101 = vrot.slane %v7953, 2
        %v8102 = vrot.slane %v7954, 2
        %v8103 = vsel %vm497, %v8101, %v8102
        %v8104 = vrot.slane %v7955, 2
        %v8105 = vsel %vm497, %v8102, %v8104
        %v8106 = vrot.slane %v7956, 2
        %v8107 = vrot.slane %v7957, 2
        %v8108 = vsel %vm497, %v8106, %v8107
        %v8109 = vrot.slane %v7958, 2
        %v8110 = vsel %vm497, %v8107, %v8109
        %v8111 = vrot.slane %v7959, 2
        %v8112 = vrot.slane %v7960, 2
        %v8113 = vsel %vm497, %v8111, %v8112
        %v8114 = vrot.slane %v7961, 2
        %v8115 = vsel %vm497, %v8112, %v8114
        %v8116 = vrot.slane %v7962, 2
        %v8117 = vrot.slane %v7963, 2
        %v8118 = vsel %vm497, %v8116, %v8117
        %v8119 = vrot.slane %v7964, 2
        %v8120 = vsel %vm497, %v8117, %v8119
        %8129 = vrot.lane.b32.xlu0 %v8103, 127
        %v8130 = vpop.permute.xlu0 %8129
        %8131 = vrot.lane.b32.xlu0 %v8105, 127
        %v8132 = vpop.permute.xlu0 %8131
        %8133 = vrot.lane.b32.xlu0 %v8108, 127
        %v8134 = vpop.permute.xlu0 %8133
        %8135 = vrot.lane.b32.xlu0 %v8110, 127
        %v8136 = vpop.permute.xlu0 %8135
        %8137 = vrot.lane.b32.xlu0 %v8113, 127
        %v8138 = vpop.permute.xlu0 %8137
        %8139 = vrot.lane.b32.xlu0 %v8115, 127
        %v8140 = vpop.permute.xlu0 %8139
        %8141 = vrot.lane.b32.xlu0 %v8118, 127
        %v8142 = vpop.permute.xlu0 %8141
        %8143 = vrot.lane.b32.xlu0 %v8120, 127
        %v8144 = vpop.permute.xlu0 %8143
        %8153 = vrot.lane.b32.xlu0 %v8103, 126
        %v8154 = vpop.permute.xlu0 %8153
        %8155 = vrot.lane.b32.xlu0 %v8105, 126
        %v8156 = vpop.permute.xlu0 %8155
        %8157 = vrot.lane.b32.xlu0 %v8108, 126
        %v8158 = vpop.permute.xlu0 %8157
        %8159 = vrot.lane.b32.xlu0 %v8110, 126
        %v8160 = vpop.permute.xlu0 %8159
        %8161 = vrot.lane.b32.xlu0 %v8113, 126
        %v8162 = vpop.permute.xlu0 %8161
        %8163 = vrot.lane.b32.xlu0 %v8115, 126
        %v8164 = vpop.permute.xlu0 %8163
        %8165 = vrot.lane.b32.xlu0 %v8118, 126
        %v8166 = vpop.permute.xlu0 %8165
        %8167 = vrot.lane.b32.xlu0 %v8120, 126
        %v8168 = vpop.permute.xlu0 %8167
        %v8177 = vcombine.low %v7953, %v7959
        %v8178 = vcombine.high %v7953, %v7959
        %v8180 = vunpack.c.l.s4 1983009808
        %v8181 = vunpack.c.0.s8 %v8180
        %v8182 = vlaneseq
        %v8183 = vshrl.u32 %v8182, 7
        %v8184 = vsub.s32 %v8181, %v8183
        %v8185 = vrot.slane %v8177, %v8184
        %v8187 = vunpack.c.l.s4 1983009808
        %v8188 = vunpack.c.0.s8 %v8187
        %v8189 = vlaneseq
        %v8190 = vshrl.u32 %v8189, 7
        %v8191 = vsub.s32 %v8188, %v8190
        %v8192 = vrot.slane %v8178, %v8191
        %v8193 = vcombine.low %v7956, %v7962
        %v8194 = vcombine.high %v7956, %v7962
        %v8196 = vunpack.c.l.s4 1983009808
        %v8197 = vunpack.c.0.s8 %v8196
        %v8198 = vlaneseq
        %v8199 = vshrl.u32 %v8198, 7
        %v8200 = vsub.s32 %v8197, %v8199
        %v8201 = vrot.slane %v8193, %v8200
        %v8203 = vunpack.c.l.s4 1983009808
        %v8204 = vunpack.c.0.s8 %v8203
        %v8205 = vlaneseq
        %v8206 = vshrl.u32 %v8205, 7
        %v8207 = vsub.s32 %v8204, %v8206
        %v8208 = vrot.slane %v8194, %v8207
        %v8209 = vcombine.low %v7974, %v7982
        %v8210 = vcombine.high %v7974, %v7982
        %v8212 = vunpack.c.l.s4 1983009808
        %v8213 = vunpack.c.0.s8 %v8212
        %v8214 = vlaneseq
        %v8215 = vshrl.u32 %v8214, 7
        %v8216 = vsub.s32 %v8213, %v8215
        %v8217 = vrot.slane %v8209, %v8216
        %v8219 = vunpack.c.l.s4 1983009808
        %v8220 = vunpack.c.0.s8 %v8219
        %v8221 = vlaneseq
        %v8222 = vshrl.u32 %v8221, 7
        %v8223 = vsub.s32 %v8220, %v8222
        %v8224 = vrot.slane %v8210, %v8223
        %v8225 = vcombine.low %v7978, %v7986
        %v8226 = vcombine.high %v7978, %v7986
        %v8228 = vunpack.c.l.s4 1983009808
        %v8229 = vunpack.c.0.s8 %v8228
        %v8230 = vlaneseq
        %v8231 = vshrl.u32 %v8230, 7
        %v8232 = vsub.s32 %v8229, %v8231
        %v8233 = vrot.slane %v8225, %v8232
        %v8235 = vunpack.c.l.s4 1983009808
        %v8236 = vunpack.c.0.s8 %v8235
        %v8237 = vlaneseq
        %v8238 = vshrl.u32 %v8237, 7
        %v8239 = vsub.s32 %v8236, %v8238
        %v8240 = vrot.slane %v8226, %v8239
        %v8241 = vcombine.low %v8185, %v8201
        %v8242 = vcombine.high %v8185, %v8201
        %v8244 = vunpack.c.l.s4 1934713408
        %v8245 = vunpack.c.0.s8 %v8244
        %v8246 = vlaneseq
        %v8247 = vshrl.u32 %v8246, 7
        %v8248 = vsub.s32 %v8245, %v8247
        %v8249 = vrot.slane %v8241, %v8248
        %v8251 = vunpack.c.l.s4 1934713408
        %v8252 = vunpack.c.0.s8 %v8251
        %v8253 = vlaneseq
        %v8254 = vshrl.u32 %v8253, 7
        %v8255 = vsub.s32 %v8252, %v8254
        %v8256 = vrot.slane %v8242, %v8255
        %v8257 = vcombine.low %v8192, %v8208
        %v8258 = vcombine.high %v8192, %v8208
        %v8260 = vunpack.c.l.s4 1934713408
        %v8261 = vunpack.c.0.s8 %v8260
        %v8262 = vlaneseq
        %v8263 = vshrl.u32 %v8262, 7
        %v8264 = vsub.s32 %v8261, %v8263
        %v8265 = vrot.slane %v8257, %v8264
        %v8267 = vunpack.c.l.s4 1934713408
        %v8268 = vunpack.c.0.s8 %v8267
        %v8269 = vlaneseq
        %v8270 = vshrl.u32 %v8269, 7
        %v8271 = vsub.s32 %v8268, %v8270
        %v8272 = vrot.slane %v8258, %v8271
        %v8273 = vcombine.low %v8217, %v8233
        %v8274 = vcombine.high %v8217, %v8233
        %v8276 = vunpack.c.l.s4 1934713408
        %v8277 = vunpack.c.0.s8 %v8276
        %v8278 = vlaneseq
        %v8279 = vshrl.u32 %v8278, 7
        %v8280 = vsub.s32 %v8277, %v8279
        %v8281 = vrot.slane %v8273, %v8280
        %v8283 = vunpack.c.l.s4 1934713408
        %v8284 = vunpack.c.0.s8 %v8283
        %v8285 = vlaneseq
        %v8286 = vshrl.u32 %v8285, 7
        %v8287 = vsub.s32 %v8284, %v8286
        %v8288 = vrot.slane %v8274, %v8287
        %v8289 = vcombine.low %v8224, %v8240
        %v8290 = vcombine.high %v8224, %v8240
        %v8292 = vunpack.c.l.s4 1934713408
        %v8293 = vunpack.c.0.s8 %v8292
        %v8294 = vlaneseq
        %v8295 = vshrl.u32 %v8294, 7
        %v8296 = vsub.s32 %v8293, %v8295
        %v8297 = vrot.slane %v8289, %v8296
        %v8299 = vunpack.c.l.s4 1934713408
        %v8300 = vunpack.c.0.s8 %v8299
        %v8301 = vlaneseq
        %v8302 = vshrl.u32 %v8301, 7
        %v8303 = vsub.s32 %v8300, %v8302
        %v8304 = vrot.slane %v8290, %v8303
        %v8305 = vcombine.low %v8249, %v8281
        %v8306 = vcombine.high %v8249, %v8281
        %v8307 = vcombine.low %v8256, %v8288
        %v8308 = vcombine.high %v8256, %v8288
        %v8309 = vcombine.low %v8265, %v8297
        %v8310 = vcombine.high %v8265, %v8297
        %v8311 = vcombine.low %v8272, %v8304
        %v8312 = vcombine.high %v8272, %v8304
        %v8313 = vcombine.low %v7998, %v8006
        %v8314 = vcombine.high %v7998, %v8006
        %v8316 = vunpack.c.l.s4 1983009808
        %v8317 = vunpack.c.0.s8 %v8316
        %v8318 = vlaneseq
        %v8319 = vshrl.u32 %v8318, 7
        %v8320 = vsub.s32 %v8317, %v8319
        %v8321 = vrot.slane %v8313, %v8320
        %v8323 = vunpack.c.l.s4 1983009808
        %v8324 = vunpack.c.0.s8 %v8323
        %v8325 = vlaneseq
        %v8326 = vshrl.u32 %v8325, 7
        %v8327 = vsub.s32 %v8324, %v8326
        %v8328 = vrot.slane %v8314, %v8327
        %v8329 = vcombine.low %v8002, %v8010
        %v8330 = vcombine.high %v8002, %v8010
        %v8332 = vunpack.c.l.s4 1983009808
        %v8333 = vunpack.c.0.s8 %v8332
        %v8334 = vlaneseq
        %v8335 = vshrl.u32 %v8334, 7
        %v8336 = vsub.s32 %v8333, %v8335
        %v8337 = vrot.slane %v8329, %v8336
        %v8339 = vunpack.c.l.s4 1983009808
        %v8340 = vunpack.c.0.s8 %v8339
        %v8341 = vlaneseq
        %v8342 = vshrl.u32 %v8341, 7
        %v8343 = vsub.s32 %v8340, %v8342
        %v8344 = vrot.slane %v8330, %v8343
        %v8345 = vcombine.low %v8027, %v8037
        %v8346 = vcombine.high %v8027, %v8037
        %v8348 = vunpack.c.l.s4 1983009808
        %v8349 = vunpack.c.0.s8 %v8348
        %v8350 = vlaneseq
        %v8351 = vshrl.u32 %v8350, 7
        %v8352 = vsub.s32 %v8349, %v8351
        %v8353 = vrot.slane %v8345, %v8352
        %v8355 = vunpack.c.l.s4 1983009808
        %v8356 = vunpack.c.0.s8 %v8355
        %v8357 = vlaneseq
        %v8358 = vshrl.u32 %v8357, 7
        %v8359 = vsub.s32 %v8356, %v8358
        %v8360 = vrot.slane %v8346, %v8359
        %v8361 = vcombine.low %v8032, %v8042
        %v8362 = vcombine.high %v8032, %v8042
        %v8364 = vunpack.c.l.s4 1983009808
        %v8365 = vunpack.c.0.s8 %v8364
        %v8366 = vlaneseq
        %v8367 = vshrl.u32 %v8366, 7
        %v8368 = vsub.s32 %v8365, %v8367
        %v8369 = vrot.slane %v8361, %v8368
        %v8371 = vunpack.c.l.s4 1983009808
        %v8372 = vunpack.c.0.s8 %v8371
        %v8373 = vlaneseq
        %v8374 = vshrl.u32 %v8373, 7
        %v8375 = vsub.s32 %v8372, %v8374
        %v8376 = vrot.slane %v8362, %v8375
        %v8377 = vcombine.low %v8321, %v8337
        %v8378 = vcombine.high %v8321, %v8337
        %v8380 = vunpack.c.l.s4 1934713408
        %v8381 = vunpack.c.0.s8 %v8380
        %v8382 = vlaneseq
        %v8383 = vshrl.u32 %v8382, 7
        %v8384 = vsub.s32 %v8381, %v8383
        %v8385 = vrot.slane %v8377, %v8384
        %v8387 = vunpack.c.l.s4 1934713408
        %v8388 = vunpack.c.0.s8 %v8387
        %v8389 = vlaneseq
        %v8390 = vshrl.u32 %v8389, 7
        %v8391 = vsub.s32 %v8388, %v8390
        %v8392 = vrot.slane %v8378, %v8391
        %v8393 = vcombine.low %v8328, %v8344
        %v8394 = vcombine.high %v8328, %v8344
        %v8396 = vunpack.c.l.s4 1934713408
        %v8397 = vunpack.c.0.s8 %v8396
        %v8398 = vlaneseq
        %v8399 = vshrl.u32 %v8398, 7
        %v8400 = vsub.s32 %v8397, %v8399
        %v8401 = vrot.slane %v8393, %v8400
        %v8403 = vunpack.c.l.s4 1934713408
        %v8404 = vunpack.c.0.s8 %v8403
        %v8405 = vlaneseq
        %v8406 = vshrl.u32 %v8405, 7
        %v8407 = vsub.s32 %v8404, %v8406
        %v8408 = vrot.slane %v8394, %v8407
        %v8409 = vcombine.low %v8353, %v8369
        %v8410 = vcombine.high %v8353, %v8369
        %v8412 = vunpack.c.l.s4 1934713408
        %v8413 = vunpack.c.0.s8 %v8412
        %v8414 = vlaneseq
        %v8415 = vshrl.u32 %v8414, 7
        %v8416 = vsub.s32 %v8413, %v8415
        %v8417 = vrot.slane %v8409, %v8416
        %v8419 = vunpack.c.l.s4 1934713408
        %v8420 = vunpack.c.0.s8 %v8419
        %v8421 = vlaneseq
        %v8422 = vshrl.u32 %v8421, 7
        %v8423 = vsub.s32 %v8420, %v8422
        %v8424 = vrot.slane %v8410, %v8423
        %v8425 = vcombine.low %v8360, %v8376
        %v8426 = vcombine.high %v8360, %v8376
        %v8428 = vunpack.c.l.s4 1934713408
        %v8429 = vunpack.c.0.s8 %v8428
        %v8430 = vlaneseq
        %v8431 = vshrl.u32 %v8430, 7
        %v8432 = vsub.s32 %v8429, %v8431
        %v8433 = vrot.slane %v8425, %v8432
        %v8435 = vunpack.c.l.s4 1934713408
        %v8436 = vunpack.c.0.s8 %v8435
        %v8437 = vlaneseq
        %v8438 = vshrl.u32 %v8437, 7
        %v8439 = vsub.s32 %v8436, %v8438
        %v8440 = vrot.slane %v8426, %v8439
        %v8441 = vcombine.low %v8385, %v8417
        %v8442 = vcombine.high %v8385, %v8417
        %v8443 = vcombine.low %v8392, %v8424
        %v8444 = vcombine.high %v8392, %v8424
        %v8445 = vcombine.low %v8401, %v8433
        %v8446 = vcombine.high %v8401, %v8433
        %v8447 = vcombine.low %v8408, %v8440
        %v8448 = vcombine.high %v8408, %v8440
        %v8449 = vcombine.low %v8054, %v8062
        %v8450 = vcombine.high %v8054, %v8062
        %v8452 = vunpack.c.l.s4 1983009808
        %v8453 = vunpack.c.0.s8 %v8452
        %v8454 = vlaneseq
        %v8455 = vshrl.u32 %v8454, 7
        %v8456 = vsub.s32 %v8453, %v8455
        %v8457 = vrot.slane %v8449, %v8456
        %v8459 = vunpack.c.l.s4 1983009808
        %v8460 = vunpack.c.0.s8 %v8459
        %v8461 = vlaneseq
        %v8462 = vshrl.u32 %v8461, 7
        %v8463 = vsub.s32 %v8460, %v8462
        %v8464 = vrot.slane %v8450, %v8463
        %v8465 = vcombine.low %v8058, %v8066
        %v8466 = vcombine.high %v8058, %v8066
        %v8468 = vunpack.c.l.s4 1983009808
        %v8469 = vunpack.c.0.s8 %v8468
        %v8470 = vlaneseq
        %v8471 = vshrl.u32 %v8470, 7
        %v8472 = vsub.s32 %v8469, %v8471
        %v8473 = vrot.slane %v8465, %v8472
        %v8475 = vunpack.c.l.s4 1983009808
        %v8476 = vunpack.c.0.s8 %v8475
        %v8477 = vlaneseq
        %v8478 = vshrl.u32 %v8477, 7
        %v8479 = vsub.s32 %v8476, %v8478
        %v8480 = vrot.slane %v8466, %v8479
        %v8481 = vcombine.low %v8078, %v8086
        %v8482 = vcombine.high %v8078, %v8086
        %v8484 = vunpack.c.l.s4 1983009808
        %v8485 = vunpack.c.0.s8 %v8484
        %v8486 = vlaneseq
        %v8487 = vshrl.u32 %v8486, 7
        %v8488 = vsub.s32 %v8485, %v8487
        %v8489 = vrot.slane %v8481, %v8488
        %v8491 = vunpack.c.l.s4 1983009808
        %v8492 = vunpack.c.0.s8 %v8491
        %v8493 = vlaneseq
        %v8494 = vshrl.u32 %v8493, 7
        %v8495 = vsub.s32 %v8492, %v8494
        %v8496 = vrot.slane %v8482, %v8495
        %v8497 = vcombine.low %v8082, %v8090
        %v8498 = vcombine.high %v8082, %v8090
        %v8500 = vunpack.c.l.s4 1983009808
        %v8501 = vunpack.c.0.s8 %v8500
        %v8502 = vlaneseq
        %v8503 = vshrl.u32 %v8502, 7
        %v8504 = vsub.s32 %v8501, %v8503
        %v8505 = vrot.slane %v8497, %v8504
        %v8507 = vunpack.c.l.s4 1983009808
        %v8508 = vunpack.c.0.s8 %v8507
        %v8509 = vlaneseq
        %v8510 = vshrl.u32 %v8509, 7
        %v8511 = vsub.s32 %v8508, %v8510
        %v8512 = vrot.slane %v8498, %v8511
        %v8513 = vcombine.low %v8457, %v8473
        %v8514 = vcombine.high %v8457, %v8473
        %v8516 = vunpack.c.l.s4 1934713408
        %v8517 = vunpack.c.0.s8 %v8516
        %v8518 = vlaneseq
        %v8519 = vshrl.u32 %v8518, 7
        %v8520 = vsub.s32 %v8517, %v8519
        %v8521 = vrot.slane %v8513, %v8520
        %v8523 = vunpack.c.l.s4 1934713408
        %v8524 = vunpack.c.0.s8 %v8523
        %v8525 = vlaneseq
        %v8526 = vshrl.u32 %v8525, 7
        %v8527 = vsub.s32 %v8524, %v8526
        %v8528 = vrot.slane %v8514, %v8527
        %v8529 = vcombine.low %v8464, %v8480
        %v8530 = vcombine.high %v8464, %v8480
        %v8532 = vunpack.c.l.s4 1934713408
        %v8533 = vunpack.c.0.s8 %v8532
        %v8534 = vlaneseq
        %v8535 = vshrl.u32 %v8534, 7
        %v8536 = vsub.s32 %v8533, %v8535
        %v8537 = vrot.slane %v8529, %v8536
        %v8539 = vunpack.c.l.s4 1934713408
        %v8540 = vunpack.c.0.s8 %v8539
        %v8541 = vlaneseq
        %v8542 = vshrl.u32 %v8541, 7
        %v8543 = vsub.s32 %v8540, %v8542
        %v8544 = vrot.slane %v8530, %v8543
        %v8545 = vcombine.low %v8489, %v8505
        %v8546 = vcombine.high %v8489, %v8505
        %v8548 = vunpack.c.l.s4 1934713408
        %v8549 = vunpack.c.0.s8 %v8548
        %v8550 = vlaneseq
        %v8551 = vshrl.u32 %v8550, 7
        %v8552 = vsub.s32 %v8549, %v8551
        %v8553 = vrot.slane %v8545, %v8552
        %v8555 = vunpack.c.l.s4 1934713408
        %v8556 = vunpack.c.0.s8 %v8555
        %v8557 = vlaneseq
        %v8558 = vshrl.u32 %v8557, 7
        %v8559 = vsub.s32 %v8556, %v8558
        %v8560 = vrot.slane %v8546, %v8559
        %v8561 = vcombine.low %v8496, %v8512
        %v8562 = vcombine.high %v8496, %v8512
        %v8564 = vunpack.c.l.s4 1934713408
        %v8565 = vunpack.c.0.s8 %v8564
        %v8566 = vlaneseq
        %v8567 = vshrl.u32 %v8566, 7
        %v8568 = vsub.s32 %v8565, %v8567
        %v8569 = vrot.slane %v8561, %v8568
        %v8571 = vunpack.c.l.s4 1934713408
        %v8572 = vunpack.c.0.s8 %v8571
        %v8573 = vlaneseq
        %v8574 = vshrl.u32 %v8573, 7
        %v8575 = vsub.s32 %v8572, %v8574
        %v8576 = vrot.slane %v8562, %v8575
        %v8577 = vcombine.low %v8521, %v8553
        %v8578 = vcombine.high %v8521, %v8553
        %v8579 = vcombine.low %v8528, %v8560
        %v8580 = vcombine.high %v8528, %v8560
        %v8581 = vcombine.low %v8537, %v8569
        %v8582 = vcombine.high %v8537, %v8569
        %v8583 = vcombine.low %v8544, %v8576
        %v8584 = vcombine.high %v8544, %v8576
        %v8585 = vcombine.low %v8103, %v8113
        %v8586 = vcombine.high %v8103, %v8113
        %v8588 = vunpack.c.l.s4 1983009808
        %v8589 = vunpack.c.0.s8 %v8588
        %v8590 = vlaneseq
        %v8591 = vshrl.u32 %v8590, 7
        %v8592 = vsub.s32 %v8589, %v8591
        %v8593 = vrot.slane %v8585, %v8592
        %v8595 = vunpack.c.l.s4 1983009808
        %v8596 = vunpack.c.0.s8 %v8595
        %v8597 = vlaneseq
        %v8598 = vshrl.u32 %v8597, 7
        %v8599 = vsub.s32 %v8596, %v8598
        %v8600 = vrot.slane %v8586, %v8599
        %v8601 = vcombine.low %v8108, %v8118
        %v8602 = vcombine.high %v8108, %v8118
        %v8604 = vunpack.c.l.s4 1983009808
        %v8605 = vunpack.c.0.s8 %v8604
        %v8606 = vlaneseq
        %v8607 = vshrl.u32 %v8606, 7
        %v8608 = vsub.s32 %v8605, %v8607
        %v8609 = vrot.slane %v8601, %v8608
        %v8611 = vunpack.c.l.s4 1983009808
        %v8612 = vunpack.c.0.s8 %v8611
        %v8613 = vlaneseq
        %v8614 = vshrl.u32 %v8613, 7
        %v8615 = vsub.s32 %v8612, %v8614
        %v8616 = vrot.slane %v8602, %v8615
        %v8617 = vcombine.low %v8130, %v8138
        %v8618 = vcombine.high %v8130, %v8138
        %v8620 = vunpack.c.l.s4 1983009808
        %v8621 = vunpack.c.0.s8 %v8620
        %v8622 = vlaneseq
        %v8623 = vshrl.u32 %v8622, 7
        %v8624 = vsub.s32 %v8621, %v8623
        %v8625 = vrot.slane %v8617, %v8624
        %v8627 = vunpack.c.l.s4 1983009808
        %v8628 = vunpack.c.0.s8 %v8627
        %v8629 = vlaneseq
        %v8630 = vshrl.u32 %v8629, 7
        %v8631 = vsub.s32 %v8628, %v8630
        %v8632 = vrot.slane %v8618, %v8631
        %v8633 = vcombine.low %v8134, %v8142
        %v8634 = vcombine.high %v8134, %v8142
        %v8636 = vunpack.c.l.s4 1983009808
        %v8637 = vunpack.c.0.s8 %v8636
        %v8638 = vlaneseq
        %v8639 = vshrl.u32 %v8638, 7
        %v8640 = vsub.s32 %v8637, %v8639
        %v8641 = vrot.slane %v8633, %v8640
        %v8643 = vunpack.c.l.s4 1983009808
        %v8644 = vunpack.c.0.s8 %v8643
        %v8645 = vlaneseq
        %v8646 = vshrl.u32 %v8645, 7
        %v8647 = vsub.s32 %v8644, %v8646
        %v8648 = vrot.slane %v8634, %v8647
        %v8649 = vcombine.low %v8593, %v8609
        %v8650 = vcombine.high %v8593, %v8609
        %v8652 = vunpack.c.l.s4 1934713408
        %v8653 = vunpack.c.0.s8 %v8652
        %v8654 = vlaneseq
        %v8655 = vshrl.u32 %v8654, 7
        %v8656 = vsub.s32 %v8653, %v8655
        %v8657 = vrot.slane %v8649, %v8656
        %v8659 = vunpack.c.l.s4 1934713408
        %v8660 = vunpack.c.0.s8 %v8659
        %v8661 = vlaneseq
        %v8662 = vshrl.u32 %v8661, 7
        %v8663 = vsub.s32 %v8660, %v8662
        %v8664 = vrot.slane %v8650, %v8663
        %v8665 = vcombine.low %v8600, %v8616
        %v8666 = vcombine.high %v8600, %v8616
        %v8668 = vunpack.c.l.s4 1934713408
        %v8669 = vunpack.c.0.s8 %v8668
        %v8670 = vlaneseq
        %v8671 = vshrl.u32 %v8670, 7
        %v8672 = vsub.s32 %v8669, %v8671
        %v8673 = vrot.slane %v8665, %v8672
        %v8675 = vunpack.c.l.s4 1934713408
        %v8676 = vunpack.c.0.s8 %v8675
        %v8677 = vlaneseq
        %v8678 = vshrl.u32 %v8677, 7
        %v8679 = vsub.s32 %v8676, %v8678
        %v8680 = vrot.slane %v8666, %v8679
        %v8681 = vcombine.low %v8625, %v8641
        %v8682 = vcombine.high %v8625, %v8641
        %v8684 = vunpack.c.l.s4 1934713408
        %v8685 = vunpack.c.0.s8 %v8684
        %v8686 = vlaneseq
        %v8687 = vshrl.u32 %v8686, 7
        %v8688 = vsub.s32 %v8685, %v8687
        %v8689 = vrot.slane %v8681, %v8688
        %v8691 = vunpack.c.l.s4 1934713408
        %v8692 = vunpack.c.0.s8 %v8691
        %v8693 = vlaneseq
        %v8694 = vshrl.u32 %v8693, 7
        %v8695 = vsub.s32 %v8692, %v8694
        %v8696 = vrot.slane %v8682, %v8695
        %v8697 = vcombine.low %v8632, %v8648
        %v8698 = vcombine.high %v8632, %v8648
        %v8700 = vunpack.c.l.s4 1934713408
        %v8701 = vunpack.c.0.s8 %v8700
        %v8702 = vlaneseq
        %v8703 = vshrl.u32 %v8702, 7
        %v8704 = vsub.s32 %v8701, %v8703
        %v8705 = vrot.slane %v8697, %v8704
        %v8707 = vunpack.c.l.s4 1934713408
        %v8708 = vunpack.c.0.s8 %v8707
        %v8709 = vlaneseq
        %v8710 = vshrl.u32 %v8709, 7
        %v8711 = vsub.s32 %v8708, %v8710
        %v8712 = vrot.slane %v8698, %v8711
        %v8713 = vcombine.low %v8657, %v8689
        %v8714 = vcombine.high %v8657, %v8689
        %v8715 = vcombine.low %v8664, %v8696
        %v8716 = vcombine.high %v8664, %v8696
        %v8717 = vcombine.low %v8673, %v8705
        %v8718 = vcombine.high %v8673, %v8705
        %v8719 = vcombine.low %v8680, %v8712
        %v8720 = vcombine.high %v8680, %v8712
        %v8721 = vcombine.low %v8154, %v8162
        %v8722 = vcombine.high %v8154, %v8162
        %v8724 = vunpack.c.l.s4 1983009808
        %v8725 = vunpack.c.0.s8 %v8724
        %v8726 = vlaneseq
        %v8727 = vshrl.u32 %v8726, 7
        %v8728 = vsub.s32 %v8725, %v8727
        %v8729 = vrot.slane %v8721, %v8728
        %v8731 = vunpack.c.l.s4 1983009808
        %v8732 = vunpack.c.0.s8 %v8731
        %v8733 = vlaneseq
        %v8734 = vshrl.u32 %v8733, 7
        %v8735 = vsub.s32 %v8732, %v8734
        %v8736 = vrot.slane %v8722, %v8735
        %v8737 = vcombine.low %v8158, %v8166
        %v8738 = vcombine.high %v8158, %v8166
        %v8740 = vunpack.c.l.s4 1983009808
        %v8741 = vunpack.c.0.s8 %v8740
        %v8742 = vlaneseq
        %v8743 = vshrl.u32 %v8742, 7
        %v8744 = vsub.s32 %v8741, %v8743
        %v8745 = vrot.slane %v8737, %v8744
        %v8747 = vunpack.c.l.s4 1983009808
        %v8748 = vunpack.c.0.s8 %v8747
        %v8749 = vlaneseq
        %v8750 = vshrl.u32 %v8749, 7
        %v8751 = vsub.s32 %v8748, %v8750
        %v8752 = vrot.slane %v8738, %v8751
        %v8753 = vcombine.low %v8729, %v8745
        %v8754 = vcombine.high %v8729, %v8745
        %v8756 = vunpack.c.l.s4 1934713408
        %v8757 = vunpack.c.0.s8 %v8756
        %v8758 = vlaneseq
        %v8759 = vshrl.u32 %v8758, 7
        %v8760 = vsub.s32 %v8757, %v8759
        %v8761 = vrot.slane %v8753, %v8760
        %v8763 = vunpack.c.l.s4 1934713408
        %v8764 = vunpack.c.0.s8 %v8763
        %v8765 = vlaneseq
        %v8766 = vshrl.u32 %v8765, 7
        %v8767 = vsub.s32 %v8764, %v8766
        %v8768 = vrot.slane %v8754, %v8767
        %v8769 = vcombine.low %v8736, %v8752
        %v8770 = vcombine.high %v8736, %v8752
        %v8772 = vunpack.c.l.s4 1934713408
        %v8773 = vunpack.c.0.s8 %v8772
        %v8774 = vlaneseq
        %v8775 = vshrl.u32 %v8774, 7
        %v8776 = vsub.s32 %v8773, %v8775
        %v8777 = vrot.slane %v8769, %v8776
        %v8779 = vunpack.c.l.s4 1934713408
        %v8780 = vunpack.c.0.s8 %v8779
        %v8781 = vlaneseq
        %v8782 = vshrl.u32 %v8781, 7
        %v8783 = vsub.s32 %v8780, %v8782
        %v8784 = vrot.slane %v8770, %v8783
        %v8785 = vcombine.high %v8761, 0.0
        %v8786 = vcombine.high %v8768, 0.0
        %v8787 = vcombine.high %v8777, 0.0
        %v8788 = vcombine.high %v8784, 0.0
        %v8789 = vcombine.low %v7954, %v7960
        %v8790 = vcombine.high %v7954, %v7960
        %v8792 = vunpack.c.l.s4 1983009808
        %v8793 = vunpack.c.0.s8 %v8792
        %v8794 = vlaneseq
        %v8795 = vshrl.u32 %v8794, 7
        %v8796 = vsub.s32 %v8793, %v8795
        %v8797 = vrot.slane %v8789, %v8796
        %v8799 = vunpack.c.l.s4 1983009808
        %v8800 = vunpack.c.0.s8 %v8799
        %v8801 = vlaneseq
        %v8802 = vshrl.u32 %v8801, 7
        %v8803 = vsub.s32 %v8800, %v8802
        %v8804 = vrot.slane %v8790, %v8803
        %v8805 = vcombine.low %v7957, %v7963
        %v8806 = vcombine.high %v7957, %v7963
        %v8808 = vunpack.c.l.s4 1983009808
        %v8809 = vunpack.c.0.s8 %v8808
        %v8810 = vlaneseq
        %v8811 = vshrl.u32 %v8810, 7
        %v8812 = vsub.s32 %v8809, %v8811
        %v8813 = vrot.slane %v8805, %v8812
        %v8815 = vunpack.c.l.s4 1983009808
        %v8816 = vunpack.c.0.s8 %v8815
        %v8817 = vlaneseq
        %v8818 = vshrl.u32 %v8817, 7
        %v8819 = vsub.s32 %v8816, %v8818
        %v8820 = vrot.slane %v8806, %v8819
        %v8821 = vcombine.low %v7976, %v7984
        %v8822 = vcombine.high %v7976, %v7984
        %v8824 = vunpack.c.l.s4 1983009808
        %v8825 = vunpack.c.0.s8 %v8824
        %v8826 = vlaneseq
        %v8827 = vshrl.u32 %v8826, 7
        %v8828 = vsub.s32 %v8825, %v8827
        %v8829 = vrot.slane %v8821, %v8828
        %v8831 = vunpack.c.l.s4 1983009808
        %v8832 = vunpack.c.0.s8 %v8831
        %v8833 = vlaneseq
        %v8834 = vshrl.u32 %v8833, 7
        %v8835 = vsub.s32 %v8832, %v8834
        %v8836 = vrot.slane %v8822, %v8835
        %v8837 = vcombine.low %v7980, %v7988
        %v8838 = vcombine.high %v7980, %v7988
        %v8840 = vunpack.c.l.s4 1983009808
        %v8841 = vunpack.c.0.s8 %v8840
        %v8842 = vlaneseq
        %v8843 = vshrl.u32 %v8842, 7
        %v8844 = vsub.s32 %v8841, %v8843
        %v8845 = vrot.slane %v8837, %v8844
        %v8847 = vunpack.c.l.s4 1983009808
        %v8848 = vunpack.c.0.s8 %v8847
        %v8849 = vlaneseq
        %v8850 = vshrl.u32 %v8849, 7
        %v8851 = vsub.s32 %v8848, %v8850
        %v8852 = vrot.slane %v8838, %v8851
        %v8853 = vcombine.low %v8797, %v8813
        %v8854 = vcombine.high %v8797, %v8813
        %v8856 = vunpack.c.l.s4 1934713408
        %v8857 = vunpack.c.0.s8 %v8856
        %v8858 = vlaneseq
        %v8859 = vshrl.u32 %v8858, 7
        %v8860 = vsub.s32 %v8857, %v8859
        %v8861 = vrot.slane %v8853, %v8860
        %v8863 = vunpack.c.l.s4 1934713408
        %v8864 = vunpack.c.0.s8 %v8863
        %v8865 = vlaneseq
        %v8866 = vshrl.u32 %v8865, 7
        %v8867 = vsub.s32 %v8864, %v8866
        %v8868 = vrot.slane %v8854, %v8867
        %v8869 = vcombine.low %v8804, %v8820
        %v8870 = vcombine.high %v8804, %v8820
        %v8872 = vunpack.c.l.s4 1934713408
        %v8873 = vunpack.c.0.s8 %v8872
        %v8874 = vlaneseq
        %v8875 = vshrl.u32 %v8874, 7
        %v8876 = vsub.s32 %v8873, %v8875
        %v8877 = vrot.slane %v8869, %v8876
        %v8879 = vunpack.c.l.s4 1934713408
        %v8880 = vunpack.c.0.s8 %v8879
        %v8881 = vlaneseq
        %v8882 = vshrl.u32 %v8881, 7
        %v8883 = vsub.s32 %v8880, %v8882
        %v8884 = vrot.slane %v8870, %v8883
        %v8885 = vcombine.low %v8829, %v8845
        %v8886 = vcombine.high %v8829, %v8845
        %v8888 = vunpack.c.l.s4 1934713408
        %v8889 = vunpack.c.0.s8 %v8888
        %v8890 = vlaneseq
        %v8891 = vshrl.u32 %v8890, 7
        %v8892 = vsub.s32 %v8889, %v8891
        %v8893 = vrot.slane %v8885, %v8892
        %v8895 = vunpack.c.l.s4 1934713408
        %v8896 = vunpack.c.0.s8 %v8895
        %v8897 = vlaneseq
        %v8898 = vshrl.u32 %v8897, 7
        %v8899 = vsub.s32 %v8896, %v8898
        %v8900 = vrot.slane %v8886, %v8899
        %v8901 = vcombine.low %v8836, %v8852
        %v8902 = vcombine.high %v8836, %v8852
        %v8904 = vunpack.c.l.s4 1934713408
        %v8905 = vunpack.c.0.s8 %v8904
        %v8906 = vlaneseq
        %v8907 = vshrl.u32 %v8906, 7
        %v8908 = vsub.s32 %v8905, %v8907
        %v8909 = vrot.slane %v8901, %v8908
        %v8911 = vunpack.c.l.s4 1934713408
        %v8912 = vunpack.c.0.s8 %v8911
        %v8913 = vlaneseq
        %v8914 = vshrl.u32 %v8913, 7
        %v8915 = vsub.s32 %v8912, %v8914
        %v8916 = vrot.slane %v8902, %v8915
        %v8917 = vcombine.low %v8861, %v8893
        %v8918 = vcombine.high %v8861, %v8893
        %v8919 = vcombine.low %v8868, %v8900
        %v8920 = vcombine.high %v8868, %v8900
        %v8921 = vcombine.low %v8877, %v8909
        %v8922 = vcombine.high %v8877, %v8909
        %v8923 = vcombine.low %v8884, %v8916
        %v8924 = vcombine.high %v8884, %v8916
        %v8925 = vcombine.low %v8000, %v8008
        %v8926 = vcombine.high %v8000, %v8008
        %v8928 = vunpack.c.l.s4 1983009808
        %v8929 = vunpack.c.0.s8 %v8928
        %v8930 = vlaneseq
        %v8931 = vshrl.u32 %v8930, 7
        %v8932 = vsub.s32 %v8929, %v8931
        %v8933 = vrot.slane %v8925, %v8932
        %v8935 = vunpack.c.l.s4 1983009808
        %v8936 = vunpack.c.0.s8 %v8935
        %v8937 = vlaneseq
        %v8938 = vshrl.u32 %v8937, 7
        %v8939 = vsub.s32 %v8936, %v8938
        %v8940 = vrot.slane %v8926, %v8939
        %v8941 = vcombine.low %v8004, %v8012
        %v8942 = vcombine.high %v8004, %v8012
        %v8944 = vunpack.c.l.s4 1983009808
        %v8945 = vunpack.c.0.s8 %v8944
        %v8946 = vlaneseq
        %v8947 = vshrl.u32 %v8946, 7
        %v8948 = vsub.s32 %v8945, %v8947
        %v8949 = vrot.slane %v8941, %v8948
        %v8951 = vunpack.c.l.s4 1983009808
        %v8952 = vunpack.c.0.s8 %v8951
        %v8953 = vlaneseq
        %v8954 = vshrl.u32 %v8953, 7
        %v8955 = vsub.s32 %v8952, %v8954
        %v8956 = vrot.slane %v8942, %v8955
        %v8957 = vcombine.low %v8029, %v8039
        %v8958 = vcombine.high %v8029, %v8039
        %v8960 = vunpack.c.l.s4 1983009808
        %v8961 = vunpack.c.0.s8 %v8960
        %v8962 = vlaneseq
        %v8963 = vshrl.u32 %v8962, 7
        %v8964 = vsub.s32 %v8961, %v8963
        %v8965 = vrot.slane %v8957, %v8964
        %v8967 = vunpack.c.l.s4 1983009808
        %v8968 = vunpack.c.0.s8 %v8967
        %v8969 = vlaneseq
        %v8970 = vshrl.u32 %v8969, 7
        %v8971 = vsub.s32 %v8968, %v8970
        %v8972 = vrot.slane %v8958, %v8971
        %v8973 = vcombine.low %v8034, %v8044
        %v8974 = vcombine.high %v8034, %v8044
        %v8976 = vunpack.c.l.s4 1983009808
        %v8977 = vunpack.c.0.s8 %v8976
        %v8978 = vlaneseq
        %v8979 = vshrl.u32 %v8978, 7
        %v8980 = vsub.s32 %v8977, %v8979
        %v8981 = vrot.slane %v8973, %v8980
        %v8983 = vunpack.c.l.s4 1983009808
        %v8984 = vunpack.c.0.s8 %v8983
        %v8985 = vlaneseq
        %v8986 = vshrl.u32 %v8985, 7
        %v8987 = vsub.s32 %v8984, %v8986
        %v8988 = vrot.slane %v8974, %v8987
        %v8989 = vcombine.low %v8933, %v8949
        %v8990 = vcombine.high %v8933, %v8949
        %v8992 = vunpack.c.l.s4 1934713408
        %v8993 = vunpack.c.0.s8 %v8992
        %v8994 = vlaneseq
        %v8995 = vshrl.u32 %v8994, 7
        %v8996 = vsub.s32 %v8993, %v8995
        %v8997 = vrot.slane %v8989, %v8996
        %v8999 = vunpack.c.l.s4 1934713408
        %v9000 = vunpack.c.0.s8 %v8999
        %v9001 = vlaneseq
        %v9002 = vshrl.u32 %v9001, 7
        %v9003 = vsub.s32 %v9000, %v9002
        %v9004 = vrot.slane %v8990, %v9003
        %v9005 = vcombine.low %v8940, %v8956
        %v9006 = vcombine.high %v8940, %v8956
        %v9008 = vunpack.c.l.s4 1934713408
        %v9009 = vunpack.c.0.s8 %v9008
        %v9010 = vlaneseq
        %v9011 = vshrl.u32 %v9010, 7
        %v9012 = vsub.s32 %v9009, %v9011
        %v9013 = vrot.slane %v9005, %v9012
        %v9015 = vunpack.c.l.s4 1934713408
        %v9016 = vunpack.c.0.s8 %v9015
        %v9017 = vlaneseq
        %v9018 = vshrl.u32 %v9017, 7
        %v9019 = vsub.s32 %v9016, %v9018
        %v9020 = vrot.slane %v9006, %v9019
        %v9021 = vcombine.low %v8965, %v8981
        %v9022 = vcombine.high %v8965, %v8981
        %v9024 = vunpack.c.l.s4 1934713408
        %v9025 = vunpack.c.0.s8 %v9024
        %v9026 = vlaneseq
        %v9027 = vshrl.u32 %v9026, 7
        %v9028 = vsub.s32 %v9025, %v9027
        %v9029 = vrot.slane %v9021, %v9028
        %v9031 = vunpack.c.l.s4 1934713408
        %v9032 = vunpack.c.0.s8 %v9031
        %v9033 = vlaneseq
        %v9034 = vshrl.u32 %v9033, 7
        %v9035 = vsub.s32 %v9032, %v9034
        %v9036 = vrot.slane %v9022, %v9035
        %v9037 = vcombine.low %v8972, %v8988
        %v9038 = vcombine.high %v8972, %v8988
        %v9040 = vunpack.c.l.s4 1934713408
        %v9041 = vunpack.c.0.s8 %v9040
        %v9042 = vlaneseq
        %v9043 = vshrl.u32 %v9042, 7
        %v9044 = vsub.s32 %v9041, %v9043
        %v9045 = vrot.slane %v9037, %v9044
        %v9047 = vunpack.c.l.s4 1934713408
        %v9048 = vunpack.c.0.s8 %v9047
        %v9049 = vlaneseq
        %v9050 = vshrl.u32 %v9049, 7
        %v9051 = vsub.s32 %v9048, %v9050
        %v9052 = vrot.slane %v9038, %v9051
        %v9053 = vcombine.low %v8997, %v9029
        %v9054 = vcombine.high %v8997, %v9029
        %v9055 = vcombine.low %v9004, %v9036
        %v9056 = vcombine.high %v9004, %v9036
        %v9057 = vcombine.low %v9013, %v9045
        %v9058 = vcombine.high %v9013, %v9045
        %v9059 = vcombine.low %v9020, %v9052
        %v9060 = vcombine.high %v9020, %v9052
        %v9061 = vcombine.low %v8056, %v8064
        %v9062 = vcombine.high %v8056, %v8064
        %v9064 = vunpack.c.l.s4 1983009808
        %v9065 = vunpack.c.0.s8 %v9064
        %v9066 = vlaneseq
        %v9067 = vshrl.u32 %v9066, 7
        %v9068 = vsub.s32 %v9065, %v9067
        %v9069 = vrot.slane %v9061, %v9068
        %v9071 = vunpack.c.l.s4 1983009808
        %v9072 = vunpack.c.0.s8 %v9071
        %v9073 = vlaneseq
        %v9074 = vshrl.u32 %v9073, 7
        %v9075 = vsub.s32 %v9072, %v9074
        %v9076 = vrot.slane %v9062, %v9075
        %v9077 = vcombine.low %v8060, %v8068
        %v9078 = vcombine.high %v8060, %v8068
        %v9080 = vunpack.c.l.s4 1983009808
        %v9081 = vunpack.c.0.s8 %v9080
        %v9082 = vlaneseq
        %v9083 = vshrl.u32 %v9082, 7
        %v9084 = vsub.s32 %v9081, %v9083
        %v9085 = vrot.slane %v9077, %v9084
        %v9087 = vunpack.c.l.s4 1983009808
        %v9088 = vunpack.c.0.s8 %v9087
        %v9089 = vlaneseq
        %v9090 = vshrl.u32 %v9089, 7
        %v9091 = vsub.s32 %v9088, %v9090
        %v9092 = vrot.slane %v9078, %v9091
        %v9093 = vcombine.low %v8080, %v8088
        %v9094 = vcombine.high %v8080, %v8088
        %v9096 = vunpack.c.l.s4 1983009808
        %v9097 = vunpack.c.0.s8 %v9096
        %v9098 = vlaneseq
        %v9099 = vshrl.u32 %v9098, 7
        %v9100 = vsub.s32 %v9097, %v9099
        %v9101 = vrot.slane %v9093, %v9100
        %v9103 = vunpack.c.l.s4 1983009808
        %v9104 = vunpack.c.0.s8 %v9103
        %v9105 = vlaneseq
        %v9106 = vshrl.u32 %v9105, 7
        %v9107 = vsub.s32 %v9104, %v9106
        %v9108 = vrot.slane %v9094, %v9107
        %v9109 = vcombine.low %v8084, %v8092
        %v9110 = vcombine.high %v8084, %v8092
        %v9112 = vunpack.c.l.s4 1983009808
        %v9113 = vunpack.c.0.s8 %v9112
        %v9114 = vlaneseq
        %v9115 = vshrl.u32 %v9114, 7
        %v9116 = vsub.s32 %v9113, %v9115
        %v9117 = vrot.slane %v9109, %v9116
        %v9119 = vunpack.c.l.s4 1983009808
        %v9120 = vunpack.c.0.s8 %v9119
        %v9121 = vlaneseq
        %v9122 = vshrl.u32 %v9121, 7
        %v9123 = vsub.s32 %v9120, %v9122
        %v9124 = vrot.slane %v9110, %v9123
        %v9125 = vcombine.low %v9069, %v9085
        %v9126 = vcombine.high %v9069, %v9085
        %v9128 = vunpack.c.l.s4 1934713408
        %v9129 = vunpack.c.0.s8 %v9128
        %v9130 = vlaneseq
        %v9131 = vshrl.u32 %v9130, 7
        %v9132 = vsub.s32 %v9129, %v9131
        %v9133 = vrot.slane %v9125, %v9132
        %v9135 = vunpack.c.l.s4 1934713408
        %v9136 = vunpack.c.0.s8 %v9135
        %v9137 = vlaneseq
        %v9138 = vshrl.u32 %v9137, 7
        %v9139 = vsub.s32 %v9136, %v9138
        %v9140 = vrot.slane %v9126, %v9139
        %v9141 = vcombine.low %v9076, %v9092
        %v9142 = vcombine.high %v9076, %v9092
        %v9144 = vunpack.c.l.s4 1934713408
        %v9145 = vunpack.c.0.s8 %v9144
        %v9146 = vlaneseq
        %v9147 = vshrl.u32 %v9146, 7
        %v9148 = vsub.s32 %v9145, %v9147
        %v9149 = vrot.slane %v9141, %v9148
        %v9151 = vunpack.c.l.s4 1934713408
        %v9152 = vunpack.c.0.s8 %v9151
        %v9153 = vlaneseq
        %v9154 = vshrl.u32 %v9153, 7
        %v9155 = vsub.s32 %v9152, %v9154
        %v9156 = vrot.slane %v9142, %v9155
        %v9157 = vcombine.low %v9101, %v9117
        %v9158 = vcombine.high %v9101, %v9117
        %v9160 = vunpack.c.l.s4 1934713408
        %v9161 = vunpack.c.0.s8 %v9160
        %v9162 = vlaneseq
        %v9163 = vshrl.u32 %v9162, 7
        %v9164 = vsub.s32 %v9161, %v9163
        %v9165 = vrot.slane %v9157, %v9164
        %v9167 = vunpack.c.l.s4 1934713408
        %v9168 = vunpack.c.0.s8 %v9167
        %v9169 = vlaneseq
        %v9170 = vshrl.u32 %v9169, 7
        %v9171 = vsub.s32 %v9168, %v9170
        %v9172 = vrot.slane %v9158, %v9171
        %v9173 = vcombine.low %v9108, %v9124
        %v9174 = vcombine.high %v9108, %v9124
        %v9176 = vunpack.c.l.s4 1934713408
        %v9177 = vunpack.c.0.s8 %v9176
        %v9178 = vlaneseq
        %v9179 = vshrl.u32 %v9178, 7
        %v9180 = vsub.s32 %v9177, %v9179
        %v9181 = vrot.slane %v9173, %v9180
        %v9183 = vunpack.c.l.s4 1934713408
        %v9184 = vunpack.c.0.s8 %v9183
        %v9185 = vlaneseq
        %v9186 = vshrl.u32 %v9185, 7
        %v9187 = vsub.s32 %v9184, %v9186
        %v9188 = vrot.slane %v9174, %v9187
        %v9189 = vcombine.low %v9133, %v9165
        %v9190 = vcombine.high %v9133, %v9165
        %v9191 = vcombine.low %v9140, %v9172
        %v9192 = vcombine.high %v9140, %v9172
        %v9193 = vcombine.low %v9149, %v9181
        %v9194 = vcombine.high %v9149, %v9181
        %v9195 = vcombine.low %v9156, %v9188
        %v9196 = vcombine.high %v9156, %v9188
        %v9197 = vcombine.low %v8105, %v8115
        %v9198 = vcombine.high %v8105, %v8115
        %v9200 = vunpack.c.l.s4 1983009808
        %v9201 = vunpack.c.0.s8 %v9200
        %v9202 = vlaneseq
        %v9203 = vshrl.u32 %v9202, 7
        %v9204 = vsub.s32 %v9201, %v9203
        %v9205 = vrot.slane %v9197, %v9204
        %v9207 = vunpack.c.l.s4 1983009808
        %v9208 = vunpack.c.0.s8 %v9207
        %v9209 = vlaneseq
        %v9210 = vshrl.u32 %v9209, 7
        %v9211 = vsub.s32 %v9208, %v9210
        %v9212 = vrot.slane %v9198, %v9211
        %v9213 = vcombine.low %v8110, %v8120
        %v9214 = vcombine.high %v8110, %v8120
        %v9216 = vunpack.c.l.s4 1983009808
        %v9217 = vunpack.c.0.s8 %v9216
        %v9218 = vlaneseq
        %v9219 = vshrl.u32 %v9218, 7
        %v9220 = vsub.s32 %v9217, %v9219
        %v9221 = vrot.slane %v9213, %v9220
        %v9223 = vunpack.c.l.s4 1983009808
        %v9224 = vunpack.c.0.s8 %v9223
        %v9225 = vlaneseq
        %v9226 = vshrl.u32 %v9225, 7
        %v9227 = vsub.s32 %v9224, %v9226
        %v9228 = vrot.slane %v9214, %v9227
        %v9229 = vcombine.low %v8132, %v8140
        %v9230 = vcombine.high %v8132, %v8140
        %v9232 = vunpack.c.l.s4 1983009808
        %v9233 = vunpack.c.0.s8 %v9232
        %v9234 = vlaneseq
        %v9235 = vshrl.u32 %v9234, 7
        %v9236 = vsub.s32 %v9233, %v9235
        %v9237 = vrot.slane %v9229, %v9236
        %v9239 = vunpack.c.l.s4 1983009808
        %v9240 = vunpack.c.0.s8 %v9239
        %v9241 = vlaneseq
        %v9242 = vshrl.u32 %v9241, 7
        %v9243 = vsub.s32 %v9240, %v9242
        %v9244 = vrot.slane %v9230, %v9243
        %v9245 = vcombine.low %v8136, %v8144
        %v9246 = vcombine.high %v8136, %v8144
        %v9248 = vunpack.c.l.s4 1983009808
        %v9249 = vunpack.c.0.s8 %v9248
        %v9250 = vlaneseq
        %v9251 = vshrl.u32 %v9250, 7
        %v9252 = vsub.s32 %v9249, %v9251
        %v9253 = vrot.slane %v9245, %v9252
        %v9255 = vunpack.c.l.s4 1983009808
        %v9256 = vunpack.c.0.s8 %v9255
        %v9257 = vlaneseq
        %v9258 = vshrl.u32 %v9257, 7
        %v9259 = vsub.s32 %v9256, %v9258
        %v9260 = vrot.slane %v9246, %v9259
        %v9261 = vcombine.low %v9205, %v9221
        %v9262 = vcombine.high %v9205, %v9221
        %v9264 = vunpack.c.l.s4 1934713408
        %v9265 = vunpack.c.0.s8 %v9264
        %v9266 = vlaneseq
        %v9267 = vshrl.u32 %v9266, 7
        %v9268 = vsub.s32 %v9265, %v9267
        %v9269 = vrot.slane %v9261, %v9268
        %v9271 = vunpack.c.l.s4 1934713408
        %v9272 = vunpack.c.0.s8 %v9271
        %v9273 = vlaneseq
        %v9274 = vshrl.u32 %v9273, 7
        %v9275 = vsub.s32 %v9272, %v9274
        %v9276 = vrot.slane %v9262, %v9275
        %v9277 = vcombine.low %v9212, %v9228
        %v9278 = vcombine.high %v9212, %v9228
        %v9280 = vunpack.c.l.s4 1934713408
        %v9281 = vunpack.c.0.s8 %v9280
        %v9282 = vlaneseq
        %v9283 = vshrl.u32 %v9282, 7
        %v9284 = vsub.s32 %v9281, %v9283
        %v9285 = vrot.slane %v9277, %v9284
        %v9287 = vunpack.c.l.s4 1934713408
        %v9288 = vunpack.c.0.s8 %v9287
        %v9289 = vlaneseq
        %v9290 = vshrl.u32 %v9289, 7
        %v9291 = vsub.s32 %v9288, %v9290
        %v9292 = vrot.slane %v9278, %v9291
        %v9293 = vcombine.low %v9237, %v9253
        %v9294 = vcombine.high %v9237, %v9253
        %v9296 = vunpack.c.l.s4 1934713408
        %v9297 = vunpack.c.0.s8 %v9296
        %v9298 = vlaneseq
        %v9299 = vshrl.u32 %v9298, 7
        %v9300 = vsub.s32 %v9297, %v9299
        %v9301 = vrot.slane %v9293, %v9300
        %v9303 = vunpack.c.l.s4 1934713408
        %v9304 = vunpack.c.0.s8 %v9303
        %v9305 = vlaneseq
        %v9306 = vshrl.u32 %v9305, 7
        %v9307 = vsub.s32 %v9304, %v9306
        %v9308 = vrot.slane %v9294, %v9307
        %v9309 = vcombine.low %v9244, %v9260
        %v9310 = vcombine.high %v9244, %v9260
        %v9312 = vunpack.c.l.s4 1934713408
        %v9313 = vunpack.c.0.s8 %v9312
        %v9314 = vlaneseq
        %v9315 = vshrl.u32 %v9314, 7
        %v9316 = vsub.s32 %v9313, %v9315
        %v9317 = vrot.slane %v9309, %v9316
        %v9319 = vunpack.c.l.s4 1934713408
        %v9320 = vunpack.c.0.s8 %v9319
        %v9321 = vlaneseq
        %v9322 = vshrl.u32 %v9321, 7
        %v9323 = vsub.s32 %v9320, %v9322
        %v9324 = vrot.slane %v9310, %v9323
        %v9325 = vcombine.low %v9269, %v9301
        %v9326 = vcombine.high %v9269, %v9301
        %v9327 = vcombine.low %v9276, %v9308
        %v9328 = vcombine.high %v9276, %v9308
        %v9329 = vcombine.low %v9285, %v9317
        %v9330 = vcombine.high %v9285, %v9317
        %v9331 = vcombine.low %v9292, %v9324
        %v9332 = vcombine.high %v9292, %v9324
        %v9333 = vcombine.low %v8156, %v8164
        %v9334 = vcombine.high %v8156, %v8164
        %v9336 = vunpack.c.l.s4 1983009808
        %v9337 = vunpack.c.0.s8 %v9336
        %v9338 = vlaneseq
        %v9339 = vshrl.u32 %v9338, 7
        %v9340 = vsub.s32 %v9337, %v9339
        %v9341 = vrot.slane %v9333, %v9340
        %v9343 = vunpack.c.l.s4 1983009808
        %v9344 = vunpack.c.0.s8 %v9343
        %v9345 = vlaneseq
        %v9346 = vshrl.u32 %v9345, 7
        %v9347 = vsub.s32 %v9344, %v9346
        %v9348 = vrot.slane %v9334, %v9347
        %v9349 = vcombine.low %v8160, %v8168
        %v9350 = vcombine.high %v8160, %v8168
        %v9352 = vunpack.c.l.s4 1983009808
        %v9353 = vunpack.c.0.s8 %v9352
        %v9354 = vlaneseq
        %v9355 = vshrl.u32 %v9354, 7
        %v9356 = vsub.s32 %v9353, %v9355
        %v9357 = vrot.slane %v9349, %v9356
        %v9359 = vunpack.c.l.s4 1983009808
        %v9360 = vunpack.c.0.s8 %v9359
        %v9361 = vlaneseq
        %v9362 = vshrl.u32 %v9361, 7
        %v9363 = vsub.s32 %v9360, %v9362
        %v9364 = vrot.slane %v9350, %v9363
        %v9365 = vcombine.low %v9341, %v9357
        %v9366 = vcombine.high %v9341, %v9357
        %v9368 = vunpack.c.l.s4 1934713408
        %v9369 = vunpack.c.0.s8 %v9368
        %v9370 = vlaneseq
        %v9371 = vshrl.u32 %v9370, 7
        %v9372 = vsub.s32 %v9369, %v9371
        %v9373 = vrot.slane %v9365, %v9372
        %v9375 = vunpack.c.l.s4 1934713408
        %v9376 = vunpack.c.0.s8 %v9375
        %v9377 = vlaneseq
        %v9378 = vshrl.u32 %v9377, 7
        %v9379 = vsub.s32 %v9376, %v9378
        %v9380 = vrot.slane %v9366, %v9379
        %v9381 = vcombine.low %v9348, %v9364
        %v9382 = vcombine.high %v9348, %v9364
        %v9384 = vunpack.c.l.s4 1934713408
        %v9385 = vunpack.c.0.s8 %v9384
        %v9386 = vlaneseq
        %v9387 = vshrl.u32 %v9386, 7
        %v9388 = vsub.s32 %v9385, %v9387
        %v9389 = vrot.slane %v9381, %v9388
        %v9391 = vunpack.c.l.s4 1934713408
        %v9392 = vunpack.c.0.s8 %v9391
        %v9393 = vlaneseq
        %v9394 = vshrl.u32 %v9393, 7
        %v9395 = vsub.s32 %v9392, %v9394
        %v9396 = vrot.slane %v9382, %v9395
        %v9397 = vcombine.high %v9373, 0.0
        %v9398 = vcombine.high %v9380, 0.0
        %v9399 = vcombine.high %v9389, 0.0
        %v9400 = vcombine.high %v9396, 0.0
        %9406 = vrot.lane.b32.xlu0 %v8306, 16
        %v9407 = vpop.permute.xlu0 %9406
        %9408 = vrot.lane.b32.xlu0 %v8442, 16
        %v9409 = vpop.permute.xlu0 %9408
        %9410 = vrot.lane.b32.xlu0 %v8578, 16
        %v9411 = vpop.permute.xlu0 %9410
        %9412 = vrot.lane.b32.xlu0 %v8714, 16
        %v9413 = vpop.permute.xlu0 %9412
        %9414 = vrot.lane.b32.xlu0 %v8785, 16
        %v9415 = vpop.permute.xlu0 %9414
        %9426 = vrot.lane.b32.xlu0 %v8307, 32
        %v9427 = vpop.permute.xlu0 %9426
        %9428 = vrot.lane.b32.xlu0 %v8443, 32
        %v9429 = vpop.permute.xlu0 %9428
        %9430 = vrot.lane.b32.xlu0 %v8579, 32
        %v9431 = vpop.permute.xlu0 %9430
        %9432 = vrot.lane.b32.xlu0 %v8715, 32
        %v9433 = vpop.permute.xlu0 %9432
        %9434 = vrot.lane.b32.xlu0 %v8768, 32
        %v9435 = vpop.permute.xlu0 %9434
        %9446 = vrot.lane.b32.xlu0 %v8308, 48
        %v9447 = vpop.permute.xlu0 %9446
        %9448 = vrot.lane.b32.xlu0 %v8444, 48
        %v9449 = vpop.permute.xlu0 %9448
        %9450 = vrot.lane.b32.xlu0 %v8580, 48
        %v9451 = vpop.permute.xlu0 %9450
        %9452 = vrot.lane.b32.xlu0 %v8716, 48
        %v9453 = vpop.permute.xlu0 %9452
        %9454 = vrot.lane.b32.xlu0 %v8786, 48
        %v9455 = vpop.permute.xlu0 %9454
        %9466 = vrot.lane.b32.xlu0 %v8309, 64
        %v9467 = vpop.permute.xlu0 %9466
        %9468 = vrot.lane.b32.xlu0 %v8445, 64
        %v9469 = vpop.permute.xlu0 %9468
        %9470 = vrot.lane.b32.xlu0 %v8581, 64
        %v9471 = vpop.permute.xlu0 %9470
        %9472 = vrot.lane.b32.xlu0 %v8717, 64
        %v9473 = vpop.permute.xlu0 %9472
        %9474 = vrot.lane.b32.xlu0 %v8777, 64
        %v9475 = vpop.permute.xlu0 %9474
        %9486 = vrot.lane.b32.xlu0 %v8310, 80
        %v9487 = vpop.permute.xlu0 %9486
        %9488 = vrot.lane.b32.xlu0 %v8446, 80
        %v9489 = vpop.permute.xlu0 %9488
        %9490 = vrot.lane.b32.xlu0 %v8582, 80
        %v9491 = vpop.permute.xlu0 %9490
        %9492 = vrot.lane.b32.xlu0 %v8718, 80
        %v9493 = vpop.permute.xlu0 %9492
        %9494 = vrot.lane.b32.xlu0 %v8787, 80
        %v9495 = vpop.permute.xlu0 %9494
        %9506 = vrot.lane.b32.xlu0 %v8311, 96
        %v9507 = vpop.permute.xlu0 %9506
        %9508 = vrot.lane.b32.xlu0 %v8447, 96
        %v9509 = vpop.permute.xlu0 %9508
        %9510 = vrot.lane.b32.xlu0 %v8583, 96
        %v9511 = vpop.permute.xlu0 %9510
        %9512 = vrot.lane.b32.xlu0 %v8719, 96
        %v9513 = vpop.permute.xlu0 %9512
        %9514 = vrot.lane.b32.xlu0 %v8784, 96
        %v9515 = vpop.permute.xlu0 %9514
        %9526 = vrot.lane.b32.xlu0 %v8312, 112
        %v9527 = vpop.permute.xlu0 %9526
        %9528 = vrot.lane.b32.xlu0 %v8448, 112
        %v9529 = vpop.permute.xlu0 %9528
        %9530 = vrot.lane.b32.xlu0 %v8584, 112
        %v9531 = vpop.permute.xlu0 %9530
        %9532 = vrot.lane.b32.xlu0 %v8720, 112
        %v9533 = vpop.permute.xlu0 %9532
        %9534 = vrot.lane.b32.xlu0 %v8788, 112
        %v9535 = vpop.permute.xlu0 %9534
        %9546 = vrot.lane.b32.xlu0 %v8918, 16
        %v9547 = vpop.permute.xlu0 %9546
        %9548 = vrot.lane.b32.xlu0 %v9054, 16
        %v9549 = vpop.permute.xlu0 %9548
        %9550 = vrot.lane.b32.xlu0 %v9190, 16
        %v9551 = vpop.permute.xlu0 %9550
        %9552 = vrot.lane.b32.xlu0 %v9326, 16
        %v9553 = vpop.permute.xlu0 %9552
        %9554 = vrot.lane.b32.xlu0 %v9397, 16
        %v9555 = vpop.permute.xlu0 %9554
        %9566 = vrot.lane.b32.xlu0 %v8919, 32
        %v9567 = vpop.permute.xlu0 %9566
        %9568 = vrot.lane.b32.xlu0 %v9055, 32
        %v9569 = vpop.permute.xlu0 %9568
        %9570 = vrot.lane.b32.xlu0 %v9191, 32
        %v9571 = vpop.permute.xlu0 %9570
        %9572 = vrot.lane.b32.xlu0 %v9327, 32
        %v9573 = vpop.permute.xlu0 %9572
        %9574 = vrot.lane.b32.xlu0 %v9380, 32
        %v9575 = vpop.permute.xlu0 %9574
        %9586 = vrot.lane.b32.xlu0 %v8920, 48
        %v9587 = vpop.permute.xlu0 %9586
        %9588 = vrot.lane.b32.xlu0 %v9056, 48
        %v9589 = vpop.permute.xlu0 %9588
        %9590 = vrot.lane.b32.xlu0 %v9192, 48
        %v9591 = vpop.permute.xlu0 %9590
        %9592 = vrot.lane.b32.xlu0 %v9328, 48
        %v9593 = vpop.permute.xlu0 %9592
        %9594 = vrot.lane.b32.xlu0 %v9398, 48
        %v9595 = vpop.permute.xlu0 %9594
        %9606 = vrot.lane.b32.xlu0 %v8921, 64
        %v9607 = vpop.permute.xlu0 %9606
        %9608 = vrot.lane.b32.xlu0 %v9057, 64
        %v9609 = vpop.permute.xlu0 %9608
        %9610 = vrot.lane.b32.xlu0 %v9193, 64
        %v9611 = vpop.permute.xlu0 %9610
        %9612 = vrot.lane.b32.xlu0 %v9329, 64
        %v9613 = vpop.permute.xlu0 %9612
        %9614 = vrot.lane.b32.xlu0 %v9389, 64
        %v9615 = vpop.permute.xlu0 %9614
        %9626 = vrot.lane.b32.xlu0 %v8922, 80
        %v9627 = vpop.permute.xlu0 %9626
        %9628 = vrot.lane.b32.xlu0 %v9058, 80
        %v9629 = vpop.permute.xlu0 %9628
        %9630 = vrot.lane.b32.xlu0 %v9194, 80
        %v9631 = vpop.permute.xlu0 %9630
        %9632 = vrot.lane.b32.xlu0 %v9330, 80
        %v9633 = vpop.permute.xlu0 %9632
        %9634 = vrot.lane.b32.xlu0 %v9399, 80
        %v9635 = vpop.permute.xlu0 %9634
        %9646 = vrot.lane.b32.xlu0 %v8923, 96
        %v9647 = vpop.permute.xlu0 %9646
        %9648 = vrot.lane.b32.xlu0 %v9059, 96
        %v9649 = vpop.permute.xlu0 %9648
        %9650 = vrot.lane.b32.xlu0 %v9195, 96
        %v9651 = vpop.permute.xlu0 %9650
        %9652 = vrot.lane.b32.xlu0 %v9331, 96
        %v9653 = vpop.permute.xlu0 %9652
        %9654 = vrot.lane.b32.xlu0 %v9396, 96
        %v9655 = vpop.permute.xlu0 %9654
        %9666 = vrot.lane.b32.xlu0 %v8924, 112
        %v9667 = vpop.permute.xlu0 %9666
        %9668 = vrot.lane.b32.xlu0 %v9060, 112
        %v9669 = vpop.permute.xlu0 %9668
        %9670 = vrot.lane.b32.xlu0 %v9196, 112
        %v9671 = vpop.permute.xlu0 %9670
        %9672 = vrot.lane.b32.xlu0 %v9332, 112
        %v9673 = vpop.permute.xlu0 %9672
        %9674 = vrot.lane.b32.xlu0 %v9400, 112
        %v9675 = vpop.permute.xlu0 %9674
        %v9681 = vsel %vm2078, %v8305, %v9407
        %v9682 = vsel %vm2078, %v8441, %v9409
        %v9683 = vsel %vm2078, %v8577, %v9411
        %v9684 = vsel %vm2078, %v8713, %v9413
        %v9685 = vsel %vm2078, %v8761, %v9415
        %v9686 = vsel %vm2084, %v9681, %v9427
        %v9687 = vsel %vm2084, %v9682, %v9429
        %v9688 = vsel %vm2084, %v9683, %v9431
        %v9689 = vsel %vm2084, %v9684, %v9433
        %v9690 = vsel %vm2084, %v9685, %v9435
        %v9691 = vsel %vm2090, %v9686, %v9447
        %v9692 = vsel %vm2090, %v9687, %v9449
        %v9693 = vsel %vm2090, %v9688, %v9451
        %v9694 = vsel %vm2090, %v9689, %v9453
        %v9695 = vsel %vm2090, %v9690, %v9455
        %v9696 = vsel %vm2096, %v9691, %v9467
        %v9697 = vsel %vm2096, %v9692, %v9469
        %v9698 = vsel %vm2096, %v9693, %v9471
        %v9699 = vsel %vm2096, %v9694, %v9473
        %v9700 = vsel %vm2096, %v9695, %v9475
        %v9701 = vsel %vm2102, %v9696, %v9487
        %v9702 = vsel %vm2102, %v9697, %v9489
        %v9703 = vsel %vm2102, %v9698, %v9491
        %v9704 = vsel %vm2102, %v9699, %v9493
        %v9705 = vsel %vm2102, %v9700, %v9495
        %v9706 = vsel %vm2108, %v9701, %v9507
        %v9707 = vsel %vm2108, %v9702, %v9509
        %v9708 = vsel %vm2108, %v9703, %v9511
        %v9709 = vsel %vm2108, %v9704, %v9513
        %v9710 = vsel %vm2108, %v9705, %v9515
        %v9711 = vsel %vm2114, %v9706, %v9527
        %v9712 = vsel %vm2114, %v9707, %v9529
        %v9713 = vsel %vm2114, %v9708, %v9531
        %v9714 = vsel %vm2114, %v9709, %v9533
        %v9715 = vsel %vm2114, %v9710, %v9535
        %v9716 = vsel %vm2078, %v8917, %v9547
        %v9717 = vsel %vm2078, %v9053, %v9549
        %v9718 = vsel %vm2078, %v9189, %v9551
        %v9719 = vsel %vm2078, %v9325, %v9553
        %v9720 = vsel %vm2078, %v9373, %v9555
        %v9721 = vsel %vm2084, %v9716, %v9567
        %v9722 = vsel %vm2084, %v9717, %v9569
        %v9723 = vsel %vm2084, %v9718, %v9571
        %v9724 = vsel %vm2084, %v9719, %v9573
        %v9725 = vsel %vm2084, %v9720, %v9575
        %v9726 = vsel %vm2090, %v9721, %v9587
        %v9727 = vsel %vm2090, %v9722, %v9589
        %v9728 = vsel %vm2090, %v9723, %v9591
        %v9729 = vsel %vm2090, %v9724, %v9593
        %v9730 = vsel %vm2090, %v9725, %v9595
        %v9731 = vsel %vm2096, %v9726, %v9607
        %v9732 = vsel %vm2096, %v9727, %v9609
        %v9733 = vsel %vm2096, %v9728, %v9611
        %v9734 = vsel %vm2096, %v9729, %v9613
        %v9735 = vsel %vm2096, %v9730, %v9615
        %v9736 = vsel %vm2102, %v9731, %v9627
        %v9737 = vsel %vm2102, %v9732, %v9629
        %v9738 = vsel %vm2102, %v9733, %v9631
        %v9739 = vsel %vm2102, %v9734, %v9633
        %v9740 = vsel %vm2102, %v9735, %v9635
        %v9741 = vsel %vm2108, %v9736, %v9647
        %v9742 = vsel %vm2108, %v9737, %v9649
        %v9743 = vsel %vm2108, %v9738, %v9651
        %v9744 = vsel %vm2108, %v9739, %v9653
        %v9745 = vsel %vm2108, %v9740, %v9655
        %v9746 = vsel %vm2114, %v9741, %v9667
        %v9747 = vsel %vm2114, %v9742, %v9669
        %v9748 = vsel %vm2114, %v9743, %v9671
        %v9749 = vsel %vm2114, %v9744, %v9673
        %v9750 = vsel %vm2114, %v9745, %v9675
        %s9751 = scalar_lea.vmem %s213, 80 [#allocation2]
        %v9752 = vld [vmem:[%s9751] sm:$0xff]
        %v9753 = vld [vmem:[%s9751 + $0x8] sm:$0xff]
        %v9754 = vld [vmem:[%s9751 + $0x60] sm:$0xff]
        %v9755 = vld [vmem:[%s9751 + $0x68] sm:$0xff]
        %v9756 = vld [vmem:[%s9751 + $0xc0] sm:$0xff]
        %v9757 = vld [vmem:[%s9751 + $0xc8] sm:$0xff]
        %v9758 = vld [vmem:[%s9751 + $0x120] sm:$0xff]
        %v9759 = vld [vmem:[%s9751 + $0x128] sm:$0xff]
        %v9768 = vrot.slane %v9752, 7
        %v9769 = vrot.slane %v9753, 7
        %v9770 = vsel %vm261, %v9768, %v9769
        %v9771 = vrot.slane %v9754, 7
        %v9772 = vrot.slane %v9755, 7
        %v9773 = vsel %vm261, %v9771, %v9772
        %v9774 = vrot.slane %v9756, 7
        %v9775 = vrot.slane %v9757, 7
        %v9776 = vsel %vm261, %v9774, %v9775
        %v9777 = vrot.slane %v9758, 7
        %v9778 = vrot.slane %v9759, 7
        %v9779 = vsel %vm261, %v9777, %v9778
        %v9788 = vsel %vm261, 0.0, %v9768
        %v9789 = vsel %vm261, 0.0, %v9771
        %v9790 = vsel %vm261, 0.0, %v9774
        %v9791 = vsel %vm261, 0.0, %v9777
        %v9792 = vsel %vm261, %v9769, 0.0
        %v9793 = vsel %vm261, %v9772, 0.0
        %v9794 = vsel %vm261, %v9775, 0.0
        %v9795 = vsel %vm261, %v9778, 0.0
        %9804 = vrot.lane.b32.xlu0 %v9788, 1
        %v9805 = vpop.permute.xlu0 %9804
        %9806 = vrot.lane.b32.xlu0 %v9770, 1
        %v9807 = vpop.permute.xlu0 %9806
        %9808 = vrot.lane.b32.xlu0 %v9792, 1
        %v9809 = vpop.permute.xlu0 %9808
        %9810 = vrot.lane.b32.xlu0 %v9789, 1
        %v9811 = vpop.permute.xlu0 %9810
        %9812 = vrot.lane.b32.xlu0 %v9773, 1
        %v9813 = vpop.permute.xlu0 %9812
        %9814 = vrot.lane.b32.xlu0 %v9793, 1
        %v9815 = vpop.permute.xlu0 %9814
        %9816 = vrot.lane.b32.xlu0 %v9790, 1
        %v9817 = vpop.permute.xlu0 %9816
        %9818 = vrot.lane.b32.xlu0 %v9776, 1
        %v9819 = vpop.permute.xlu0 %9818
        %9820 = vrot.lane.b32.xlu0 %v9794, 1
        %v9821 = vpop.permute.xlu0 %9820
        %9822 = vrot.lane.b32.xlu0 %v9791, 1
        %v9823 = vpop.permute.xlu0 %9822
        %9824 = vrot.lane.b32.xlu0 %v9779, 1
        %v9825 = vpop.permute.xlu0 %9824
        %9826 = vrot.lane.b32.xlu0 %v9795, 1
        %v9827 = vpop.permute.xlu0 %9826
        %v9840 = vsel %vm334, 0.0, %v9805
        %v9841 = vsel %vm334, 0.0, %v9807
        %v9842 = vsel %vm334, 0.0, %v9809
        %v9843 = vsel %vm334, 0.0, %v9811
        %v9844 = vsel %vm334, 0.0, %v9813
        %v9845 = vsel %vm334, 0.0, %v9815
        %v9846 = vsel %vm334, 0.0, %v9817
        %v9847 = vsel %vm334, 0.0, %v9819
        %v9848 = vsel %vm334, 0.0, %v9821
        %v9849 = vsel %vm334, 0.0, %v9823
        %v9850 = vsel %vm334, 0.0, %v9825
        %v9851 = vsel %vm334, 0.0, %v9827
        %v9852 = vsel %vm347, %v9840, 0.0
        %v9853 = vsel %vm347, %v9841, 0.0
        %v9854 = vsel %vm347, %v9842, 0.0
        %v9855 = vsel %vm347, %v9843, 0.0
        %v9856 = vsel %vm347, %v9844, 0.0
        %v9857 = vsel %vm347, %v9845, 0.0
        %v9858 = vsel %vm347, %v9846, 0.0
        %v9859 = vsel %vm347, %v9847, 0.0
        %v9860 = vsel %vm347, %v9848, 0.0
        %v9861 = vsel %vm347, %v9849, 0.0
        %v9862 = vsel %vm347, %v9850, 0.0
        %v9863 = vsel %vm347, %v9851, 0.0
        %9872 = vrot.lane.b32.xlu0 %v9852, 127
        %v9873 = vpop.permute.xlu0 %9872
        %9874 = vrot.lane.b32.xlu0 %v9853, 127
        %v9875 = vpop.permute.xlu0 %9874
        %9876 = vrot.lane.b32.xlu0 %v9855, 127
        %v9877 = vpop.permute.xlu0 %9876
        %9878 = vrot.lane.b32.xlu0 %v9856, 127
        %v9879 = vpop.permute.xlu0 %9878
        %9880 = vrot.lane.b32.xlu0 %v9858, 127
        %v9881 = vpop.permute.xlu0 %9880
        %9882 = vrot.lane.b32.xlu0 %v9859, 127
        %v9883 = vpop.permute.xlu0 %9882
        %9884 = vrot.lane.b32.xlu0 %v9861, 127
        %v9885 = vpop.permute.xlu0 %9884
        %9886 = vrot.lane.b32.xlu0 %v9862, 127
        %v9887 = vpop.permute.xlu0 %9886
        %9896 = vrot.lane.b32.xlu0 %v9852, 126
        %v9897 = vpop.permute.xlu0 %9896
        %9898 = vrot.lane.b32.xlu0 %v9853, 126
        %v9899 = vpop.permute.xlu0 %9898
        %9900 = vrot.lane.b32.xlu0 %v9855, 126
        %v9901 = vpop.permute.xlu0 %9900
        %9902 = vrot.lane.b32.xlu0 %v9856, 126
        %v9903 = vpop.permute.xlu0 %9902
        %9904 = vrot.lane.b32.xlu0 %v9858, 126
        %v9905 = vpop.permute.xlu0 %9904
        %9906 = vrot.lane.b32.xlu0 %v9859, 126
        %v9907 = vpop.permute.xlu0 %9906
        %9908 = vrot.lane.b32.xlu0 %v9861, 126
        %v9909 = vpop.permute.xlu0 %9908
        %9910 = vrot.lane.b32.xlu0 %v9862, 126
        %v9911 = vpop.permute.xlu0 %9910
        %v9924 = vrot.slane %v9852, 1
        %v9925 = vrot.slane %v9853, 1
        %v9926 = vsel %vm420, %v9924, %v9925
        %v9927 = vrot.slane %v9854, 1
        %v9928 = vsel %vm420, %v9925, %v9927
        %v9929 = vrot.slane %v9855, 1
        %v9930 = vrot.slane %v9856, 1
        %v9931 = vsel %vm420, %v9929, %v9930
        %v9932 = vrot.slane %v9857, 1
        %v9933 = vsel %vm420, %v9930, %v9932
        %v9934 = vrot.slane %v9858, 1
        %v9935 = vrot.slane %v9859, 1
        %v9936 = vsel %vm420, %v9934, %v9935
        %v9937 = vrot.slane %v9860, 1
        %v9938 = vsel %vm420, %v9935, %v9937
        %v9939 = vrot.slane %v9861, 1
        %v9940 = vrot.slane %v9862, 1
        %v9941 = vsel %vm420, %v9939, %v9940
        %v9942 = vrot.slane %v9863, 1
        %v9943 = vsel %vm420, %v9940, %v9942
        %9952 = vrot.lane.b32.xlu0 %v9926, 127
        %v9953 = vpop.permute.xlu0 %9952
        %9954 = vrot.lane.b32.xlu0 %v9928, 127
        %v9955 = vpop.permute.xlu0 %9954
        %9956 = vrot.lane.b32.xlu0 %v9931, 127
        %v9957 = vpop.permute.xlu0 %9956
        %9958 = vrot.lane.b32.xlu0 %v9933, 127
        %v9959 = vpop.permute.xlu0 %9958
        %9960 = vrot.lane.b32.xlu0 %v9936, 127
        %v9961 = vpop.permute.xlu0 %9960
        %9962 = vrot.lane.b32.xlu0 %v9938, 127
        %v9963 = vpop.permute.xlu0 %9962
        %9964 = vrot.lane.b32.xlu0 %v9941, 127
        %v9965 = vpop.permute.xlu0 %9964
        %9966 = vrot.lane.b32.xlu0 %v9943, 127
        %v9967 = vpop.permute.xlu0 %9966
        %9976 = vrot.lane.b32.xlu0 %v9926, 126
        %v9977 = vpop.permute.xlu0 %9976
        %9978 = vrot.lane.b32.xlu0 %v9928, 126
        %v9979 = vpop.permute.xlu0 %9978
        %9980 = vrot.lane.b32.xlu0 %v9931, 126
        %v9981 = vpop.permute.xlu0 %9980
        %9982 = vrot.lane.b32.xlu0 %v9933, 126
        %v9983 = vpop.permute.xlu0 %9982
        %9984 = vrot.lane.b32.xlu0 %v9936, 126
        %v9985 = vpop.permute.xlu0 %9984
        %9986 = vrot.lane.b32.xlu0 %v9938, 126
        %v9987 = vpop.permute.xlu0 %9986
        %9988 = vrot.lane.b32.xlu0 %v9941, 126
        %v9989 = vpop.permute.xlu0 %9988
        %9990 = vrot.lane.b32.xlu0 %v9943, 126
        %v9991 = vpop.permute.xlu0 %9990
        %v10000 = vrot.slane %v9852, 2
        %v10001 = vrot.slane %v9853, 2
        %v10002 = vsel %vm497, %v10000, %v10001
        %v10003 = vrot.slane %v9854, 2
        %v10004 = vsel %vm497, %v10001, %v10003
        %v10005 = vrot.slane %v9855, 2
        %v10006 = vrot.slane %v9856, 2
        %v10007 = vsel %vm497, %v10005, %v10006
        %v10008 = vrot.slane %v9857, 2
        %v10009 = vsel %vm497, %v10006, %v10008
        %v10010 = vrot.slane %v9858, 2
        %v10011 = vrot.slane %v9859, 2
        %v10012 = vsel %vm497, %v10010, %v10011
        %v10013 = vrot.slane %v9860, 2
        %v10014 = vsel %vm497, %v10011, %v10013
        %v10015 = vrot.slane %v9861, 2
        %v10016 = vrot.slane %v9862, 2
        %v10017 = vsel %vm497, %v10015, %v10016
        %v10018 = vrot.slane %v9863, 2
        %v10019 = vsel %vm497, %v10016, %v10018
        %10028 = vrot.lane.b32.xlu0 %v10002, 127
        %v10029 = vpop.permute.xlu0 %10028
        %10030 = vrot.lane.b32.xlu0 %v10004, 127
        %v10031 = vpop.permute.xlu0 %10030
        %10032 = vrot.lane.b32.xlu0 %v10007, 127
        %v10033 = vpop.permute.xlu0 %10032
        %10034 = vrot.lane.b32.xlu0 %v10009, 127
        %v10035 = vpop.permute.xlu0 %10034
        %10036 = vrot.lane.b32.xlu0 %v10012, 127
        %v10037 = vpop.permute.xlu0 %10036
        %10038 = vrot.lane.b32.xlu0 %v10014, 127
        %v10039 = vpop.permute.xlu0 %10038
        %10040 = vrot.lane.b32.xlu0 %v10017, 127
        %v10041 = vpop.permute.xlu0 %10040
        %10042 = vrot.lane.b32.xlu0 %v10019, 127
        %v10043 = vpop.permute.xlu0 %10042
        %10052 = vrot.lane.b32.xlu0 %v10002, 126
        %v10053 = vpop.permute.xlu0 %10052
        %10054 = vrot.lane.b32.xlu0 %v10004, 126
        %v10055 = vpop.permute.xlu0 %10054
        %10056 = vrot.lane.b32.xlu0 %v10007, 126
        %v10057 = vpop.permute.xlu0 %10056
        %10058 = vrot.lane.b32.xlu0 %v10009, 126
        %v10059 = vpop.permute.xlu0 %10058
        %10060 = vrot.lane.b32.xlu0 %v10012, 126
        %v10061 = vpop.permute.xlu0 %10060
        %10062 = vrot.lane.b32.xlu0 %v10014, 126
        %v10063 = vpop.permute.xlu0 %10062
        %10064 = vrot.lane.b32.xlu0 %v10017, 126
        %v10065 = vpop.permute.xlu0 %10064
        %10066 = vrot.lane.b32.xlu0 %v10019, 126
        %v10067 = vpop.permute.xlu0 %10066
        %v10076 = vcombine.low %v9852, %v9858
        %v10077 = vcombine.high %v9852, %v9858
        %v10079 = vunpack.c.l.s4 1983009808
        %v10080 = vunpack.c.0.s8 %v10079
        %v10081 = vlaneseq
        %v10082 = vshrl.u32 %v10081, 7
        %v10083 = vsub.s32 %v10080, %v10082
        %v10084 = vrot.slane %v10076, %v10083
        %v10086 = vunpack.c.l.s4 1983009808
        %v10087 = vunpack.c.0.s8 %v10086
        %v10088 = vlaneseq
        %v10089 = vshrl.u32 %v10088, 7
        %v10090 = vsub.s32 %v10087, %v10089
        %v10091 = vrot.slane %v10077, %v10090
        %v10092 = vcombine.low %v9855, %v9861
        %v10093 = vcombine.high %v9855, %v9861
        %v10095 = vunpack.c.l.s4 1983009808
        %v10096 = vunpack.c.0.s8 %v10095
        %v10097 = vlaneseq
        %v10098 = vshrl.u32 %v10097, 7
        %v10099 = vsub.s32 %v10096, %v10098
        %v10100 = vrot.slane %v10092, %v10099
        %v10102 = vunpack.c.l.s4 1983009808
        %v10103 = vunpack.c.0.s8 %v10102
        %v10104 = vlaneseq
        %v10105 = vshrl.u32 %v10104, 7
        %v10106 = vsub.s32 %v10103, %v10105
        %v10107 = vrot.slane %v10093, %v10106
        %v10108 = vcombine.low %v9873, %v9881
        %v10109 = vcombine.high %v9873, %v9881
        %v10111 = vunpack.c.l.s4 1983009808
        %v10112 = vunpack.c.0.s8 %v10111
        %v10113 = vlaneseq
        %v10114 = vshrl.u32 %v10113, 7
        %v10115 = vsub.s32 %v10112, %v10114
        %v10116 = vrot.slane %v10108, %v10115
        %v10118 = vunpack.c.l.s4 1983009808
        %v10119 = vunpack.c.0.s8 %v10118
        %v10120 = vlaneseq
        %v10121 = vshrl.u32 %v10120, 7
        %v10122 = vsub.s32 %v10119, %v10121
        %v10123 = vrot.slane %v10109, %v10122
        %v10124 = vcombine.low %v9877, %v9885
        %v10125 = vcombine.high %v9877, %v9885
        %v10127 = vunpack.c.l.s4 1983009808
        %v10128 = vunpack.c.0.s8 %v10127
        %v10129 = vlaneseq
        %v10130 = vshrl.u32 %v10129, 7
        %v10131 = vsub.s32 %v10128, %v10130
        %v10132 = vrot.slane %v10124, %v10131
        %v10134 = vunpack.c.l.s4 1983009808
        %v10135 = vunpack.c.0.s8 %v10134
        %v10136 = vlaneseq
        %v10137 = vshrl.u32 %v10136, 7
        %v10138 = vsub.s32 %v10135, %v10137
        %v10139 = vrot.slane %v10125, %v10138
        %v10140 = vcombine.low %v10084, %v10100
        %v10141 = vcombine.high %v10084, %v10100
        %v10143 = vunpack.c.l.s4 1934713408
        %v10144 = vunpack.c.0.s8 %v10143
        %v10145 = vlaneseq
        %v10146 = vshrl.u32 %v10145, 7
        %v10147 = vsub.s32 %v10144, %v10146
        %v10148 = vrot.slane %v10140, %v10147
        %v10150 = vunpack.c.l.s4 1934713408
        %v10151 = vunpack.c.0.s8 %v10150
        %v10152 = vlaneseq
        %v10153 = vshrl.u32 %v10152, 7
        %v10154 = vsub.s32 %v10151, %v10153
        %v10155 = vrot.slane %v10141, %v10154
        %v10156 = vcombine.low %v10091, %v10107
        %v10157 = vcombine.high %v10091, %v10107
        %v10159 = vunpack.c.l.s4 1934713408
        %v10160 = vunpack.c.0.s8 %v10159
        %v10161 = vlaneseq
        %v10162 = vshrl.u32 %v10161, 7
        %v10163 = vsub.s32 %v10160, %v10162
        %v10164 = vrot.slane %v10156, %v10163
        %v10166 = vunpack.c.l.s4 1934713408
        %v10167 = vunpack.c.0.s8 %v10166
        %v10168 = vlaneseq
        %v10169 = vshrl.u32 %v10168, 7
        %v10170 = vsub.s32 %v10167, %v10169
        %v10171 = vrot.slane %v10157, %v10170
        %v10172 = vcombine.low %v10116, %v10132
        %v10173 = vcombine.high %v10116, %v10132
        %v10175 = vunpack.c.l.s4 1934713408
        %v10176 = vunpack.c.0.s8 %v10175
        %v10177 = vlaneseq
        %v10178 = vshrl.u32 %v10177, 7
        %v10179 = vsub.s32 %v10176, %v10178
        %v10180 = vrot.slane %v10172, %v10179
        %v10182 = vunpack.c.l.s4 1934713408
        %v10183 = vunpack.c.0.s8 %v10182
        %v10184 = vlaneseq
        %v10185 = vshrl.u32 %v10184, 7
        %v10186 = vsub.s32 %v10183, %v10185
        %v10187 = vrot.slane %v10173, %v10186
        %v10188 = vcombine.low %v10123, %v10139
        %v10189 = vcombine.high %v10123, %v10139
        %v10191 = vunpack.c.l.s4 1934713408
        %v10192 = vunpack.c.0.s8 %v10191
        %v10193 = vlaneseq
        %v10194 = vshrl.u32 %v10193, 7
        %v10195 = vsub.s32 %v10192, %v10194
        %v10196 = vrot.slane %v10188, %v10195
        %v10198 = vunpack.c.l.s4 1934713408
        %v10199 = vunpack.c.0.s8 %v10198
        %v10200 = vlaneseq
        %v10201 = vshrl.u32 %v10200, 7
        %v10202 = vsub.s32 %v10199, %v10201
        %v10203 = vrot.slane %v10189, %v10202
        %v10204 = vcombine.low %v10148, %v10180
        %v10205 = vcombine.high %v10148, %v10180
        %v10206 = vcombine.low %v10155, %v10187
        %v10207 = vcombine.high %v10155, %v10187
        %v10208 = vcombine.low %v10164, %v10196
        %v10209 = vcombine.high %v10164, %v10196
        %v10210 = vcombine.low %v10171, %v10203
        %v10211 = vcombine.high %v10171, %v10203
        %v10212 = vcombine.low %v9897, %v9905
        %v10213 = vcombine.high %v9897, %v9905
        %v10215 = vunpack.c.l.s4 1983009808
        %v10216 = vunpack.c.0.s8 %v10215
        %v10217 = vlaneseq
        %v10218 = vshrl.u32 %v10217, 7
        %v10219 = vsub.s32 %v10216, %v10218
        %v10220 = vrot.slane %v10212, %v10219
        %v10222 = vunpack.c.l.s4 1983009808
        %v10223 = vunpack.c.0.s8 %v10222
        %v10224 = vlaneseq
        %v10225 = vshrl.u32 %v10224, 7
        %v10226 = vsub.s32 %v10223, %v10225
        %v10227 = vrot.slane %v10213, %v10226
        %v10228 = vcombine.low %v9901, %v9909
        %v10229 = vcombine.high %v9901, %v9909
        %v10231 = vunpack.c.l.s4 1983009808
        %v10232 = vunpack.c.0.s8 %v10231
        %v10233 = vlaneseq
        %v10234 = vshrl.u32 %v10233, 7
        %v10235 = vsub.s32 %v10232, %v10234
        %v10236 = vrot.slane %v10228, %v10235
        %v10238 = vunpack.c.l.s4 1983009808
        %v10239 = vunpack.c.0.s8 %v10238
        %v10240 = vlaneseq
        %v10241 = vshrl.u32 %v10240, 7
        %v10242 = vsub.s32 %v10239, %v10241
        %v10243 = vrot.slane %v10229, %v10242
        %v10244 = vcombine.low %v9926, %v9936
        %v10245 = vcombine.high %v9926, %v9936
        %v10247 = vunpack.c.l.s4 1983009808
        %v10248 = vunpack.c.0.s8 %v10247
        %v10249 = vlaneseq
        %v10250 = vshrl.u32 %v10249, 7
        %v10251 = vsub.s32 %v10248, %v10250
        %v10252 = vrot.slane %v10244, %v10251
        %v10254 = vunpack.c.l.s4 1983009808
        %v10255 = vunpack.c.0.s8 %v10254
        %v10256 = vlaneseq
        %v10257 = vshrl.u32 %v10256, 7
        %v10258 = vsub.s32 %v10255, %v10257
        %v10259 = vrot.slane %v10245, %v10258
        %v10260 = vcombine.low %v9931, %v9941
        %v10261 = vcombine.high %v9931, %v9941
        %v10263 = vunpack.c.l.s4 1983009808
        %v10264 = vunpack.c.0.s8 %v10263
        %v10265 = vlaneseq
        %v10266 = vshrl.u32 %v10265, 7
        %v10267 = vsub.s32 %v10264, %v10266
        %v10268 = vrot.slane %v10260, %v10267
        %v10270 = vunpack.c.l.s4 1983009808
        %v10271 = vunpack.c.0.s8 %v10270
        %v10272 = vlaneseq
        %v10273 = vshrl.u32 %v10272, 7
        %v10274 = vsub.s32 %v10271, %v10273
        %v10275 = vrot.slane %v10261, %v10274
        %v10276 = vcombine.low %v10220, %v10236
        %v10277 = vcombine.high %v10220, %v10236
        %v10279 = vunpack.c.l.s4 1934713408
        %v10280 = vunpack.c.0.s8 %v10279
        %v10281 = vlaneseq
        %v10282 = vshrl.u32 %v10281, 7
        %v10283 = vsub.s32 %v10280, %v10282
        %v10284 = vrot.slane %v10276, %v10283
        %v10286 = vunpack.c.l.s4 1934713408
        %v10287 = vunpack.c.0.s8 %v10286
        %v10288 = vlaneseq
        %v10289 = vshrl.u32 %v10288, 7
        %v10290 = vsub.s32 %v10287, %v10289
        %v10291 = vrot.slane %v10277, %v10290
        %v10292 = vcombine.low %v10227, %v10243
        %v10293 = vcombine.high %v10227, %v10243
        %v10295 = vunpack.c.l.s4 1934713408
        %v10296 = vunpack.c.0.s8 %v10295
        %v10297 = vlaneseq
        %v10298 = vshrl.u32 %v10297, 7
        %v10299 = vsub.s32 %v10296, %v10298
        %v10300 = vrot.slane %v10292, %v10299
        %v10302 = vunpack.c.l.s4 1934713408
        %v10303 = vunpack.c.0.s8 %v10302
        %v10304 = vlaneseq
        %v10305 = vshrl.u32 %v10304, 7
        %v10306 = vsub.s32 %v10303, %v10305
        %v10307 = vrot.slane %v10293, %v10306
        %v10308 = vcombine.low %v10252, %v10268
        %v10309 = vcombine.high %v10252, %v10268
        %v10311 = vunpack.c.l.s4 1934713408
        %v10312 = vunpack.c.0.s8 %v10311
        %v10313 = vlaneseq
        %v10314 = vshrl.u32 %v10313, 7
        %v10315 = vsub.s32 %v10312, %v10314
        %v10316 = vrot.slane %v10308, %v10315
        %v10318 = vunpack.c.l.s4 1934713408
        %v10319 = vunpack.c.0.s8 %v10318
        %v10320 = vlaneseq
        %v10321 = vshrl.u32 %v10320, 7
        %v10322 = vsub.s32 %v10319, %v10321
        %v10323 = vrot.slane %v10309, %v10322
        %v10324 = vcombine.low %v10259, %v10275
        %v10325 = vcombine.high %v10259, %v10275
        %v10327 = vunpack.c.l.s4 1934713408
        %v10328 = vunpack.c.0.s8 %v10327
        %v10329 = vlaneseq
        %v10330 = vshrl.u32 %v10329, 7
        %v10331 = vsub.s32 %v10328, %v10330
        %v10332 = vrot.slane %v10324, %v10331
        %v10334 = vunpack.c.l.s4 1934713408
        %v10335 = vunpack.c.0.s8 %v10334
        %v10336 = vlaneseq
        %v10337 = vshrl.u32 %v10336, 7
        %v10338 = vsub.s32 %v10335, %v10337
        %v10339 = vrot.slane %v10325, %v10338
        %v10340 = vcombine.low %v10284, %v10316
        %v10341 = vcombine.high %v10284, %v10316
        %v10342 = vcombine.low %v10291, %v10323
        %v10343 = vcombine.high %v10291, %v10323
        %v10344 = vcombine.low %v10300, %v10332
        %v10345 = vcombine.high %v10300, %v10332
        %v10346 = vcombine.low %v10307, %v10339
        %v10347 = vcombine.high %v10307, %v10339
        %v10348 = vcombine.low %v9953, %v9961
        %v10349 = vcombine.high %v9953, %v9961
        %v10351 = vunpack.c.l.s4 1983009808
        %v10352 = vunpack.c.0.s8 %v10351
        %v10353 = vlaneseq
        %v10354 = vshrl.u32 %v10353, 7
        %v10355 = vsub.s32 %v10352, %v10354
        %v10356 = vrot.slane %v10348, %v10355
        %v10358 = vunpack.c.l.s4 1983009808
        %v10359 = vunpack.c.0.s8 %v10358
        %v10360 = vlaneseq
        %v10361 = vshrl.u32 %v10360, 7
        %v10362 = vsub.s32 %v10359, %v10361
        %v10363 = vrot.slane %v10349, %v10362
        %v10364 = vcombine.low %v9957, %v9965
        %v10365 = vcombine.high %v9957, %v9965
        %v10367 = vunpack.c.l.s4 1983009808
        %v10368 = vunpack.c.0.s8 %v10367
        %v10369 = vlaneseq
        %v10370 = vshrl.u32 %v10369, 7
        %v10371 = vsub.s32 %v10368, %v10370
        %v10372 = vrot.slane %v10364, %v10371
        %v10374 = vunpack.c.l.s4 1983009808
        %v10375 = vunpack.c.0.s8 %v10374
        %v10376 = vlaneseq
        %v10377 = vshrl.u32 %v10376, 7
        %v10378 = vsub.s32 %v10375, %v10377
        %v10379 = vrot.slane %v10365, %v10378
        %v10380 = vcombine.low %v9977, %v9985
        %v10381 = vcombine.high %v9977, %v9985
        %v10383 = vunpack.c.l.s4 1983009808
        %v10384 = vunpack.c.0.s8 %v10383
        %v10385 = vlaneseq
        %v10386 = vshrl.u32 %v10385, 7
        %v10387 = vsub.s32 %v10384, %v10386
        %v10388 = vrot.slane %v10380, %v10387
        %v10390 = vunpack.c.l.s4 1983009808
        %v10391 = vunpack.c.0.s8 %v10390
        %v10392 = vlaneseq
        %v10393 = vshrl.u32 %v10392, 7
        %v10394 = vsub.s32 %v10391, %v10393
        %v10395 = vrot.slane %v10381, %v10394
        %v10396 = vcombine.low %v9981, %v9989
        %v10397 = vcombine.high %v9981, %v9989
        %v10399 = vunpack.c.l.s4 1983009808
        %v10400 = vunpack.c.0.s8 %v10399
        %v10401 = vlaneseq
        %v10402 = vshrl.u32 %v10401, 7
        %v10403 = vsub.s32 %v10400, %v10402
        %v10404 = vrot.slane %v10396, %v10403
        %v10406 = vunpack.c.l.s4 1983009808
        %v10407 = vunpack.c.0.s8 %v10406
        %v10408 = vlaneseq
        %v10409 = vshrl.u32 %v10408, 7
        %v10410 = vsub.s32 %v10407, %v10409
        %v10411 = vrot.slane %v10397, %v10410
        %v10412 = vcombine.low %v10356, %v10372
        %v10413 = vcombine.high %v10356, %v10372
        %v10415 = vunpack.c.l.s4 1934713408
        %v10416 = vunpack.c.0.s8 %v10415
        %v10417 = vlaneseq
        %v10418 = vshrl.u32 %v10417, 7
        %v10419 = vsub.s32 %v10416, %v10418
        %v10420 = vrot.slane %v10412, %v10419
        %v10422 = vunpack.c.l.s4 1934713408
        %v10423 = vunpack.c.0.s8 %v10422
        %v10424 = vlaneseq
        %v10425 = vshrl.u32 %v10424, 7
        %v10426 = vsub.s32 %v10423, %v10425
        %v10427 = vrot.slane %v10413, %v10426
        %v10428 = vcombine.low %v10363, %v10379
        %v10429 = vcombine.high %v10363, %v10379
        %v10431 = vunpack.c.l.s4 1934713408
        %v10432 = vunpack.c.0.s8 %v10431
        %v10433 = vlaneseq
        %v10434 = vshrl.u32 %v10433, 7
        %v10435 = vsub.s32 %v10432, %v10434
        %v10436 = vrot.slane %v10428, %v10435
        %v10438 = vunpack.c.l.s4 1934713408
        %v10439 = vunpack.c.0.s8 %v10438
        %v10440 = vlaneseq
        %v10441 = vshrl.u32 %v10440, 7
        %v10442 = vsub.s32 %v10439, %v10441
        %v10443 = vrot.slane %v10429, %v10442
        %v10444 = vcombine.low %v10388, %v10404
        %v10445 = vcombine.high %v10388, %v10404
        %v10447 = vunpack.c.l.s4 1934713408
        %v10448 = vunpack.c.0.s8 %v10447
        %v10449 = vlaneseq
        %v10450 = vshrl.u32 %v10449, 7
        %v10451 = vsub.s32 %v10448, %v10450
        %v10452 = vrot.slane %v10444, %v10451
        %v10454 = vunpack.c.l.s4 1934713408
        %v10455 = vunpack.c.0.s8 %v10454
        %v10456 = vlaneseq
        %v10457 = vshrl.u32 %v10456, 7
        %v10458 = vsub.s32 %v10455, %v10457
        %v10459 = vrot.slane %v10445, %v10458
        %v10460 = vcombine.low %v10395, %v10411
        %v10461 = vcombine.high %v10395, %v10411
        %v10463 = vunpack.c.l.s4 1934713408
        %v10464 = vunpack.c.0.s8 %v10463
        %v10465 = vlaneseq
        %v10466 = vshrl.u32 %v10465, 7
        %v10467 = vsub.s32 %v10464, %v10466
        %v10468 = vrot.slane %v10460, %v10467
        %v10470 = vunpack.c.l.s4 1934713408
        %v10471 = vunpack.c.0.s8 %v10470
        %v10472 = vlaneseq
        %v10473 = vshrl.u32 %v10472, 7
        %v10474 = vsub.s32 %v10471, %v10473
        %v10475 = vrot.slane %v10461, %v10474
        %v10476 = vcombine.low %v10420, %v10452
        %v10477 = vcombine.high %v10420, %v10452
        %v10478 = vcombine.low %v10427, %v10459
        %v10479 = vcombine.high %v10427, %v10459
        %v10480 = vcombine.low %v10436, %v10468
        %v10481 = vcombine.high %v10436, %v10468
        %v10482 = vcombine.low %v10443, %v10475
        %v10483 = vcombine.high %v10443, %v10475
        %v10484 = vcombine.low %v10002, %v10012
        %v10485 = vcombine.high %v10002, %v10012
        %v10487 = vunpack.c.l.s4 1983009808
        %v10488 = vunpack.c.0.s8 %v10487
        %v10489 = vlaneseq
        %v10490 = vshrl.u32 %v10489, 7
        %v10491 = vsub.s32 %v10488, %v10490
        %v10492 = vrot.slane %v10484, %v10491
        %v10494 = vunpack.c.l.s4 1983009808
        %v10495 = vunpack.c.0.s8 %v10494
        %v10496 = vlaneseq
        %v10497 = vshrl.u32 %v10496, 7
        %v10498 = vsub.s32 %v10495, %v10497
        %v10499 = vrot.slane %v10485, %v10498
        %v10500 = vcombine.low %v10007, %v10017
        %v10501 = vcombine.high %v10007, %v10017
        %v10503 = vunpack.c.l.s4 1983009808
        %v10504 = vunpack.c.0.s8 %v10503
        %v10505 = vlaneseq
        %v10506 = vshrl.u32 %v10505, 7
        %v10507 = vsub.s32 %v10504, %v10506
        %v10508 = vrot.slane %v10500, %v10507
        %v10510 = vunpack.c.l.s4 1983009808
        %v10511 = vunpack.c.0.s8 %v10510
        %v10512 = vlaneseq
        %v10513 = vshrl.u32 %v10512, 7
        %v10514 = vsub.s32 %v10511, %v10513
        %v10515 = vrot.slane %v10501, %v10514
        %v10516 = vcombine.low %v10029, %v10037
        %v10517 = vcombine.high %v10029, %v10037
        %v10519 = vunpack.c.l.s4 1983009808
        %v10520 = vunpack.c.0.s8 %v10519
        %v10521 = vlaneseq
        %v10522 = vshrl.u32 %v10521, 7
        %v10523 = vsub.s32 %v10520, %v10522
        %v10524 = vrot.slane %v10516, %v10523
        %v10526 = vunpack.c.l.s4 1983009808
        %v10527 = vunpack.c.0.s8 %v10526
        %v10528 = vlaneseq
        %v10529 = vshrl.u32 %v10528, 7
        %v10530 = vsub.s32 %v10527, %v10529
        %v10531 = vrot.slane %v10517, %v10530
        %v10532 = vcombine.low %v10033, %v10041
        %v10533 = vcombine.high %v10033, %v10041
        %v10535 = vunpack.c.l.s4 1983009808
        %v10536 = vunpack.c.0.s8 %v10535
        %v10537 = vlaneseq
        %v10538 = vshrl.u32 %v10537, 7
        %v10539 = vsub.s32 %v10536, %v10538
        %v10540 = vrot.slane %v10532, %v10539
        %v10542 = vunpack.c.l.s4 1983009808
        %v10543 = vunpack.c.0.s8 %v10542
        %v10544 = vlaneseq
        %v10545 = vshrl.u32 %v10544, 7
        %v10546 = vsub.s32 %v10543, %v10545
        %v10547 = vrot.slane %v10533, %v10546
        %v10548 = vcombine.low %v10492, %v10508
        %v10549 = vcombine.high %v10492, %v10508
        %v10551 = vunpack.c.l.s4 1934713408
        %v10552 = vunpack.c.0.s8 %v10551
        %v10553 = vlaneseq
        %v10554 = vshrl.u32 %v10553, 7
        %v10555 = vsub.s32 %v10552, %v10554
        %v10556 = vrot.slane %v10548, %v10555
        %v10558 = vunpack.c.l.s4 1934713408
        %v10559 = vunpack.c.0.s8 %v10558
        %v10560 = vlaneseq
        %v10561 = vshrl.u32 %v10560, 7
        %v10562 = vsub.s32 %v10559, %v10561
        %v10563 = vrot.slane %v10549, %v10562
        %v10564 = vcombine.low %v10499, %v10515
        %v10565 = vcombine.high %v10499, %v10515
        %v10567 = vunpack.c.l.s4 1934713408
        %v10568 = vunpack.c.0.s8 %v10567
        %v10569 = vlaneseq
        %v10570 = vshrl.u32 %v10569, 7
        %v10571 = vsub.s32 %v10568, %v10570
        %v10572 = vrot.slane %v10564, %v10571
        %v10574 = vunpack.c.l.s4 1934713408
        %v10575 = vunpack.c.0.s8 %v10574
        %v10576 = vlaneseq
        %v10577 = vshrl.u32 %v10576, 7
        %v10578 = vsub.s32 %v10575, %v10577
        %v10579 = vrot.slane %v10565, %v10578
        %v10580 = vcombine.low %v10524, %v10540
        %v10581 = vcombine.high %v10524, %v10540
        %v10583 = vunpack.c.l.s4 1934713408
        %v10584 = vunpack.c.0.s8 %v10583
        %v10585 = vlaneseq
        %v10586 = vshrl.u32 %v10585, 7
        %v10587 = vsub.s32 %v10584, %v10586
        %v10588 = vrot.slane %v10580, %v10587
        %v10590 = vunpack.c.l.s4 1934713408
        %v10591 = vunpack.c.0.s8 %v10590
        %v10592 = vlaneseq
        %v10593 = vshrl.u32 %v10592, 7
        %v10594 = vsub.s32 %v10591, %v10593
        %v10595 = vrot.slane %v10581, %v10594
        %v10596 = vcombine.low %v10531, %v10547
        %v10597 = vcombine.high %v10531, %v10547
        %v10599 = vunpack.c.l.s4 1934713408
        %v10600 = vunpack.c.0.s8 %v10599
        %v10601 = vlaneseq
        %v10602 = vshrl.u32 %v10601, 7
        %v10603 = vsub.s32 %v10600, %v10602
        %v10604 = vrot.slane %v10596, %v10603
        %v10606 = vunpack.c.l.s4 1934713408
        %v10607 = vunpack.c.0.s8 %v10606
        %v10608 = vlaneseq
        %v10609 = vshrl.u32 %v10608, 7
        %v10610 = vsub.s32 %v10607, %v10609
        %v10611 = vrot.slane %v10597, %v10610
        %v10612 = vcombine.low %v10556, %v10588
        %v10613 = vcombine.high %v10556, %v10588
        %v10614 = vcombine.low %v10563, %v10595
        %v10615 = vcombine.high %v10563, %v10595
        %v10616 = vcombine.low %v10572, %v10604
        %v10617 = vcombine.high %v10572, %v10604
        %v10618 = vcombine.low %v10579, %v10611
        %v10619 = vcombine.high %v10579, %v10611
        %v10620 = vcombine.low %v10053, %v10061
        %v10621 = vcombine.high %v10053, %v10061
        %v10623 = vunpack.c.l.s4 1983009808
        %v10624 = vunpack.c.0.s8 %v10623
        %v10625 = vlaneseq
        %v10626 = vshrl.u32 %v10625, 7
        %v10627 = vsub.s32 %v10624, %v10626
        %v10628 = vrot.slane %v10620, %v10627
        %v10630 = vunpack.c.l.s4 1983009808
        %v10631 = vunpack.c.0.s8 %v10630
        %v10632 = vlaneseq
        %v10633 = vshrl.u32 %v10632, 7
        %v10634 = vsub.s32 %v10631, %v10633
        %v10635 = vrot.slane %v10621, %v10634
        %v10636 = vcombine.low %v10057, %v10065
        %v10637 = vcombine.high %v10057, %v10065
        %v10639 = vunpack.c.l.s4 1983009808
        %v10640 = vunpack.c.0.s8 %v10639
        %v10641 = vlaneseq
        %v10642 = vshrl.u32 %v10641, 7
        %v10643 = vsub.s32 %v10640, %v10642
        %v10644 = vrot.slane %v10636, %v10643
        %v10646 = vunpack.c.l.s4 1983009808
        %v10647 = vunpack.c.0.s8 %v10646
        %v10648 = vlaneseq
        %v10649 = vshrl.u32 %v10648, 7
        %v10650 = vsub.s32 %v10647, %v10649
        %v10651 = vrot.slane %v10637, %v10650
        %v10652 = vcombine.low %v10628, %v10644
        %v10653 = vcombine.high %v10628, %v10644
        %v10655 = vunpack.c.l.s4 1934713408
        %v10656 = vunpack.c.0.s8 %v10655
        %v10657 = vlaneseq
        %v10658 = vshrl.u32 %v10657, 7
        %v10659 = vsub.s32 %v10656, %v10658
        %v10660 = vrot.slane %v10652, %v10659
        %v10662 = vunpack.c.l.s4 1934713408
        %v10663 = vunpack.c.0.s8 %v10662
        %v10664 = vlaneseq
        %v10665 = vshrl.u32 %v10664, 7
        %v10666 = vsub.s32 %v10663, %v10665
        %v10667 = vrot.slane %v10653, %v10666
        %v10668 = vcombine.low %v10635, %v10651
        %v10669 = vcombine.high %v10635, %v10651
        %v10671 = vunpack.c.l.s4 1934713408
        %v10672 = vunpack.c.0.s8 %v10671
        %v10673 = vlaneseq
        %v10674 = vshrl.u32 %v10673, 7
        %v10675 = vsub.s32 %v10672, %v10674
        %v10676 = vrot.slane %v10668, %v10675
        %v10678 = vunpack.c.l.s4 1934713408
        %v10679 = vunpack.c.0.s8 %v10678
        %v10680 = vlaneseq
        %v10681 = vshrl.u32 %v10680, 7
        %v10682 = vsub.s32 %v10679, %v10681
        %v10683 = vrot.slane %v10669, %v10682
        %v10684 = vcombine.high %v10660, 0.0
        %v10685 = vcombine.high %v10667, 0.0
        %v10686 = vcombine.high %v10676, 0.0
        %v10687 = vcombine.high %v10683, 0.0
        %v10688 = vcombine.low %v9853, %v9859
        %v10689 = vcombine.high %v9853, %v9859
        %v10691 = vunpack.c.l.s4 1983009808
        %v10692 = vunpack.c.0.s8 %v10691
        %v10693 = vlaneseq
        %v10694 = vshrl.u32 %v10693, 7
        %v10695 = vsub.s32 %v10692, %v10694
        %v10696 = vrot.slane %v10688, %v10695
        %v10698 = vunpack.c.l.s4 1983009808
        %v10699 = vunpack.c.0.s8 %v10698
        %v10700 = vlaneseq
        %v10701 = vshrl.u32 %v10700, 7
        %v10702 = vsub.s32 %v10699, %v10701
        %v10703 = vrot.slane %v10689, %v10702
        %v10704 = vcombine.low %v9856, %v9862
        %v10705 = vcombine.high %v9856, %v9862
        %v10707 = vunpack.c.l.s4 1983009808
        %v10708 = vunpack.c.0.s8 %v10707
        %v10709 = vlaneseq
        %v10710 = vshrl.u32 %v10709, 7
        %v10711 = vsub.s32 %v10708, %v10710
        %v10712 = vrot.slane %v10704, %v10711
        %v10714 = vunpack.c.l.s4 1983009808
        %v10715 = vunpack.c.0.s8 %v10714
        %v10716 = vlaneseq
        %v10717 = vshrl.u32 %v10716, 7
        %v10718 = vsub.s32 %v10715, %v10717
        %v10719 = vrot.slane %v10705, %v10718
        %v10720 = vcombine.low %v9875, %v9883
        %v10721 = vcombine.high %v9875, %v9883
        %v10723 = vunpack.c.l.s4 1983009808
        %v10724 = vunpack.c.0.s8 %v10723
        %v10725 = vlaneseq
        %v10726 = vshrl.u32 %v10725, 7
        %v10727 = vsub.s32 %v10724, %v10726
        %v10728 = vrot.slane %v10720, %v10727
        %v10730 = vunpack.c.l.s4 1983009808
        %v10731 = vunpack.c.0.s8 %v10730
        %v10732 = vlaneseq
        %v10733 = vshrl.u32 %v10732, 7
        %v10734 = vsub.s32 %v10731, %v10733
        %v10735 = vrot.slane %v10721, %v10734
        %v10736 = vcombine.low %v9879, %v9887
        %v10737 = vcombine.high %v9879, %v9887
        %v10739 = vunpack.c.l.s4 1983009808
        %v10740 = vunpack.c.0.s8 %v10739
        %v10741 = vlaneseq
        %v10742 = vshrl.u32 %v10741, 7
        %v10743 = vsub.s32 %v10740, %v10742
        %v10744 = vrot.slane %v10736, %v10743
        %v10746 = vunpack.c.l.s4 1983009808
        %v10747 = vunpack.c.0.s8 %v10746
        %v10748 = vlaneseq
        %v10749 = vshrl.u32 %v10748, 7
        %v10750 = vsub.s32 %v10747, %v10749
        %v10751 = vrot.slane %v10737, %v10750
        %v10752 = vcombine.low %v10696, %v10712
        %v10753 = vcombine.high %v10696, %v10712
        %v10755 = vunpack.c.l.s4 1934713408
        %v10756 = vunpack.c.0.s8 %v10755
        %v10757 = vlaneseq
        %v10758 = vshrl.u32 %v10757, 7
        %v10759 = vsub.s32 %v10756, %v10758
        %v10760 = vrot.slane %v10752, %v10759
        %v10762 = vunpack.c.l.s4 1934713408
        %v10763 = vunpack.c.0.s8 %v10762
        %v10764 = vlaneseq
        %v10765 = vshrl.u32 %v10764, 7
        %v10766 = vsub.s32 %v10763, %v10765
        %v10767 = vrot.slane %v10753, %v10766
        %v10768 = vcombine.low %v10703, %v10719
        %v10769 = vcombine.high %v10703, %v10719
        %v10771 = vunpack.c.l.s4 1934713408
        %v10772 = vunpack.c.0.s8 %v10771
        %v10773 = vlaneseq
        %v10774 = vshrl.u32 %v10773, 7
        %v10775 = vsub.s32 %v10772, %v10774
        %v10776 = vrot.slane %v10768, %v10775
        %v10778 = vunpack.c.l.s4 1934713408
        %v10779 = vunpack.c.0.s8 %v10778
        %v10780 = vlaneseq
        %v10781 = vshrl.u32 %v10780, 7
        %v10782 = vsub.s32 %v10779, %v10781
        %v10783 = vrot.slane %v10769, %v10782
        %v10784 = vcombine.low %v10728, %v10744
        %v10785 = vcombine.high %v10728, %v10744
        %v10787 = vunpack.c.l.s4 1934713408
        %v10788 = vunpack.c.0.s8 %v10787
        %v10789 = vlaneseq
        %v10790 = vshrl.u32 %v10789, 7
        %v10791 = vsub.s32 %v10788, %v10790
        %v10792 = vrot.slane %v10784, %v10791
        %v10794 = vunpack.c.l.s4 1934713408
        %v10795 = vunpack.c.0.s8 %v10794
        %v10796 = vlaneseq
        %v10797 = vshrl.u32 %v10796, 7
        %v10798 = vsub.s32 %v10795, %v10797
        %v10799 = vrot.slane %v10785, %v10798
        %v10800 = vcombine.low %v10735, %v10751
        %v10801 = vcombine.high %v10735, %v10751
        %v10803 = vunpack.c.l.s4 1934713408
        %v10804 = vunpack.c.0.s8 %v10803
        %v10805 = vlaneseq
        %v10806 = vshrl.u32 %v10805, 7
        %v10807 = vsub.s32 %v10804, %v10806
        %v10808 = vrot.slane %v10800, %v10807
        %v10810 = vunpack.c.l.s4 1934713408
        %v10811 = vunpack.c.0.s8 %v10810
        %v10812 = vlaneseq
        %v10813 = vshrl.u32 %v10812, 7
        %v10814 = vsub.s32 %v10811, %v10813
        %v10815 = vrot.slane %v10801, %v10814
        %v10816 = vcombine.low %v10760, %v10792
        %v10817 = vcombine.high %v10760, %v10792
        %v10818 = vcombine.low %v10767, %v10799
        %v10819 = vcombine.high %v10767, %v10799
        %v10820 = vcombine.low %v10776, %v10808
        %v10821 = vcombine.high %v10776, %v10808
        %v10822 = vcombine.low %v10783, %v10815
        %v10823 = vcombine.high %v10783, %v10815
        %v10824 = vcombine.low %v9899, %v9907
        %v10825 = vcombine.high %v9899, %v9907
        %v10827 = vunpack.c.l.s4 1983009808
        %v10828 = vunpack.c.0.s8 %v10827
        %v10829 = vlaneseq
        %v10830 = vshrl.u32 %v10829, 7
        %v10831 = vsub.s32 %v10828, %v10830
        %v10832 = vrot.slane %v10824, %v10831
        %v10834 = vunpack.c.l.s4 1983009808
        %v10835 = vunpack.c.0.s8 %v10834
        %v10836 = vlaneseq
        %v10837 = vshrl.u32 %v10836, 7
        %v10838 = vsub.s32 %v10835, %v10837
        %v10839 = vrot.slane %v10825, %v10838
        %v10840 = vcombine.low %v9903, %v9911
        %v10841 = vcombine.high %v9903, %v9911
        %v10843 = vunpack.c.l.s4 1983009808
        %v10844 = vunpack.c.0.s8 %v10843
        %v10845 = vlaneseq
        %v10846 = vshrl.u32 %v10845, 7
        %v10847 = vsub.s32 %v10844, %v10846
        %v10848 = vrot.slane %v10840, %v10847
        %v10850 = vunpack.c.l.s4 1983009808
        %v10851 = vunpack.c.0.s8 %v10850
        %v10852 = vlaneseq
        %v10853 = vshrl.u32 %v10852, 7
        %v10854 = vsub.s32 %v10851, %v10853
        %v10855 = vrot.slane %v10841, %v10854
        %v10856 = vcombine.low %v9928, %v9938
        %v10857 = vcombine.high %v9928, %v9938
        %v10859 = vunpack.c.l.s4 1983009808
        %v10860 = vunpack.c.0.s8 %v10859
        %v10861 = vlaneseq
        %v10862 = vshrl.u32 %v10861, 7
        %v10863 = vsub.s32 %v10860, %v10862
        %v10864 = vrot.slane %v10856, %v10863
        %v10866 = vunpack.c.l.s4 1983009808
        %v10867 = vunpack.c.0.s8 %v10866
        %v10868 = vlaneseq
        %v10869 = vshrl.u32 %v10868, 7
        %v10870 = vsub.s32 %v10867, %v10869
        %v10871 = vrot.slane %v10857, %v10870
        %v10872 = vcombine.low %v9933, %v9943
        %v10873 = vcombine.high %v9933, %v9943
        %v10875 = vunpack.c.l.s4 1983009808
        %v10876 = vunpack.c.0.s8 %v10875
        %v10877 = vlaneseq
        %v10878 = vshrl.u32 %v10877, 7
        %v10879 = vsub.s32 %v10876, %v10878
        %v10880 = vrot.slane %v10872, %v10879
        %v10882 = vunpack.c.l.s4 1983009808
        %v10883 = vunpack.c.0.s8 %v10882
        %v10884 = vlaneseq
        %v10885 = vshrl.u32 %v10884, 7
        %v10886 = vsub.s32 %v10883, %v10885
        %v10887 = vrot.slane %v10873, %v10886
        %v10888 = vcombine.low %v10832, %v10848
        %v10889 = vcombine.high %v10832, %v10848
        %v10891 = vunpack.c.l.s4 1934713408
        %v10892 = vunpack.c.0.s8 %v10891
        %v10893 = vlaneseq
        %v10894 = vshrl.u32 %v10893, 7
        %v10895 = vsub.s32 %v10892, %v10894
        %v10896 = vrot.slane %v10888, %v10895
        %v10898 = vunpack.c.l.s4 1934713408
        %v10899 = vunpack.c.0.s8 %v10898
        %v10900 = vlaneseq
        %v10901 = vshrl.u32 %v10900, 7
        %v10902 = vsub.s32 %v10899, %v10901
        %v10903 = vrot.slane %v10889, %v10902
        %v10904 = vcombine.low %v10839, %v10855
        %v10905 = vcombine.high %v10839, %v10855
        %v10907 = vunpack.c.l.s4 1934713408
        %v10908 = vunpack.c.0.s8 %v10907
        %v10909 = vlaneseq
        %v10910 = vshrl.u32 %v10909, 7
        %v10911 = vsub.s32 %v10908, %v10910
        %v10912 = vrot.slane %v10904, %v10911
        %v10914 = vunpack.c.l.s4 1934713408
        %v10915 = vunpack.c.0.s8 %v10914
        %v10916 = vlaneseq
        %v10917 = vshrl.u32 %v10916, 7
        %v10918 = vsub.s32 %v10915, %v10917
        %v10919 = vrot.slane %v10905, %v10918
        %v10920 = vcombine.low %v10864, %v10880
        %v10921 = vcombine.high %v10864, %v10880
        %v10923 = vunpack.c.l.s4 1934713408
        %v10924 = vunpack.c.0.s8 %v10923
        %v10925 = vlaneseq
        %v10926 = vshrl.u32 %v10925, 7
        %v10927 = vsub.s32 %v10924, %v10926
        %v10928 = vrot.slane %v10920, %v10927
        %v10930 = vunpack.c.l.s4 1934713408
        %v10931 = vunpack.c.0.s8 %v10930
        %v10932 = vlaneseq
        %v10933 = vshrl.u32 %v10932, 7
        %v10934 = vsub.s32 %v10931, %v10933
        %v10935 = vrot.slane %v10921, %v10934
        %v10936 = vcombine.low %v10871, %v10887
        %v10937 = vcombine.high %v10871, %v10887
        %v10939 = vunpack.c.l.s4 1934713408
        %v10940 = vunpack.c.0.s8 %v10939
        %v10941 = vlaneseq
        %v10942 = vshrl.u32 %v10941, 7
        %v10943 = vsub.s32 %v10940, %v10942
        %v10944 = vrot.slane %v10936, %v10943
        %v10946 = vunpack.c.l.s4 1934713408
        %v10947 = vunpack.c.0.s8 %v10946
        %v10948 = vlaneseq
        %v10949 = vshrl.u32 %v10948, 7
        %v10950 = vsub.s32 %v10947, %v10949
        %v10951 = vrot.slane %v10937, %v10950
        %v10952 = vcombine.low %v10896, %v10928
        %v10953 = vcombine.high %v10896, %v10928
        %v10954 = vcombine.low %v10903, %v10935
        %v10955 = vcombine.high %v10903, %v10935
        %v10956 = vcombine.low %v10912, %v10944
        %v10957 = vcombine.high %v10912, %v10944
        %v10958 = vcombine.low %v10919, %v10951
        %v10959 = vcombine.high %v10919, %v10951
        %v10960 = vcombine.low %v9955, %v9963
        %v10961 = vcombine.high %v9955, %v9963
        %v10963 = vunpack.c.l.s4 1983009808
        %v10964 = vunpack.c.0.s8 %v10963
        %v10965 = vlaneseq
        %v10966 = vshrl.u32 %v10965, 7
        %v10967 = vsub.s32 %v10964, %v10966
        %v10968 = vrot.slane %v10960, %v10967
        %v10970 = vunpack.c.l.s4 1983009808
        %v10971 = vunpack.c.0.s8 %v10970
        %v10972 = vlaneseq
        %v10973 = vshrl.u32 %v10972, 7
        %v10974 = vsub.s32 %v10971, %v10973
        %v10975 = vrot.slane %v10961, %v10974
        %v10976 = vcombine.low %v9959, %v9967
        %v10977 = vcombine.high %v9959, %v9967
        %v10979 = vunpack.c.l.s4 1983009808
        %v10980 = vunpack.c.0.s8 %v10979
        %v10981 = vlaneseq
        %v10982 = vshrl.u32 %v10981, 7
        %v10983 = vsub.s32 %v10980, %v10982
        %v10984 = vrot.slane %v10976, %v10983
        %v10986 = vunpack.c.l.s4 1983009808
        %v10987 = vunpack.c.0.s8 %v10986
        %v10988 = vlaneseq
        %v10989 = vshrl.u32 %v10988, 7
        %v10990 = vsub.s32 %v10987, %v10989
        %v10991 = vrot.slane %v10977, %v10990
        %v10992 = vcombine.low %v9979, %v9987
        %v10993 = vcombine.high %v9979, %v9987
        %v10995 = vunpack.c.l.s4 1983009808
        %v10996 = vunpack.c.0.s8 %v10995
        %v10997 = vlaneseq
        %v10998 = vshrl.u32 %v10997, 7
        %v10999 = vsub.s32 %v10996, %v10998
        %v11000 = vrot.slane %v10992, %v10999
        %v11002 = vunpack.c.l.s4 1983009808
        %v11003 = vunpack.c.0.s8 %v11002
        %v11004 = vlaneseq
        %v11005 = vshrl.u32 %v11004, 7
        %v11006 = vsub.s32 %v11003, %v11005
        %v11007 = vrot.slane %v10993, %v11006
        %v11008 = vcombine.low %v9983, %v9991
        %v11009 = vcombine.high %v9983, %v9991
        %v11011 = vunpack.c.l.s4 1983009808
        %v11012 = vunpack.c.0.s8 %v11011
        %v11013 = vlaneseq
        %v11014 = vshrl.u32 %v11013, 7
        %v11015 = vsub.s32 %v11012, %v11014
        %v11016 = vrot.slane %v11008, %v11015
        %v11018 = vunpack.c.l.s4 1983009808
        %v11019 = vunpack.c.0.s8 %v11018
        %v11020 = vlaneseq
        %v11021 = vshrl.u32 %v11020, 7
        %v11022 = vsub.s32 %v11019, %v11021
        %v11023 = vrot.slane %v11009, %v11022
        %v11024 = vcombine.low %v10968, %v10984
        %v11025 = vcombine.high %v10968, %v10984
        %v11027 = vunpack.c.l.s4 1934713408
        %v11028 = vunpack.c.0.s8 %v11027
        %v11029 = vlaneseq
        %v11030 = vshrl.u32 %v11029, 7
        %v11031 = vsub.s32 %v11028, %v11030
        %v11032 = vrot.slane %v11024, %v11031
        %v11034 = vunpack.c.l.s4 1934713408
        %v11035 = vunpack.c.0.s8 %v11034
        %v11036 = vlaneseq
        %v11037 = vshrl.u32 %v11036, 7
        %v11038 = vsub.s32 %v11035, %v11037
        %v11039 = vrot.slane %v11025, %v11038
        %v11040 = vcombine.low %v10975, %v10991
        %v11041 = vcombine.high %v10975, %v10991
        %v11043 = vunpack.c.l.s4 1934713408
        %v11044 = vunpack.c.0.s8 %v11043
        %v11045 = vlaneseq
        %v11046 = vshrl.u32 %v11045, 7
        %v11047 = vsub.s32 %v11044, %v11046
        %v11048 = vrot.slane %v11040, %v11047
        %v11050 = vunpack.c.l.s4 1934713408
        %v11051 = vunpack.c.0.s8 %v11050
        %v11052 = vlaneseq
        %v11053 = vshrl.u32 %v11052, 7
        %v11054 = vsub.s32 %v11051, %v11053
        %v11055 = vrot.slane %v11041, %v11054
        %v11056 = vcombine.low %v11000, %v11016
        %v11057 = vcombine.high %v11000, %v11016
        %v11059 = vunpack.c.l.s4 1934713408
        %v11060 = vunpack.c.0.s8 %v11059
        %v11061 = vlaneseq
        %v11062 = vshrl.u32 %v11061, 7
        %v11063 = vsub.s32 %v11060, %v11062
        %v11064 = vrot.slane %v11056, %v11063
        %v11066 = vunpack.c.l.s4 1934713408
        %v11067 = vunpack.c.0.s8 %v11066
        %v11068 = vlaneseq
        %v11069 = vshrl.u32 %v11068, 7
        %v11070 = vsub.s32 %v11067, %v11069
        %v11071 = vrot.slane %v11057, %v11070
        %v11072 = vcombine.low %v11007, %v11023
        %v11073 = vcombine.high %v11007, %v11023
        %v11075 = vunpack.c.l.s4 1934713408
        %v11076 = vunpack.c.0.s8 %v11075
        %v11077 = vlaneseq
        %v11078 = vshrl.u32 %v11077, 7
        %v11079 = vsub.s32 %v11076, %v11078
        %v11080 = vrot.slane %v11072, %v11079
        %v11082 = vunpack.c.l.s4 1934713408
        %v11083 = vunpack.c.0.s8 %v11082
        %v11084 = vlaneseq
        %v11085 = vshrl.u32 %v11084, 7
        %v11086 = vsub.s32 %v11083, %v11085
        %v11087 = vrot.slane %v11073, %v11086
        %v11088 = vcombine.low %v11032, %v11064
        %v11089 = vcombine.high %v11032, %v11064
        %v11090 = vcombine.low %v11039, %v11071
        %v11091 = vcombine.high %v11039, %v11071
        %v11092 = vcombine.low %v11048, %v11080
        %v11093 = vcombine.high %v11048, %v11080
        %v11094 = vcombine.low %v11055, %v11087
        %v11095 = vcombine.high %v11055, %v11087
        %v11096 = vcombine.low %v10004, %v10014
        %v11097 = vcombine.high %v10004, %v10014
        %v11099 = vunpack.c.l.s4 1983009808
        %v11100 = vunpack.c.0.s8 %v11099
        %v11101 = vlaneseq
        %v11102 = vshrl.u32 %v11101, 7
        %v11103 = vsub.s32 %v11100, %v11102
        %v11104 = vrot.slane %v11096, %v11103
        %v11106 = vunpack.c.l.s4 1983009808
        %v11107 = vunpack.c.0.s8 %v11106
        %v11108 = vlaneseq
        %v11109 = vshrl.u32 %v11108, 7
        %v11110 = vsub.s32 %v11107, %v11109
        %v11111 = vrot.slane %v11097, %v11110
        %v11112 = vcombine.low %v10009, %v10019
        %v11113 = vcombine.high %v10009, %v10019
        %v11115 = vunpack.c.l.s4 1983009808
        %v11116 = vunpack.c.0.s8 %v11115
        %v11117 = vlaneseq
        %v11118 = vshrl.u32 %v11117, 7
        %v11119 = vsub.s32 %v11116, %v11118
        %v11120 = vrot.slane %v11112, %v11119
        %v11122 = vunpack.c.l.s4 1983009808
        %v11123 = vunpack.c.0.s8 %v11122
        %v11124 = vlaneseq
        %v11125 = vshrl.u32 %v11124, 7
        %v11126 = vsub.s32 %v11123, %v11125
        %v11127 = vrot.slane %v11113, %v11126
        %v11128 = vcombine.low %v10031, %v10039
        %v11129 = vcombine.high %v10031, %v10039
        %v11131 = vunpack.c.l.s4 1983009808
        %v11132 = vunpack.c.0.s8 %v11131
        %v11133 = vlaneseq
        %v11134 = vshrl.u32 %v11133, 7
        %v11135 = vsub.s32 %v11132, %v11134
        %v11136 = vrot.slane %v11128, %v11135
        %v11138 = vunpack.c.l.s4 1983009808
        %v11139 = vunpack.c.0.s8 %v11138
        %v11140 = vlaneseq
        %v11141 = vshrl.u32 %v11140, 7
        %v11142 = vsub.s32 %v11139, %v11141
        %v11143 = vrot.slane %v11129, %v11142
        %v11144 = vcombine.low %v10035, %v10043
        %v11145 = vcombine.high %v10035, %v10043
        %v11147 = vunpack.c.l.s4 1983009808
        %v11148 = vunpack.c.0.s8 %v11147
        %v11149 = vlaneseq
        %v11150 = vshrl.u32 %v11149, 7
        %v11151 = vsub.s32 %v11148, %v11150
        %v11152 = vrot.slane %v11144, %v11151
        %v11154 = vunpack.c.l.s4 1983009808
        %v11155 = vunpack.c.0.s8 %v11154
        %v11156 = vlaneseq
        %v11157 = vshrl.u32 %v11156, 7
        %v11158 = vsub.s32 %v11155, %v11157
        %v11159 = vrot.slane %v11145, %v11158
        %v11160 = vcombine.low %v11104, %v11120
        %v11161 = vcombine.high %v11104, %v11120
        %v11163 = vunpack.c.l.s4 1934713408
        %v11164 = vunpack.c.0.s8 %v11163
        %v11165 = vlaneseq
        %v11166 = vshrl.u32 %v11165, 7
        %v11167 = vsub.s32 %v11164, %v11166
        %v11168 = vrot.slane %v11160, %v11167
        %v11170 = vunpack.c.l.s4 1934713408
        %v11171 = vunpack.c.0.s8 %v11170
        %v11172 = vlaneseq
        %v11173 = vshrl.u32 %v11172, 7
        %v11174 = vsub.s32 %v11171, %v11173
        %v11175 = vrot.slane %v11161, %v11174
        %v11176 = vcombine.low %v11111, %v11127
        %v11177 = vcombine.high %v11111, %v11127
        %v11179 = vunpack.c.l.s4 1934713408
        %v11180 = vunpack.c.0.s8 %v11179
        %v11181 = vlaneseq
        %v11182 = vshrl.u32 %v11181, 7
        %v11183 = vsub.s32 %v11180, %v11182
        %v11184 = vrot.slane %v11176, %v11183
        %v11186 = vunpack.c.l.s4 1934713408
        %v11187 = vunpack.c.0.s8 %v11186
        %v11188 = vlaneseq
        %v11189 = vshrl.u32 %v11188, 7
        %v11190 = vsub.s32 %v11187, %v11189
        %v11191 = vrot.slane %v11177, %v11190
        %v11192 = vcombine.low %v11136, %v11152
        %v11193 = vcombine.high %v11136, %v11152
        %v11195 = vunpack.c.l.s4 1934713408
        %v11196 = vunpack.c.0.s8 %v11195
        %v11197 = vlaneseq
        %v11198 = vshrl.u32 %v11197, 7
        %v11199 = vsub.s32 %v11196, %v11198
        %v11200 = vrot.slane %v11192, %v11199
        %v11202 = vunpack.c.l.s4 1934713408
        %v11203 = vunpack.c.0.s8 %v11202
        %v11204 = vlaneseq
        %v11205 = vshrl.u32 %v11204, 7
        %v11206 = vsub.s32 %v11203, %v11205
        %v11207 = vrot.slane %v11193, %v11206
        %v11208 = vcombine.low %v11143, %v11159
        %v11209 = vcombine.high %v11143, %v11159
        %v11211 = vunpack.c.l.s4 1934713408
        %v11212 = vunpack.c.0.s8 %v11211
        %v11213 = vlaneseq
        %v11214 = vshrl.u32 %v11213, 7
        %v11215 = vsub.s32 %v11212, %v11214
        %v11216 = vrot.slane %v11208, %v11215
        %v11218 = vunpack.c.l.s4 1934713408
        %v11219 = vunpack.c.0.s8 %v11218
        %v11220 = vlaneseq
        %v11221 = vshrl.u32 %v11220, 7
        %v11222 = vsub.s32 %v11219, %v11221
        %v11223 = vrot.slane %v11209, %v11222
        %v11224 = vcombine.low %v11168, %v11200
        %v11225 = vcombine.high %v11168, %v11200
        %v11226 = vcombine.low %v11175, %v11207
        %v11227 = vcombine.high %v11175, %v11207
        %v11228 = vcombine.low %v11184, %v11216
        %v11229 = vcombine.high %v11184, %v11216
        %v11230 = vcombine.low %v11191, %v11223
        %v11231 = vcombine.high %v11191, %v11223
        %v11232 = vcombine.low %v10055, %v10063
        %v11233 = vcombine.high %v10055, %v10063
        %v11235 = vunpack.c.l.s4 1983009808
        %v11236 = vunpack.c.0.s8 %v11235
        %v11237 = vlaneseq
        %v11238 = vshrl.u32 %v11237, 7
        %v11239 = vsub.s32 %v11236, %v11238
        %v11240 = vrot.slane %v11232, %v11239
        %v11242 = vunpack.c.l.s4 1983009808
        %v11243 = vunpack.c.0.s8 %v11242
        %v11244 = vlaneseq
        %v11245 = vshrl.u32 %v11244, 7
        %v11246 = vsub.s32 %v11243, %v11245
        %v11247 = vrot.slane %v11233, %v11246
        %v11248 = vcombine.low %v10059, %v10067
        %v11249 = vcombine.high %v10059, %v10067
        %v11251 = vunpack.c.l.s4 1983009808
        %v11252 = vunpack.c.0.s8 %v11251
        %v11253 = vlaneseq
        %v11254 = vshrl.u32 %v11253, 7
        %v11255 = vsub.s32 %v11252, %v11254
        %v11256 = vrot.slane %v11248, %v11255
        %v11258 = vunpack.c.l.s4 1983009808
        %v11259 = vunpack.c.0.s8 %v11258
        %v11260 = vlaneseq
        %v11261 = vshrl.u32 %v11260, 7
        %v11262 = vsub.s32 %v11259, %v11261
        %v11263 = vrot.slane %v11249, %v11262
        %v11264 = vcombine.low %v11240, %v11256
        %v11265 = vcombine.high %v11240, %v11256
        %v11267 = vunpack.c.l.s4 1934713408
        %v11268 = vunpack.c.0.s8 %v11267
        %v11269 = vlaneseq
        %v11270 = vshrl.u32 %v11269, 7
        %v11271 = vsub.s32 %v11268, %v11270
        %v11272 = vrot.slane %v11264, %v11271
        %v11274 = vunpack.c.l.s4 1934713408
        %v11275 = vunpack.c.0.s8 %v11274
        %v11276 = vlaneseq
        %v11277 = vshrl.u32 %v11276, 7
        %v11278 = vsub.s32 %v11275, %v11277
        %v11279 = vrot.slane %v11265, %v11278
        %v11280 = vcombine.low %v11247, %v11263
        %v11281 = vcombine.high %v11247, %v11263
        %v11283 = vunpack.c.l.s4 1934713408
        %v11284 = vunpack.c.0.s8 %v11283
        %v11285 = vlaneseq
        %v11286 = vshrl.u32 %v11285, 7
        %v11287 = vsub.s32 %v11284, %v11286
        %v11288 = vrot.slane %v11280, %v11287
        %v11290 = vunpack.c.l.s4 1934713408
        %v11291 = vunpack.c.0.s8 %v11290
        %v11292 = vlaneseq
        %v11293 = vshrl.u32 %v11292, 7
        %v11294 = vsub.s32 %v11291, %v11293
        %v11295 = vrot.slane %v11281, %v11294
        %v11296 = vcombine.high %v11272, 0.0
        %v11297 = vcombine.high %v11279, 0.0
        %v11298 = vcombine.high %v11288, 0.0
        %v11299 = vcombine.high %v11295, 0.0
        %11305 = vrot.lane.b32.xlu0 %v10205, 16
        %v11306 = vpop.permute.xlu0 %11305
        %11307 = vrot.lane.b32.xlu0 %v10341, 16
        %v11308 = vpop.permute.xlu0 %11307
        %11309 = vrot.lane.b32.xlu0 %v10477, 16
        %v11310 = vpop.permute.xlu0 %11309
        %11311 = vrot.lane.b32.xlu0 %v10613, 16
        %v11312 = vpop.permute.xlu0 %11311
        %11313 = vrot.lane.b32.xlu0 %v10684, 16
        %v11314 = vpop.permute.xlu0 %11313
        %11325 = vrot.lane.b32.xlu0 %v10206, 32
        %v11326 = vpop.permute.xlu0 %11325
        %11327 = vrot.lane.b32.xlu0 %v10342, 32
        %v11328 = vpop.permute.xlu0 %11327
        %11329 = vrot.lane.b32.xlu0 %v10478, 32
        %v11330 = vpop.permute.xlu0 %11329
        %11331 = vrot.lane.b32.xlu0 %v10614, 32
        %v11332 = vpop.permute.xlu0 %11331
        %11333 = vrot.lane.b32.xlu0 %v10667, 32
        %v11334 = vpop.permute.xlu0 %11333
        %11345 = vrot.lane.b32.xlu0 %v10207, 48
        %v11346 = vpop.permute.xlu0 %11345
        %11347 = vrot.lane.b32.xlu0 %v10343, 48
        %v11348 = vpop.permute.xlu0 %11347
        %11349 = vrot.lane.b32.xlu0 %v10479, 48
        %v11350 = vpop.permute.xlu0 %11349
        %11351 = vrot.lane.b32.xlu0 %v10615, 48
        %v11352 = vpop.permute.xlu0 %11351
        %11353 = vrot.lane.b32.xlu0 %v10685, 48
        %v11354 = vpop.permute.xlu0 %11353
        %11365 = vrot.lane.b32.xlu0 %v10208, 64
        %v11366 = vpop.permute.xlu0 %11365
        %11367 = vrot.lane.b32.xlu0 %v10344, 64
        %v11368 = vpop.permute.xlu0 %11367
        %11369 = vrot.lane.b32.xlu0 %v10480, 64
        %v11370 = vpop.permute.xlu0 %11369
        %11371 = vrot.lane.b32.xlu0 %v10616, 64
        %v11372 = vpop.permute.xlu0 %11371
        %11373 = vrot.lane.b32.xlu0 %v10676, 64
        %v11374 = vpop.permute.xlu0 %11373
        %11385 = vrot.lane.b32.xlu0 %v10209, 80
        %v11386 = vpop.permute.xlu0 %11385
        %11387 = vrot.lane.b32.xlu0 %v10345, 80
        %v11388 = vpop.permute.xlu0 %11387
        %11389 = vrot.lane.b32.xlu0 %v10481, 80
        %v11390 = vpop.permute.xlu0 %11389
        %11391 = vrot.lane.b32.xlu0 %v10617, 80
        %v11392 = vpop.permute.xlu0 %11391
        %11393 = vrot.lane.b32.xlu0 %v10686, 80
        %v11394 = vpop.permute.xlu0 %11393
        %11405 = vrot.lane.b32.xlu0 %v10210, 96
        %v11406 = vpop.permute.xlu0 %11405
        %11407 = vrot.lane.b32.xlu0 %v10346, 96
        %v11408 = vpop.permute.xlu0 %11407
        %11409 = vrot.lane.b32.xlu0 %v10482, 96
        %v11410 = vpop.permute.xlu0 %11409
        %11411 = vrot.lane.b32.xlu0 %v10618, 96
        %v11412 = vpop.permute.xlu0 %11411
        %11413 = vrot.lane.b32.xlu0 %v10683, 96
        %v11414 = vpop.permute.xlu0 %11413
        %11425 = vrot.lane.b32.xlu0 %v10211, 112
        %v11426 = vpop.permute.xlu0 %11425
        %11427 = vrot.lane.b32.xlu0 %v10347, 112
        %v11428 = vpop.permute.xlu0 %11427
        %11429 = vrot.lane.b32.xlu0 %v10483, 112
        %v11430 = vpop.permute.xlu0 %11429
        %11431 = vrot.lane.b32.xlu0 %v10619, 112
        %v11432 = vpop.permute.xlu0 %11431
        %11433 = vrot.lane.b32.xlu0 %v10687, 112
        %v11434 = vpop.permute.xlu0 %11433
        %11445 = vrot.lane.b32.xlu0 %v10817, 16
        %v11446 = vpop.permute.xlu0 %11445
        %11447 = vrot.lane.b32.xlu0 %v10953, 16
        %v11448 = vpop.permute.xlu0 %11447
        %11449 = vrot.lane.b32.xlu0 %v11089, 16
        %v11450 = vpop.permute.xlu0 %11449
        %11451 = vrot.lane.b32.xlu0 %v11225, 16
        %v11452 = vpop.permute.xlu0 %11451
        %11453 = vrot.lane.b32.xlu0 %v11296, 16
        %v11454 = vpop.permute.xlu0 %11453
        %11465 = vrot.lane.b32.xlu0 %v10818, 32
        %v11466 = vpop.permute.xlu0 %11465
        %11467 = vrot.lane.b32.xlu0 %v10954, 32
        %v11468 = vpop.permute.xlu0 %11467
        %11469 = vrot.lane.b32.xlu0 %v11090, 32
        %v11470 = vpop.permute.xlu0 %11469
        %11471 = vrot.lane.b32.xlu0 %v11226, 32
        %v11472 = vpop.permute.xlu0 %11471
        %11473 = vrot.lane.b32.xlu0 %v11279, 32
        %v11474 = vpop.permute.xlu0 %11473
        %11485 = vrot.lane.b32.xlu0 %v10819, 48
        %v11486 = vpop.permute.xlu0 %11485
        %11487 = vrot.lane.b32.xlu0 %v10955, 48
        %v11488 = vpop.permute.xlu0 %11487
        %11489 = vrot.lane.b32.xlu0 %v11091, 48
        %v11490 = vpop.permute.xlu0 %11489
        %11491 = vrot.lane.b32.xlu0 %v11227, 48
        %v11492 = vpop.permute.xlu0 %11491
        %11493 = vrot.lane.b32.xlu0 %v11297, 48
        %v11494 = vpop.permute.xlu0 %11493
        %11505 = vrot.lane.b32.xlu0 %v10820, 64
        %v11506 = vpop.permute.xlu0 %11505
        %11507 = vrot.lane.b32.xlu0 %v10956, 64
        %v11508 = vpop.permute.xlu0 %11507
        %11509 = vrot.lane.b32.xlu0 %v11092, 64
        %v11510 = vpop.permute.xlu0 %11509
        %11511 = vrot.lane.b32.xlu0 %v11228, 64
        %v11512 = vpop.permute.xlu0 %11511
        %11513 = vrot.lane.b32.xlu0 %v11288, 64
        %v11514 = vpop.permute.xlu0 %11513
        %11525 = vrot.lane.b32.xlu0 %v10821, 80
        %v11526 = vpop.permute.xlu0 %11525
        %11527 = vrot.lane.b32.xlu0 %v10957, 80
        %v11528 = vpop.permute.xlu0 %11527
        %11529 = vrot.lane.b32.xlu0 %v11093, 80
        %v11530 = vpop.permute.xlu0 %11529
        %11531 = vrot.lane.b32.xlu0 %v11229, 80
        %v11532 = vpop.permute.xlu0 %11531
        %11533 = vrot.lane.b32.xlu0 %v11298, 80
        %v11534 = vpop.permute.xlu0 %11533
        %11545 = vrot.lane.b32.xlu0 %v10822, 96
        %v11546 = vpop.permute.xlu0 %11545
        %11547 = vrot.lane.b32.xlu0 %v10958, 96
        %v11548 = vpop.permute.xlu0 %11547
        %11549 = vrot.lane.b32.xlu0 %v11094, 96
        %v11550 = vpop.permute.xlu0 %11549
        %11551 = vrot.lane.b32.xlu0 %v11230, 96
        %v11552 = vpop.permute.xlu0 %11551
        %11553 = vrot.lane.b32.xlu0 %v11295, 96
        %v11554 = vpop.permute.xlu0 %11553
        %11565 = vrot.lane.b32.xlu0 %v10823, 112
        %v11566 = vpop.permute.xlu0 %11565
        %11567 = vrot.lane.b32.xlu0 %v10959, 112
        %v11568 = vpop.permute.xlu0 %11567
        %11569 = vrot.lane.b32.xlu0 %v11095, 112
        %v11570 = vpop.permute.xlu0 %11569
        %11571 = vrot.lane.b32.xlu0 %v11231, 112
        %v11572 = vpop.permute.xlu0 %11571
        %11573 = vrot.lane.b32.xlu0 %v11299, 112
        %v11574 = vpop.permute.xlu0 %11573
        %v11580 = vsel %vm2078, %v10204, %v11306
        %v11581 = vsel %vm2078, %v10340, %v11308
        %v11582 = vsel %vm2078, %v10476, %v11310
        %v11583 = vsel %vm2078, %v10612, %v11312
        %v11584 = vsel %vm2078, %v10660, %v11314
        %v11585 = vsel %vm2084, %v11580, %v11326
        %v11586 = vsel %vm2084, %v11581, %v11328
        %v11587 = vsel %vm2084, %v11582, %v11330
        %v11588 = vsel %vm2084, %v11583, %v11332
        %v11589 = vsel %vm2084, %v11584, %v11334
        %v11590 = vsel %vm2090, %v11585, %v11346
        %v11591 = vsel %vm2090, %v11586, %v11348
        %v11592 = vsel %vm2090, %v11587, %v11350
        %v11593 = vsel %vm2090, %v11588, %v11352
        %v11594 = vsel %vm2090, %v11589, %v11354
        %v11595 = vsel %vm2096, %v11590, %v11366
        %v11596 = vsel %vm2096, %v11591, %v11368
        %v11597 = vsel %vm2096, %v11592, %v11370
        %v11598 = vsel %vm2096, %v11593, %v11372
        %v11599 = vsel %vm2096, %v11594, %v11374
        %v11600 = vsel %vm2102, %v11595, %v11386
        %v11601 = vsel %vm2102, %v11596, %v11388
        %v11602 = vsel %vm2102, %v11597, %v11390
        %v11603 = vsel %vm2102, %v11598, %v11392
        %v11604 = vsel %vm2102, %v11599, %v11394
        %v11605 = vsel %vm2108, %v11600, %v11406
        %v11606 = vsel %vm2108, %v11601, %v11408
        %v11607 = vsel %vm2108, %v11602, %v11410
        %v11608 = vsel %vm2108, %v11603, %v11412
        %v11609 = vsel %vm2108, %v11604, %v11414
        %v11610 = vsel %vm2114, %v11605, %v11426
        %v11611 = vsel %vm2114, %v11606, %v11428
        %v11612 = vsel %vm2114, %v11607, %v11430
        %v11613 = vsel %vm2114, %v11608, %v11432
        %v11614 = vsel %vm2114, %v11609, %v11434
        %v11615 = vsel %vm2078, %v10816, %v11446
        %v11616 = vsel %vm2078, %v10952, %v11448
        %v11617 = vsel %vm2078, %v11088, %v11450
        %v11618 = vsel %vm2078, %v11224, %v11452
        %v11619 = vsel %vm2078, %v11272, %v11454
        %v11620 = vsel %vm2084, %v11615, %v11466
        %v11621 = vsel %vm2084, %v11616, %v11468
        %v11622 = vsel %vm2084, %v11617, %v11470
        %v11623 = vsel %vm2084, %v11618, %v11472
        %v11624 = vsel %vm2084, %v11619, %v11474
        %v11625 = vsel %vm2090, %v11620, %v11486
        %v11626 = vsel %vm2090, %v11621, %v11488
        %v11627 = vsel %vm2090, %v11622, %v11490
        %v11628 = vsel %vm2090, %v11623, %v11492
        %v11629 = vsel %vm2090, %v11624, %v11494
        %v11630 = vsel %vm2096, %v11625, %v11506
        %v11631 = vsel %vm2096, %v11626, %v11508
        %v11632 = vsel %vm2096, %v11627, %v11510
        %v11633 = vsel %vm2096, %v11628, %v11512
        %v11634 = vsel %vm2096, %v11629, %v11514
        %v11635 = vsel %vm2102, %v11630, %v11526
        %v11636 = vsel %vm2102, %v11631, %v11528
        %v11637 = vsel %vm2102, %v11632, %v11530
        %v11638 = vsel %vm2102, %v11633, %v11532
        %v11639 = vsel %vm2102, %v11634, %v11534
        %v11640 = vsel %vm2108, %v11635, %v11546
        %v11641 = vsel %vm2108, %v11636, %v11548
        %v11642 = vsel %vm2108, %v11637, %v11550
        %v11643 = vsel %vm2108, %v11638, %v11552
        %v11644 = vsel %vm2108, %v11639, %v11554
        %v11645 = vsel %vm2114, %v11640, %v11566
        %v11646 = vsel %vm2114, %v11641, %v11568
        %v11647 = vsel %vm2114, %v11642, %v11570
        %v11648 = vsel %vm2114, %v11643, %v11572
        %v11649 = vsel %vm2114, %v11644, %v11574
        %v11650 = vld [vmem:[%s1] sm:$0xff]
        %v11651 = vld [vmem:[%s1 + $0x8] sm:$0xff]
        %v11652 = vld [vmem:[%s2] sm:$0xff]
        %v11653 = vld [vmem:[%s2 + $0x8] sm:$0xff]
        %11655 = vset.pattern.permute.xlu0 0
        %11656 = vperm.xlu0 %11655, %v11652
        %v11657 = vpop.permute.xlu0 %11656
        %11660 = vset.pattern.permute.xlu0 0
        %11661 = vperm.xlu0 %11660, %v11653
        %v11662 = vpop.permute.xlu0 %11661
        %vm11664 = vcmask 293888
        %v11666 = vsel %vm11664, %v11650, 0
        %v11669 = vsel %vm11664, %v11651, 0
        %vm11671 = vcmask 1043456
        %v11673 = vsel %vm11671, %v2119, 0
        %v11676 = vsel %vm11671, %v2154, 0
        %v11679 = vsel %vm11671, %v4018, 0
        %v11682 = vsel %vm11671, %v4053, 0
        %v11685 = vsel %vm11671, %v5917, 0
        %v11688 = vsel %vm11671, %v5952, 0
        %v11691 = vsel %vm11671, %v7816, 0
        %v11694 = vsel %vm11671, %v7851, 0
        %11696 = vmatprep.subr.mxu0 %v2150
        %11697 = vmatpush1.msra.mxu0 %v2115
        %11698 = vmatprep.subr.mxu0 %v2151
        %11699 = vmatpush1.msra.mxu0 %v2116
        %11700 = vmatprep.subr.mxu0 %v2152
        %11701 = vmatpush1.msra.mxu0 %v2117
        %11702 = vmatprep.subr.mxu0 %v2153
        %11703 = vmatpush1.msra.mxu0 %v2118
        %11704 = vmatprep.subr.mxu0 %v11676
        %11705 = vmatpush1.msra.mxu0 %v11673
        %11706 = vmatprep.subr.mxu0 0.0
        %11707 = vmatpush1.msra.mxu0 0.0
        %11708 = vmatprep.subr.mxu0 0.0
        %11709 = vmatpush1.msra.mxu0 0.0
        %11710 = vmatprep.subr.mxu0 0.0
        %11711 = vmatpush1.msra.mxu0 0.0
        %11712 = vmatprep.subr.mxu0 0.0
        %11713 = vmatpush1.msra.mxu0 0.0
        %11714 = vmatprep.subr.mxu0 0.0
        %11715 = vmatpush1.msra.mxu0 0.0
        %11716 = vmatprep.subr.mxu0 0.0
        %11717 = vmatpush1.msra.mxu0 0.0
        %11718 = vmatprep.subr.mxu0 0.0
        %11719 = vmatpush1.msra.mxu0 0.0
        %11720 = vmatprep.subr.mxu0 0.0
        %11721 = vmatpush1.msra.mxu0 0.0
        %11722 = vmatprep.subr.mxu0 0.0
        %11723 = vmatpush1.msra.mxu0 0.0
        %11724 = vmatprep.subr.mxu0 0.0
        %11725 = vmatpush1.msra.mxu0 0.0
        %11726 = vmatprep.subr.mxu0 0.0
        %11727 = vmatpush1.msra.mxu0 0.0
        %11728 = vmatprep.subr.mxu0 0.0
        %11729 = vmatpush1.msra.mxu0 0.0
        %11730 = vmatprep.subr.mxu0 0.0
        %11731 = vmatpush1.msra.mxu0 0.0
        %11732 = vmatprep.subr.mxu0 0.0
        %11733 = vmatpush1.msra.mxu0 0.0
        %11734 = vmatprep.subr.mxu0 0.0
        %11735 = vmatpush1.msra.mxu0 0.0
        %11736 = vmatprep.subr.mxu0 0.0
        %11737 = vmatpush1.msra.mxu0 0.0
        %11738 = vmatprep.subr.mxu0 0.0
        %11739 = vmatpush1.msra.mxu0 0.0
        %11740 = vmatprep.subr.mxu0 0.0
        %11741 = vmatpush1.msra.mxu0 0.0
        %11742 = vmatprep.subr.mxu0 0.0
        %11743 = vmatpush1.msra.mxu0 0.0
        %11744 = vmatprep.subr.mxu0 0.0
        %11745 = vmatpush1.msra.mxu0 0.0
        %11746 = vmatprep.subr.mxu0 0.0
        %11747 = vmatpush1.msra.mxu0 0.0
        %11748 = vmatprep.subr.mxu0 0.0
        %11749 = vmatpush1.msra.mxu0 0.0
        %11750 = vmatprep.subr.mxu0 0.0
        %11751 = vmatpush1.msra.mxu0 0.0
        %11752 = vmatprep.subr.mxu0 0.0
        %11753 = vmatpush1.msra.mxu0 0.0
        %11754 = vmatprep.subr.mxu0 0.0
        %11755 = vmatpush1.msra.mxu0 0.0
        %11756 = vmatprep.subr.mxu0 0.0
        %11757 = vmatpush1.msra.mxu0 0.0
        %11758 = vmatprep.subr.mxu0 0.0
        %11759 = vmatpush1.msra.mxu0 0.0
        %11760 = vmatprep.mubr.f32.mxu0 0.0
        %11761 = vmatmul.mubr.f32.gmra.mrb[0].mxu0 %v11666
        %v11762 = vpop.f32.mrb[0].mxu0
        %v11763 = vadd.f32 %v11657, %v11762
        %v11764 = vpop.f32.mrb[0].mxu0
        %v11765 = vadd.f32 %v11657, %v11764
        %11766 = vmatprep.mubr.f32.mxu0 0.0
        %11767 = vmatmul.mubr.f32.gmra.mrb[0].mxu0 %v11669
        %v11768 = vpop.f32.mrb[0].mxu0
        %v11769 = vadd.f32 %v11662, %v11768
        %v11770 = vpop.f32.mrb[0].mxu0
        %v11771 = vadd.f32 %v11662, %v11770
        %11772 = vdwg.mxu0
        %11773 = vmatprep.subr.mxu0 %v4049
        %11774 = vmatpush1.msra.mxu0 %v4014
        %11775 = vmatprep.subr.mxu0 %v4050
        %11776 = vmatpush1.msra.mxu0 %v4015
        %11777 = vmatprep.subr.mxu0 %v4051
        %11778 = vmatpush1.msra.mxu0 %v4016
        %11779 = vmatprep.subr.mxu0 %v4052
        %11780 = vmatpush1.msra.mxu0 %v4017
        %11781 = vmatprep.subr.mxu0 %v11682
        %11782 = vmatpush1.msra.mxu0 %v11679
        %11783 = vmatprep.subr.mxu0 0.0
        %11784 = vmatpush1.msra.mxu0 0.0
        %11785 = vmatprep.subr.mxu0 0.0
        %11786 = vmatpush1.msra.mxu0 0.0
        %11787 = vmatprep.subr.mxu0 0.0
        %11788 = vmatpush1.msra.mxu0 0.0
        %11789 = vmatprep.subr.mxu0 0.0
        %11790 = vmatpush1.msra.mxu0 0.0
        %11791 = vmatprep.subr.mxu0 0.0
        %11792 = vmatpush1.msra.mxu0 0.0
        %11793 = vmatprep.subr.mxu0 0.0
        %11794 = vmatpush1.msra.mxu0 0.0
        %11795 = vmatprep.subr.mxu0 0.0
        %11796 = vmatpush1.msra.mxu0 0.0
        %11797 = vmatprep.subr.mxu0 0.0
        %11798 = vmatpush1.msra.mxu0 0.0
        %11799 = vmatprep.subr.mxu0 0.0
        %11800 = vmatpush1.msra.mxu0 0.0
        %11801 = vmatprep.subr.mxu0 0.0
        %11802 = vmatpush1.msra.mxu0 0.0
        %11803 = vmatprep.subr.mxu0 0.0
        %11804 = vmatpush1.msra.mxu0 0.0
        %11805 = vmatprep.subr.mxu0 0.0
        %11806 = vmatpush1.msra.mxu0 0.0
        %11807 = vmatprep.subr.mxu0 0.0
        %11808 = vmatpush1.msra.mxu0 0.0
        %11809 = vmatprep.subr.mxu0 0.0
        %11810 = vmatpush1.msra.mxu0 0.0
        %11811 = vmatprep.subr.mxu0 0.0
        %11812 = vmatpush1.msra.mxu0 0.0
        %11813 = vmatprep.subr.mxu0 0.0
        %11814 = vmatpush1.msra.mxu0 0.0
        %11815 = vmatprep.subr.mxu0 0.0
        %11816 = vmatpush1.msra.mxu0 0.0
        %11817 = vmatprep.subr.mxu0 0.0
        %11818 = vmatpush1.msra.mxu0 0.0
        %11819 = vmatprep.subr.mxu0 0.0
        %11820 = vmatpush1.msra.mxu0 0.0
        %11821 = vmatprep.subr.mxu0 0.0
        %11822 = vmatpush1.msra.mxu0 0.0
        %11823 = vmatprep.subr.mxu0 0.0
        %11824 = vmatpush1.msra.mxu0 0.0
        %11825 = vmatprep.subr.mxu0 0.0
        %11826 = vmatpush1.msra.mxu0 0.0
        %11827 = vmatprep.subr.mxu0 0.0
        %11828 = vmatpush1.msra.mxu0 0.0
        %11829 = vmatprep.subr.mxu0 0.0
        %11830 = vmatpush1.msra.mxu0 0.0
        %11831 = vmatprep.subr.mxu0 0.0
        %11832 = vmatpush1.msra.mxu0 0.0
        %11833 = vmatprep.subr.mxu0 0.0
        %11834 = vmatpush1.msra.mxu0 0.0
        %11835 = vmatprep.subr.mxu0 0.0
        %11836 = vmatpush1.msra.mxu0 0.0
        %11837 = vmatprep.mubr.f32.mxu0 0.0
        %11838 = vmatmul.mubr.f32.gmra.mrb[0].mxu0 %v11666
        %v11839 = vpop.f32.mrb[0].mxu0
        %v11840 = vadd.f32 %v11657, %v11839
        %v11841 = vpop.f32.mrb[0].mxu0
        %v11842 = vadd.f32 %v11657, %v11841
        %11843 = vmatprep.mubr.f32.mxu0 0.0
        %11844 = vmatmul.mubr.f32.gmra.mrb[0].mxu0 %v11669
        %v11845 = vpop.f32.mrb[0].mxu0
        %v11846 = vadd.f32 %v11662, %v11845
        %v11847 = vpop.f32.mrb[0].mxu0
        %v11848 = vadd.f32 %v11662, %v11847
        %11849 = vdwg.mxu0
        %11850 = vmatprep.subr.mxu0 %v5948
        %11851 = vmatpush1.msra.mxu0 %v5913
        %11852 = vmatprep.subr.mxu0 %v5949
        %11853 = vmatpush1.msra.mxu0 %v5914
        %11854 = vmatprep.subr.mxu0 %v5950
        %11855 = vmatpush1.msra.mxu0 %v5915
        %11856 = vmatprep.subr.mxu0 %v5951
        %11857 = vmatpush1.msra.mxu0 %v5916
        %11858 = vmatprep.subr.mxu0 %v11688
        %11859 = vmatpush1.msra.mxu0 %v11685
        %11860 = vmatprep.subr.mxu0 0.0
        %11861 = vmatpush1.msra.mxu0 0.0
        %11862 = vmatprep.subr.mxu0 0.0
        %11863 = vmatpush1.msra.mxu0 0.0
        %11864 = vmatprep.subr.mxu0 0.0
        %11865 = vmatpush1.msra.mxu0 0.0
        %11866 = vmatprep.subr.mxu0 0.0
        %11867 = vmatpush1.msra.mxu0 0.0
        %11868 = vmatprep.subr.mxu0 0.0
        %11869 = vmatpush1.msra.mxu0 0.0
        %11870 = vmatprep.subr.mxu0 0.0
        %11871 = vmatpush1.msra.mxu0 0.0
        %11872 = vmatprep.subr.mxu0 0.0
        %11873 = vmatpush1.msra.mxu0 0.0
        %11874 = vmatprep.subr.mxu0 0.0
        %11875 = vmatpush1.msra.mxu0 0.0
        %11876 = vmatprep.subr.mxu0 0.0
        %11877 = vmatpush1.msra.mxu0 0.0
        %11878 = vmatprep.subr.mxu0 0.0
        %11879 = vmatpush1.msra.mxu0 0.0
        %11880 = vmatprep.subr.mxu0 0.0
        %11881 = vmatpush1.msra.mxu0 0.0
        %11882 = vmatprep.subr.mxu0 0.0
        %11883 = vmatpush1.msra.mxu0 0.0
        %11884 = vmatprep.subr.mxu0 0.0
        %11885 = vmatpush1.msra.mxu0 0.0
        %11886 = vmatprep.subr.mxu0 0.0
        %11887 = vmatpush1.msra.mxu0 0.0
        %11888 = vmatprep.subr.mxu0 0.0
        %11889 = vmatpush1.msra.mxu0 0.0
        %11890 = vmatprep.subr.mxu0 0.0
        %11891 = vmatpush1.msra.mxu0 0.0
        %11892 = vmatprep.subr.mxu0 0.0
        %11893 = vmatpush1.msra.mxu0 0.0
        %11894 = vmatprep.subr.mxu0 0.0
        %11895 = vmatpush1.msra.mxu0 0.0
        %11896 = vmatprep.subr.mxu0 0.0
        %11897 = vmatpush1.msra.mxu0 0.0
        %11898 = vmatprep.subr.mxu0 0.0
        %11899 = vmatpush1.msra.mxu0 0.0
        %11900 = vmatprep.subr.mxu0 0.0
        %11901 = vmatpush1.msra.mxu0 0.0
        %11902 = vmatprep.subr.mxu0 0.0
        %11903 = vmatpush1.msra.mxu0 0.0
        %11904 = vmatprep.subr.mxu0 0.0
        %11905 = vmatpush1.msra.mxu0 0.0
        %11906 = vmatprep.subr.mxu0 0.0
        %11907 = vmatpush1.msra.mxu0 0.0
        %11908 = vmatprep.subr.mxu0 0.0
        %11909 = vmatpush1.msra.mxu0 0.0
        %11910 = vmatprep.subr.mxu0 0.0
        %11911 = vmatpush1.msra.mxu0 0.0
        %11912 = vmatprep.subr.mxu0 0.0
        %11913 = vmatpush1.msra.mxu0 0.0
        %11914 = vmatprep.mubr.f32.mxu0 0.0
        %11915 = vmatmul.mubr.f32.gmra.mrb[0].mxu0 %v11666
        %v11916 = vpop.f32.mrb[0].mxu0
        %v11917 = vadd.f32 %v11657, %v11916
        %v11918 = vpop.f32.mrb[0].mxu0
        %v11919 = vadd.f32 %v11657, %v11918
        %11920 = vmatprep.mubr.f32.mxu0 0.0
        %11921 = vmatmul.mubr.f32.gmra.mrb[0].mxu0 %v11669
        %v11922 = vpop.f32.mrb[0].mxu0
        %v11923 = vadd.f32 %v11662, %v11922
        %v11924 = vpop.f32.mrb[0].mxu0
        %v11925 = vadd.f32 %v11662, %v11924
        %11926 = vdwg.mxu0
        %11927 = vmatprep.subr.mxu0 %v7847
        %11928 = vmatpush1.msra.mxu0 %v7812
        %11929 = vmatprep.subr.mxu0 %v7848
        %11930 = vmatpush1.msra.mxu0 %v7813
        %11931 = vmatprep.subr.mxu0 %v7849
        %11932 = vmatpush1.msra.mxu0 %v7814
        %11933 = vmatprep.subr.mxu0 %v7850
        %11934 = vmatpush1.msra.mxu0 %v7815
        %11935 = vmatprep.subr.mxu0 %v11694
        %11936 = vmatpush1.msra.mxu0 %v11691
        %11937 = vmatprep.subr.mxu0 0.0
        %11938 = vmatpush1.msra.mxu0 0.0
        %11939 = vmatprep.subr.mxu0 0.0
        %11940 = vmatpush1.msra.mxu0 0.0
        %11941 = vmatprep.subr.mxu0 0.0
        %11942 = vmatpush1.msra.mxu0 0.0
        %11943 = vmatprep.subr.mxu0 0.0
        %11944 = vmatpush1.msra.mxu0 0.0
        %11945 = vmatprep.subr.mxu0 0.0
        %11946 = vmatpush1.msra.mxu0 0.0
        %11947 = vmatprep.subr.mxu0 0.0
        %11948 = vmatpush1.msra.mxu0 0.0
        %11949 = vmatprep.subr.mxu0 0.0
        %11950 = vmatpush1.msra.mxu0 0.0
        %11951 = vmatprep.subr.mxu0 0.0
        %11952 = vmatpush1.msra.mxu0 0.0
        %11953 = vmatprep.subr.mxu0 0.0
        %11954 = vmatpush1.msra.mxu0 0.0
        %11955 = vmatprep.subr.mxu0 0.0
        %11956 = vmatpush1.msra.mxu0 0.0
        %11957 = vmatprep.subr.mxu0 0.0
        %11958 = vmatpush1.msra.mxu0 0.0
        %11959 = vmatprep.subr.mxu0 0.0
        %11960 = vmatpush1.msra.mxu0 0.0
        %11961 = vmatprep.subr.mxu0 0.0
        %11962 = vmatpush1.msra.mxu0 0.0
        %11963 = vmatprep.subr.mxu0 0.0
        %11964 = vmatpush1.msra.mxu0 0.0
        %11965 = vmatprep.subr.mxu0 0.0
        %11966 = vmatpush1.msra.mxu0 0.0
        %11967 = vmatprep.subr.mxu0 0.0
        %11968 = vmatpush1.msra.mxu0 0.0
        %11969 = vmatprep.subr.mxu0 0.0
        %11970 = vmatpush1.msra.mxu0 0.0
        %11971 = vmatprep.subr.mxu0 0.0
        %11972 = vmatpush1.msra.mxu0 0.0
        %11973 = vmatprep.subr.mxu0 0.0
        %11974 = vmatpush1.msra.mxu0 0.0
        %11975 = vmatprep.subr.mxu0 0.0
        %11976 = vmatpush1.msra.mxu0 0.0
        %11977 = vmatprep.subr.mxu0 0.0
        %11978 = vmatpush1.msra.mxu0 0.0
        %11979 = vmatprep.subr.mxu0 0.0
        %11980 = vmatpush1.msra.mxu0 0.0
        %11981 = vmatprep.subr.mxu0 0.0
        %11982 = vmatpush1.msra.mxu0 0.0
        %11983 = vmatprep.subr.mxu0 0.0
        %11984 = vmatpush1.msra.mxu0 0.0
        %11985 = vmatprep.subr.mxu0 0.0
        %11986 = vmatpush1.msra.mxu0 0.0
        %11987 = vmatprep.subr.mxu0 0.0
        %11988 = vmatpush1.msra.mxu0 0.0
        %11989 = vmatprep.subr.mxu0 0.0
        %11990 = vmatpush1.msra.mxu0 0.0
        %11991 = vmatprep.mubr.f32.mxu0 0.0
        %11992 = vmatmul.mubr.f32.gmra.mrb[0].mxu0 %v11666
        %v11993 = vpop.f32.mrb[0].mxu0
        %v11994 = vadd.f32 %v11657, %v11993
        %v11995 = vpop.f32.mrb[0].mxu0
        %v11996 = vadd.f32 %v11657, %v11995
        %11997 = vmatprep.mubr.f32.mxu0 0.0
        %11998 = vmatmul.mubr.f32.gmra.mrb[0].mxu0 %v11669
        %v11999 = vpop.f32.mrb[0].mxu0
        %v12000 = vadd.f32 %v11662, %v11999
        %v12001 = vpop.f32.mrb[0].mxu0
        %v12002 = vadd.f32 %v11662, %v12001
        %12003 = vdwg.mxu0
        %s12004 = scalar_lea.vmem %s1, 16
        %v12005 = vld [vmem:[%s12004] sm:$0xff]
        %v12006 = vld [vmem:[%s12004 + $0x8] sm:$0xff]
        %s12007 = scalar_lea.vmem %s2, 16
        %v12008 = vld [vmem:[%s12007] sm:$0xff]
        %v12009 = vld [vmem:[%s12007 + $0x8] sm:$0xff]
        %12011 = vset.pattern.permute.xlu0 0
        %12012 = vperm.xlu0 %12011, %v12008
        %v12013 = vpop.permute.xlu0 %12012
        %12016 = vset.pattern.permute.xlu0 0
        %12017 = vperm.xlu0 %12016, %v12009
        %v12018 = vpop.permute.xlu0 %12017
        %v12021 = vsel %vm11664, %v12005, 0
        %v12024 = vsel %vm11664, %v12006, 0
        %v12027 = vsel %vm11671, %v9715, 0
        %v12030 = vsel %vm11671, %v9750, 0
        %12032 = vmatprep.subr.mxu0 %v9746
        %12033 = vmatpush1.msra.mxu0 %v9711
        %12034 = vmatprep.subr.mxu0 %v9747
        %12035 = vmatpush1.msra.mxu0 %v9712
        %12036 = vmatprep.subr.mxu0 %v9748
        %12037 = vmatpush1.msra.mxu0 %v9713
        %12038 = vmatprep.subr.mxu0 %v9749
        %12039 = vmatpush1.msra.mxu0 %v9714
        %12040 = vmatprep.subr.mxu0 %v12030
        %12041 = vmatpush1.msra.mxu0 %v12027
        %12042 = vmatprep.subr.mxu0 0.0
        %12043 = vmatpush1.msra.mxu0 0.0
        %12044 = vmatprep.subr.mxu0 0.0
        %12045 = vmatpush1.msra.mxu0 0.0
        %12046 = vmatprep.subr.mxu0 0.0
        %12047 = vmatpush1.msra.mxu0 0.0
        %12048 = vmatprep.subr.mxu0 0.0
        %12049 = vmatpush1.msra.mxu0 0.0
        %12050 = vmatprep.subr.mxu0 0.0
        %12051 = vmatpush1.msra.mxu0 0.0
        %12052 = vmatprep.subr.mxu0 0.0
        %12053 = vmatpush1.msra.mxu0 0.0
        %12054 = vmatprep.subr.mxu0 0.0
        %12055 = vmatpush1.msra.mxu0 0.0
        %12056 = vmatprep.subr.mxu0 0.0
        %12057 = vmatpush1.msra.mxu0 0.0
        %12058 = vmatprep.subr.mxu0 0.0
        %12059 = vmatpush1.msra.mxu0 0.0
        %12060 = vmatprep.subr.mxu0 0.0
        %12061 = vmatpush1.msra.mxu0 0.0
        %12062 = vmatprep.subr.mxu0 0.0
        %12063 = vmatpush1.msra.mxu0 0.0
        %12064 = vmatprep.subr.mxu0 0.0
        %12065 = vmatpush1.msra.mxu0 0.0
        %12066 = vmatprep.subr.mxu0 0.0
        %12067 = vmatpush1.msra.mxu0 0.0
        %12068 = vmatprep.subr.mxu0 0.0
        %12069 = vmatpush1.msra.mxu0 0.0
        %12070 = vmatprep.subr.mxu0 0.0
        %12071 = vmatpush1.msra.mxu0 0.0
        %12072 = vmatprep.subr.mxu0 0.0
        %12073 = vmatpush1.msra.mxu0 0.0
        %12074 = vmatprep.subr.mxu0 0.0
        %12075 = vmatpush1.msra.mxu0 0.0
        %12076 = vmatprep.subr.mxu0 0.0
        %12077 = vmatpush1.msra.mxu0 0.0
        %12078 = vmatprep.subr.mxu0 0.0
        %12079 = vmatpush1.msra.mxu0 0.0
        %12080 = vmatprep.subr.mxu0 0.0
        %12081 = vmatpush1.msra.mxu0 0.0
        %12082 = vmatprep.subr.mxu0 0.0
        %12083 = vmatpush1.msra.mxu0 0.0
        %12084 = vmatprep.subr.mxu0 0.0
        %12085 = vmatpush1.msra.mxu0 0.0
        %12086 = vmatprep.subr.mxu0 0.0
        %12087 = vmatpush1.msra.mxu0 0.0
        %12088 = vmatprep.subr.mxu0 0.0
        %12089 = vmatpush1.msra.mxu0 0.0
        %12090 = vmatprep.subr.mxu0 0.0
        %12091 = vmatpush1.msra.mxu0 0.0
        %12092 = vmatprep.subr.mxu0 0.0
        %12093 = vmatpush1.msra.mxu0 0.0
        %12094 = vmatprep.subr.mxu0 0.0
        %12095 = vmatpush1.msra.mxu0 0.0
        %12096 = vmatprep.mubr.f32.mxu0 0.0
        %12097 = vmatmul.mubr.f32.gmra.mrb[0].mxu0 %v12021
        %v12098 = vpop.f32.mrb[0].mxu0
        %v12099 = vadd.f32 %v12013, %v12098
        %v12100 = vpop.f32.mrb[0].mxu0
        %v12101 = vadd.f32 %v12013, %v12100
        %12102 = vmatprep.mubr.f32.mxu0 0.0
        %12103 = vmatmul.mubr.f32.gmra.mrb[0].mxu0 %v12024
        %v12104 = vpop.f32.mrb[0].mxu0
        %v12105 = vadd.f32 %v12018, %v12104
        %v12106 = vpop.f32.mrb[0].mxu0
        %v12107 = vadd.f32 %v12018, %v12106
        %12108 = vdwg.mxu0
        %s12109 = scalar_lea.vmem %s1, 32
        %v12110 = vld [vmem:[%s12109] sm:$0xff]
        %v12111 = vld [vmem:[%s12109 + $0x8] sm:$0xff]
        %s12112 = scalar_lea.vmem %s2, 32
        %v12113 = vld [vmem:[%s12112] sm:$0xff]
        %v12114 = vld [vmem:[%s12112 + $0x8] sm:$0xff]
        %12116 = vset.pattern.permute.xlu0 0
        %12117 = vperm.xlu0 %12116, %v12113
        %v12118 = vpop.permute.xlu0 %12117
        %12121 = vset.pattern.permute.xlu0 0
        %12122 = vperm.xlu0 %12121, %v12114
        %v12123 = vpop.permute.xlu0 %12122
        %v12126 = vsel %vm11664, %v12110, 0
        %v12129 = vsel %vm11664, %v12111, 0
        %v12132 = vsel %vm11671, %v11614, 0
        %v12135 = vsel %vm11671, %v11649, 0
        %12137 = vmatprep.subr.mxu0 %v11645
        %12138 = vmatpush1.msra.mxu0 %v11610
        %12139 = vmatprep.subr.mxu0 %v11646
        %12140 = vmatpush1.msra.mxu0 %v11611
        %12141 = vmatprep.subr.mxu0 %v11647
        %12142 = vmatpush1.msra.mxu0 %v11612
        %12143 = vmatprep.subr.mxu0 %v11648
        %12144 = vmatpush1.msra.mxu0 %v11613
        %12145 = vmatprep.subr.mxu0 %v12135
        %12146 = vmatpush1.msra.mxu0 %v12132
        %12147 = vmatprep.subr.mxu0 0.0
        %12148 = vmatpush1.msra.mxu0 0.0
        %12149 = vmatprep.subr.mxu0 0.0
        %12150 = vmatpush1.msra.mxu0 0.0
        %12151 = vmatprep.subr.mxu0 0.0
        %12152 = vmatpush1.msra.mxu0 0.0
        %12153 = vmatprep.subr.mxu0 0.0
        %12154 = vmatpush1.msra.mxu0 0.0
        %12155 = vmatprep.subr.mxu0 0.0
        %12156 = vmatpush1.msra.mxu0 0.0
        %12157 = vmatprep.subr.mxu0 0.0
        %12158 = vmatpush1.msra.mxu0 0.0
        %12159 = vmatprep.subr.mxu0 0.0
        %12160 = vmatpush1.msra.mxu0 0.0
        %12161 = vmatprep.subr.mxu0 0.0
        %12162 = vmatpush1.msra.mxu0 0.0
        %12163 = vmatprep.subr.mxu0 0.0
        %12164 = vmatpush1.msra.mxu0 0.0
        %12165 = vmatprep.subr.mxu0 0.0
        %12166 = vmatpush1.msra.mxu0 0.0
        %12167 = vmatprep.subr.mxu0 0.0
        %12168 = vmatpush1.msra.mxu0 0.0
        %12169 = vmatprep.subr.mxu0 0.0
        %12170 = vmatpush1.msra.mxu0 0.0
        %12171 = vmatprep.subr.mxu0 0.0
        %12172 = vmatpush1.msra.mxu0 0.0
        %12173 = vmatprep.subr.mxu0 0.0
        %12174 = vmatpush1.msra.mxu0 0.0
        %12175 = vmatprep.subr.mxu0 0.0
        %12176 = vmatpush1.msra.mxu0 0.0
        %12177 = vmatprep.subr.mxu0 0.0
        %12178 = vmatpush1.msra.mxu0 0.0
        %12179 = vmatprep.subr.mxu0 0.0
        %12180 = vmatpush1.msra.mxu0 0.0
        %12181 = vmatprep.subr.mxu0 0.0
        %12182 = vmatpush1.msra.mxu0 0.0
        %12183 = vmatprep.subr.mxu0 0.0
        %12184 = vmatpush1.msra.mxu0 0.0
        %12185 = vmatprep.subr.mxu0 0.0
        %12186 = vmatpush1.msra.mxu0 0.0
        %12187 = vmatprep.subr.mxu0 0.0
        %12188 = vmatpush1.msra.mxu0 0.0
        %12189 = vmatprep.subr.mxu0 0.0
        %12190 = vmatpush1.msra.mxu0 0.0
        %12191 = vmatprep.subr.mxu0 0.0
        %12192 = vmatpush1.msra.mxu0 0.0
        %12193 = vmatprep.subr.mxu0 0.0
        %12194 = vmatpush1.msra.mxu0 0.0
        %12195 = vmatprep.subr.mxu0 0.0
        %12196 = vmatpush1.msra.mxu0 0.0
        %12197 = vmatprep.subr.mxu0 0.0
        %12198 = vmatpush1.msra.mxu0 0.0
        %12199 = vmatprep.subr.mxu0 0.0
        %12200 = vmatpush1.msra.mxu0 0.0
        %12201 = vmatprep.mubr.f32.mxu0 0.0
        %12202 = vmatmul.mubr.f32.gmra.mrb[0].mxu0 %v12126
        %v12203 = vpop.f32.mrb[0].mxu0
        %v12204 = vadd.f32 %v12118, %v12203
        %v12205 = vpop.f32.mrb[0].mxu0
        %v12206 = vadd.f32 %v12118, %v12205
        %12207 = vmatprep.mubr.f32.mxu0 0.0
        %12208 = vmatmul.mubr.f32.gmra.mrb[0].mxu0 %v12129
        %v12209 = vpop.f32.mrb[0].mxu0
        %v12210 = vadd.f32 %v12123, %v12209
        %v12211 = vpop.f32.mrb[0].mxu0
        %v12212 = vadd.f32 %v12123, %v12211
        %12213 = vdwg.mxu0
        %v12214 = vadd.f32 %v11763, %v11765
        %v12215 = vadd.f32 %v12214, %v11840
        %v12216 = vadd.f32 %v12215, %v11842
        %v12217 = vadd.f32 %v12216, %v11917
        %v12218 = vadd.f32 %v12217, %v11919
        %v12219 = vadd.f32 %v12218, %v11994
        %v12220 = vadd.f32 %v12219, %v11996
        %v12221 = vadd.f32 %v12220, %v12099
        %v12222 = vadd.f32 %v12221, %v12101
        %v12223 = vadd.f32 %v12222, %v12204
        %v12224 = vadd.f32 %v12223, %v12206
        %12225 = vadd.xlane.f32.xlu0 %v12224
        %v12226 = vpop.xlane.xlu0 %12225
        %v12227 = vadd.f32 %v11769, %v11771
        %v12228 = vadd.f32 %v12227, %v11846
        %v12229 = vadd.f32 %v12228, %v11848
        %v12230 = vadd.f32 %v12229, %v11923
        %v12231 = vadd.f32 %v12230, %v11925
        %v12232 = vadd.f32 %v12231, %v12000
        %v12233 = vadd.f32 %v12232, %v12002
        %v12234 = vadd.f32 %v12233, %v12105
        %v12235 = vadd.f32 %v12234, %v12107
        %v12236 = vadd.f32 %v12235, %v12210
        %v12237 = vadd.f32 %v12236, %v12212
        %12238 = vadd.xlane.f32.xlu0 %v12237
        %v12239 = vpop.xlane.xlu0 %12238
        %v12240 = vmul.f32 %v12226, 0.0006510417
        %v12241 = vmul.f32 %v12239, 0.0006510417
        %v12242 = vld [vmem:[%s3] sm:$0xff]
        %v12243 = vld [vmem:[%s3 + $0x8] sm:$0xff]
        %v12244 = vmul.f32 %v12242, %v12240
        %v12245 = vmul.f32 %v12243, %v12241
        %vm12246 = vcmask 15360
        %v12247 = vsel %vm12246, %v12244, 0.0
        %v12248 = vsel %vm12246, %v12245, 0.0
        %v12249 = vadd.f32 %v12247, %v12248
        %v12250 = vrot.slane %v12249, 4
        %v12251 = vadd.f32 %v12249, %v12250
        %v12252 = vrot.slane %v12251, 2
        %v12253 = vadd.f32 %v12251, %v12252
        %v12254 = vrot.slane %v12253, 1
        %v12255 = vadd.f32 %v12253, %v12254
        %v12256 = vmax.f32 %v12255, 0.0
        %v12257 = vld [vmem:[%s4] sm:$0xff]
        %v12258 = vld [vmem:[%s4 + $0x8] sm:$0xff]
        %v12259 = vmul.f32 %v12257, %v12256
        %v12260 = vmul.f32 %v12258, %v12256
        %v12261 = vsel %vm12246, %v12259, 0.0
        %12262 = vadd.xlane.f32.xlu0 %v12261
        %v12263 = vpop.xlane.xlu0 %12262
        %v12264 = vsel %vm12246, %v12260, 0.0
        %12265 = vadd.xlane.f32.xlu0 %v12264
        %v12266 = vpop.xlane.xlu0 %12265
        %v12267 = vxor.u32 %v12263, 2147483648
        %v12268 = vxor.u32 %v12266, 2147483648
        %v12269 = vmul.f32 %v12267, 1.442695
        %v12270 = vpow.pop %v12269
        %v12271 = vmul.f32 %v12268, 1.442695
        %v12272 = vpow.pop %v12271
        %v12273 = vadd.f32 %v12270, 1.0
        %v12274 = vadd.f32 %v12272, 1.0
        %v12275 = vrcp.pop %v12273
        %v12276 = vmul.f32 1.0, %v12275
        %v12277 = vrcp.pop %v12274
        %v12278 = vmul.f32 1.0, %v12277
        %v12279 = vmul.f32 %v11763, %v12276
        %v12280 = vmul.f32 %v11765, %v12276
        %v12281 = vmul.f32 %v11840, %v12276
        %v12282 = vmul.f32 %v11842, %v12276
        %v12283 = vmul.f32 %v11917, %v12276
        %v12284 = vmul.f32 %v11919, %v12276
        %v12285 = vmul.f32 %v11994, %v12276
        %v12286 = vmul.f32 %v11996, %v12276
        %v12287 = vmul.f32 %v12099, %v12276
        %v12288 = vmul.f32 %v12101, %v12276
        %v12289 = vmul.f32 %v12204, %v12276
        %v12290 = vmul.f32 %v12206, %v12276
        %v12291 = vmul.f32 %v11769, %v12278
        %v12292 = vmul.f32 %v11771, %v12278
        %v12293 = vmul.f32 %v11846, %v12278
        %v12294 = vmul.f32 %v11848, %v12278
        %v12295 = vmul.f32 %v11923, %v12278
        %v12296 = vmul.f32 %v11925, %v12278
        %v12297 = vmul.f32 %v12000, %v12278
        %v12298 = vmul.f32 %v12002, %v12278
        %v12299 = vmul.f32 %v12105, %v12278
        %v12300 = vmul.f32 %v12107, %v12278
        %v12301 = vmul.f32 %v12210, %v12278
        %v12302 = vmul.f32 %v12212, %v12278
        %12303 = vst [vmem:[%s244] sm:$0xff] %v12279
        %12304 = vst [vmem:[%s244 + $0x8] sm:$0xff] %v12280
        %12305 = vst [vmem:[%s244 + $0x10] sm:$0xff] %v12281
        %12306 = vst [vmem:[%s244 + $0x18] sm:$0xff] %v12282
        %12307 = vst [vmem:[%s244 + $0x20] sm:$0xff] %v12283
        %12308 = vst [vmem:[%s244 + $0x28] sm:$0xff] %v12284
        %12309 = vst [vmem:[%s244 + $0x30] sm:$0xff] %v12285
        %12310 = vst [vmem:[%s244 + $0x38] sm:$0xff] %v12286
        %12311 = vst [vmem:[%s244 + $0x40] sm:$0xff] %v12287
        %12312 = vst [vmem:[%s244 + $0x48] sm:$0xff] %v12288
        %12313 = vst [vmem:[%s244 + $0x50] sm:$0xff] %v12289
        %12314 = vst [vmem:[%s244 + $0x58] sm:$0xff] %v12290
        %12315 = vst [vmem:[%s244 + $0x60] sm:$0xff] %v12291
        %12316 = vst [vmem:[%s244 + $0x68] sm:$0xff] %v12292
        %12317 = vst [vmem:[%s244 + $0x70] sm:$0xff] %v12293
        %12318 = vst [vmem:[%s244 + $0x78] sm:$0xff] %v12294
        %12319 = vst [vmem:[%s244 + $0x80] sm:$0xff] %v12295
        %12320 = vst [vmem:[%s244 + $0x88] sm:$0xff] %v12296
        %12321 = vst [vmem:[%s244 + $0x90] sm:$0xff] %v12297
        %12322 = vst [vmem:[%s244 + $0x98] sm:$0xff] %v12298
        %12323 = vst [vmem:[%s244 + $0xa0] sm:$0xff] %v12299
        %12324 = vst [vmem:[%s244 + $0xa8] sm:$0xff] %v12300
        %12325 = vst [vmem:[%s244 + $0xb0] sm:$0xff] %v12301
        %12326 = vst [vmem:[%s244 + $0xb8] sm:$0xff] %v12302
        %p12327 = scmp.lt.s32.totalorder %s19, 1
        %s12328 = scalar_select %p12327, %s19, 1
        %s12329 = smul.addr %s12328, 24
        %s12330 = smul.addr %s12329, 8
        %s12331 = scalar_lea.vmem %s5, %s12330
        // Predicated region
        $region45: #{cubesphere_conv2d_forward.1} parent=39 // pred_check
          %p12332 = pneg %p147
        $region46: #{cubesphere_conv2d_forward.1} parent=39 // pred_check_branch
          %12334 = sbr.rel (%p12332) target = $region48
        $region47: #{cubesphere_conv2d_forward.1} parent=39 // pred_region
          _
        $region48: #{cubesphere_conv2d_forward.1} parent=39 // pred_fallthru
          _
      $region40: #{cubesphere_conv2d_forward.1} parent=5 // pred_fallthru
        _
      %p12335 = scmp.le.s32.totalorder 2, %s14
      // Predicated region
      $region49: #{cubesphere_conv2d_forward.1} parent=5 // pred_check
        %p12336 = pneg %p12335
      $region50: #{cubesphere_conv2d_forward.1} parent=5 // pred_check_branch
        %12338 = sbr.rel (%p12336) target = $region52
      $region51: #{cubesphere_conv2d_forward.1} parent=5 // pred_region
        %s12339 = ssub.s32 %s14, 2
        // Predicated region
        $region53: #{cubesphere_conv2d_forward.1} parent=51 // pred_check
          %p12340 = pneg %p153
        $region54: #{cubesphere_conv2d_forward.1} parent=51 // pred_check_branch
          %12342 = sbr.rel (%p12340) target = $region56
        $region55: #{cubesphere_conv2d_forward.1} parent=51 // pred_region
          %p12343 = scmp.lt.s32.totalorder %s20, 1
          %s12344 = scalar_select %p12343, %s20, 1
          %s12345 = smul.addr %s12344, 24
          %s12346 = smul.addr %s12345, 8
          %s12347 = scalar_lea.vmem %s5, %s12346
        $region56: #{cubesphere_conv2d_forward.1} parent=51 // pred_fallthru
          _
      $region52: #{cubesphere_conv2d_forward.1} parent=5 // pred_fallthru
        _
    $region6: #{cubesphere_conv2d_forward.1} parent=1 // loop_footer
      %s18 = sadd.s32 1, %s14
    $region7: #{cubesphere_conv2d_forward.1} parent=1 // loop_footer_branch
      %13 = sbr.rel target = $region3
    $region8: #{cubesphere_conv2d_forward.1} parent=1 // loop_exit
      _
    %12348 = vsyncpa [#allocation3], 1
    %s12349 = scalar_lea.sflag [#allocation3], 1
    %12350 = vsyncpa %s12349, 1

</llo_original>
